<compile_context>
chip_gen: v5e
topology: v5e:2x2
jax: 0.10.0
libtpu: 0.0.40
codegen_flags: <defaults>
</compile_context>

<pallas_src>
import jax
import jax.numpy as jnp
from jax.experimental import pallas as pl
from jax.experimental.pallas import tpu as pltpu

NUM_CLASSES = 4
CLS_PAD = 128               # lane-dense classifier output width
LSTM_HIDDEN = 128           # lstm_hidden_size
CNN_FEAT = 2048             # ResNet50 feature dim
FOG_IN, FOG_HID, FOG_OUT = 4, 32, 64
FOG_PAD = 128               # fog-encoder widths padded to full lanes
LIDAR_IN = 64               # LSTM input_size
IMG_CH = 3
CONV_CH = 64
K_PAD = 32                  # padded im2col contraction dim (3*3*3=27 -> 32)
FUSE_HID1, FUSE_HID2 = 512, 128

_VMEM_LIMIT = 32 << 20


def _vmem_spec():
    # whole array resident in VMEM (small, grid-less operands)
    return pl.BlockSpec(memory_space=pltpu.MemorySpace.VMEM)


def _round_up(x, m):
    return ((x + m - 1) // m) * m


# ----------------------------------------------------------------------------
# CNN backbone (stand-in for ResNet50 feature extractor -> 2048 features)
# conv3x3(pad=1) -> ReLU -> global-avg-pool -> Linear(64, 2048)
# Gridded over the patch axis with an adaptive tile; pooled sum accumulated in
# a VMEM scratch (pl.when init / finalize).
# ----------------------------------------------------------------------------
def _make_cnn_kernel(true_patches, pad_patches):
    inv_p = 1.0 / float(true_patches)

    def kernel(p_ref, wc_ref, bc_ref, wp_ref, bp_ref, out_ref, acc_ref):
        @pl.when(pl.program_id(0) == 0)
        def _():
            acc_ref[...] = jnp.zeros_like(acc_ref)

        B, TP, K = p_ref.shape
        # Flattened single-stream matmul: (B*TP, 32) @ (32, 64)
        x = p_ref[...].reshape(B * TP, K)
        feat = jnp.dot(x, wc_ref[...],
                       preferred_element_type=jnp.float32) + bc_ref[...]
        feat = jnp.maximum(feat, 0.0)                      # ReLU
        acc_ref[...] += jnp.sum(feat.reshape(B, TP, CONV_CH), axis=1)

        @pl.when(pl.program_id(0) == pl.num_programs(0) - 1)
        def _():
            pooled_sum = acc_ref[...]
            if pad_patches:
                # padded (all-zero) patches contribute relu(bias) each; remove.
                pooled_sum = pooled_sum - float(pad_patches) * jnp.maximum(
                    bc_ref[...], 0.0)
            pooled = (pooled_sum * inv_p).astype(jnp.bfloat16)      # GAP
            out_ref[...] = (jnp.dot(pooled, wp_ref[...],
                                    preferred_element_type=jnp.float32)
                            + bp_ref[...]).astype(out_ref.dtype)

    return kernel


def cnn_backbone(images, conv_w, conv_b, proj_w, proj_b):
    # TODO(synk): the pretrained ResNet50 backbone is not reproduced; stand-in
    # is conv3x3(pad=1) -> ReLU -> global-avg-pool -> Linear -> 2048 features.
    B, C, H, W = images.shape
    P = H * W
    xp = jnp.pad(images, ((0, 0), (0, 0), (1, 1), (1, 1)))
    cols = [xp[:, :, di:di + H, dj:dj + W] for di in range(3) for dj in range(3)]
    patches = jnp.stack(cols, axis=2)                        # (B, C, 9, H, W)
    patches = patches.transpose(0, 3, 4, 1, 2).reshape(B, P, C * 9)
    patches = jnp.pad(patches, ((0, 0), (0, 0), (0, K_PAD - C * 9)))
    patches = patches.astype(jnp.bfloat16)
    # TODO(synk): im2col is still materialized by XLA; a fully in-kernel
    # version (9 shifted reads of an NHWC tile) would remove this HBM trip.

    TP = min(_round_up(P, 128), 2048)                        # adaptive tile
    P_pad = _round_up(P, TP)
    if P_pad != P:
        patches = jnp.pad(patches, ((0, 0), (0, P_pad - P), (0, 0)))

    return pl.pallas_call(
        _make_cnn_kernel(P, P_pad - P),
        out_shape=jax.ShapeDtypeStruct((B, CNN_FEAT), jnp.bfloat16),
        grid=(P_pad // TP,),
        in_specs=[
            pl.BlockSpec((B, TP, K_PAD), lambda p: (0, p, 0)),
            pl.BlockSpec((K_PAD, CONV_CH), lambda p: (0, 0)),
            pl.BlockSpec((1, CONV_CH), lambda p: (0, 0)),
            pl.BlockSpec((CONV_CH, CNN_FEAT), lambda p: (0, 0)),
            pl.BlockSpec((1, CNN_FEAT), lambda p: (0, 0)),
        ],
        out_specs=pl.BlockSpec((B, CNN_FEAT), lambda p: (0, 0)),
        scratch_shapes=[pltpu.VMEM((B, CONV_CH), jnp.float32)],
        compiler_params=pltpu.CompilerParams(
            dimension_semantics=("arbitrary",),
            vmem_limit_bytes=_VMEM_LIMIT),
    )(patches, conv_w, conv_b, proj_w, proj_b)


# ----------------------------------------------------------------------------
# Fused kernel: 2-layer bidirectional LSTM (PyTorch gate order i, f, g, o)
# + fog encoder + fusion MLP + classifier, all in one pallas_call.
# ----------------------------------------------------------------------------
def _fused_lstm_head_kernel(
        x_ref, cnn_ref, fog_ref,
        wih1_ref, b1f_ref, b1b_ref, whh1_ref,
        wih2f_ref, b2f_ref, whh2f_ref, wih2b_ref, b2b_ref,
        fw1_ref, fb1_ref, fw2_ref, fb2_ref,
        w1c_ref, w1l_ref, w1f_ref, fusb1_ref, w2_ref, fusb2_ref,
        wcl_ref, bcl_ref,
        out_ref,
        xp1f_sc, xp1b_sc, xp2f_sc, seq1_sc,
        hcat1_sc, c1f_sc, c1b_sc, h2f_sc, c2f_sc):
    bf16 = jnp.bfloat16
    T, B, D = x_ref.shape
    H = LSTM_HIDDEN

    def lstm_gates(g):
        i = jax.nn.sigmoid(g[:, 0:H])
        f = jax.nn.sigmoid(g[:, H:2 * H])
        gg = jnp.tanh(g[:, 2 * H:3 * H])
        o = jax.nn.sigmoid(g[:, 3 * H:4 * H])
        return i, f, gg, o

    # ---- layer 1: hoisted, flattened input projection (one matmul, both dirs)
    x_flat = x_ref[...].reshape(T * B, D).astype(bf16)
    xp1 = jnp.dot(x_flat, wih1_ref[...], preferred_element_type=jnp.float32)
    xp1f_sc[...] = (xp1[:, 0:4 * H] + b1f_ref[...]).reshape(T, B, 4 * H)
    xp1b_sc[...] = (xp1[:, 4 * H:8 * H] + b1b_ref[...]).reshape(T, B, 4 * H)

    hcat1_sc[...] = jnp.zeros_like(hcat1_sc)
    c1f_sc[...] = jnp.zeros_like(c1f_sc)
    c1b_sc[...] = jnp.zeros_like(c1b_sc)

    def l1_step(t, carry):
        # One block-diagonal W_hh matmul drives both directions (K = 2H = 256).
        g_rec = jnp.dot(hcat1_sc[...], whh1_ref[...],
                        preferred_element_type=jnp.float32)       # (B, 8H)
        tb = T - 1 - t
        gf = g_rec[:, 0:4 * H] + xp1f_sc[t]
        gb = g_rec[:, 4 * H:8 * H] + xp1b_sc[tb]
        i_f, f_f, g_f, o_f = lstm_gates(gf)
        c_f = f_f * c1f_sc[...] + i_f * g_f
        h_f = o_f * jnp.tanh(c_f)
        i_b, f_b, g_b, o_b = lstm_gates(gb)
        c_b = f_b * c1b_sc[...] + i_b * g_b
        h_b = o_b * jnp.tanh(c_b)
        c1f_sc[...] = c_f
        c1b_sc[...] = c_b
        # h state lives in bf16 so the next step's matmul LHS needs no repack.
        hcat1_sc[...] = jnp.concatenate(
            [h_f.astype(bf16), h_b.astype(bf16)], axis=-1)
        seq1_sc[t, :, 0:H] = h_f
        seq1_sc[tb, :, H:2 * H] = h_b
        return carry

    jax.lax.fori_loop(0, T, l1_step, 0)
    # TODO(synk): inter-layer dropout(0.2) omitted (inference mode).

    # ---- layer 2 (forward): hoisted, flattened input projection ----
    s_flat = seq1_sc[...].reshape(T * B, 2 * H).astype(bf16)
    xp2f = (jnp.dot(s_flat, wih2f_ref[...], preferred_element_type=jnp.float32)
            + b2f_ref[...])
    xp2f_sc[...] = xp2f.reshape(T, B, 4 * H)

    h2f_sc[...] = jnp.zeros_like(h2f_sc)
    c2f_sc[...] = jnp.zeros_like(c2f_sc)

    def l2_step(t, carry):
        g = jnp.dot(h2f_sc[...], whh2f_ref[...],
                    preferred_element_type=jnp.float32) + xp2f_sc[t]
        i, f, gg, o = lstm_gates(g)
        c = f * c2f_sc[...] + i * gg
        h = o * jnp.tanh(c)
        c2f_sc[...] = c
        h2f_sc[...] = h.astype(bf16)
        return carry

    jax.lax.fori_loop(0, T, l2_step, 0)

    # Layer-2 backward hidden at output index T-1 == one step from zero state
    # (the reference model only consumes lstm_out[:, -1, :]); h_prev@W_hh == 0.
    gb2 = (jnp.dot(seq1_sc[T - 1].astype(bf16), wih2b_ref[...],
                   preferred_element_type=jnp.float32) + b2b_ref[...])
    i_b2, _, g_b2, o_b2 = lstm_gates(gb2)
    h_b2 = o_b2 * jnp.tanh(i_b2 * g_b2)

    lstm_feat = jnp.concatenate([h2f_sc[...], h_b2.astype(bf16)], axis=-1)

    # ---- head: fog encoder (128-lane padded) + fusion MLP + classifier ----
    fog_h = jnp.maximum(
        jnp.dot(fog_ref[...].astype(bf16), fw1_ref[...],
                preferred_element_type=jnp.float32) + fb1_ref[...], 0.0)
    fog_e = jnp.maximum(
        jnp.dot(fog_h.astype(bf16), fw2_ref[...],
                preferred_element_type=jnp.float32) + fb2_ref[...], 0.0)
    h1 = (jnp.dot(cnn_ref[...], w1c_ref[...], preferred_element_type=jnp.float32)
          + jnp.dot(lstm_feat, w1l_ref[...], preferred_element_type=jnp.float32)
          + jnp.dot(fog_e.astype(bf16), w1f_ref[...],
                    preferred_element_type=jnp.float32)
          + fusb1_ref[...])
    h1 = jnp.maximum(h1, 0.0)                 # Dropout(0.3) -> identity (eval)
    h2 = jnp.maximum(
        jnp.dot(h1.astype(bf16), w2_ref[...],
                preferred_element_type=jnp.float32) + fusb2_ref[...], 0.0)
    # Dropout(0.2) -> identity (eval)
    out_ref[...] = (jnp.dot(h2.astype(bf16), wcl_ref[...],
                            preferred_element_type=jnp.float32) + bcl_ref[...])


# ----------------------------------------------------------------------------
# Parameters & forward
# ----------------------------------------------------------------------------
def init_params(key):
    ks = jax.random.split(key, 40)
    it = iter(ks)

    def nrm(shape, scale=0.05):
        return (scale * jax.random.normal(next(it), shape)).astype(jnp.float32)

    H = LSTM_HIDDEN
    p = {}

    # --- CNN stand-in ---
    conv_w = nrm((CONV_CH, IMG_CH, 3, 3))
    wc = conv_w.reshape(CONV_CH, IMG_CH * 9).T               # (27, 64)
    wc = jnp.pad(wc, ((0, K_PAD - IMG_CH * 9), (0, 0)))      # (32, 64)
    p['conv_w'] = wc.astype(jnp.bfloat16)
    p['conv_b'] = nrm((1, CONV_CH))
    p['proj_w'] = nrm((CONV_CH, CNN_FEAT)).astype(jnp.bfloat16)
    p['proj_b'] = nrm((1, CNN_FEAT))

    # --- LSTM layer 1 (bidirectional, fused) ---
    wih1_f = nrm((LIDAR_IN, 4 * H))
    wih1_b = nrm((LIDAR_IN, 4 * H))
    p['wih1_cat'] = jnp.concatenate([wih1_f, wih1_b], axis=1).astype(jnp.bfloat16)
    p['b1f'] = nrm((1, 4 * H))                    # b_ih + b_hh folded
    p['b1b'] = nrm((1, 4 * H))
    whh1_f = nrm((H, 4 * H))
    whh1_b = nrm((H, 4 * H))
    bd = jnp.zeros((2 * H, 8 * H), jnp.float32)   # block-diagonal W_hh
    bd = bd.at[0:H, 0:4 * H].set(whh1_f)
    bd = bd.at[H:2 * H, 4 * H:8 * H].set(whh1_b)
    p['whh1_bd'] = bd.astype(jnp.bfloat16)

    # --- LSTM layer 2 ---
    p['wih2_f'] = nrm((2 * H, 4 * H)).astype(jnp.bfloat16)
    p['b2f'] = nrm((1, 4 * H))
    p['whh2_f'] = nrm((H, 4 * H)).astype(jnp.bfloat16)
    p['wih2_b'] = nrm((2 * H, 4 * H)).astype(jnp.bfloat16)
    p['b2b'] = nrm((1, 4 * H))
    # whh2_b not needed: last-layer backward output at index T-1 starts from a
    # zero hidden state (only lstm_out[:, -1, :] is consumed downstream).

    # --- fog encoder (padded to 128 lanes everywhere) ---
    fw1 = nrm((FOG_IN, FOG_HID))
    p['fog_w1'] = jnp.pad(fw1, ((0, FOG_PAD - FOG_IN),
                                (0, FOG_PAD - FOG_HID))).astype(jnp.bfloat16)
    p['fog_b1'] = jnp.pad(nrm((1, FOG_HID)), ((0, 0), (0, FOG_PAD - FOG_HID)))
    fw2 = nrm((FOG_HID, FOG_OUT))
    p['fog_w2'] = jnp.pad(fw2, ((0, FOG_PAD - FOG_HID),
                                (0, FOG_PAD - FOG_OUT))).astype(jnp.bfloat16)
    p['fog_b2'] = jnp.pad(nrm((1, FOG_OUT)), ((0, 0), (0, FOG_PAD - FOG_OUT)))

    # --- fusion MLP: fus_w1 pre-split into column blocks (== cat(...) @ W1) ---
    p['fus_w1_cnn'] = nrm((CNN_FEAT, FUSE_HID1)).astype(jnp.bfloat16)
    p['fus_w1_lstm'] = nrm((2 * H, FUSE_HID1)).astype(jnp.bfloat16)
    w1f = nrm((FOG_OUT, FUSE_HID1))
    p['fus_w1_fog'] = jnp.pad(w1f, ((0, FOG_PAD - FOG_OUT),
                                    (0, 0))).astype(jnp.bfloat16)
    p['fus_b1'] = nrm((1, FUSE_HID1))
    p['fus_w2'] = nrm((FUSE_HID1, FUSE_HID2)).astype(jnp.bfloat16)
    p['fus_b2'] = nrm((1, FUSE_HID2))

    cls_w = nrm((FUSE_HID2, NUM_CLASSES))
    p['cls_w'] = jnp.pad(cls_w, ((0, 0), (0, CLS_PAD - NUM_CLASSES))
                         ).astype(jnp.bfloat16)
    p['cls_b'] = jnp.pad(nrm((1, NUM_CLASSES)),
                         ((0, 0), (0, CLS_PAD - NUM_CLASSES)))
    return p


@jax.jit
def improved_hybrid_forward(params, images, lidar_sequences, fog_features):
    B = images.shape[0]
    B_pad = max(8, _round_up(B, 8))              # pad batch to sublane width
    pad_b = B_pad - B
    if pad_b:
        images = jnp.pad(images, ((0, pad_b), (0, 0), (0, 0), (0, 0)))
        lidar_sequences = jnp.pad(lidar_sequences, ((0, pad_b), (0, 0), (0, 0)))
        fog_features = jnp.pad(fog_features, ((0, pad_b), (0, 0)))

    cnn_features = cnn_backbone(images, params['conv_w'], params['conv_b'],
                                params['proj_w'], params['proj_b'])   # (Bp,2048)

    x_tm = jnp.transpose(lidar_sequences, (1, 0, 2))       # time-major (T,Bp,64)
    T = x_tm.shape[0]
    H = LSTM_HIDDEN
    fog_pad = jnp.pad(fog_features, ((0, 0), (0, FOG_PAD - FOG_IN)))

    logits_pad = pl.pallas_call(
        _fused_lstm_head_kernel,
        out_shape=jax.ShapeDtypeStruct((B_pad, CLS_PAD), jnp.float32),
        in_specs=[_vmem_spec()] * 24,
        out_specs=_vmem_spec(),
        scratch_shapes=[
            pltpu.VMEM((T, B_pad, 4 * H), jnp.float32),   # layer-1 fwd x-proj
            pltpu.VMEM((T, B_pad, 4 * H), jnp.float32),   # layer-1 bwd x-proj
            pltpu.VMEM((T, B_pad, 4 * H), jnp.float32),   # layer-2 fwd x-proj
            pltpu.VMEM((T, B_pad, 2 * H), jnp.float32),   # layer-1 sequence
            pltpu.VMEM((B_pad, 2 * H), jnp.bfloat16),     # layer-1 h_cat (bf16)
            pltpu.VMEM((B_pad, H), jnp.float32),          # layer-1 c fwd
            pltpu.VMEM((B_pad, H), jnp.float32),          # layer-1 c bwd
            pltpu.VMEM((B_pad, H), jnp.bfloat16),         # layer-2 h fwd (bf16)
            pltpu.VMEM((B_pad, H), jnp.float32),          # layer-2 c fwd
        ],
        compiler_params=pltpu.CompilerParams(vmem_limit_bytes=_VMEM_LIMIT),
    )(x_tm, cnn_features, fog_pad,
      params['wih1_cat'], params['b1f'], params['b1b'], params['whh1_bd'],
      params['wih2_f'], params['b2f'], params['whh2_f'],
      params['wih2_b'], params['b2b'],
      params['fog_w1'], params['fog_b1'], params['fog_w2'], params['fog_b2'],
      params['fus_w1_cnn'], params['fus_w1_lstm'], params['fus_w1_fog'],
      params['fus_b1'], params['fus_w2'], params['fus_b2'],
      params['cls_w'], params['cls_b'])
    return logits_pad[:B, :NUM_CLASSES]


if __name__ == "__main__":
    key = jax.random.PRNGKey(0)
    pk, k1, k2, k3 = jax.random.split(key, 4)
    params = init_params(pk)

    batch, seq_len = 2, 8
    images = jax.random.normal(k1, (batch, IMG_CH, 16, 16), jnp.float32)
    lidar_sequences = jax.random.normal(k2, (batch, seq_len, LIDAR_IN), jnp.float32)
    fog_features = jax.random.normal(k3, (batch, FOG_IN), jnp.float32)

    out = improved_hybrid_forward(params, images, lidar_sequences, fog_features)
    jax.block_until_ready(out)
    assert out.shape == (batch, NUM_CLASSES)
    assert bool(jnp.all(jnp.isfinite(out)))
    print("KERNEL_OK")
</pallas_src>

<mosaic_0001>
module attributes {stable_mosaic.version = 11 : i64} {
  func.func @kernel(%arg0: i32, %arg1: memref<8x256x32xbf16, #tpu.memory_space<vmem>>, %arg2: memref<32x64xbf16, #tpu.memory_space<vmem>>, %arg3: memref<1x64xf32, #tpu.memory_space<vmem>>, %arg4: memref<64x2048xbf16, #tpu.memory_space<vmem>>, %arg5: memref<1x2048xf32, #tpu.memory_space<vmem>>, %arg6: memref<8x2048xbf16, #tpu.memory_space<vmem>>, %arg7: memref<8x64xf32, #tpu.memory_space<vmem>>) attributes {dimension_semantics = [#tpu.dimension_semantics<arbitrary>], iteration_bounds = array<i64: 1>, scalar_prefetch = 0 : i64, scratch_operands = 1 : i64, tpu.core_type = #tpu.core_type<tc>, window_params = [{transform_indices = @transform_0, window_bounds = array<i64: 8, 256, 32>}, {pipeline_mode = #tpu.pipeline_mode<synchronous>, transform_indices = @transform_1, window_bounds = array<i64: 32, 64>}, {pipeline_mode = #tpu.pipeline_mode<synchronous>, transform_indices = @transform_2, window_bounds = array<i64: 1, 64>}, {pipeline_mode = #tpu.pipeline_mode<synchronous>, transform_indices = @transform_3, window_bounds = array<i64: 64, 2048>}, {pipeline_mode = #tpu.pipeline_mode<synchronous>, transform_indices = @transform_4, window_bounds = array<i64: 1, 2048>}, {pipeline_mode = #tpu.pipeline_mode<synchronous>, transform_indices = @transform_5, window_bounds = array<i64: 8, 2048>}]} {
    %c0_i32 = arith.constant 0 : i32
    %0 = arith.cmpi eq, %arg0, %c0_i32 : i32
    %1 = arith.extui %0 : i1 to i32
    %c0_i32_0 = arith.constant 0 : i32
    %2 = arith.cmpi ne, %1, %c0_i32_0 : i32
    scf.if %2 {
      %cst_15 = arith.constant 0.000000e+00 : f32
      %20 = vector.broadcast %cst_15 : f32 to vector<8x64xf32>
      %c0_16 = arith.constant 0 : index
      %c0_17 = arith.constant 0 : index
      %21 = vector.load %arg7[%c0_16, %c0_17] : memref<8x64xf32, #tpu.memory_space<vmem>>, vector<8x64xf32>
      tpu.vector_store %arg7[%c0_16, %c0_17], %20 {strides = array<i32>} : memref<8x64xf32, #tpu.memory_space<vmem>>, vector<8x64xf32>,
    } else {
    }
    %c0 = arith.constant 0 : index
    %c0_1 = arith.constant 0 : index
    %c0_2 = arith.constant 0 : index
    %3 = vector.load %arg1[%c0, %c0_1, %c0_2] : memref<8x256x32xbf16, #tpu.memory_space<vmem>>, vector<8x256x32xbf16>
    %4 = vector.shape_cast %3 : vector<8x256x32xbf16> to vector<2048x32xbf16>
    %c0_3 = arith.constant 0 : index
    %c0_4 = arith.constant 0 : index
    %5 = vector.load %arg2[%c0_3, %c0_4] : memref<32x64xbf16, #tpu.memory_space<vmem>>, vector<32x64xbf16>
    %cst = arith.constant dense<0.000000e+00> : vector<2048x64xf32>
    %6 = tpu.matmul %4, %5, %cst {dimension_numbers = #tpu.dot_dimension_numbers<[1], [0], [0], [1], [0, 0, 1, 1], [], []>} : vector<2048x32xbf16>, vector<32x64xbf16>, vector<2048x64xf32> -> vector<2048x64xf32>
    %c0_5 = arith.constant 0 : index
    %c0_6 = arith.constant 0 : index
    %7 = vector.load %arg3[%c0_5, %c0_6] : memref<1x64xf32, #tpu.memory_space<vmem>>, vector<1x64xf32>
    %8 = vector.broadcast %7 : vector<1x64xf32> to vector<2048x64xf32>
    %9 = arith.addf %6, %8 : vector<2048x64xf32>
    %cst_7 = arith.constant 0.000000e+00 : f32
    %10 = vector.broadcast %cst_7 : f32 to vector<2048x64xf32>
    %11 = arith.maximumf %9, %10 : vector<2048x64xf32>
    %c0_8 = arith.constant 0 : index
    %c0_9 = arith.constant 0 : index
    %12 = vector.load %arg7[%c0_8, %c0_9] : memref<8x64xf32, #tpu.memory_space<vmem>>, vector<8x64xf32>
    %13 = vector.shape_cast %11 : vector<2048x64xf32> to vector<8x256x64xf32>
    %cst_10 = arith.constant dense<0.000000e+00> : vector<8x64xf32>
    %14 = vector.multi_reduction <add>, %13, %cst_10 [1] : vector<8x256x64xf32> to vector<8x64xf32>
    %15 = arith.addf %12, %14 : vector<8x64xf32>
    %c0_11 = arith.constant 0 : index
    %c0_12 = arith.constant 0 : index
    %16 = vector.load %arg7[%c0_11, %c0_12] : memref<8x64xf32, #tpu.memory_space<vmem>>, vector<8x64xf32>
    tpu.vector_store %arg7[%c0_11, %c0_12], %15 {strides = array<i32>} : memref<8x64xf32, #tpu.memory_space<vmem>>, vector<8x64xf32>,
    %c0_i32_13 = arith.constant 0 : i32
    %17 = arith.cmpi eq, %arg0, %c0_i32_13 : i32
    %18 = arith.extui %17 : i1 to i32
    %c0_i32_14 = arith.constant 0 : i32
    %19 = arith.cmpi ne, %18, %c0_i32_14 : i32
    scf.if %19 {
      %c0_15 = arith.constant 0 : index
      %c0_16 = arith.constant 0 : index
      %20 = vector.load %arg7[%c0_15, %c0_16] : memref<8x64xf32, #tpu.memory_space<vmem>>, vector<8x64xf32>
      %cst_17 = arith.constant 3.906250e-03 : f32
      %21 = vector.broadcast %cst_17 : f32 to vector<8x64xf32>
      %22 = arith.mulf %20, %21 : vector<8x64xf32>
      %23 = arith.truncf %22 : vector<8x64xf32> to vector<8x64xbf16>
      %c0_18 = arith.constant 0 : index
      %c0_19 = arith.constant 0 : index
      %24 = vector.load %arg4[%c0_18, %c0_19] : memref<64x2048xbf16, #tpu.memory_space<vmem>>, vector<64x2048xbf16>
      %cst_20 = arith.constant dense<0.000000e+00> : vector<8x2048xf32>
      %25 = tpu.matmul %23, %24, %cst_20 {dimension_numbers = #tpu.dot_dimension_numbers<[1], [0], [0], [1], [0, 0, 1, 1], [], []>} : vector<8x64xbf16>, vector<64x2048xbf16>, vector<8x2048xf32> -> vector<8x2048xf32>
      %c0_21 = arith.constant 0 : index
      %c0_22 = arith.constant 0 : index
      %26 = vector.load %arg5[%c0_21, %c0_22] : memref<1x2048xf32, #tpu.memory_space<vmem>>, vector<1x2048xf32>
      %27 = vector.broadcast %26 : vector<1x2048xf32> to vector<8x2048xf32>
      %28 = arith.addf %25, %27 : vector<8x2048xf32>
      %29 = arith.truncf %28 : vector<8x2048xf32> to vector<8x2048xbf16>
      %c0_23 = arith.constant 0 : index
      %c0_24 = arith.constant 0 : index
      %30 = vector.load %arg6[%c0_23, %c0_24] : memref<8x2048xbf16, #tpu.memory_space<vmem>>, vector<8x2048xbf16>
      tpu.vector_store %arg6[%c0_23, %c0_24], %29 {strides = array<i32>} : memref<8x2048xbf16, #tpu.memory_space<vmem>>, vector<8x2048xbf16>,
    } else {
    }
    return
  }
  func.func @transform_0(%arg0: i32) -> (i32, i32, i32) {
    %c0_i32 = arith.constant 0 : i32
    %c0_i32_0 = arith.constant 0 : i32
    %c0_i32_1 = arith.constant 0 : i32
    return %c0_i32, %arg0, %c0_i32_0 : i32, i32, i32
  }
  func.func @transform_1(%arg0: i32) -> (i32, i32) {
    %c0_i32 = arith.constant 0 : i32
    %c0_i32_0 = arith.constant 0 : i32
    %c0_i32_1 = arith.constant 0 : i32
    return %c0_i32, %c0_i32_0 : i32, i32
  }
  func.func @transform_2(%arg0: i32) -> (i32, i32) {
    %c0_i32 = arith.constant 0 : i32
    %c0_i32_0 = arith.constant 0 : i32
    %c0_i32_1 = arith.constant 0 : i32
    return %c0_i32, %c0_i32_0 : i32, i32
  }
  func.func @transform_3(%arg0: i32) -> (i32, i32) {
    %c0_i32 = arith.constant 0 : i32
    %c0_i32_0 = arith.constant 0 : i32
    %c0_i32_1 = arith.constant 0 : i32
    return %c0_i32, %c0_i32_0 : i32, i32
  }
  func.func @transform_4(%arg0: i32) -> (i32, i32) {
    %c0_i32 = arith.constant 0 : i32
    %c0_i32_0 = arith.constant 0 : i32
    %c0_i32_1 = arith.constant 0 : i32
    return %c0_i32, %c0_i32_0 : i32, i32
  }
  func.func @transform_5(%arg0: i32) -> (i32, i32) {
    %c0_i32 = arith.constant 0 : i32
    %c0_i32_0 = arith.constant 0 : i32
    %c0_i32_1 = arith.constant 0 : i32
    return %c0_i32, %c0_i32_0 : i32, i32
  }
}

module attributes {stable_mosaic.version = 11 : i64} {
  func.func @_fused_lstm_head_kernel(%arg0: memref<8x8x64xf32, #tpu.memory_space<vmem>>, %arg1: memref<8x2048xbf16, #tpu.memory_space<vmem>>, %arg2: memref<8x128xf32, #tpu.memory_space<vmem>>, %arg3: memref<64x1024xbf16, #tpu.memory_space<vmem>>, %arg4: memref<1x512xf32, #tpu.memory_space<vmem>>, %arg5: memref<1x512xf32, #tpu.memory_space<vmem>>, %arg6: memref<256x1024xbf16, #tpu.memory_space<vmem>>, %arg7: memref<256x512xbf16, #tpu.memory_space<vmem>>, %arg8: memref<1x512xf32, #tpu.memory_space<vmem>>, %arg9: memref<128x512xbf16, #tpu.memory_space<vmem>>, %arg10: memref<256x512xbf16, #tpu.memory_space<vmem>>, %arg11: memref<1x512xf32, #tpu.memory_space<vmem>>, %arg12: memref<128x128xbf16, #tpu.memory_space<vmem>>, %arg13: memref<1x128xf32, #tpu.memory_space<vmem>>, %arg14: memref<128x128xbf16, #tpu.memory_space<vmem>>, %arg15: memref<1x128xf32, #tpu.memory_space<vmem>>, %arg16: memref<2048x512xbf16, #tpu.memory_space<vmem>>, %arg17: memref<256x512xbf16, #tpu.memory_space<vmem>>, %arg18: memref<128x512xbf16, #tpu.memory_space<vmem>>, %arg19: memref<1x512xf32, #tpu.memory_space<vmem>>, %arg20: memref<512x128xbf16, #tpu.memory_space<vmem>>, %arg21: memref<1x128xf32, #tpu.memory_space<vmem>>, %arg22: memref<128x128xbf16, #tpu.memory_space<vmem>>, %arg23: memref<1x128xf32, #tpu.memory_space<vmem>>, %arg24: memref<8x128xf32, #tpu.memory_space<vmem>>, %arg25: memref<8x8x512xf32, #tpu.memory_space<vmem>>, %arg26: memref<8x8x512xf32, #tpu.memory_space<vmem>>, %arg27: memref<8x8x512xf32, #tpu.memory_space<vmem>>, %arg28: memref<8x8x256xf32, #tpu.memory_space<vmem>>, %arg29: memref<8x256xbf16, #tpu.memory_space<vmem>>, %arg30: memref<8x128xf32, #tpu.memory_space<vmem>>, %arg31: memref<8x128xf32, #tpu.memory_space<vmem>>, %arg32: memref<8x128xbf16, #tpu.memory_space<vmem>>, %arg33: memref<8x128xf32, #tpu.memory_space<vmem>>) attributes {dimension_semantics = [], scalar_prefetch = 0 : i64, scratch_operands = 9 : i64, tpu.core_type = #tpu.core_type<tc>} {
    %c0 = arith.constant 0 : index
    %c0_0 = arith.constant 0 : index
    %c0_1 = arith.constant 0 : index
    %0 = vector.load %arg0[%c0, %c0_0, %c0_1] : memref<8x8x64xf32, #tpu.memory_space<vmem>>, vector<8x8x64xf32>
    %1 = vector.shape_cast %0 : vector<8x8x64xf32> to vector<64x64xf32>
    %2 = arith.truncf %1 : vector<64x64xf32> to vector<64x64xbf16>
    %c0_2 = arith.constant 0 : index
    %c0_3 = arith.constant 0 : index
    %3 = vector.load %arg3[%c0_2, %c0_3] : memref<64x1024xbf16, #tpu.memory_space<vmem>>, vector<64x1024xbf16>
    %cst = arith.constant dense<0.000000e+00> : vector<64x1024xf32>
    %4 = tpu.matmul %2, %3, %cst {dimension_numbers = #tpu.dot_dimension_numbers<[1], [0], [0], [1], [0, 0, 1, 1], [], []>} : vector<64x64xbf16>, vector<64x1024xbf16>, vector<64x1024xf32> -> vector<64x1024xf32>
    %5 = vector.extract_strided_slice %4 {offsets = [0, 0], sizes = [64, 512], strides = [1, 1]} : vector<64x1024xf32> to vector<64x512xf32>
    %c0_4 = arith.constant 0 : index
    %c0_5 = arith.constant 0 : index
    %6 = vector.load %arg4[%c0_4, %c0_5] : memref<1x512xf32, #tpu.memory_space<vmem>>, vector<1x512xf32>
    %7 = vector.broadcast %6 : vector<1x512xf32> to vector<64x512xf32>
    %8 = arith.addf %5, %7 : vector<64x512xf32>
    %9 = vector.shape_cast %8 : vector<64x512xf32> to vector<8x8x512xf32>
    %c0_6 = arith.constant 0 : index
    %c0_7 = arith.constant 0 : index
    %c0_8 = arith.constant 0 : index
    %10 = vector.load %arg25[%c0_6, %c0_7, %c0_8] : memref<8x8x512xf32, #tpu.memory_space<vmem>>, vector<8x8x512xf32>
    tpu.vector_store %arg25[%c0_6, %c0_7, %c0_8], %9 {strides = array<i32>} : memref<8x8x512xf32, #tpu.memory_space<vmem>>, vector<8x8x512xf32>,
    %11 = vector.extract_strided_slice %4 {offsets = [0, 512], sizes = [64, 512], strides = [1, 1]} : vector<64x1024xf32> to vector<64x512xf32>
    %c0_9 = arith.constant 0 : index
    %c0_10 = arith.constant 0 : index
    %12 = vector.load %arg5[%c0_9, %c0_10] : memref<1x512xf32, #tpu.memory_space<vmem>>, vector<1x512xf32>
    %13 = vector.broadcast %12 : vector<1x512xf32> to vector<64x512xf32>
    %14 = arith.addf %11, %13 : vector<64x512xf32>
    %15 = vector.shape_cast %14 : vector<64x512xf32> to vector<8x8x512xf32>
    %c0_11 = arith.constant 0 : index
    %c0_12 = arith.constant 0 : index
    %c0_13 = arith.constant 0 : index
    %16 = vector.load %arg26[%c0_11, %c0_12, %c0_13] : memref<8x8x512xf32, #tpu.memory_space<vmem>>, vector<8x8x512xf32>
    tpu.vector_store %arg26[%c0_11, %c0_12, %c0_13], %15 {strides = array<i32>} : memref<8x8x512xf32, #tpu.memory_space<vmem>>, vector<8x8x512xf32>,
    %cst_14 = arith.constant 0.000000e+00 : bf16
    %17 = vector.broadcast %cst_14 : bf16 to vector<8x256xbf16>
    %c0_15 = arith.constant 0 : index
    %c0_16 = arith.constant 0 : index
    %18 = vector.load %arg29[%c0_15, %c0_16] : memref<8x256xbf16, #tpu.memory_space<vmem>>, vector<8x256xbf16>
    tpu.vector_store %arg29[%c0_15, %c0_16], %17 {strides = array<i32>} : memref<8x256xbf16, #tpu.memory_space<vmem>>, vector<8x256xbf16>,
    %cst_17 = arith.constant 0.000000e+00 : f32
    %19 = vector.broadcast %cst_17 : f32 to vector<8x128xf32>
    %c0_18 = arith.constant 0 : index
    %c0_19 = arith.constant 0 : index
    %20 = vector.load %arg30[%c0_18, %c0_19] : memref<8x128xf32, #tpu.memory_space<vmem>>, vector<8x128xf32>
    tpu.vector_store %arg30[%c0_18, %c0_19], %19 {strides = array<i32>} : memref<8x128xf32, #tpu.memory_space<vmem>>, vector<8x128xf32>,
    %cst_20 = arith.constant 0.000000e+00 : f32
    %21 = vector.broadcast %cst_20 : f32 to vector<8x128xf32>
    %c0_21 = arith.constant 0 : index
    %c0_22 = arith.constant 0 : index
    %22 = vector.load %arg31[%c0_21, %c0_22] : memref<8x128xf32, #tpu.memory_space<vmem>>, vector<8x128xf32>
    tpu.vector_store %arg31[%c0_21, %c0_22], %21 {strides = array<i32>} : memref<8x128xf32, #tpu.memory_space<vmem>>, vector<8x128xf32>,
    %c0_i32 = arith.constant 0 : i32
    %c8_i32 = arith.constant 8 : i32
    %23 = arith.addi %c0_i32, %c8_i32 : i32
    %c1_i32 = arith.constant 1 : i32
    scf.for %arg34 = %c0_i32 to %23 step %c1_i32  : i32 {
      %c0_97 = arith.constant 0 : index
      %c0_98 = arith.constant 0 : index
      %114 = vector.load %arg29[%c0_97, %c0_98] : memref<8x256xbf16, #tpu.memory_space<vmem>>, vector<8x256xbf16>
      %c0_99 = arith.constant 0 : index
      %c0_100 = arith.constant 0 : index
      %115 = vector.load %arg6[%c0_99, %c0_100] : memref<256x1024xbf16, #tpu.memory_space<vmem>>, vector<256x1024xbf16>
      %cst_101 = arith.constant dense<0.000000e+00> : vector<8x1024xf32>
      %116 = tpu.matmul %114, %115, %cst_101 {dimension_numbers = #tpu.dot_dimension_numbers<[1], [0], [0], [1], [0, 0, 1, 1], [], []>} : vector<8x256xbf16>, vector<256x1024xbf16>, vector<8x1024xf32> -> vector<8x1024xf32>
      %c7_i32 = arith.constant 7 : i32
      %117 = arith.subi %c7_i32, %arg34 : i32
      %118 = vector.extract_strided_slice %116 {offsets = [0, 0], sizes = [8, 512], strides = [1, 1]} : vector<8x1024xf32> to vector<8x512xf32>
      %119 = arith.index_cast %arg34 : i32 to index
      %c0_102 = arith.constant 0 : index
      %c0_103 = arith.constant 0 : index
      %120 = vector.load %arg25[%119, %c0_102, %c0_103] : memref<8x8x512xf32, #tpu.memory_space<vmem>>, vector<1x8x512xf32>
      %121 = vector.shape_cast %120 : vector<1x8x512xf32> to vector<8x512xf32>
      %122 = arith.addf %118, %121 : vector<8x512xf32>
      %123 = vector.extract_strided_slice %116 {offsets = [0, 512], sizes = [8, 512], strides = [1, 1]} : vector<8x1024xf32> to vector<8x512xf32>
      %124 = arith.index_cast %117 : i32 to index
      %c0_104 = arith.constant 0 : index
      %c0_105 = arith.constant 0 : index
      %125 = vector.load %arg26[%124, %c0_104, %c0_105] : memref<8x8x512xf32, #tpu.memory_space<vmem>>, vector<1x8x512xf32>
      %126 = vector.shape_cast %125 : vector<1x8x512xf32> to vector<8x512xf32>
      %127 = arith.addf %123, %126 : vector<8x512xf32>
      %128 = vector.extract_strided_slice %122 {offsets = [0, 0], sizes = [8, 128], strides = [1, 1]} : vector<8x512xf32> to vector<8x128xf32>
      %129 = arith.negf %128 : vector<8x128xf32>
      %130 = math.exp %129 : vector<8x128xf32>
      %cst_106 = arith.constant 1.000000e+00 : f32
      %131 = vector.broadcast %cst_106 : f32 to vector<8x128xf32>
      %132 = arith.addf %131, %130 : vector<8x128xf32>
      %133 = arith.divf %131, %132 : vector<8x128xf32>
      %134 = vector.extract_strided_slice %122 {offsets = [0, 128], sizes = [8, 128], strides = [1, 1]} : vector<8x512xf32> to vector<8x128xf32>
      %135 = arith.negf %134 : vector<8x128xf32>
      %136 = math.exp %135 : vector<8x128xf32>
      %cst_107 = arith.constant 1.000000e+00 : f32
      %137 = vector.broadcast %cst_107 : f32 to vector<8x128xf32>
      %138 = arith.addf %137, %136 : vector<8x128xf32>
      %139 = arith.divf %137, %138 : vector<8x128xf32>
      %140 = vector.extract_strided_slice %122 {offsets = [0, 256], sizes = [8, 128], strides = [1, 1]} : vector<8x512xf32> to vector<8x128xf32>
      %141 = math.tanh %140 : vector<8x128xf32>
      %142 = vector.extract_strided_slice %122 {offsets = [0, 384], sizes = [8, 128], strides = [1, 1]} : vector<8x512xf32> to vector<8x128xf32>
      %143 = arith.negf %142 : vector<8x128xf32>
      %144 = math.exp %143 : vector<8x128xf32>
      %cst_108 = arith.constant 1.000000e+00 : f32
      %145 = vector.broadcast %cst_108 : f32 to vector<8x128xf32>
      %146 = arith.addf %145, %144 : vector<8x128xf32>
      %147 = arith.divf %145, %146 : vector<8x128xf32>
      %c0_109 = arith.constant 0 : index
      %c0_110 = arith.constant 0 : index
      %148 = vector.load %arg30[%c0_109, %c0_110] : memref<8x128xf32, #tpu.memory_space<vmem>>, vector<8x128xf32>
      %149 = arith.mulf %139, %148 : vector<8x128xf32>
      %150 = arith.mulf %133, %141 : vector<8x128xf32>
      %151 = arith.addf %149, %150 : vector<8x128xf32>
      %152 = math.tanh %151 : vector<8x128xf32>
      %153 = arith.mulf %147, %152 : vector<8x128xf32>
      %154 = vector.extract_strided_slice %127 {offsets = [0, 0], sizes = [8, 128], strides = [1, 1]} : vector<8x512xf32> to vector<8x128xf32>
      %155 = arith.negf %154 : vector<8x128xf32>
      %156 = math.exp %155 : vector<8x128xf32>
      %cst_111 = arith.constant 1.000000e+00 : f32
      %157 = vector.broadcast %cst_111 : f32 to vector<8x128xf32>
      %158 = arith.addf %157, %156 : vector<8x128xf32>
      %159 = arith.divf %157, %158 : vector<8x128xf32>
      %160 = vector.extract_strided_slice %127 {offsets = [0, 128], sizes = [8, 128], strides = [1, 1]} : vector<8x512xf32> to vector<8x128xf32>
      %161 = arith.negf %160 : vector<8x128xf32>
      %162 = math.exp %161 : vector<8x128xf32>
      %cst_112 = arith.constant 1.000000e+00 : f32
      %163 = vector.broadcast %cst_112 : f32 to vector<8x128xf32>
      %164 = arith.addf %163, %162 : vector<8x128xf32>
      %165 = arith.divf %163, %164 : vector<8x128xf32>
      %166 = vector.extract_strided_slice %127 {offsets = [0, 256], sizes = [8, 128], strides = [1, 1]} : vector<8x512xf32> to vector<8x128xf32>
      %167 = math.tanh %166 : vector<8x128xf32>
      %168 = vector.extract_strided_slice %127 {offsets = [0, 384], sizes = [8, 128], strides = [1, 1]} : vector<8x512xf32> to vector<8x128xf32>
      %169 = arith.negf %168 : vector<8x128xf32>
      %170 = math.exp %169 : vector<8x128xf32>
      %cst_113 = arith.constant 1.000000e+00 : f32
      %171 = vector.broadcast %cst_113 : f32 to vector<8x128xf32>
      %172 = arith.addf %171, %170 : vector<8x128xf32>
      %173 = arith.divf %171, %172 : vector<8x128xf32>
      %c0_114 = arith.constant 0 : index
      %c0_115 = arith.constant 0 : index
      %174 = vector.load %arg31[%c0_114, %c0_115] : memref<8x128xf32, #tpu.memory_space<vmem>>, vector<8x128xf32>
      %175 = arith.mulf %165, %174 : vector<8x128xf32>
      %176 = arith.mulf %159, %167 : vector<8x128xf32>
      %177 = arith.addf %175, %176 : vector<8x128xf32>
      %178 = math.tanh %177 : vector<8x128xf32>
      %179 = arith.mulf %173, %178 : vector<8x128xf32>
      %c0_116 = arith.constant 0 : index
      %c0_117 = arith.constant 0 : index
      %180 = vector.load %arg30[%c0_116, %c0_117] : memref<8x128xf32, #tpu.memory_space<vmem>>, vector<8x128xf32>
      tpu.vector_store %arg30[%c0_116, %c0_117], %151 {strides = array<i32>} : memref<8x128xf32, #tpu.memory_space<vmem>>, vector<8x128xf32>,
      %c0_118 = arith.constant 0 : index
      %c0_119 = arith.constant 0 : index
      %181 = vector.load %arg31[%c0_118, %c0_119] : memref<8x128xf32, #tpu.memory_space<vmem>>, vector<8x128xf32>
      tpu.vector_store %arg31[%c0_118, %c0_119], %177 {strides = array<i32>} : memref<8x128xf32, #tpu.memory_space<vmem>>, vector<8x128xf32>,
      %182 = arith.truncf %153 : vector<8x128xf32> to vector<8x128xbf16>
      %183 = arith.truncf %179 : vector<8x128xf32> to vector<8x128xbf16>
      %184 = tpu.concatenate %182, %183 in 1 : vector<8x128xbf16>, vector<8x128xbf16> -> vector<8x256xbf16>
      %c0_120 = arith.constant 0 : index
      %c0_121 = arith.constant 0 : index
      %185 = vector.load %arg29[%c0_120, %c0_121] : memref<8x256xbf16, #tpu.memory_space<vmem>>, vector<8x256xbf16>
      tpu.vector_store %arg29[%c0_120, %c0_121], %184 {strides = array<i32>} : memref<8x256xbf16, #tpu.memory_space<vmem>>, vector<8x256xbf16>,
      %186 = arith.index_cast %arg34 : i32 to index
      %c0_122 = arith.constant 0 : index
      %c0_123 = arith.constant 0 : index
      %187 = vector.load %arg28[%186, %c0_122, %c0_123] : memref<8x8x256xf32, #tpu.memory_space<vmem>>, vector<1x8x128xf32>
      %188 = vector.shape_cast %187 : vector<1x8x128xf32> to vector<8x128xf32>
      %189 = vector.shape_cast %153 : vector<8x128xf32> to vector<1x8x128xf32>
      tpu.vector_store %arg28[%186, %c0_122, %c0_123], %189 {strides = array<i32>} : memref<8x8x256xf32, #tpu.memory_space<vmem>>, vector<1x8x128xf32>,
      %190 = arith.index_cast %117 : i32 to index
      %c0_124 = arith.constant 0 : index
      %c128 = arith.constant 128 : index
      %191 = vector.load %arg28[%190, %c0_124, %c128] : memref<8x8x256xf32, #tpu.memory_space<vmem>>, vector<1x8x128xf32>
      %192 = vector.shape_cast %191 : vector<1x8x128xf32> to vector<8x128xf32>
      %193 = vector.shape_cast %179 : vector<8x128xf32> to vector<1x8x128xf32>
      tpu.vector_store %arg28[%190, %c0_124, %c128], %193 {strides = array<i32>} : memref<8x8x256xf32, #tpu.memory_space<vmem>>, vector<1x8x128xf32>,
    }
    %c8_i32_23 = arith.constant 8 : i32
    %c0_24 = arith.constant 0 : index
    %c0_25 = arith.constant 0 : index
    %c0_26 = arith.constant 0 : index
    %24 = vector.load %arg28[%c0_24, %c0_25, %c0_26] : memref<8x8x256xf32, #tpu.memory_space<vmem>>, vector<8x8x256xf32>
    %25 = vector.shape_cast %24 : vector<8x8x256xf32> to vector<64x256xf32>
    %26 = arith.truncf %25 : vector<64x256xf32> to vector<64x256xbf16>
    %c0_27 = arith.constant 0 : index
    %c0_28 = arith.constant 0 : index
    %27 = vector.load %arg7[%c0_27, %c0_28] : memref<256x512xbf16, #tpu.memory_space<vmem>>, vector<256x512xbf16>
    %cst_29 = arith.constant dense<0.000000e+00> : vector<64x512xf32>
    %28 = tpu.matmul %26, %27, %cst_29 {dimension_numbers = #tpu.dot_dimension_numbers<[1], [0], [0], [1], [0, 0, 1, 1], [], []>} : vector<64x256xbf16>, vector<256x512xbf16>, vector<64x512xf32> -> vector<64x512xf32>
    %c0_30 = arith.constant 0 : index
    %c0_31 = arith.constant 0 : index
    %29 = vector.load %arg8[%c0_30, %c0_31] : memref<1x512xf32, #tpu.memory_space<vmem>>, vector<1x512xf32>
    %30 = vector.broadcast %29 : vector<1x512xf32> to vector<64x512xf32>
    %31 = arith.addf %28, %30 : vector<64x512xf32>
    %32 = vector.shape_cast %31 : vector<64x512xf32> to vector<8x8x512xf32>
    %c0_32 = arith.constant 0 : index
    %c0_33 = arith.constant 0 : index
    %c0_34 = arith.constant 0 : index
    %33 = vector.load %arg27[%c0_32, %c0_33, %c0_34] : memref<8x8x512xf32, #tpu.memory_space<vmem>>, vector<8x8x512xf32>
    tpu.vector_store %arg27[%c0_32, %c0_33, %c0_34], %32 {strides = array<i32>} : memref<8x8x512xf32, #tpu.memory_space<vmem>>, vector<8x8x512xf32>,
    %cst_35 = arith.constant 0.000000e+00 : bf16
    %34 = vector.broadcast %cst_35 : bf16 to vector<8x128xbf16>
    %c0_36 = arith.constant 0 : index
    %c0_37 = arith.constant 0 : index
    %35 = vector.load %arg32[%c0_36, %c0_37] : memref<8x128xbf16, #tpu.memory_space<vmem>>, vector<8x128xbf16>
    tpu.vector_store %arg32[%c0_36, %c0_37], %34 {strides = array<i32>} : memref<8x128xbf16, #tpu.memory_space<vmem>>, vector<8x128xbf16>,
    %cst_38 = arith.constant 0.000000e+00 : f32
    %36 = vector.broadcast %cst_38 : f32 to vector<8x128xf32>
    %c0_39 = arith.constant 0 : index
    %c0_40 = arith.constant 0 : index
    %37 = vector.load %arg33[%c0_39, %c0_40] : memref<8x128xf32, #tpu.memory_space<vmem>>, vector<8x128xf32>
    tpu.vector_store %arg33[%c0_39, %c0_40], %36 {strides = array<i32>} : memref<8x128xf32, #tpu.memory_space<vmem>>, vector<8x128xf32>,
    %c0_i32_41 = arith.constant 0 : i32
    %c8_i32_42 = arith.constant 8 : i32
    %38 = arith.addi %c0_i32_41, %c8_i32_42 : i32
    %c1_i32_43 = arith.constant 1 : i32
    scf.for %arg34 = %c0_i32_41 to %38 step %c1_i32_43  : i32 {
      %c0_97 = arith.constant 0 : index
      %c0_98 = arith.constant 0 : index
      %114 = vector.load %arg32[%c0_97, %c0_98] : memref<8x128xbf16, #tpu.memory_space<vmem>>, vector<8x128xbf16>
      %c0_99 = arith.constant 0 : index
      %c0_100 = arith.constant 0 : index
      %115 = vector.load %arg9[%c0_99, %c0_100] : memref<128x512xbf16, #tpu.memory_space<vmem>>, vector<128x512xbf16>
      %cst_101 = arith.constant dense<0.000000e+00> : vector<8x512xf32>
      %116 = tpu.matmul %114, %115, %cst_101 {dimension_numbers = #tpu.dot_dimension_numbers<[1], [0], [0], [1], [0, 0, 1, 1], [], []>} : vector<8x128xbf16>, vector<128x512xbf16>, vector<8x512xf32> -> vector<8x512xf32>
      %117 = arith.index_cast %arg34 : i32 to index
      %c0_102 = arith.constant 0 : index
      %c0_103 = arith.constant 0 : index
      %118 = vector.load %arg27[%117, %c0_102, %c0_103] : memref<8x8x512xf32, #tpu.memory_space<vmem>>, vector<1x8x512xf32>
      %119 = vector.shape_cast %118 : vector<1x8x512xf32> to vector<8x512xf32>
      %120 = arith.addf %116, %119 : vector<8x512xf32>
      %121 = vector.extract_strided_slice %120 {offsets = [0, 0], sizes = [8, 128], strides = [1, 1]} : vector<8x512xf32> to vector<8x128xf32>
      %122 = arith.negf %121 : vector<8x128xf32>
      %123 = math.exp %122 : vector<8x128xf32>
      %cst_104 = arith.constant 1.000000e+00 : f32
      %124 = vector.broadcast %cst_104 : f32 to vector<8x128xf32>
      %125 = arith.addf %124, %123 : vector<8x128xf32>
      %126 = arith.divf %124, %125 : vector<8x128xf32>
      %127 = vector.extract_strided_slice %120 {offsets = [0, 128], sizes = [8, 128], strides = [1, 1]} : vector<8x512xf32> to vector<8x128xf32>
      %128 = arith.negf %127 : vector<8x128xf32>
      %129 = math.exp %128 : vector<8x128xf32>
      %cst_105 = arith.constant 1.000000e+00 : f32
      %130 = vector.broadcast %cst_105 : f32 to vector<8x128xf32>
      %131 = arith.addf %130, %129 : vector<8x128xf32>
      %132 = arith.divf %130, %131 : vector<8x128xf32>
      %133 = vector.extract_strided_slice %120 {offsets = [0, 256], sizes = [8, 128], strides = [1, 1]} : vector<8x512xf32> to vector<8x128xf32>
      %134 = math.tanh %133 : vector<8x128xf32>
      %135 = vector.extract_strided_slice %120 {offsets = [0, 384], sizes = [8, 128], strides = [1, 1]} : vector<8x512xf32> to vector<8x128xf32>
      %136 = arith.negf %135 : vector<8x128xf32>
      %137 = math.exp %136 : vector<8x128xf32>
      %cst_106 = arith.constant 1.000000e+00 : f32
      %138 = vector.broadcast %cst_106 : f32 to vector<8x128xf32>
      %139 = arith.addf %138, %137 : vector<8x128xf32>
      %140 = arith.divf %138, %139 : vector<8x128xf32>
      %c0_107 = arith.constant 0 : index
      %c0_108 = arith.constant 0 : index
      %141 = vector.load %arg33[%c0_107, %c0_108] : memref<8x128xf32, #tpu.memory_space<vmem>>, vector<8x128xf32>
      %142 = arith.mulf %132, %141 : vector<8x128xf32>
      %143 = arith.mulf %126, %134 : vector<8x128xf32>
      %144 = arith.addf %142, %143 : vector<8x128xf32>
      %145 = math.tanh %144 : vector<8x128xf32>
      %146 = arith.mulf %140, %145 : vector<8x128xf32>
      %c0_109 = arith.constant 0 : index
      %c0_110 = arith.constant 0 : index
      %147 = vector.load %arg33[%c0_109, %c0_110] : memref<8x128xf32, #tpu.memory_space<vmem>>, vector<8x128xf32>
      tpu.vector_store %arg33[%c0_109, %c0_110], %144 {strides = array<i32>} : memref<8x128xf32, #tpu.memory_space<vmem>>, vector<8x128xf32>,
      %148 = arith.truncf %146 : vector<8x128xf32> to vector<8x128xbf16>
      %c0_111 = arith.constant 0 : index
      %c0_112 = arith.constant 0 : index
      %149 = vector.load %arg32[%c0_111, %c0_112] : memref<8x128xbf16, #tpu.memory_space<vmem>>, vector<8x128xbf16>
      tpu.vector_store %arg32[%c0_111, %c0_112], %148 {strides = array<i32>} : memref<8x128xbf16, #tpu.memory_space<vmem>>, vector<8x128xbf16>,
    }
    %c8_i32_44 = arith.constant 8 : i32
    %c7 = arith.constant 7 : index
    %c0_45 = arith.constant 0 : index
    %c0_46 = arith.constant 0 : index
    %39 = vector.load %arg28[%c7, %c0_45, %c0_46] : memref<8x8x256xf32, #tpu.memory_space<vmem>>, vector<1x8x256xf32>
    %40 = vector.shape_cast %39 : vector<1x8x256xf32> to vector<8x256xf32>
    %41 = arith.truncf %40 : vector<8x256xf32> to vector<8x256xbf16>
    %c0_47 = arith.constant 0 : index
    %c0_48 = arith.constant 0 : index
    %42 = vector.load %arg10[%c0_47, %c0_48] : memref<256x512xbf16, #tpu.memory_space<vmem>>, vector<256x512xbf16>
    %cst_49 = arith.constant dense<0.000000e+00> : vector<8x512xf32>
    %43 = tpu.matmul %41, %42, %cst_49 {dimension_numbers = #tpu.dot_dimension_numbers<[1], [0], [0], [1], [0, 0, 1, 1], [], []>} : vector<8x256xbf16>, vector<256x512xbf16>, vector<8x512xf32> -> vector<8x512xf32>
    %c0_50 = arith.constant 0 : index
    %c0_51 = arith.constant 0 : index
    %44 = vector.load %arg11[%c0_50, %c0_51] : memref<1x512xf32, #tpu.memory_space<vmem>>, vector<1x512xf32>
    %45 = vector.broadcast %44 : vector<1x512xf32> to vector<8x512xf32>
    %46 = arith.addf %43, %45 : vector<8x512xf32>
    %47 = vector.extract_strided_slice %46 {offsets = [0, 0], sizes = [8, 128], strides = [1, 1]} : vector<8x512xf32> to vector<8x128xf32>
    %48 = arith.negf %47 : vector<8x128xf32>
    %49 = math.exp %48 : vector<8x128xf32>
    %cst_52 = arith.constant 1.000000e+00 : f32
    %50 = vector.broadcast %cst_52 : f32 to vector<8x128xf32>
    %51 = arith.addf %50, %49 : vector<8x128xf32>
    %52 = arith.divf %50, %51 : vector<8x128xf32>
    %53 = vector.extract_strided_slice %46 {offsets = [0, 256], sizes = [8, 128], strides = [1, 1]} : vector<8x512xf32> to vector<8x128xf32>
    %54 = math.tanh %53 : vector<8x128xf32>
    %55 = vector.extract_strided_slice %46 {offsets = [0, 384], sizes = [8, 128], strides = [1, 1]} : vector<8x512xf32> to vector<8x128xf32>
    %56 = arith.negf %55 : vector<8x128xf32>
    %57 = math.exp %56 : vector<8x128xf32>
    %cst_53 = arith.constant 1.000000e+00 : f32
    %58 = vector.broadcast %cst_53 : f32 to vector<8x128xf32>
    %59 = arith.addf %58, %57 : vector<8x128xf32>
    %60 = arith.divf %58, %59 : vector<8x128xf32>
    %61 = arith.mulf %52, %54 : vector<8x128xf32>
    %62 = math.tanh %61 : vector<8x128xf32>
    %63 = arith.mulf %60, %62 : vector<8x128xf32>
    %c0_54 = arith.constant 0 : index
    %c0_55 = arith.constant 0 : index
    %64 = vector.load %arg32[%c0_54, %c0_55] : memref<8x128xbf16, #tpu.memory_space<vmem>>, vector<8x128xbf16>
    %65 = arith.truncf %63 : vector<8x128xf32> to vector<8x128xbf16>
    %66 = tpu.concatenate %64, %65 in 1 : vector<8x128xbf16>, vector<8x128xbf16> -> vector<8x256xbf16>
    %c0_56 = arith.constant 0 : index
    %c0_57 = arith.constant 0 : index
    %67 = vector.load %arg2[%c0_56, %c0_57] : memref<8x128xf32, #tpu.memory_space<vmem>>, vector<8x128xf32>
    %68 = arith.truncf %67 : vector<8x128xf32> to vector<8x128xbf16>
    %c0_58 = arith.constant 0 : index
    %c0_59 = arith.constant 0 : index
    %69 = vector.load %arg12[%c0_58, %c0_59] : memref<128x128xbf16, #tpu.memory_space<vmem>>, vector<128x128xbf16>
    %cst_60 = arith.constant dense<0.000000e+00> : vector<8x128xf32>
    %70 = tpu.matmul %68, %69, %cst_60 {dimension_numbers = #tpu.dot_dimension_numbers<[1], [0], [0], [1], [0, 0, 1, 1], [], []>} : vector<8x128xbf16>, vector<128x128xbf16>, vector<8x128xf32> -> vector<8x128xf32>
    %c0_61 = arith.constant 0 : index
    %c0_62 = arith.constant 0 : index
    %71 = vector.load %arg13[%c0_61, %c0_62] : memref<1x128xf32, #tpu.memory_space<vmem>>, vector<1x128xf32>
    %72 = vector.broadcast %71 : vector<1x128xf32> to vector<8x128xf32>
    %73 = arith.addf %70, %72 : vector<8x128xf32>
    %cst_63 = arith.constant 0.000000e+00 : f32
    %74 = vector.broadcast %cst_63 : f32 to vector<8x128xf32>
    %75 = arith.maximumf %73, %74 : vector<8x128xf32>
    %76 = arith.truncf %75 : vector<8x128xf32> to vector<8x128xbf16>
    %c0_64 = arith.constant 0 : index
    %c0_65 = arith.constant 0 : index
    %77 = vector.load %arg14[%c0_64, %c0_65] : memref<128x128xbf16, #tpu.memory_space<vmem>>, vector<128x128xbf16>
    %cst_66 = arith.constant dense<0.000000e+00> : vector<8x128xf32>
    %78 = tpu.matmul %76, %77, %cst_66 {dimension_numbers = #tpu.dot_dimension_numbers<[1], [0], [0], [1], [0, 0, 1, 1], [], []>} : vector<8x128xbf16>, vector<128x128xbf16>, vector<8x128xf32> -> vector<8x128xf32>
    %c0_67 = arith.constant 0 : index
    %c0_68 = arith.constant 0 : index
    %79 = vector.load %arg15[%c0_67, %c0_68] : memref<1x128xf32, #tpu.memory_space<vmem>>, vector<1x128xf32>
    %80 = vector.broadcast %79 : vector<1x128xf32> to vector<8x128xf32>
    %81 = arith.addf %78, %80 : vector<8x128xf32>
    %cst_69 = arith.constant 0.000000e+00 : f32
    %82 = vector.broadcast %cst_69 : f32 to vector<8x128xf32>
    %83 = arith.maximumf %81, %82 : vector<8x128xf32>
    %c0_70 = arith.constant 0 : index
    %c0_71 = arith.constant 0 : index
    %84 = vector.load %arg1[%c0_70, %c0_71] : memref<8x2048xbf16, #tpu.memory_space<vmem>>, vector<8x2048xbf16>
    %c0_72 = arith.constant 0 : index
    %c0_73 = arith.constant 0 : index
    %85 = vector.load %arg16[%c0_72, %c0_73] : memref<2048x512xbf16, #tpu.memory_space<vmem>>, vector<2048x512xbf16>
    %cst_74 = arith.constant dense<0.000000e+00> : vector<8x512xf32>
    %86 = tpu.matmul %84, %85, %cst_74 {dimension_numbers = #tpu.dot_dimension_numbers<[1], [0], [0], [1], [0, 0, 1, 1], [], []>} : vector<8x2048xbf16>, vector<2048x512xbf16>, vector<8x512xf32> -> vector<8x512xf32>
    %c0_75 = arith.constant 0 : index
    %c0_76 = arith.constant 0 : index
    %87 = vector.load %arg17[%c0_75, %c0_76] : memref<256x512xbf16, #tpu.memory_space<vmem>>, vector<256x512xbf16>
    %cst_77 = arith.constant dense<0.000000e+00> : vector<8x512xf32>
    %88 = tpu.matmul %66, %87, %cst_77 {dimension_numbers = #tpu.dot_dimension_numbers<[1], [0], [0], [1], [0, 0, 1, 1], [], []>} : vector<8x256xbf16>, vector<256x512xbf16>, vector<8x512xf32> -> vector<8x512xf32>
    %89 = arith.addf %86, %88 : vector<8x512xf32>
    %90 = arith.truncf %83 : vector<8x128xf32> to vector<8x128xbf16>
    %c0_78 = arith.constant 0 : index
    %c0_79 = arith.constant 0 : index
    %91 = vector.load %arg18[%c0_78, %c0_79] : memref<128x512xbf16, #tpu.memory_space<vmem>>, vector<128x512xbf16>
    %cst_80 = arith.constant dense<0.000000e+00> : vector<8x512xf32>
    %92 = tpu.matmul %90, %91, %cst_80 {dimension_numbers = #tpu.dot_dimension_numbers<[1], [0], [0], [1], [0, 0, 1, 1], [], []>} : vector<8x128xbf16>, vector<128x512xbf16>, vector<8x512xf32> -> vector<8x512xf32>
    %93 = arith.addf %89, %92 : vector<8x512xf32>
    %c0_81 = arith.constant 0 : index
    %c0_82 = arith.constant 0 : index
    %94 = vector.load %arg19[%c0_81, %c0_82] : memref<1x512xf32, #tpu.memory_space<vmem>>, vector<1x512xf32>
    %95 = vector.broadcast %94 : vector<1x512xf32> to vector<8x512xf32>
    %96 = arith.addf %93, %95 : vector<8x512xf32>
    %cst_83 = arith.constant 0.000000e+00 : f32
    %97 = vector.broadcast %cst_83 : f32 to vector<8x512xf32>
    %98 = arith.maximumf %96, %97 : vector<8x512xf32>
    %99 = arith.truncf %98 : vector<8x512xf32> to vector<8x512xbf16>
    %c0_84 = arith.constant 0 : index
    %c0_85 = arith.constant 0 : index
    %100 = vector.load %arg20[%c0_84, %c0_85] : memref<512x128xbf16, #tpu.memory_space<vmem>>, vector<512x128xbf16>
    %cst_86 = arith.constant dense<0.000000e+00> : vector<8x128xf32>
    %101 = tpu.matmul %99, %100, %cst_86 {dimension_numbers = #tpu.dot_dimension_numbers<[1], [0], [0], [1], [0, 0, 1, 1], [], []>} : vector<8x512xbf16>, vector<512x128xbf16>, vector<8x128xf32> -> vector<8x128xf32>
    %c0_87 = arith.constant 0 : index
    %c0_88 = arith.constant 0 : index
    %102 = vector.load %arg21[%c0_87, %c0_88] : memref<1x128xf32, #tpu.memory_space<vmem>>, vector<1x128xf32>
    %103 = vector.broadcast %102 : vector<1x128xf32> to vector<8x128xf32>
    %104 = arith.addf %101, %103 : vector<8x128xf32>
    %cst_89 = arith.constant 0.000000e+00 : f32
    %105 = vector.broadcast %cst_89 : f32 to vector<8x128xf32>
    %106 = arith.maximumf %104, %105 : vector<8x128xf32>
    %107 = arith.truncf %106 : vector<8x128xf32> to vector<8x128xbf16>
    %c0_90 = arith.constant 0 : index
    %c0_91 = arith.constant 0 : index
    %108 = vector.load %arg22[%c0_90, %c0_91] : memref<128x128xbf16, #tpu.memory_space<vmem>>, vector<128x128xbf16>
    %cst_92 = arith.constant dense<0.000000e+00> : vector<8x128xf32>
    %109 = tpu.matmul %107, %108, %cst_92 {dimension_numbers = #tpu.dot_dimension_numbers<[1], [0], [0], [1], [0, 0, 1, 1], [], []>} : vector<8x128xbf16>, vector<128x128xbf16>, vector<8x128xf32> -> vector<8x128xf32>
    %c0_93 = arith.constant 0 : index
    %c0_94 = arith.constant 0 : index
    %110 = vector.load %arg23[%c0_93, %c0_94] : memref<1x128xf32, #tpu.memory_space<vmem>>, vector<1x128xf32>
    %111 = vector.broadcast %110 : vector<1x128xf32> to vector<8x128xf32>
    %112 = arith.addf %109, %111 : vector<8x128xf32>
    %c0_95 = arith.constant 0 : index
    %c0_96 = arith.constant 0 : index
    %113 = vector.load %arg24[%c0_95, %c0_96] : memref<8x128xf32, #tpu.memory_space<vmem>>, vector<8x128xf32>
    tpu.vector_store %arg24[%c0_95, %c0_96], %112 {strides = array<i32>} : memref<8x128xf32, #tpu.memory_space<vmem>>, vector<8x128xf32>,
    return
  }
}

</mosaic_0001>

<llo_original>
// kernel: improved_hybrid_forward.2
$region0: #{improved_hybrid_forward.2}
  #allocation0 [shape = 'u32[]', space=smem, size = 0x4, offset = 0x4, fixed_abs, tag = 'smem constant byte address 0x4 - core index']
  #allocation1 [shape = 'u32[72,128]{1,0:T(1,128)}', space=vmem, size = 0x9000, scoped, tag = 'internal scratch']
  #allocation2 [shape = 'f32[8,64]{1,0:T(8,128)}', space=vmem, size = 0x1000, scoped, tag = 'scratch operand']
  %s0 = inlined_call_operand.vmem [shape: bf16[8,256,32], index: 0, kind: input, shape index: {}]
  %s1 = inlined_call_operand.vmem [shape: bf16[32,64], index: 1, kind: input, shape index: {}]
  %s2 = inlined_call_operand.vmem [shape: f32[1,64], index: 2, kind: input, shape index: {}]
  %s3 = inlined_call_operand.vmem [shape: bf16[64,2048], index: 3, kind: input, shape index: {}]
  %s4 = inlined_call_operand.vmem [shape: f32[1,2048], index: 4, kind: input, shape index: {}]
  %s5 = inlined_call_operand.vmem [shape: bf16[8,2048], index: 5, kind: output, shape index: {}]
  %s6 = sld [smem:[#allocation0]]
  $region38: #{improved_hybrid_forward.2} parent=0
    _
  %s8 = ssub.s32 1, %s6
  %s9 = scalar_select 0, %s8, %s6
  // Predicated region
  $region2: #{improved_hybrid_forward.2} parent=0 // pred_check
    _
  $region3: #{improved_hybrid_forward.2} parent=0 // pred_check_branch
    %11 = sbr.rel (0) target = $region5
  $region4: #{improved_hybrid_forward.2} parent=0 // pred_region
    _
  $region5: #{improved_hybrid_forward.2} parent=0 // pred_fallthru
    _
  // Predicated region
  $region6: #{improved_hybrid_forward.2} parent=0 // pred_check
    _
  $region7: #{improved_hybrid_forward.2} parent=0 // pred_check_branch
    %13 = sbr.rel (0) target = $region9
  $region8: #{improved_hybrid_forward.2} parent=0 // pred_region
    _
  $region9: #{improved_hybrid_forward.2} parent=0 // pred_fallthru
    _
  // Predicated region
  $region10: #{improved_hybrid_forward.2} parent=0 // pred_check
    _
  $region11: #{improved_hybrid_forward.2} parent=0 // pred_check_branch
    %15 = sbr.rel (0) target = $region13
  $region12: #{improved_hybrid_forward.2} parent=0 // pred_region
    _
  $region13: #{improved_hybrid_forward.2} parent=0 // pred_fallthru
    _
  // Predicated region
  $region14: #{improved_hybrid_forward.2} parent=0 // pred_check
    _
  $region15: #{improved_hybrid_forward.2} parent=0 // pred_check_branch
    %17 = sbr.rel (0) target = $region17
  $region16: #{improved_hybrid_forward.2} parent=0 // pred_region
    _
  $region17: #{improved_hybrid_forward.2} parent=0 // pred_fallthru
    _
  // Predicated region
  $region18: #{improved_hybrid_forward.2} parent=0 // pred_check
    _
  $region19: #{improved_hybrid_forward.2} parent=0 // pred_check_branch
    %19 = sbr.rel (0) target = $region21
  $region20: #{improved_hybrid_forward.2} parent=0 // pred_region
    _
  $region21: #{improved_hybrid_forward.2} parent=0 // pred_fallthru
    _
  %p21 = scmp.eq.s32.totalorder 0, 0
  // Predicated region
  $region22: #{improved_hybrid_forward.2} parent=0 // pred_check
    %p22 = pneg %p21
  $region23: #{improved_hybrid_forward.2} parent=0 // pred_check_branch
    %24 = sbr.rel (%p22) target = $region25
  $region24: #{improved_hybrid_forward.2} parent=0 // pred_region
    %vm25 = vcmask 523264
    %26 = vst.msk [vmem:[#allocation2] sm:$0xff] %vm25, 0.0
  $region25: #{improved_hybrid_forward.2} parent=0 // pred_fallthru
    _
  %v27 = vld [vmem:[%s0] sm:$0xf]
  %v28 = vld [vmem:[%s0 + $0x4] sm:$0xf]
  %v29 = vld [vmem:[%s0 + $0x8] sm:$0xf]
  %v30 = vld [vmem:[%s0 + $0xc] sm:$0xf]
  %v31 = vld [vmem:[%s0 + $0x10] sm:$0xf]
  %v32 = vld [vmem:[%s0 + $0x14] sm:$0xf]
  %v33 = vld [vmem:[%s0 + $0x18] sm:$0xf]
  %v34 = vld [vmem:[%s0 + $0x1c] sm:$0xf]
  %v35 = vld [vmem:[%s0 + $0x20] sm:$0xf]
  %v36 = vld [vmem:[%s0 + $0x24] sm:$0xf]
  %v37 = vld [vmem:[%s0 + $0x28] sm:$0xf]
  %v38 = vld [vmem:[%s0 + $0x2c] sm:$0xf]
  %v39 = vld [vmem:[%s0 + $0x30] sm:$0xf]
  %v40 = vld [vmem:[%s0 + $0x34] sm:$0xf]
  %v41 = vld [vmem:[%s0 + $0x38] sm:$0xf]
  %v42 = vld [vmem:[%s0 + $0x3c] sm:$0xf]
  %v43 = vld [vmem:[%s0 + $0x40] sm:$0xf]
  %v44 = vld [vmem:[%s0 + $0x44] sm:$0xf]
  %v45 = vld [vmem:[%s0 + $0x48] sm:$0xf]
  %v46 = vld [vmem:[%s0 + $0x4c] sm:$0xf]
  %v47 = vld [vmem:[%s0 + $0x50] sm:$0xf]
  %v48 = vld [vmem:[%s0 + $0x54] sm:$0xf]
  %v49 = vld [vmem:[%s0 + $0x58] sm:$0xf]
  %v50 = vld [vmem:[%s0 + $0x5c] sm:$0xf]
  %v51 = vld [vmem:[%s0 + $0x60] sm:$0xf]
  %v52 = vld [vmem:[%s0 + $0x64] sm:$0xf]
  %v53 = vld [vmem:[%s0 + $0x68] sm:$0xf]
  %v54 = vld [vmem:[%s0 + $0x6c] sm:$0xf]
  %v55 = vld [vmem:[%s0 + $0x70] sm:$0xf]
  %v56 = vld [vmem:[%s0 + $0x74] sm:$0xf]
  %v57 = vld [vmem:[%s0 + $0x78] sm:$0xf]
  %v58 = vld [vmem:[%s0 + $0x7c] sm:$0xf]
  %v59 = vld [vmem:[%s0 + $0x80] sm:$0xf]
  %v60 = vld [vmem:[%s0 + $0x84] sm:$0xf]
  %v61 = vld [vmem:[%s0 + $0x88] sm:$0xf]
  %v62 = vld [vmem:[%s0 + $0x8c] sm:$0xf]
  %v63 = vld [vmem:[%s0 + $0x90] sm:$0xf]
  %v64 = vld [vmem:[%s0 + $0x94] sm:$0xf]
  %v65 = vld [vmem:[%s0 + $0x98] sm:$0xf]
  %v66 = vld [vmem:[%s0 + $0x9c] sm:$0xf]
  %v67 = vld [vmem:[%s0 + $0xa0] sm:$0xf]
  %v68 = vld [vmem:[%s0 + $0xa4] sm:$0xf]
  %v69 = vld [vmem:[%s0 + $0xa8] sm:$0xf]
  %v70 = vld [vmem:[%s0 + $0xac] sm:$0xf]
  %v71 = vld [vmem:[%s0 + $0xb0] sm:$0xf]
  %v72 = vld [vmem:[%s0 + $0xb4] sm:$0xf]
  %v73 = vld [vmem:[%s0 + $0xb8] sm:$0xf]
  %v74 = vld [vmem:[%s0 + $0xbc] sm:$0xf]
  %v75 = vld [vmem:[%s0 + $0xc0] sm:$0xf]
  %v76 = vld [vmem:[%s0 + $0xc4] sm:$0xf]
  %v77 = vld [vmem:[%s0 + $0xc8] sm:$0xf]
  %v78 = vld [vmem:[%s0 + $0xcc] sm:$0xf]
  %v79 = vld [vmem:[%s0 + $0xd0] sm:$0xf]
  %v80 = vld [vmem:[%s0 + $0xd4] sm:$0xf]
  %v81 = vld [vmem:[%s0 + $0xd8] sm:$0xf]
  %v82 = vld [vmem:[%s0 + $0xdc] sm:$0xf]
  %v83 = vld [vmem:[%s0 + $0xe0] sm:$0xf]
  %v84 = vld [vmem:[%s0 + $0xe4] sm:$0xf]
  %v85 = vld [vmem:[%s0 + $0xe8] sm:$0xf]
  %v86 = vld [vmem:[%s0 + $0xec] sm:$0xf]
  %v87 = vld [vmem:[%s0 + $0xf0] sm:$0xf]
  %v88 = vld [vmem:[%s0 + $0xf4] sm:$0xf]
  %v89 = vld [vmem:[%s0 + $0xf8] sm:$0xf]
  %v90 = vld [vmem:[%s0 + $0xfc] sm:$0xf]
  %v91 = vld [vmem:[%s0 + $0x100] sm:$0xf]
  %v92 = vld [vmem:[%s0 + $0x104] sm:$0xf]
  %v93 = vld [vmem:[%s0 + $0x108] sm:$0xf]
  %v94 = vld [vmem:[%s0 + $0x10c] sm:$0xf]
  %v95 = vld [vmem:[%s0 + $0x110] sm:$0xf]
  %v96 = vld [vmem:[%s0 + $0x114] sm:$0xf]
  %v97 = vld [vmem:[%s0 + $0x118] sm:$0xf]
  %v98 = vld [vmem:[%s0 + $0x11c] sm:$0xf]
  %v99 = vld [vmem:[%s0 + $0x120] sm:$0xf]
  %v100 = vld [vmem:[%s0 + $0x124] sm:$0xf]
  %v101 = vld [vmem:[%s0 + $0x128] sm:$0xf]
  %v102 = vld [vmem:[%s0 + $0x12c] sm:$0xf]
  %v103 = vld [vmem:[%s0 + $0x130] sm:$0xf]
  %v104 = vld [vmem:[%s0 + $0x134] sm:$0xf]
  %v105 = vld [vmem:[%s0 + $0x138] sm:$0xf]
  %v106 = vld [vmem:[%s0 + $0x13c] sm:$0xf]
  %v107 = vld [vmem:[%s0 + $0x140] sm:$0xf]
  %v108 = vld [vmem:[%s0 + $0x144] sm:$0xf]
  %v109 = vld [vmem:[%s0 + $0x148] sm:$0xf]
  %v110 = vld [vmem:[%s0 + $0x14c] sm:$0xf]
  %v111 = vld [vmem:[%s0 + $0x150] sm:$0xf]
  %v112 = vld [vmem:[%s0 + $0x154] sm:$0xf]
  %v113 = vld [vmem:[%s0 + $0x158] sm:$0xf]
  %v114 = vld [vmem:[%s0 + $0x15c] sm:$0xf]
  %v115 = vld [vmem:[%s0 + $0x160] sm:$0xf]
  %v116 = vld [vmem:[%s0 + $0x164] sm:$0xf]
  %v117 = vld [vmem:[%s0 + $0x168] sm:$0xf]
  %v118 = vld [vmem:[%s0 + $0x16c] sm:$0xf]
  %v119 = vld [vmem:[%s0 + $0x170] sm:$0xf]
  %v120 = vld [vmem:[%s0 + $0x174] sm:$0xf]
  %v121 = vld [vmem:[%s0 + $0x178] sm:$0xf]
  %v122 = vld [vmem:[%s0 + $0x17c] sm:$0xf]
  %v123 = vld [vmem:[%s0 + $0x180] sm:$0xf]
  %v124 = vld [vmem:[%s0 + $0x184] sm:$0xf]
  %v125 = vld [vmem:[%s0 + $0x188] sm:$0xf]
  %v126 = vld [vmem:[%s0 + $0x18c] sm:$0xf]
  %v127 = vld [vmem:[%s0 + $0x190] sm:$0xf]
  %v128 = vld [vmem:[%s0 + $0x194] sm:$0xf]
  %v129 = vld [vmem:[%s0 + $0x198] sm:$0xf]
  %v130 = vld [vmem:[%s0 + $0x19c] sm:$0xf]
  %v131 = vld [vmem:[%s0 + $0x1a0] sm:$0xf]
  %v132 = vld [vmem:[%s0 + $0x1a4] sm:$0xf]
  %v133 = vld [vmem:[%s0 + $0x1a8] sm:$0xf]
  %v134 = vld [vmem:[%s0 + $0x1ac] sm:$0xf]
  %v135 = vld [vmem:[%s0 + $0x1b0] sm:$0xf]
  %v136 = vld [vmem:[%s0 + $0x1b4] sm:$0xf]
  %v137 = vld [vmem:[%s0 + $0x1b8] sm:$0xf]
  %v138 = vld [vmem:[%s0 + $0x1bc] sm:$0xf]
  %v139 = vld [vmem:[%s0 + $0x1c0] sm:$0xf]
  %v140 = vld [vmem:[%s0 + $0x1c4] sm:$0xf]
  %v141 = vld [vmem:[%s0 + $0x1c8] sm:$0xf]
  %v142 = vld [vmem:[%s0 + $0x1cc] sm:$0xf]
  %v143 = vld [vmem:[%s0 + $0x1d0] sm:$0xf]
  %v144 = vld [vmem:[%s0 + $0x1d4] sm:$0xf]
  %v145 = vld [vmem:[%s0 + $0x1d8] sm:$0xf]
  %v146 = vld [vmem:[%s0 + $0x1dc] sm:$0xf]
  %v147 = vld [vmem:[%s0 + $0x1e0] sm:$0xf]
  %v148 = vld [vmem:[%s0 + $0x1e4] sm:$0xf]
  %v149 = vld [vmem:[%s0 + $0x1e8] sm:$0xf]
  %v150 = vld [vmem:[%s0 + $0x1ec] sm:$0xf]
  %v151 = vld [vmem:[%s0 + $0x1f0] sm:$0xf]
  %v152 = vld [vmem:[%s0 + $0x1f4] sm:$0xf]
  %v153 = vld [vmem:[%s0 + $0x1f8] sm:$0xf]
  %v154 = vld [vmem:[%s0 + $0x1fc] sm:$0xf]
  %v155 = vld [vmem:[%s0 + $0x200] sm:$0xf]
  %v156 = vld [vmem:[%s0 + $0x204] sm:$0xf]
  %v157 = vld [vmem:[%s0 + $0x208] sm:$0xf]
  %v158 = vld [vmem:[%s0 + $0x20c] sm:$0xf]
  %v159 = vld [vmem:[%s0 + $0x210] sm:$0xf]
  %v160 = vld [vmem:[%s0 + $0x214] sm:$0xf]
  %v161 = vld [vmem:[%s0 + $0x218] sm:$0xf]
  %v162 = vld [vmem:[%s0 + $0x21c] sm:$0xf]
  %v163 = vld [vmem:[%s0 + $0x220] sm:$0xf]
  %v164 = vld [vmem:[%s0 + $0x224] sm:$0xf]
  %v165 = vld [vmem:[%s0 + $0x228] sm:$0xf]
  %v166 = vld [vmem:[%s0 + $0x22c] sm:$0xf]
  %v167 = vld [vmem:[%s0 + $0x230] sm:$0xf]
  %v168 = vld [vmem:[%s0 + $0x234] sm:$0xf]
  %v169 = vld [vmem:[%s0 + $0x238] sm:$0xf]
  %v170 = vld [vmem:[%s0 + $0x23c] sm:$0xf]
  %v171 = vld [vmem:[%s0 + $0x240] sm:$0xf]
  %v172 = vld [vmem:[%s0 + $0x244] sm:$0xf]
  %v173 = vld [vmem:[%s0 + $0x248] sm:$0xf]
  %v174 = vld [vmem:[%s0 + $0x24c] sm:$0xf]
  %v175 = vld [vmem:[%s0 + $0x250] sm:$0xf]
  %v176 = vld [vmem:[%s0 + $0x254] sm:$0xf]
  %v177 = vld [vmem:[%s0 + $0x258] sm:$0xf]
  %v178 = vld [vmem:[%s0 + $0x25c] sm:$0xf]
  %v179 = vld [vmem:[%s0 + $0x260] sm:$0xf]
  %v180 = vld [vmem:[%s0 + $0x264] sm:$0xf]
  %v181 = vld [vmem:[%s0 + $0x268] sm:$0xf]
  %v182 = vld [vmem:[%s0 + $0x26c] sm:$0xf]
  %v183 = vld [vmem:[%s0 + $0x270] sm:$0xf]
  %v184 = vld [vmem:[%s0 + $0x274] sm:$0xf]
  %v185 = vld [vmem:[%s0 + $0x278] sm:$0xf]
  %v186 = vld [vmem:[%s0 + $0x27c] sm:$0xf]
  %v187 = vld [vmem:[%s0 + $0x280] sm:$0xf]
  %v188 = vld [vmem:[%s0 + $0x284] sm:$0xf]
  %v189 = vld [vmem:[%s0 + $0x288] sm:$0xf]
  %v190 = vld [vmem:[%s0 + $0x28c] sm:$0xf]
  %v191 = vld [vmem:[%s0 + $0x290] sm:$0xf]
  %v192 = vld [vmem:[%s0 + $0x294] sm:$0xf]
  %v193 = vld [vmem:[%s0 + $0x298] sm:$0xf]
  %v194 = vld [vmem:[%s0 + $0x29c] sm:$0xf]
  %v195 = vld [vmem:[%s0 + $0x2a0] sm:$0xf]
  %v196 = vld [vmem:[%s0 + $0x2a4] sm:$0xf]
  %v197 = vld [vmem:[%s0 + $0x2a8] sm:$0xf]
  %v198 = vld [vmem:[%s0 + $0x2ac] sm:$0xf]
  %v199 = vld [vmem:[%s0 + $0x2b0] sm:$0xf]
  %v200 = vld [vmem:[%s0 + $0x2b4] sm:$0xf]
  %v201 = vld [vmem:[%s0 + $0x2b8] sm:$0xf]
  %v202 = vld [vmem:[%s0 + $0x2bc] sm:$0xf]
  %v203 = vld [vmem:[%s0 + $0x2c0] sm:$0xf]
  %v204 = vld [vmem:[%s0 + $0x2c4] sm:$0xf]
  %v205 = vld [vmem:[%s0 + $0x2c8] sm:$0xf]
  %v206 = vld [vmem:[%s0 + $0x2cc] sm:$0xf]
  %v207 = vld [vmem:[%s0 + $0x2d0] sm:$0xf]
  %v208 = vld [vmem:[%s0 + $0x2d4] sm:$0xf]
  %v209 = vld [vmem:[%s0 + $0x2d8] sm:$0xf]
  %v210 = vld [vmem:[%s0 + $0x2dc] sm:$0xf]
  %v211 = vld [vmem:[%s0 + $0x2e0] sm:$0xf]
  %v212 = vld [vmem:[%s0 + $0x2e4] sm:$0xf]
  %v213 = vld [vmem:[%s0 + $0x2e8] sm:$0xf]
  %v214 = vld [vmem:[%s0 + $0x2ec] sm:$0xf]
  %v215 = vld [vmem:[%s0 + $0x2f0] sm:$0xf]
  %v216 = vld [vmem:[%s0 + $0x2f4] sm:$0xf]
  %v217 = vld [vmem:[%s0 + $0x2f8] sm:$0xf]
  %v218 = vld [vmem:[%s0 + $0x2fc] sm:$0xf]
  %v219 = vld [vmem:[%s0 + $0x300] sm:$0xf]
  %v220 = vld [vmem:[%s0 + $0x304] sm:$0xf]
  %v221 = vld [vmem:[%s0 + $0x308] sm:$0xf]
  %v222 = vld [vmem:[%s0 + $0x30c] sm:$0xf]
  %v223 = vld [vmem:[%s0 + $0x310] sm:$0xf]
  %v224 = vld [vmem:[%s0 + $0x314] sm:$0xf]
  %v225 = vld [vmem:[%s0 + $0x318] sm:$0xf]
  %v226 = vld [vmem:[%s0 + $0x31c] sm:$0xf]
  %v227 = vld [vmem:[%s0 + $0x320] sm:$0xf]
  %v228 = vld [vmem:[%s0 + $0x324] sm:$0xf]
  %v229 = vld [vmem:[%s0 + $0x328] sm:$0xf]
  %v230 = vld [vmem:[%s0 + $0x32c] sm:$0xf]
  %v231 = vld [vmem:[%s0 + $0x330] sm:$0xf]
  %v232 = vld [vmem:[%s0 + $0x334] sm:$0xf]
  %v233 = vld [vmem:[%s0 + $0x338] sm:$0xf]
  %v234 = vld [vmem:[%s0 + $0x33c] sm:$0xf]
  %v235 = vld [vmem:[%s0 + $0x340] sm:$0xf]
  %v236 = vld [vmem:[%s0 + $0x344] sm:$0xf]
  %v237 = vld [vmem:[%s0 + $0x348] sm:$0xf]
  %v238 = vld [vmem:[%s0 + $0x34c] sm:$0xf]
  %v239 = vld [vmem:[%s0 + $0x350] sm:$0xf]
  %v240 = vld [vmem:[%s0 + $0x354] sm:$0xf]
  %v241 = vld [vmem:[%s0 + $0x358] sm:$0xf]
  %v242 = vld [vmem:[%s0 + $0x35c] sm:$0xf]
  %v243 = vld [vmem:[%s0 + $0x360] sm:$0xf]
  %v244 = vld [vmem:[%s0 + $0x364] sm:$0xf]
  %v245 = vld [vmem:[%s0 + $0x368] sm:$0xf]
  %v246 = vld [vmem:[%s0 + $0x36c] sm:$0xf]
  %v247 = vld [vmem:[%s0 + $0x370] sm:$0xf]
  %v248 = vld [vmem:[%s0 + $0x374] sm:$0xf]
  %v249 = vld [vmem:[%s0 + $0x378] sm:$0xf]
  %v250 = vld [vmem:[%s0 + $0x37c] sm:$0xf]
  %v251 = vld [vmem:[%s0 + $0x380] sm:$0xf]
  %v252 = vld [vmem:[%s0 + $0x384] sm:$0xf]
  %v253 = vld [vmem:[%s0 + $0x388] sm:$0xf]
  %v254 = vld [vmem:[%s0 + $0x38c] sm:$0xf]
  %v255 = vld [vmem:[%s0 + $0x390] sm:$0xf]
  %v256 = vld [vmem:[%s0 + $0x394] sm:$0xf]
  %v257 = vld [vmem:[%s0 + $0x398] sm:$0xf]
  %v258 = vld [vmem:[%s0 + $0x39c] sm:$0xf]
  %v259 = vld [vmem:[%s0 + $0x3a0] sm:$0xf]
  %v260 = vld [vmem:[%s0 + $0x3a4] sm:$0xf]
  %v261 = vld [vmem:[%s0 + $0x3a8] sm:$0xf]
  %v262 = vld [vmem:[%s0 + $0x3ac] sm:$0xf]
  %v263 = vld [vmem:[%s0 + $0x3b0] sm:$0xf]
  %v264 = vld [vmem:[%s0 + $0x3b4] sm:$0xf]
  %v265 = vld [vmem:[%s0 + $0x3b8] sm:$0xf]
  %v266 = vld [vmem:[%s0 + $0x3bc] sm:$0xf]
  %v267 = vld [vmem:[%s0 + $0x3c0] sm:$0xf]
  %v268 = vld [vmem:[%s0 + $0x3c4] sm:$0xf]
  %v269 = vld [vmem:[%s0 + $0x3c8] sm:$0xf]
  %v270 = vld [vmem:[%s0 + $0x3cc] sm:$0xf]
  %v271 = vld [vmem:[%s0 + $0x3d0] sm:$0xf]
  %v272 = vld [vmem:[%s0 + $0x3d4] sm:$0xf]
  %v273 = vld [vmem:[%s0 + $0x3d8] sm:$0xf]
  %v274 = vld [vmem:[%s0 + $0x3dc] sm:$0xf]
  %v275 = vld [vmem:[%s0 + $0x3e0] sm:$0xf]
  %v276 = vld [vmem:[%s0 + $0x3e4] sm:$0xf]
  %v277 = vld [vmem:[%s0 + $0x3e8] sm:$0xf]
  %v278 = vld [vmem:[%s0 + $0x3ec] sm:$0xf]
  %v279 = vld [vmem:[%s0 + $0x3f0] sm:$0xf]
  %v280 = vld [vmem:[%s0 + $0x3f4] sm:$0xf]
  %v281 = vld [vmem:[%s0 + $0x3f8] sm:$0xf]
  %v282 = vld [vmem:[%s0 + $0x3fc] sm:$0xf]
  %v283 = vld [vmem:[%s1] sm:$0xf]
  %v284 = vld [vmem:[%s1 + $0x4] sm:$0xf]
  %v285 = vld [vmem:[%s1 + $0x8] sm:$0xf]
  %v286 = vld [vmem:[%s1 + $0xc] sm:$0xf]
  %v287 = vld [vmem:[%s2] sm:$0x1]
  %v289 = vperm.slane %v287, 0
  %v547 = vunpack.c.l.b16 %v27
  %v548 = vunpack.c.l.b16 %v28
  %v549 = vunpack.c.l.b16 %v29
  %v550 = vunpack.c.l.b16 %v30
  %v551 = vunpack.c.l.b16 %v31
  %v552 = vunpack.c.l.b16 %v32
  %v553 = vunpack.c.l.b16 %v33
  %v554 = vunpack.c.l.b16 %v34
  %v555 = vunpack.c.l.b16 %v35
  %v556 = vunpack.c.l.b16 %v36
  %v557 = vunpack.c.l.b16 %v37
  %v558 = vunpack.c.l.b16 %v38
  %v559 = vunpack.c.l.b16 %v39
  %v560 = vunpack.c.l.b16 %v40
  %v561 = vunpack.c.l.b16 %v41
  %v562 = vunpack.c.l.b16 %v42
  %v563 = vunpack.c.l.b16 %v43
  %v564 = vunpack.c.l.b16 %v44
  %v565 = vunpack.c.l.b16 %v45
  %v566 = vunpack.c.l.b16 %v46
  %v567 = vunpack.c.l.b16 %v47
  %v568 = vunpack.c.l.b16 %v48
  %v569 = vunpack.c.l.b16 %v49
  %v570 = vunpack.c.l.b16 %v50
  %v571 = vunpack.c.l.b16 %v51
  %v572 = vunpack.c.l.b16 %v52
  %v573 = vunpack.c.l.b16 %v53
  %v574 = vunpack.c.l.b16 %v54
  %v575 = vunpack.c.l.b16 %v55
  %v576 = vunpack.c.l.b16 %v56
  %v577 = vunpack.c.l.b16 %v57
  %v578 = vunpack.c.l.b16 %v58
  %v579 = vunpack.c.l.b16 %v59
  %v580 = vunpack.c.l.b16 %v60
  %v581 = vunpack.c.l.b16 %v61
  %v582 = vunpack.c.l.b16 %v62
  %v583 = vunpack.c.l.b16 %v63
  %v584 = vunpack.c.l.b16 %v64
  %v585 = vunpack.c.l.b16 %v65
  %v586 = vunpack.c.l.b16 %v66
  %v587 = vunpack.c.l.b16 %v67
  %v588 = vunpack.c.l.b16 %v68
  %v589 = vunpack.c.l.b16 %v69
  %v590 = vunpack.c.l.b16 %v70
  %v591 = vunpack.c.l.b16 %v71
  %v592 = vunpack.c.l.b16 %v72
  %v593 = vunpack.c.l.b16 %v73
  %v594 = vunpack.c.l.b16 %v74
  %v595 = vunpack.c.l.b16 %v75
  %v596 = vunpack.c.l.b16 %v76
  %v597 = vunpack.c.l.b16 %v77
  %v598 = vunpack.c.l.b16 %v78
  %v599 = vunpack.c.l.b16 %v79
  %v600 = vunpack.c.l.b16 %v80
  %v601 = vunpack.c.l.b16 %v81
  %v602 = vunpack.c.l.b16 %v82
  %v603 = vunpack.c.l.b16 %v83
  %v604 = vunpack.c.l.b16 %v84
  %v605 = vunpack.c.l.b16 %v85
  %v606 = vunpack.c.l.b16 %v86
  %v607 = vunpack.c.l.b16 %v87
  %v608 = vunpack.c.l.b16 %v88
  %v609 = vunpack.c.l.b16 %v89
  %v610 = vunpack.c.l.b16 %v90
  %v611 = vunpack.c.l.b16 %v91
  %v612 = vunpack.c.l.b16 %v92
  %v613 = vunpack.c.l.b16 %v93
  %v614 = vunpack.c.l.b16 %v94
  %v615 = vunpack.c.l.b16 %v95
  %v616 = vunpack.c.l.b16 %v96
  %v617 = vunpack.c.l.b16 %v97
  %v618 = vunpack.c.l.b16 %v98
  %v619 = vunpack.c.l.b16 %v99
  %v620 = vunpack.c.l.b16 %v100
  %v621 = vunpack.c.l.b16 %v101
  %v622 = vunpack.c.l.b16 %v102
  %v623 = vunpack.c.l.b16 %v103
  %v624 = vunpack.c.l.b16 %v104
  %v625 = vunpack.c.l.b16 %v105
  %v626 = vunpack.c.l.b16 %v106
  %v627 = vunpack.c.l.b16 %v107
  %v628 = vunpack.c.l.b16 %v108
  %v629 = vunpack.c.l.b16 %v109
  %v630 = vunpack.c.l.b16 %v110
  %v631 = vunpack.c.l.b16 %v111
  %v632 = vunpack.c.l.b16 %v112
  %v633 = vunpack.c.l.b16 %v113
  %v634 = vunpack.c.l.b16 %v114
  %v635 = vunpack.c.l.b16 %v115
  %v636 = vunpack.c.l.b16 %v116
  %v637 = vunpack.c.l.b16 %v117
  %v638 = vunpack.c.l.b16 %v118
  %v639 = vunpack.c.l.b16 %v119
  %v640 = vunpack.c.l.b16 %v120
  %v641 = vunpack.c.l.b16 %v121
  %v642 = vunpack.c.l.b16 %v122
  %v643 = vunpack.c.l.b16 %v123
  %v644 = vunpack.c.l.b16 %v124
  %v645 = vunpack.c.l.b16 %v125
  %v646 = vunpack.c.l.b16 %v126
  %v647 = vunpack.c.l.b16 %v127
  %v648 = vunpack.c.l.b16 %v128
  %v649 = vunpack.c.l.b16 %v129
  %v650 = vunpack.c.l.b16 %v130
  %v651 = vunpack.c.l.b16 %v131
  %v652 = vunpack.c.l.b16 %v132
  %v653 = vunpack.c.l.b16 %v133
  %v654 = vunpack.c.l.b16 %v134
  %v655 = vunpack.c.l.b16 %v135
  %v656 = vunpack.c.l.b16 %v136
  %v657 = vunpack.c.l.b16 %v137
  %v658 = vunpack.c.l.b16 %v138
  %v659 = vunpack.c.l.b16 %v139
  %v660 = vunpack.c.l.b16 %v140
  %v661 = vunpack.c.l.b16 %v141
  %v662 = vunpack.c.l.b16 %v142
  %v663 = vunpack.c.l.b16 %v143
  %v664 = vunpack.c.l.b16 %v144
  %v665 = vunpack.c.l.b16 %v145
  %v666 = vunpack.c.l.b16 %v146
  %v667 = vunpack.c.l.b16 %v147
  %v668 = vunpack.c.l.b16 %v148
  %v669 = vunpack.c.l.b16 %v149
  %v670 = vunpack.c.l.b16 %v150
  %v671 = vunpack.c.l.b16 %v151
  %v672 = vunpack.c.l.b16 %v152
  %v673 = vunpack.c.l.b16 %v153
  %v674 = vunpack.c.l.b16 %v154
  %v675 = vunpack.c.l.b16 %v155
  %v676 = vunpack.c.l.b16 %v156
  %v677 = vunpack.c.l.b16 %v157
  %v678 = vunpack.c.l.b16 %v158
  %v679 = vunpack.c.l.b16 %v159
  %v680 = vunpack.c.l.b16 %v160
  %v681 = vunpack.c.l.b16 %v161
  %v682 = vunpack.c.l.b16 %v162
  %v683 = vunpack.c.l.b16 %v163
  %v684 = vunpack.c.l.b16 %v164
  %v685 = vunpack.c.l.b16 %v165
  %v686 = vunpack.c.l.b16 %v166
  %v687 = vunpack.c.l.b16 %v167
  %v688 = vunpack.c.l.b16 %v168
  %v689 = vunpack.c.l.b16 %v169
  %v690 = vunpack.c.l.b16 %v170
  %v691 = vunpack.c.l.b16 %v171
  %v692 = vunpack.c.l.b16 %v172
  %v693 = vunpack.c.l.b16 %v173
  %v694 = vunpack.c.l.b16 %v174
  %v695 = vunpack.c.l.b16 %v175
  %v696 = vunpack.c.l.b16 %v176
  %v697 = vunpack.c.l.b16 %v177
  %v698 = vunpack.c.l.b16 %v178
  %v699 = vunpack.c.l.b16 %v179
  %v700 = vunpack.c.l.b16 %v180
  %v701 = vunpack.c.l.b16 %v181
  %v702 = vunpack.c.l.b16 %v182
  %v703 = vunpack.c.l.b16 %v183
  %v704 = vunpack.c.l.b16 %v184
  %v705 = vunpack.c.l.b16 %v185
  %v706 = vunpack.c.l.b16 %v186
  %v707 = vunpack.c.l.b16 %v187
  %v708 = vunpack.c.l.b16 %v188
  %v709 = vunpack.c.l.b16 %v189
  %v710 = vunpack.c.l.b16 %v190
  %v711 = vunpack.c.l.b16 %v191
  %v712 = vunpack.c.l.b16 %v192
  %v713 = vunpack.c.l.b16 %v193
  %v714 = vunpack.c.l.b16 %v194
  %v715 = vunpack.c.l.b16 %v195
  %v716 = vunpack.c.l.b16 %v196
  %v717 = vunpack.c.l.b16 %v197
  %v718 = vunpack.c.l.b16 %v198
  %v719 = vunpack.c.l.b16 %v199
  %v720 = vunpack.c.l.b16 %v200
  %v721 = vunpack.c.l.b16 %v201
  %v722 = vunpack.c.l.b16 %v202
  %v723 = vunpack.c.l.b16 %v203
  %v724 = vunpack.c.l.b16 %v204
  %v725 = vunpack.c.l.b16 %v205
  %v726 = vunpack.c.l.b16 %v206
  %v727 = vunpack.c.l.b16 %v207
  %v728 = vunpack.c.l.b16 %v208
  %v729 = vunpack.c.l.b16 %v209
  %v730 = vunpack.c.l.b16 %v210
  %v731 = vunpack.c.l.b16 %v211
  %v732 = vunpack.c.l.b16 %v212
  %v733 = vunpack.c.l.b16 %v213
  %v734 = vunpack.c.l.b16 %v214
  %v735 = vunpack.c.l.b16 %v215
  %v736 = vunpack.c.l.b16 %v216
  %v737 = vunpack.c.l.b16 %v217
  %v738 = vunpack.c.l.b16 %v218
  %v739 = vunpack.c.l.b16 %v219
  %v740 = vunpack.c.l.b16 %v220
  %v741 = vunpack.c.l.b16 %v221
  %v742 = vunpack.c.l.b16 %v222
  %v743 = vunpack.c.l.b16 %v223
  %v744 = vunpack.c.l.b16 %v224
  %v745 = vunpack.c.l.b16 %v225
  %v746 = vunpack.c.l.b16 %v226
  %v747 = vunpack.c.l.b16 %v227
  %v748 = vunpack.c.l.b16 %v228
  %v749 = vunpack.c.l.b16 %v229
  %v750 = vunpack.c.l.b16 %v230
  %v751 = vunpack.c.l.b16 %v231
  %v752 = vunpack.c.l.b16 %v232
  %v753 = vunpack.c.l.b16 %v233
  %v754 = vunpack.c.l.b16 %v234
  %v755 = vunpack.c.l.b16 %v235
  %v756 = vunpack.c.l.b16 %v236
  %v757 = vunpack.c.l.b16 %v237
  %v758 = vunpack.c.l.b16 %v238
  %v759 = vunpack.c.l.b16 %v239
  %v760 = vunpack.c.l.b16 %v240
  %v761 = vunpack.c.l.b16 %v241
  %v762 = vunpack.c.l.b16 %v242
  %v763 = vunpack.c.l.b16 %v243
  %v764 = vunpack.c.l.b16 %v244
  %v765 = vunpack.c.l.b16 %v245
  %v766 = vunpack.c.l.b16 %v246
  %v767 = vunpack.c.l.b16 %v247
  %v768 = vunpack.c.l.b16 %v248
  %v769 = vunpack.c.l.b16 %v249
  %v770 = vunpack.c.l.b16 %v250
  %v771 = vunpack.c.l.b16 %v251
  %v772 = vunpack.c.l.b16 %v252
  %v773 = vunpack.c.l.b16 %v253
  %v774 = vunpack.c.l.b16 %v254
  %v775 = vunpack.c.l.b16 %v255
  %v776 = vunpack.c.l.b16 %v256
  %v777 = vunpack.c.l.b16 %v257
  %v778 = vunpack.c.l.b16 %v258
  %v779 = vunpack.c.l.b16 %v259
  %v780 = vunpack.c.l.b16 %v260
  %v781 = vunpack.c.l.b16 %v261
  %v782 = vunpack.c.l.b16 %v262
  %v783 = vunpack.c.l.b16 %v263
  %v784 = vunpack.c.l.b16 %v264
  %v785 = vunpack.c.l.b16 %v265
  %v786 = vunpack.c.l.b16 %v266
  %v787 = vunpack.c.l.b16 %v267
  %v788 = vunpack.c.l.b16 %v268
  %v789 = vunpack.c.l.b16 %v269
  %v790 = vunpack.c.l.b16 %v270
  %v791 = vunpack.c.l.b16 %v271
  %v792 = vunpack.c.l.b16 %v272
  %v793 = vunpack.c.l.b16 %v273
  %v794 = vunpack.c.l.b16 %v274
  %v795 = vunpack.c.l.b16 %v275
  %v796 = vunpack.c.l.b16 %v276
  %v797 = vunpack.c.l.b16 %v277
  %v798 = vunpack.c.l.b16 %v278
  %v799 = vunpack.c.l.b16 %v279
  %v800 = vunpack.c.l.b16 %v280
  %v801 = vunpack.c.l.b16 %v281
  %v802 = vunpack.c.l.b16 %v282
  %v803 = vpack.c.b16 %v548, %v547
  %v804 = vpack.c.b16 %v550, %v549
  %v805 = vpack.c.b16 %v552, %v551
  %v806 = vpack.c.b16 %v554, %v553
  %v807 = vpack.c.b16 %v556, %v555
  %v808 = vpack.c.b16 %v558, %v557
  %v809 = vpack.c.b16 %v560, %v559
  %v810 = vpack.c.b16 %v562, %v561
  %v811 = vpack.c.b16 %v564, %v563
  %v812 = vpack.c.b16 %v566, %v565
  %v813 = vpack.c.b16 %v568, %v567
  %v814 = vpack.c.b16 %v570, %v569
  %v815 = vpack.c.b16 %v572, %v571
  %v816 = vpack.c.b16 %v574, %v573
  %v817 = vpack.c.b16 %v576, %v575
  %v818 = vpack.c.b16 %v578, %v577
  %v819 = vpack.c.b16 %v580, %v579
  %v820 = vpack.c.b16 %v582, %v581
  %v821 = vpack.c.b16 %v584, %v583
  %v822 = vpack.c.b16 %v586, %v585
  %v823 = vpack.c.b16 %v588, %v587
  %v824 = vpack.c.b16 %v590, %v589
  %v825 = vpack.c.b16 %v592, %v591
  %v826 = vpack.c.b16 %v594, %v593
  %v827 = vpack.c.b16 %v596, %v595
  %v828 = vpack.c.b16 %v598, %v597
  %v829 = vpack.c.b16 %v600, %v599
  %v830 = vpack.c.b16 %v602, %v601
  %v831 = vpack.c.b16 %v604, %v603
  %v832 = vpack.c.b16 %v606, %v605
  %v833 = vpack.c.b16 %v608, %v607
  %v834 = vpack.c.b16 %v610, %v609
  %v835 = vpack.c.b16 %v612, %v611
  %v836 = vpack.c.b16 %v614, %v613
  %v837 = vpack.c.b16 %v616, %v615
  %v838 = vpack.c.b16 %v618, %v617
  %v839 = vpack.c.b16 %v620, %v619
  %v840 = vpack.c.b16 %v622, %v621
  %v841 = vpack.c.b16 %v624, %v623
  %v842 = vpack.c.b16 %v626, %v625
  %v843 = vpack.c.b16 %v628, %v627
  %v844 = vpack.c.b16 %v630, %v629
  %v845 = vpack.c.b16 %v632, %v631
  %v846 = vpack.c.b16 %v634, %v633
  %v847 = vpack.c.b16 %v636, %v635
  %v848 = vpack.c.b16 %v638, %v637
  %v849 = vpack.c.b16 %v640, %v639
  %v850 = vpack.c.b16 %v642, %v641
  %v851 = vpack.c.b16 %v644, %v643
  %v852 = vpack.c.b16 %v646, %v645
  %v853 = vpack.c.b16 %v648, %v647
  %v854 = vpack.c.b16 %v650, %v649
  %v855 = vpack.c.b16 %v652, %v651
  %v856 = vpack.c.b16 %v654, %v653
  %v857 = vpack.c.b16 %v656, %v655
  %v858 = vpack.c.b16 %v658, %v657
  %v859 = vpack.c.b16 %v660, %v659
  %v860 = vpack.c.b16 %v662, %v661
  %v861 = vpack.c.b16 %v664, %v663
  %v862 = vpack.c.b16 %v666, %v665
  %v863 = vpack.c.b16 %v668, %v667
  %v864 = vpack.c.b16 %v670, %v669
  %v865 = vpack.c.b16 %v672, %v671
  %v866 = vpack.c.b16 %v674, %v673
  %v867 = vpack.c.b16 %v676, %v675
  %v868 = vpack.c.b16 %v678, %v677
  %v869 = vpack.c.b16 %v680, %v679
  %v870 = vpack.c.b16 %v682, %v681
  %v871 = vpack.c.b16 %v684, %v683
  %v872 = vpack.c.b16 %v686, %v685
  %v873 = vpack.c.b16 %v688, %v687
  %v874 = vpack.c.b16 %v690, %v689
  %v875 = vpack.c.b16 %v692, %v691
  %v876 = vpack.c.b16 %v694, %v693
  %v877 = vpack.c.b16 %v696, %v695
  %v878 = vpack.c.b16 %v698, %v697
  %v879 = vpack.c.b16 %v700, %v699
  %v880 = vpack.c.b16 %v702, %v701
  %v881 = vpack.c.b16 %v704, %v703
  %v882 = vpack.c.b16 %v706, %v705
  %v883 = vpack.c.b16 %v708, %v707
  %v884 = vpack.c.b16 %v710, %v709
  %v885 = vpack.c.b16 %v712, %v711
  %v886 = vpack.c.b16 %v714, %v713
  %v887 = vpack.c.b16 %v716, %v715
  %v888 = vpack.c.b16 %v718, %v717
  %v889 = vpack.c.b16 %v720, %v719
  %v890 = vpack.c.b16 %v722, %v721
  %v891 = vpack.c.b16 %v724, %v723
  %v892 = vpack.c.b16 %v726, %v725
  %v893 = vpack.c.b16 %v728, %v727
  %v894 = vpack.c.b16 %v730, %v729
  %v895 = vpack.c.b16 %v732, %v731
  %v896 = vpack.c.b16 %v734, %v733
  %v897 = vpack.c.b16 %v736, %v735
  %v898 = vpack.c.b16 %v738, %v737
  %v899 = vpack.c.b16 %v740, %v739
  %v900 = vpack.c.b16 %v742, %v741
  %v901 = vpack.c.b16 %v744, %v743
  %v902 = vpack.c.b16 %v746, %v745
  %v903 = vpack.c.b16 %v748, %v747
  %v904 = vpack.c.b16 %v750, %v749
  %v905 = vpack.c.b16 %v752, %v751
  %v906 = vpack.c.b16 %v754, %v753
  %v907 = vpack.c.b16 %v756, %v755
  %v908 = vpack.c.b16 %v758, %v757
  %v909 = vpack.c.b16 %v760, %v759
  %v910 = vpack.c.b16 %v762, %v761
  %v911 = vpack.c.b16 %v764, %v763
  %v912 = vpack.c.b16 %v766, %v765
  %v913 = vpack.c.b16 %v768, %v767
  %v914 = vpack.c.b16 %v770, %v769
  %v915 = vpack.c.b16 %v772, %v771
  %v916 = vpack.c.b16 %v774, %v773
  %v917 = vpack.c.b16 %v776, %v775
  %v918 = vpack.c.b16 %v778, %v777
  %v919 = vpack.c.b16 %v780, %v779
  %v920 = vpack.c.b16 %v782, %v781
  %v921 = vpack.c.b16 %v784, %v783
  %v922 = vpack.c.b16 %v786, %v785
  %v923 = vpack.c.b16 %v788, %v787
  %v924 = vpack.c.b16 %v790, %v789
  %v925 = vpack.c.b16 %v792, %v791
  %v926 = vpack.c.b16 %v794, %v793
  %v927 = vpack.c.b16 %v796, %v795
  %v928 = vpack.c.b16 %v798, %v797
  %v929 = vpack.c.b16 %v800, %v799
  %v930 = vpack.c.b16 %v802, %v801
  %v935 = vunpack.c.l.b16 %v283
  %v936 = vunpack.c.l.b16 %v284
  %v937 = vunpack.c.l.b16 %v285
  %v938 = vunpack.c.l.b16 %v286
  %v939 = vpack.c.b16 %v936, %v935
  %v940 = vpack.c.b16 %v938, %v937
  %vm943 = vcmask 261120
  %v945 = vsel %vm943, %v803, 0
  %v948 = vsel %vm943, %v804, 0
  %v951 = vsel %vm943, %v805, 0
  %v954 = vsel %vm943, %v806, 0
  %v957 = vsel %vm943, %v807, 0
  %v960 = vsel %vm943, %v808, 0
  %v963 = vsel %vm943, %v809, 0
  %v966 = vsel %vm943, %v810, 0
  %v969 = vsel %vm943, %v811, 0
  %v972 = vsel %vm943, %v812, 0
  %v975 = vsel %vm943, %v813, 0
  %v978 = vsel %vm943, %v814, 0
  %v981 = vsel %vm943, %v815, 0
  %v984 = vsel %vm943, %v816, 0
  %v987 = vsel %vm943, %v817, 0
  %v990 = vsel %vm943, %v818, 0
  %v993 = vsel %vm943, %v819, 0
  %v996 = vsel %vm943, %v820, 0
  %v999 = vsel %vm943, %v821, 0
  %v1002 = vsel %vm943, %v822, 0
  %v1005 = vsel %vm943, %v823, 0
  %v1008 = vsel %vm943, %v824, 0
  %v1011 = vsel %vm943, %v825, 0
  %v1014 = vsel %vm943, %v826, 0
  %v1017 = vsel %vm943, %v827, 0
  %v1020 = vsel %vm943, %v828, 0
  %v1023 = vsel %vm943, %v829, 0
  %v1026 = vsel %vm943, %v830, 0
  %v1029 = vsel %vm943, %v831, 0
  %v1032 = vsel %vm943, %v832, 0
  %v1035 = vsel %vm943, %v833, 0
  %v1038 = vsel %vm943, %v834, 0
  %v1041 = vsel %vm943, %v835, 0
  %v1044 = vsel %vm943, %v836, 0
  %v1047 = vsel %vm943, %v837, 0
  %v1050 = vsel %vm943, %v838, 0
  %v1053 = vsel %vm943, %v839, 0
  %v1056 = vsel %vm943, %v840, 0
  %v1059 = vsel %vm943, %v841, 0
  %v1062 = vsel %vm943, %v842, 0
  %v1065 = vsel %vm943, %v843, 0
  %v1068 = vsel %vm943, %v844, 0
  %v1071 = vsel %vm943, %v845, 0
  %v1074 = vsel %vm943, %v846, 0
  %v1077 = vsel %vm943, %v847, 0
  %v1080 = vsel %vm943, %v848, 0
  %v1083 = vsel %vm943, %v849, 0
  %v1086 = vsel %vm943, %v850, 0
  %v1089 = vsel %vm943, %v851, 0
  %v1092 = vsel %vm943, %v852, 0
  %v1095 = vsel %vm943, %v853, 0
  %v1098 = vsel %vm943, %v854, 0
  %v1101 = vsel %vm943, %v855, 0
  %v1104 = vsel %vm943, %v856, 0
  %v1107 = vsel %vm943, %v857, 0
  %v1110 = vsel %vm943, %v858, 0
  %v1113 = vsel %vm943, %v859, 0
  %v1116 = vsel %vm943, %v860, 0
  %v1119 = vsel %vm943, %v861, 0
  %v1122 = vsel %vm943, %v862, 0
  %v1125 = vsel %vm943, %v863, 0
  %v1128 = vsel %vm943, %v864, 0
  %v1131 = vsel %vm943, %v865, 0
  %v1134 = vsel %vm943, %v866, 0
  %v1137 = vsel %vm943, %v867, 0
  %v1140 = vsel %vm943, %v868, 0
  %v1143 = vsel %vm943, %v869, 0
  %v1146 = vsel %vm943, %v870, 0
  %v1149 = vsel %vm943, %v871, 0
  %v1152 = vsel %vm943, %v872, 0
  %v1155 = vsel %vm943, %v873, 0
  %v1158 = vsel %vm943, %v874, 0
  %v1161 = vsel %vm943, %v875, 0
  %v1164 = vsel %vm943, %v876, 0
  %v1167 = vsel %vm943, %v877, 0
  %v1170 = vsel %vm943, %v878, 0
  %v1173 = vsel %vm943, %v879, 0
  %v1176 = vsel %vm943, %v880, 0
  %v1179 = vsel %vm943, %v881, 0
  %v1182 = vsel %vm943, %v882, 0
  %v1185 = vsel %vm943, %v883, 0
  %v1188 = vsel %vm943, %v884, 0
  %v1191 = vsel %vm943, %v885, 0
  %v1194 = vsel %vm943, %v886, 0
  %v1197 = vsel %vm943, %v887, 0
  %v1200 = vsel %vm943, %v888, 0
  %v1203 = vsel %vm943, %v889, 0
  %v1206 = vsel %vm943, %v890, 0
  %v1209 = vsel %vm943, %v891, 0
  %v1212 = vsel %vm943, %v892, 0
  %v1215 = vsel %vm943, %v893, 0
  %v1218 = vsel %vm943, %v894, 0
  %v1221 = vsel %vm943, %v895, 0
  %v1224 = vsel %vm943, %v896, 0
  %v1227 = vsel %vm943, %v897, 0
  %v1230 = vsel %vm943, %v898, 0
  %v1233 = vsel %vm943, %v899, 0
  %v1236 = vsel %vm943, %v900, 0
  %v1239 = vsel %vm943, %v901, 0
  %v1242 = vsel %vm943, %v902, 0
  %v1245 = vsel %vm943, %v903, 0
  %v1248 = vsel %vm943, %v904, 0
  %v1251 = vsel %vm943, %v905, 0
  %v1254 = vsel %vm943, %v906, 0
  %v1257 = vsel %vm943, %v907, 0
  %v1260 = vsel %vm943, %v908, 0
  %v1263 = vsel %vm943, %v909, 0
  %v1266 = vsel %vm943, %v910, 0
  %v1269 = vsel %vm943, %v911, 0
  %v1272 = vsel %vm943, %v912, 0
  %v1275 = vsel %vm943, %v913, 0
  %v1278 = vsel %vm943, %v914, 0
  %v1281 = vsel %vm943, %v915, 0
  %v1284 = vsel %vm943, %v916, 0
  %v1287 = vsel %vm943, %v917, 0
  %v1290 = vsel %vm943, %v918, 0
  %v1293 = vsel %vm943, %v919, 0
  %v1296 = vsel %vm943, %v920, 0
  %v1299 = vsel %vm943, %v921, 0
  %v1302 = vsel %vm943, %v922, 0
  %v1305 = vsel %vm943, %v923, 0
  %v1308 = vsel %vm943, %v924, 0
  %v1311 = vsel %vm943, %v925, 0
  %v1314 = vsel %vm943, %v926, 0
  %v1317 = vsel %vm943, %v927, 0
  %v1320 = vsel %vm943, %v928, 0
  %v1323 = vsel %vm943, %v929, 0
  %v1326 = vsel %vm943, %v930, 0
  %1328 = vmatpush.bf16.msra.mxu0 0
  %1329 = vmatpush.bf16.msra.mxu0 0
  %1330 = vmatpush.bf16.msra.mxu0 0
  %1331 = vmatpush.bf16.msra.mxu0 0
  %1332 = vmatpush.bf16.msra.mxu0 0
  %1333 = vmatpush.bf16.msra.mxu0 0
  %1334 = vmatpush.bf16.msra.mxu0 %v940
  %1335 = vmatpush.bf16.msra.mxu0 %v939
  %1336 = vmatmul.bf16.gmra.mxu0 %v945
  %v1337 = vpop.f32.mrf.mxu0
  %v1338 = vadd.f32 %v289, %v1337
  %v1339 = vpop.f32.mrf.mxu0
  %v1340 = vadd.f32 %v289, %v1339
  %1341 = vmatmul.bf16.gmra.mxu0 %v948
  %v1342 = vpop.f32.mrf.mxu0
  %v1343 = vadd.f32 %v289, %v1342
  %v1344 = vpop.f32.mrf.mxu0
  %v1345 = vadd.f32 %v289, %v1344
  %1346 = vmatmul.bf16.gmra.mxu0 %v951
  %v1347 = vpop.f32.mrf.mxu0
  %v1348 = vadd.f32 %v289, %v1347
  %v1349 = vpop.f32.mrf.mxu0
  %v1350 = vadd.f32 %v289, %v1349
  %1351 = vmatmul.bf16.gmra.mxu0 %v954
  %v1352 = vpop.f32.mrf.mxu0
  %v1353 = vadd.f32 %v289, %v1352
  %v1354 = vpop.f32.mrf.mxu0
  %v1355 = vadd.f32 %v289, %v1354
  %1356 = vmatmul.bf16.gmra.mxu0 %v957
  %v1357 = vpop.f32.mrf.mxu0
  %v1358 = vadd.f32 %v289, %v1357
  %v1359 = vpop.f32.mrf.mxu0
  %v1360 = vadd.f32 %v289, %v1359
  %1361 = vmatmul.bf16.gmra.mxu0 %v960
  %v1362 = vpop.f32.mrf.mxu0
  %v1363 = vadd.f32 %v289, %v1362
  %v1364 = vpop.f32.mrf.mxu0
  %v1365 = vadd.f32 %v289, %v1364
  %1366 = vmatmul.bf16.gmra.mxu0 %v963
  %v1367 = vpop.f32.mrf.mxu0
  %v1368 = vadd.f32 %v289, %v1367
  %v1369 = vpop.f32.mrf.mxu0
  %v1370 = vadd.f32 %v289, %v1369
  %1371 = vmatmul.bf16.gmra.mxu0 %v966
  %v1372 = vpop.f32.mrf.mxu0
  %v1373 = vadd.f32 %v289, %v1372
  %v1374 = vpop.f32.mrf.mxu0
  %v1375 = vadd.f32 %v289, %v1374
  %1376 = vmatmul.bf16.gmra.mxu0 %v969
  %v1377 = vpop.f32.mrf.mxu0
  %v1378 = vadd.f32 %v289, %v1377
  %v1379 = vpop.f32.mrf.mxu0
  %v1380 = vadd.f32 %v289, %v1379
  %1381 = vmatmul.bf16.gmra.mxu0 %v972
  %v1382 = vpop.f32.mrf.mxu0
  %v1383 = vadd.f32 %v289, %v1382
  %v1384 = vpop.f32.mrf.mxu0
  %v1385 = vadd.f32 %v289, %v1384
  %1386 = vmatmul.bf16.gmra.mxu0 %v975
  %v1387 = vpop.f32.mrf.mxu0
  %v1388 = vadd.f32 %v289, %v1387
  %v1389 = vpop.f32.mrf.mxu0
  %v1390 = vadd.f32 %v289, %v1389
  %1391 = vmatmul.bf16.gmra.mxu0 %v978
  %v1392 = vpop.f32.mrf.mxu0
  %v1393 = vadd.f32 %v289, %v1392
  %v1394 = vpop.f32.mrf.mxu0
  %v1395 = vadd.f32 %v289, %v1394
  %1396 = vmatmul.bf16.gmra.mxu0 %v981
  %v1397 = vpop.f32.mrf.mxu0
  %v1398 = vadd.f32 %v289, %v1397
  %v1399 = vpop.f32.mrf.mxu0
  %v1400 = vadd.f32 %v289, %v1399
  %1401 = vmatmul.bf16.gmra.mxu0 %v984
  %v1402 = vpop.f32.mrf.mxu0
  %v1403 = vadd.f32 %v289, %v1402
  %v1404 = vpop.f32.mrf.mxu0
  %v1405 = vadd.f32 %v289, %v1404
  %1406 = vmatmul.bf16.gmra.mxu0 %v987
  %v1407 = vpop.f32.mrf.mxu0
  %v1408 = vadd.f32 %v289, %v1407
  %v1409 = vpop.f32.mrf.mxu0
  %v1410 = vadd.f32 %v289, %v1409
  %1411 = vmatmul.bf16.gmra.mxu0 %v990
  %v1412 = vpop.f32.mrf.mxu0
  %v1413 = vadd.f32 %v289, %v1412
  %v1414 = vpop.f32.mrf.mxu0
  %v1415 = vadd.f32 %v289, %v1414
  %1416 = vmatmul.bf16.gmra.mxu0 %v993
  %v1417 = vpop.f32.mrf.mxu0
  %v1418 = vadd.f32 %v289, %v1417
  %v1419 = vpop.f32.mrf.mxu0
  %v1420 = vadd.f32 %v289, %v1419
  %1421 = vmatmul.bf16.gmra.mxu0 %v996
  %v1422 = vpop.f32.mrf.mxu0
  %v1423 = vadd.f32 %v289, %v1422
  %v1424 = vpop.f32.mrf.mxu0
  %v1425 = vadd.f32 %v289, %v1424
  %1426 = vmatmul.bf16.gmra.mxu0 %v999
  %v1427 = vpop.f32.mrf.mxu0
  %v1428 = vadd.f32 %v289, %v1427
  %v1429 = vpop.f32.mrf.mxu0
  %v1430 = vadd.f32 %v289, %v1429
  %1431 = vmatmul.bf16.gmra.mxu0 %v1002
  %v1432 = vpop.f32.mrf.mxu0
  %v1433 = vadd.f32 %v289, %v1432
  %v1434 = vpop.f32.mrf.mxu0
  %v1435 = vadd.f32 %v289, %v1434
  %1436 = vmatmul.bf16.gmra.mxu0 %v1005
  %v1437 = vpop.f32.mrf.mxu0
  %v1438 = vadd.f32 %v289, %v1437
  %v1439 = vpop.f32.mrf.mxu0
  %v1440 = vadd.f32 %v289, %v1439
  %1441 = vmatmul.bf16.gmra.mxu0 %v1008
  %v1442 = vpop.f32.mrf.mxu0
  %v1443 = vadd.f32 %v289, %v1442
  %v1444 = vpop.f32.mrf.mxu0
  %v1445 = vadd.f32 %v289, %v1444
  %1446 = vmatmul.bf16.gmra.mxu0 %v1011
  %v1447 = vpop.f32.mrf.mxu0
  %v1448 = vadd.f32 %v289, %v1447
  %v1449 = vpop.f32.mrf.mxu0
  %v1450 = vadd.f32 %v289, %v1449
  %1451 = vmatmul.bf16.gmra.mxu0 %v1014
  %v1452 = vpop.f32.mrf.mxu0
  %v1453 = vadd.f32 %v289, %v1452
  %v1454 = vpop.f32.mrf.mxu0
  %v1455 = vadd.f32 %v289, %v1454
  %1456 = vmatmul.bf16.gmra.mxu0 %v1017
  %v1457 = vpop.f32.mrf.mxu0
  %v1458 = vadd.f32 %v289, %v1457
  %v1459 = vpop.f32.mrf.mxu0
  %v1460 = vadd.f32 %v289, %v1459
  %1461 = vmatmul.bf16.gmra.mxu0 %v1020
  %v1462 = vpop.f32.mrf.mxu0
  %v1463 = vadd.f32 %v289, %v1462
  %v1464 = vpop.f32.mrf.mxu0
  %v1465 = vadd.f32 %v289, %v1464
  %1466 = vmatmul.bf16.gmra.mxu0 %v1023
  %v1467 = vpop.f32.mrf.mxu0
  %v1468 = vadd.f32 %v289, %v1467
  %v1469 = vpop.f32.mrf.mxu0
  %v1470 = vadd.f32 %v289, %v1469
  %1471 = vmatmul.bf16.gmra.mxu0 %v1026
  %v1472 = vpop.f32.mrf.mxu0
  %v1473 = vadd.f32 %v289, %v1472
  %v1474 = vpop.f32.mrf.mxu0
  %v1475 = vadd.f32 %v289, %v1474
  %1476 = vmatmul.bf16.gmra.mxu0 %v1029
  %v1477 = vpop.f32.mrf.mxu0
  %v1478 = vadd.f32 %v289, %v1477
  %v1479 = vpop.f32.mrf.mxu0
  %v1480 = vadd.f32 %v289, %v1479
  %1481 = vmatmul.bf16.gmra.mxu0 %v1032
  %v1482 = vpop.f32.mrf.mxu0
  %v1483 = vadd.f32 %v289, %v1482
  %v1484 = vpop.f32.mrf.mxu0
  %v1485 = vadd.f32 %v289, %v1484
  %1486 = vmatmul.bf16.gmra.mxu0 %v1035
  %v1487 = vpop.f32.mrf.mxu0
  %v1488 = vadd.f32 %v289, %v1487
  %v1489 = vpop.f32.mrf.mxu0
  %v1490 = vadd.f32 %v289, %v1489
  %1491 = vmatmul.bf16.gmra.mxu0 %v1038
  %v1492 = vpop.f32.mrf.mxu0
  %v1493 = vadd.f32 %v289, %v1492
  %v1494 = vpop.f32.mrf.mxu0
  %v1495 = vadd.f32 %v289, %v1494
  %1496 = vmatmul.bf16.gmra.mxu0 %v1041
  %v1497 = vpop.f32.mrf.mxu0
  %v1498 = vadd.f32 %v289, %v1497
  %v1499 = vpop.f32.mrf.mxu0
  %v1500 = vadd.f32 %v289, %v1499
  %1501 = vmatmul.bf16.gmra.mxu0 %v1044
  %v1502 = vpop.f32.mrf.mxu0
  %v1503 = vadd.f32 %v289, %v1502
  %v1504 = vpop.f32.mrf.mxu0
  %v1505 = vadd.f32 %v289, %v1504
  %1506 = vmatmul.bf16.gmra.mxu0 %v1047
  %v1507 = vpop.f32.mrf.mxu0
  %v1508 = vadd.f32 %v289, %v1507
  %v1509 = vpop.f32.mrf.mxu0
  %v1510 = vadd.f32 %v289, %v1509
  %1511 = vmatmul.bf16.gmra.mxu0 %v1050
  %v1512 = vpop.f32.mrf.mxu0
  %v1513 = vadd.f32 %v289, %v1512
  %v1514 = vpop.f32.mrf.mxu0
  %v1515 = vadd.f32 %v289, %v1514
  %1516 = vmatmul.bf16.gmra.mxu0 %v1053
  %v1517 = vpop.f32.mrf.mxu0
  %v1518 = vadd.f32 %v289, %v1517
  %v1519 = vpop.f32.mrf.mxu0
  %v1520 = vadd.f32 %v289, %v1519
  %1521 = vmatmul.bf16.gmra.mxu0 %v1056
  %v1522 = vpop.f32.mrf.mxu0
  %v1523 = vadd.f32 %v289, %v1522
  %v1524 = vpop.f32.mrf.mxu0
  %v1525 = vadd.f32 %v289, %v1524
  %1526 = vmatmul.bf16.gmra.mxu0 %v1059
  %v1527 = vpop.f32.mrf.mxu0
  %v1528 = vadd.f32 %v289, %v1527
  %v1529 = vpop.f32.mrf.mxu0
  %v1530 = vadd.f32 %v289, %v1529
  %1531 = vmatmul.bf16.gmra.mxu0 %v1062
  %v1532 = vpop.f32.mrf.mxu0
  %v1533 = vadd.f32 %v289, %v1532
  %v1534 = vpop.f32.mrf.mxu0
  %v1535 = vadd.f32 %v289, %v1534
  %1536 = vmatmul.bf16.gmra.mxu0 %v1065
  %v1537 = vpop.f32.mrf.mxu0
  %v1538 = vadd.f32 %v289, %v1537
  %v1539 = vpop.f32.mrf.mxu0
  %v1540 = vadd.f32 %v289, %v1539
  %1541 = vmatmul.bf16.gmra.mxu0 %v1068
  %v1542 = vpop.f32.mrf.mxu0
  %v1543 = vadd.f32 %v289, %v1542
  %v1544 = vpop.f32.mrf.mxu0
  %v1545 = vadd.f32 %v289, %v1544
  %1546 = vmatmul.bf16.gmra.mxu0 %v1071
  %v1547 = vpop.f32.mrf.mxu0
  %v1548 = vadd.f32 %v289, %v1547
  %v1549 = vpop.f32.mrf.mxu0
  %v1550 = vadd.f32 %v289, %v1549
  %1551 = vmatmul.bf16.gmra.mxu0 %v1074
  %v1552 = vpop.f32.mrf.mxu0
  %v1553 = vadd.f32 %v289, %v1552
  %v1554 = vpop.f32.mrf.mxu0
  %v1555 = vadd.f32 %v289, %v1554
  %1556 = vmatmul.bf16.gmra.mxu0 %v1077
  %v1557 = vpop.f32.mrf.mxu0
  %v1558 = vadd.f32 %v289, %v1557
  %v1559 = vpop.f32.mrf.mxu0
  %v1560 = vadd.f32 %v289, %v1559
  %1561 = vmatmul.bf16.gmra.mxu0 %v1080
  %v1562 = vpop.f32.mrf.mxu0
  %v1563 = vadd.f32 %v289, %v1562
  %v1564 = vpop.f32.mrf.mxu0
  %v1565 = vadd.f32 %v289, %v1564
  %1566 = vmatmul.bf16.gmra.mxu0 %v1083
  %v1567 = vpop.f32.mrf.mxu0
  %v1568 = vadd.f32 %v289, %v1567
  %v1569 = vpop.f32.mrf.mxu0
  %v1570 = vadd.f32 %v289, %v1569
  %1571 = vmatmul.bf16.gmra.mxu0 %v1086
  %v1572 = vpop.f32.mrf.mxu0
  %v1573 = vadd.f32 %v289, %v1572
  %v1574 = vpop.f32.mrf.mxu0
  %v1575 = vadd.f32 %v289, %v1574
  %1576 = vmatmul.bf16.gmra.mxu0 %v1089
  %v1577 = vpop.f32.mrf.mxu0
  %v1578 = vadd.f32 %v289, %v1577
  %v1579 = vpop.f32.mrf.mxu0
  %v1580 = vadd.f32 %v289, %v1579
  %1581 = vmatmul.bf16.gmra.mxu0 %v1092
  %v1582 = vpop.f32.mrf.mxu0
  %v1583 = vadd.f32 %v289, %v1582
  %v1584 = vpop.f32.mrf.mxu0
  %v1585 = vadd.f32 %v289, %v1584
  %1586 = vmatmul.bf16.gmra.mxu0 %v1095
  %v1587 = vpop.f32.mrf.mxu0
  %v1588 = vadd.f32 %v289, %v1587
  %v1589 = vpop.f32.mrf.mxu0
  %v1590 = vadd.f32 %v289, %v1589
  %1591 = vmatmul.bf16.gmra.mxu0 %v1098
  %v1592 = vpop.f32.mrf.mxu0
  %v1593 = vadd.f32 %v289, %v1592
  %v1594 = vpop.f32.mrf.mxu0
  %v1595 = vadd.f32 %v289, %v1594
  %1596 = vmatmul.bf16.gmra.mxu0 %v1101
  %v1597 = vpop.f32.mrf.mxu0
  %v1598 = vadd.f32 %v289, %v1597
  %v1599 = vpop.f32.mrf.mxu0
  %v1600 = vadd.f32 %v289, %v1599
  %1601 = vmatmul.bf16.gmra.mxu0 %v1104
  %v1602 = vpop.f32.mrf.mxu0
  %v1603 = vadd.f32 %v289, %v1602
  %v1604 = vpop.f32.mrf.mxu0
  %v1605 = vadd.f32 %v289, %v1604
  %1606 = vmatmul.bf16.gmra.mxu0 %v1107
  %v1607 = vpop.f32.mrf.mxu0
  %v1608 = vadd.f32 %v289, %v1607
  %v1609 = vpop.f32.mrf.mxu0
  %v1610 = vadd.f32 %v289, %v1609
  %1611 = vmatmul.bf16.gmra.mxu0 %v1110
  %v1612 = vpop.f32.mrf.mxu0
  %v1613 = vadd.f32 %v289, %v1612
  %v1614 = vpop.f32.mrf.mxu0
  %v1615 = vadd.f32 %v289, %v1614
  %1616 = vmatmul.bf16.gmra.mxu0 %v1113
  %v1617 = vpop.f32.mrf.mxu0
  %v1618 = vadd.f32 %v289, %v1617
  %v1619 = vpop.f32.mrf.mxu0
  %v1620 = vadd.f32 %v289, %v1619
  %1621 = vmatmul.bf16.gmra.mxu0 %v1116
  %v1622 = vpop.f32.mrf.mxu0
  %v1623 = vadd.f32 %v289, %v1622
  %v1624 = vpop.f32.mrf.mxu0
  %v1625 = vadd.f32 %v289, %v1624
  %1626 = vmatmul.bf16.gmra.mxu0 %v1119
  %v1627 = vpop.f32.mrf.mxu0
  %v1628 = vadd.f32 %v289, %v1627
  %v1629 = vpop.f32.mrf.mxu0
  %v1630 = vadd.f32 %v289, %v1629
  %1631 = vmatmul.bf16.gmra.mxu0 %v1122
  %v1632 = vpop.f32.mrf.mxu0
  %v1633 = vadd.f32 %v289, %v1632
  %v1634 = vpop.f32.mrf.mxu0
  %v1635 = vadd.f32 %v289, %v1634
  %1636 = vmatmul.bf16.gmra.mxu0 %v1125
  %v1637 = vpop.f32.mrf.mxu0
  %v1638 = vadd.f32 %v289, %v1637
  %v1639 = vpop.f32.mrf.mxu0
  %v1640 = vadd.f32 %v289, %v1639
  %1641 = vmatmul.bf16.gmra.mxu0 %v1128
  %v1642 = vpop.f32.mrf.mxu0
  %v1643 = vadd.f32 %v289, %v1642
  %v1644 = vpop.f32.mrf.mxu0
  %v1645 = vadd.f32 %v289, %v1644
  %1646 = vmatmul.bf16.gmra.mxu0 %v1131
  %v1647 = vpop.f32.mrf.mxu0
  %v1648 = vadd.f32 %v289, %v1647
  %v1649 = vpop.f32.mrf.mxu0
  %v1650 = vadd.f32 %v289, %v1649
  %1651 = vmatmul.bf16.gmra.mxu0 %v1134
  %v1652 = vpop.f32.mrf.mxu0
  %v1653 = vadd.f32 %v289, %v1652
  %v1654 = vpop.f32.mrf.mxu0
  %v1655 = vadd.f32 %v289, %v1654
  %1656 = vmatmul.bf16.gmra.mxu0 %v1137
  %v1657 = vpop.f32.mrf.mxu0
  %v1658 = vadd.f32 %v289, %v1657
  %v1659 = vpop.f32.mrf.mxu0
  %v1660 = vadd.f32 %v289, %v1659
  %1661 = vmatmul.bf16.gmra.mxu0 %v1140
  %v1662 = vpop.f32.mrf.mxu0
  %v1663 = vadd.f32 %v289, %v1662
  %v1664 = vpop.f32.mrf.mxu0
  %v1665 = vadd.f32 %v289, %v1664
  %1666 = vmatmul.bf16.gmra.mxu0 %v1143
  %v1667 = vpop.f32.mrf.mxu0
  %v1668 = vadd.f32 %v289, %v1667
  %v1669 = vpop.f32.mrf.mxu0
  %v1670 = vadd.f32 %v289, %v1669
  %1671 = vmatmul.bf16.gmra.mxu0 %v1146
  %v1672 = vpop.f32.mrf.mxu0
  %v1673 = vadd.f32 %v289, %v1672
  %v1674 = vpop.f32.mrf.mxu0
  %v1675 = vadd.f32 %v289, %v1674
  %1676 = vmatmul.bf16.gmra.mxu0 %v1149
  %v1677 = vpop.f32.mrf.mxu0
  %v1678 = vadd.f32 %v289, %v1677
  %v1679 = vpop.f32.mrf.mxu0
  %v1680 = vadd.f32 %v289, %v1679
  %1681 = vmatmul.bf16.gmra.mxu0 %v1152
  %v1682 = vpop.f32.mrf.mxu0
  %v1683 = vadd.f32 %v289, %v1682
  %v1684 = vpop.f32.mrf.mxu0
  %v1685 = vadd.f32 %v289, %v1684
  %1686 = vmatmul.bf16.gmra.mxu0 %v1155
  %v1687 = vpop.f32.mrf.mxu0
  %v1688 = vadd.f32 %v289, %v1687
  %v1689 = vpop.f32.mrf.mxu0
  %v1690 = vadd.f32 %v289, %v1689
  %1691 = vmatmul.bf16.gmra.mxu0 %v1158
  %v1692 = vpop.f32.mrf.mxu0
  %v1693 = vadd.f32 %v289, %v1692
  %v1694 = vpop.f32.mrf.mxu0
  %v1695 = vadd.f32 %v289, %v1694
  %1696 = vmatmul.bf16.gmra.mxu0 %v1161
  %v1697 = vpop.f32.mrf.mxu0
  %v1698 = vadd.f32 %v289, %v1697
  %v1699 = vpop.f32.mrf.mxu0
  %v1700 = vadd.f32 %v289, %v1699
  %1701 = vmatmul.bf16.gmra.mxu0 %v1164
  %v1702 = vpop.f32.mrf.mxu0
  %v1703 = vadd.f32 %v289, %v1702
  %v1704 = vpop.f32.mrf.mxu0
  %v1705 = vadd.f32 %v289, %v1704
  %1706 = vmatmul.bf16.gmra.mxu0 %v1167
  %v1707 = vpop.f32.mrf.mxu0
  %v1708 = vadd.f32 %v289, %v1707
  %v1709 = vpop.f32.mrf.mxu0
  %v1710 = vadd.f32 %v289, %v1709
  %1711 = vmatmul.bf16.gmra.mxu0 %v1170
  %v1712 = vpop.f32.mrf.mxu0
  %v1713 = vadd.f32 %v289, %v1712
  %v1714 = vpop.f32.mrf.mxu0
  %v1715 = vadd.f32 %v289, %v1714
  %1716 = vmatmul.bf16.gmra.mxu0 %v1173
  %v1717 = vpop.f32.mrf.mxu0
  %v1718 = vadd.f32 %v289, %v1717
  %v1719 = vpop.f32.mrf.mxu0
  %v1720 = vadd.f32 %v289, %v1719
  %1721 = vmatmul.bf16.gmra.mxu0 %v1176
  %v1722 = vpop.f32.mrf.mxu0
  %v1723 = vadd.f32 %v289, %v1722
  %v1724 = vpop.f32.mrf.mxu0
  %v1725 = vadd.f32 %v289, %v1724
  %1726 = vmatmul.bf16.gmra.mxu0 %v1179
  %v1727 = vpop.f32.mrf.mxu0
  %v1728 = vadd.f32 %v289, %v1727
  %v1729 = vpop.f32.mrf.mxu0
  %v1730 = vadd.f32 %v289, %v1729
  %1731 = vmatmul.bf16.gmra.mxu0 %v1182
  %v1732 = vpop.f32.mrf.mxu0
  %v1733 = vadd.f32 %v289, %v1732
  %v1734 = vpop.f32.mrf.mxu0
  %v1735 = vadd.f32 %v289, %v1734
  %1736 = vmatmul.bf16.gmra.mxu0 %v1185
  %v1737 = vpop.f32.mrf.mxu0
  %v1738 = vadd.f32 %v289, %v1737
  %v1739 = vpop.f32.mrf.mxu0
  %v1740 = vadd.f32 %v289, %v1739
  %1741 = vmatmul.bf16.gmra.mxu0 %v1188
  %v1742 = vpop.f32.mrf.mxu0
  %v1743 = vadd.f32 %v289, %v1742
  %v1744 = vpop.f32.mrf.mxu0
  %v1745 = vadd.f32 %v289, %v1744
  %1746 = vmatmul.bf16.gmra.mxu0 %v1191
  %v1747 = vpop.f32.mrf.mxu0
  %v1748 = vadd.f32 %v289, %v1747
  %v1749 = vpop.f32.mrf.mxu0
  %v1750 = vadd.f32 %v289, %v1749
  %1751 = vmatmul.bf16.gmra.mxu0 %v1194
  %v1752 = vpop.f32.mrf.mxu0
  %v1753 = vadd.f32 %v289, %v1752
  %v1754 = vpop.f32.mrf.mxu0
  %v1755 = vadd.f32 %v289, %v1754
  %1756 = vmatmul.bf16.gmra.mxu0 %v1197
  %v1757 = vpop.f32.mrf.mxu0
  %v1758 = vadd.f32 %v289, %v1757
  %v1759 = vpop.f32.mrf.mxu0
  %v1760 = vadd.f32 %v289, %v1759
  %1761 = vmatmul.bf16.gmra.mxu0 %v1200
  %v1762 = vpop.f32.mrf.mxu0
  %v1763 = vadd.f32 %v289, %v1762
  %v1764 = vpop.f32.mrf.mxu0
  %v1765 = vadd.f32 %v289, %v1764
  %1766 = vmatmul.bf16.gmra.mxu0 %v1203
  %v1767 = vpop.f32.mrf.mxu0
  %v1768 = vadd.f32 %v289, %v1767
  %v1769 = vpop.f32.mrf.mxu0
  %v1770 = vadd.f32 %v289, %v1769
  %1771 = vmatmul.bf16.gmra.mxu0 %v1206
  %v1772 = vpop.f32.mrf.mxu0
  %v1773 = vadd.f32 %v289, %v1772
  %v1774 = vpop.f32.mrf.mxu0
  %v1775 = vadd.f32 %v289, %v1774
  %1776 = vmatmul.bf16.gmra.mxu0 %v1209
  %v1777 = vpop.f32.mrf.mxu0
  %v1778 = vadd.f32 %v289, %v1777
  %v1779 = vpop.f32.mrf.mxu0
  %v1780 = vadd.f32 %v289, %v1779
  %1781 = vmatmul.bf16.gmra.mxu0 %v1212
  %v1782 = vpop.f32.mrf.mxu0
  %v1783 = vadd.f32 %v289, %v1782
  %v1784 = vpop.f32.mrf.mxu0
  %v1785 = vadd.f32 %v289, %v1784
  %1786 = vmatmul.bf16.gmra.mxu0 %v1215
  %v1787 = vpop.f32.mrf.mxu0
  %v1788 = vadd.f32 %v289, %v1787
  %v1789 = vpop.f32.mrf.mxu0
  %v1790 = vadd.f32 %v289, %v1789
  %1791 = vmatmul.bf16.gmra.mxu0 %v1218
  %v1792 = vpop.f32.mrf.mxu0
  %v1793 = vadd.f32 %v289, %v1792
  %v1794 = vpop.f32.mrf.mxu0
  %v1795 = vadd.f32 %v289, %v1794
  %1796 = vmatmul.bf16.gmra.mxu0 %v1221
  %v1797 = vpop.f32.mrf.mxu0
  %v1798 = vadd.f32 %v289, %v1797
  %v1799 = vpop.f32.mrf.mxu0
  %v1800 = vadd.f32 %v289, %v1799
  %1801 = vmatmul.bf16.gmra.mxu0 %v1224
  %v1802 = vpop.f32.mrf.mxu0
  %v1803 = vadd.f32 %v289, %v1802
  %v1804 = vpop.f32.mrf.mxu0
  %v1805 = vadd.f32 %v289, %v1804
  %1806 = vmatmul.bf16.gmra.mxu0 %v1227
  %v1807 = vpop.f32.mrf.mxu0
  %v1808 = vadd.f32 %v289, %v1807
  %v1809 = vpop.f32.mrf.mxu0
  %v1810 = vadd.f32 %v289, %v1809
  %1811 = vmatmul.bf16.gmra.mxu0 %v1230
  %v1812 = vpop.f32.mrf.mxu0
  %v1813 = vadd.f32 %v289, %v1812
  %v1814 = vpop.f32.mrf.mxu0
  %v1815 = vadd.f32 %v289, %v1814
  %1816 = vmatmul.bf16.gmra.mxu0 %v1233
  %v1817 = vpop.f32.mrf.mxu0
  %v1818 = vadd.f32 %v289, %v1817
  %v1819 = vpop.f32.mrf.mxu0
  %v1820 = vadd.f32 %v289, %v1819
  %1821 = vmatmul.bf16.gmra.mxu0 %v1236
  %v1822 = vpop.f32.mrf.mxu0
  %v1823 = vadd.f32 %v289, %v1822
  %v1824 = vpop.f32.mrf.mxu0
  %v1825 = vadd.f32 %v289, %v1824
  %1826 = vmatmul.bf16.gmra.mxu0 %v1239
  %v1827 = vpop.f32.mrf.mxu0
  %v1828 = vadd.f32 %v289, %v1827
  %v1829 = vpop.f32.mrf.mxu0
  %v1830 = vadd.f32 %v289, %v1829
  %1831 = vmatmul.bf16.gmra.mxu0 %v1242
  %v1832 = vpop.f32.mrf.mxu0
  %v1833 = vadd.f32 %v289, %v1832
  %v1834 = vpop.f32.mrf.mxu0
  %v1835 = vadd.f32 %v289, %v1834
  %1836 = vmatmul.bf16.gmra.mxu0 %v1245
  %v1837 = vpop.f32.mrf.mxu0
  %v1838 = vadd.f32 %v289, %v1837
  %v1839 = vpop.f32.mrf.mxu0
  %v1840 = vadd.f32 %v289, %v1839
  %1841 = vmatmul.bf16.gmra.mxu0 %v1248
  %v1842 = vpop.f32.mrf.mxu0
  %v1843 = vadd.f32 %v289, %v1842
  %v1844 = vpop.f32.mrf.mxu0
  %v1845 = vadd.f32 %v289, %v1844
  %1846 = vmatmul.bf16.gmra.mxu0 %v1251
  %v1847 = vpop.f32.mrf.mxu0
  %v1848 = vadd.f32 %v289, %v1847
  %v1849 = vpop.f32.mrf.mxu0
  %v1850 = vadd.f32 %v289, %v1849
  %1851 = vmatmul.bf16.gmra.mxu0 %v1254
  %v1852 = vpop.f32.mrf.mxu0
  %v1853 = vadd.f32 %v289, %v1852
  %v1854 = vpop.f32.mrf.mxu0
  %v1855 = vadd.f32 %v289, %v1854
  %1856 = vmatmul.bf16.gmra.mxu0 %v1257
  %v1857 = vpop.f32.mrf.mxu0
  %v1858 = vadd.f32 %v289, %v1857
  %v1859 = vpop.f32.mrf.mxu0
  %v1860 = vadd.f32 %v289, %v1859
  %1861 = vmatmul.bf16.gmra.mxu0 %v1260
  %v1862 = vpop.f32.mrf.mxu0
  %v1863 = vadd.f32 %v289, %v1862
  %v1864 = vpop.f32.mrf.mxu0
  %v1865 = vadd.f32 %v289, %v1864
  %1866 = vmatmul.bf16.gmra.mxu0 %v1263
  %v1867 = vpop.f32.mrf.mxu0
  %v1868 = vadd.f32 %v289, %v1867
  %v1869 = vpop.f32.mrf.mxu0
  %v1870 = vadd.f32 %v289, %v1869
  %1871 = vmatmul.bf16.gmra.mxu0 %v1266
  %v1872 = vpop.f32.mrf.mxu0
  %v1873 = vadd.f32 %v289, %v1872
  %v1874 = vpop.f32.mrf.mxu0
  %v1875 = vadd.f32 %v289, %v1874
  %1876 = vmatmul.bf16.gmra.mxu0 %v1269
  %v1877 = vpop.f32.mrf.mxu0
  %v1878 = vadd.f32 %v289, %v1877
  %v1879 = vpop.f32.mrf.mxu0
  %v1880 = vadd.f32 %v289, %v1879
  %1881 = vmatmul.bf16.gmra.mxu0 %v1272
  %v1882 = vpop.f32.mrf.mxu0
  %v1883 = vadd.f32 %v289, %v1882
  %v1884 = vpop.f32.mrf.mxu0
  %v1885 = vadd.f32 %v289, %v1884
  %1886 = vmatmul.bf16.gmra.mxu0 %v1275
  %v1887 = vpop.f32.mrf.mxu0
  %v1888 = vadd.f32 %v289, %v1887
  %v1889 = vpop.f32.mrf.mxu0
  %v1890 = vadd.f32 %v289, %v1889
  %1891 = vmatmul.bf16.gmra.mxu0 %v1278
  %v1892 = vpop.f32.mrf.mxu0
  %v1893 = vadd.f32 %v289, %v1892
  %v1894 = vpop.f32.mrf.mxu0
  %v1895 = vadd.f32 %v289, %v1894
  %1896 = vmatmul.bf16.gmra.mxu0 %v1281
  %v1897 = vpop.f32.mrf.mxu0
  %v1898 = vadd.f32 %v289, %v1897
  %v1899 = vpop.f32.mrf.mxu0
  %v1900 = vadd.f32 %v289, %v1899
  %1901 = vmatmul.bf16.gmra.mxu0 %v1284
  %v1902 = vpop.f32.mrf.mxu0
  %v1903 = vadd.f32 %v289, %v1902
  %v1904 = vpop.f32.mrf.mxu0
  %v1905 = vadd.f32 %v289, %v1904
  %1906 = vmatmul.bf16.gmra.mxu0 %v1287
  %v1907 = vpop.f32.mrf.mxu0
  %v1908 = vadd.f32 %v289, %v1907
  %v1909 = vpop.f32.mrf.mxu0
  %v1910 = vadd.f32 %v289, %v1909
  %1911 = vmatmul.bf16.gmra.mxu0 %v1290
  %v1912 = vpop.f32.mrf.mxu0
  %v1913 = vadd.f32 %v289, %v1912
  %v1914 = vpop.f32.mrf.mxu0
  %v1915 = vadd.f32 %v289, %v1914
  %1916 = vmatmul.bf16.gmra.mxu0 %v1293
  %v1917 = vpop.f32.mrf.mxu0
  %v1918 = vadd.f32 %v289, %v1917
  %v1919 = vpop.f32.mrf.mxu0
  %v1920 = vadd.f32 %v289, %v1919
  %1921 = vmatmul.bf16.gmra.mxu0 %v1296
  %v1922 = vpop.f32.mrf.mxu0
  %v1923 = vadd.f32 %v289, %v1922
  %v1924 = vpop.f32.mrf.mxu0
  %v1925 = vadd.f32 %v289, %v1924
  %1926 = vmatmul.bf16.gmra.mxu0 %v1299
  %v1927 = vpop.f32.mrf.mxu0
  %v1928 = vadd.f32 %v289, %v1927
  %v1929 = vpop.f32.mrf.mxu0
  %v1930 = vadd.f32 %v289, %v1929
  %1931 = vmatmul.bf16.gmra.mxu0 %v1302
  %v1932 = vpop.f32.mrf.mxu0
  %v1933 = vadd.f32 %v289, %v1932
  %v1934 = vpop.f32.mrf.mxu0
  %v1935 = vadd.f32 %v289, %v1934
  %1936 = vmatmul.bf16.gmra.mxu0 %v1305
  %v1937 = vpop.f32.mrf.mxu0
  %v1938 = vadd.f32 %v289, %v1937
  %v1939 = vpop.f32.mrf.mxu0
  %v1940 = vadd.f32 %v289, %v1939
  %1941 = vmatmul.bf16.gmra.mxu0 %v1308
  %v1942 = vpop.f32.mrf.mxu0
  %v1943 = vadd.f32 %v289, %v1942
  %v1944 = vpop.f32.mrf.mxu0
  %v1945 = vadd.f32 %v289, %v1944
  %1946 = vmatmul.bf16.gmra.mxu0 %v1311
  %v1947 = vpop.f32.mrf.mxu0
  %v1948 = vadd.f32 %v289, %v1947
  %v1949 = vpop.f32.mrf.mxu0
  %v1950 = vadd.f32 %v289, %v1949
  %1951 = vmatmul.bf16.gmra.mxu0 %v1314
  %v1952 = vpop.f32.mrf.mxu0
  %v1953 = vadd.f32 %v289, %v1952
  %v1954 = vpop.f32.mrf.mxu0
  %v1955 = vadd.f32 %v289, %v1954
  %1956 = vmatmul.bf16.gmra.mxu0 %v1317
  %v1957 = vpop.f32.mrf.mxu0
  %v1958 = vadd.f32 %v289, %v1957
  %v1959 = vpop.f32.mrf.mxu0
  %v1960 = vadd.f32 %v289, %v1959
  %1961 = vmatmul.bf16.gmra.mxu0 %v1320
  %v1962 = vpop.f32.mrf.mxu0
  %v1963 = vadd.f32 %v289, %v1962
  %v1964 = vpop.f32.mrf.mxu0
  %v1965 = vadd.f32 %v289, %v1964
  %1966 = vmatmul.bf16.gmra.mxu0 %v1323
  %v1967 = vpop.f32.mrf.mxu0
  %v1968 = vadd.f32 %v289, %v1967
  %v1969 = vpop.f32.mrf.mxu0
  %v1970 = vadd.f32 %v289, %v1969
  %1971 = vmatmul.bf16.gmra.mxu0 %v1326
  %v1972 = vpop.f32.mrf.mxu0
  %v1973 = vadd.f32 %v289, %v1972
  %v1974 = vpop.f32.mrf.mxu0
  %v1975 = vadd.f32 %v289, %v1974
  %1976 = vdwg.mxu0
  %v1977 = vmax.f32 %v1338, 0.0
  %v1978 = vmax.f32 %v1340, 0.0
  %v1979 = vmax.f32 %v1343, 0.0
  %v1980 = vmax.f32 %v1345, 0.0
  %v1981 = vmax.f32 %v1348, 0.0
  %v1982 = vmax.f32 %v1350, 0.0
  %v1983 = vmax.f32 %v1353, 0.0
  %v1984 = vmax.f32 %v1355, 0.0
  %v1985 = vmax.f32 %v1358, 0.0
  %v1986 = vmax.f32 %v1360, 0.0
  %v1987 = vmax.f32 %v1363, 0.0
  %v1988 = vmax.f32 %v1365, 0.0
  %v1989 = vmax.f32 %v1368, 0.0
  %v1990 = vmax.f32 %v1370, 0.0
  %v1991 = vmax.f32 %v1373, 0.0
  %v1992 = vmax.f32 %v1375, 0.0
  %v1993 = vmax.f32 %v1378, 0.0
  %v1994 = vmax.f32 %v1380, 0.0
  %v1995 = vmax.f32 %v1383, 0.0
  %v1996 = vmax.f32 %v1385, 0.0
  %v1997 = vmax.f32 %v1388, 0.0
  %v1998 = vmax.f32 %v1390, 0.0
  %v1999 = vmax.f32 %v1393, 0.0
  %v2000 = vmax.f32 %v1395, 0.0
  %v2001 = vmax.f32 %v1398, 0.0
  %v2002 = vmax.f32 %v1400, 0.0
  %v2003 = vmax.f32 %v1403, 0.0
  %v2004 = vmax.f32 %v1405, 0.0
  %v2005 = vmax.f32 %v1408, 0.0
  %v2006 = vmax.f32 %v1410, 0.0
  %v2007 = vmax.f32 %v1413, 0.0
  %v2008 = vmax.f32 %v1415, 0.0
  %v2009 = vmax.f32 %v1418, 0.0
  %v2010 = vmax.f32 %v1420, 0.0
  %v2011 = vmax.f32 %v1423, 0.0
  %v2012 = vmax.f32 %v1425, 0.0
  %v2013 = vmax.f32 %v1428, 0.0
  %v2014 = vmax.f32 %v1430, 0.0
  %v2015 = vmax.f32 %v1433, 0.0
  %v2016 = vmax.f32 %v1435, 0.0
  %v2017 = vmax.f32 %v1438, 0.0
  %v2018 = vmax.f32 %v1440, 0.0
  %v2019 = vmax.f32 %v1443, 0.0
  %v2020 = vmax.f32 %v1445, 0.0
  %v2021 = vmax.f32 %v1448, 0.0
  %v2022 = vmax.f32 %v1450, 0.0
  %v2023 = vmax.f32 %v1453, 0.0
  %v2024 = vmax.f32 %v1455, 0.0
  %v2025 = vmax.f32 %v1458, 0.0
  %v2026 = vmax.f32 %v1460, 0.0
  %v2027 = vmax.f32 %v1463, 0.0
  %v2028 = vmax.f32 %v1465, 0.0
  %v2029 = vmax.f32 %v1468, 0.0
  %v2030 = vmax.f32 %v1470, 0.0
  %v2031 = vmax.f32 %v1473, 0.0
  %v2032 = vmax.f32 %v1475, 0.0
  %v2033 = vmax.f32 %v1478, 0.0
  %v2034 = vmax.f32 %v1480, 0.0
  %v2035 = vmax.f32 %v1483, 0.0
  %v2036 = vmax.f32 %v1485, 0.0
  %v2037 = vmax.f32 %v1488, 0.0
  %v2038 = vmax.f32 %v1490, 0.0
  %v2039 = vmax.f32 %v1493, 0.0
  %v2040 = vmax.f32 %v1495, 0.0
  %v2041 = vmax.f32 %v1498, 0.0
  %v2042 = vmax.f32 %v1500, 0.0
  %v2043 = vmax.f32 %v1503, 0.0
  %v2044 = vmax.f32 %v1505, 0.0
  %v2045 = vmax.f32 %v1508, 0.0
  %v2046 = vmax.f32 %v1510, 0.0
  %v2047 = vmax.f32 %v1513, 0.0
  %v2048 = vmax.f32 %v1515, 0.0
  %v2049 = vmax.f32 %v1518, 0.0
  %v2050 = vmax.f32 %v1520, 0.0
  %v2051 = vmax.f32 %v1523, 0.0
  %v2052 = vmax.f32 %v1525, 0.0
  %v2053 = vmax.f32 %v1528, 0.0
  %v2054 = vmax.f32 %v1530, 0.0
  %v2055 = vmax.f32 %v1533, 0.0
  %v2056 = vmax.f32 %v1535, 0.0
  %v2057 = vmax.f32 %v1538, 0.0
  %v2058 = vmax.f32 %v1540, 0.0
  %v2059 = vmax.f32 %v1543, 0.0
  %v2060 = vmax.f32 %v1545, 0.0
  %v2061 = vmax.f32 %v1548, 0.0
  %v2062 = vmax.f32 %v1550, 0.0
  %v2063 = vmax.f32 %v1553, 0.0
  %v2064 = vmax.f32 %v1555, 0.0
  %v2065 = vmax.f32 %v1558, 0.0
  %v2066 = vmax.f32 %v1560, 0.0
  %v2067 = vmax.f32 %v1563, 0.0
  %v2068 = vmax.f32 %v1565, 0.0
  %v2069 = vmax.f32 %v1568, 0.0
  %v2070 = vmax.f32 %v1570, 0.0
  %v2071 = vmax.f32 %v1573, 0.0
  %v2072 = vmax.f32 %v1575, 0.0
  %v2073 = vmax.f32 %v1578, 0.0
  %v2074 = vmax.f32 %v1580, 0.0
  %v2075 = vmax.f32 %v1583, 0.0
  %v2076 = vmax.f32 %v1585, 0.0
  %v2077 = vmax.f32 %v1588, 0.0
  %v2078 = vmax.f32 %v1590, 0.0
  %v2079 = vmax.f32 %v1593, 0.0
  %v2080 = vmax.f32 %v1595, 0.0
  %v2081 = vmax.f32 %v1598, 0.0
  %v2082 = vmax.f32 %v1600, 0.0
  %v2083 = vmax.f32 %v1603, 0.0
  %v2084 = vmax.f32 %v1605, 0.0
  %v2085 = vmax.f32 %v1608, 0.0
  %v2086 = vmax.f32 %v1610, 0.0
  %v2087 = vmax.f32 %v1613, 0.0
  %v2088 = vmax.f32 %v1615, 0.0
  %v2089 = vmax.f32 %v1618, 0.0
  %v2090 = vmax.f32 %v1620, 0.0
  %v2091 = vmax.f32 %v1623, 0.0
  %v2092 = vmax.f32 %v1625, 0.0
  %v2093 = vmax.f32 %v1628, 0.0
  %v2094 = vmax.f32 %v1630, 0.0
  %v2095 = vmax.f32 %v1633, 0.0
  %v2096 = vmax.f32 %v1635, 0.0
  %v2097 = vmax.f32 %v1638, 0.0
  %v2098 = vmax.f32 %v1640, 0.0
  %v2099 = vmax.f32 %v1643, 0.0
  %v2100 = vmax.f32 %v1645, 0.0
  %v2101 = vmax.f32 %v1648, 0.0
  %v2102 = vmax.f32 %v1650, 0.0
  %v2103 = vmax.f32 %v1653, 0.0
  %v2104 = vmax.f32 %v1655, 0.0
  %v2105 = vmax.f32 %v1658, 0.0
  %v2106 = vmax.f32 %v1660, 0.0
  %v2107 = vmax.f32 %v1663, 0.0
  %v2108 = vmax.f32 %v1665, 0.0
  %v2109 = vmax.f32 %v1668, 0.0
  %v2110 = vmax.f32 %v1670, 0.0
  %v2111 = vmax.f32 %v1673, 0.0
  %v2112 = vmax.f32 %v1675, 0.0
  %v2113 = vmax.f32 %v1678, 0.0
  %v2114 = vmax.f32 %v1680, 0.0
  %v2115 = vmax.f32 %v1683, 0.0
  %v2116 = vmax.f32 %v1685, 0.0
  %v2117 = vmax.f32 %v1688, 0.0
  %v2118 = vmax.f32 %v1690, 0.0
  %v2119 = vmax.f32 %v1693, 0.0
  %v2120 = vmax.f32 %v1695, 0.0
  %v2121 = vmax.f32 %v1698, 0.0
  %v2122 = vmax.f32 %v1700, 0.0
  %v2123 = vmax.f32 %v1703, 0.0
  %v2124 = vmax.f32 %v1705, 0.0
  %v2125 = vmax.f32 %v1708, 0.0
  %v2126 = vmax.f32 %v1710, 0.0
  %v2127 = vmax.f32 %v1713, 0.0
  %v2128 = vmax.f32 %v1715, 0.0
  %v2129 = vmax.f32 %v1718, 0.0
  %v2130 = vmax.f32 %v1720, 0.0
  %v2131 = vmax.f32 %v1723, 0.0
  %v2132 = vmax.f32 %v1725, 0.0
  %v2133 = vmax.f32 %v1728, 0.0
  %v2134 = vmax.f32 %v1730, 0.0
  %v2135 = vmax.f32 %v1733, 0.0
  %v2136 = vmax.f32 %v1735, 0.0
  %v2137 = vmax.f32 %v1738, 0.0
  %v2138 = vmax.f32 %v1740, 0.0
  %v2139 = vmax.f32 %v1743, 0.0
  %v2140 = vmax.f32 %v1745, 0.0
  %v2141 = vmax.f32 %v1748, 0.0
  %v2142 = vmax.f32 %v1750, 0.0
  %v2143 = vmax.f32 %v1753, 0.0
  %v2144 = vmax.f32 %v1755, 0.0
  %v2145 = vmax.f32 %v1758, 0.0
  %v2146 = vmax.f32 %v1760, 0.0
  %v2147 = vmax.f32 %v1763, 0.0
  %v2148 = vmax.f32 %v1765, 0.0
  %v2149 = vmax.f32 %v1768, 0.0
  %v2150 = vmax.f32 %v1770, 0.0
  %v2151 = vmax.f32 %v1773, 0.0
  %v2152 = vmax.f32 %v1775, 0.0
  %v2153 = vmax.f32 %v1778, 0.0
  %v2154 = vmax.f32 %v1780, 0.0
  %v2155 = vmax.f32 %v1783, 0.0
  %v2156 = vmax.f32 %v1785, 0.0
  %v2157 = vmax.f32 %v1788, 0.0
  %v2158 = vmax.f32 %v1790, 0.0
  %v2159 = vmax.f32 %v1793, 0.0
  %v2160 = vmax.f32 %v1795, 0.0
  %v2161 = vmax.f32 %v1798, 0.0
  %v2162 = vmax.f32 %v1800, 0.0
  %v2163 = vmax.f32 %v1803, 0.0
  %v2164 = vmax.f32 %v1805, 0.0
  %v2165 = vmax.f32 %v1808, 0.0
  %v2166 = vmax.f32 %v1810, 0.0
  %v2167 = vmax.f32 %v1813, 0.0
  %v2168 = vmax.f32 %v1815, 0.0
  %v2169 = vmax.f32 %v1818, 0.0
  %v2170 = vmax.f32 %v1820, 0.0
  %v2171 = vmax.f32 %v1823, 0.0
  %v2172 = vmax.f32 %v1825, 0.0
  %v2173 = vmax.f32 %v1828, 0.0
  %v2174 = vmax.f32 %v1830, 0.0
  %v2175 = vmax.f32 %v1833, 0.0
  %v2176 = vmax.f32 %v1835, 0.0
  %v2177 = vmax.f32 %v1838, 0.0
  %v2178 = vmax.f32 %v1840, 0.0
  %v2179 = vmax.f32 %v1843, 0.0
  %v2180 = vmax.f32 %v1845, 0.0
  %v2181 = vmax.f32 %v1848, 0.0
  %v2182 = vmax.f32 %v1850, 0.0
  %v2183 = vmax.f32 %v1853, 0.0
  %v2184 = vmax.f32 %v1855, 0.0
  %v2185 = vmax.f32 %v1858, 0.0
  %v2186 = vmax.f32 %v1860, 0.0
  %v2187 = vmax.f32 %v1863, 0.0
  %v2188 = vmax.f32 %v1865, 0.0
  %v2189 = vmax.f32 %v1868, 0.0
  %v2190 = vmax.f32 %v1870, 0.0
  %v2191 = vmax.f32 %v1873, 0.0
  %v2192 = vmax.f32 %v1875, 0.0
  %v2193 = vmax.f32 %v1878, 0.0
  %v2194 = vmax.f32 %v1880, 0.0
  %v2195 = vmax.f32 %v1883, 0.0
  %v2196 = vmax.f32 %v1885, 0.0
  %v2197 = vmax.f32 %v1888, 0.0
  %v2198 = vmax.f32 %v1890, 0.0
  %v2199 = vmax.f32 %v1893, 0.0
  %v2200 = vmax.f32 %v1895, 0.0
  %v2201 = vmax.f32 %v1898, 0.0
  %v2202 = vmax.f32 %v1900, 0.0
  %v2203 = vmax.f32 %v1903, 0.0
  %v2204 = vmax.f32 %v1905, 0.0
  %v2205 = vmax.f32 %v1908, 0.0
  %v2206 = vmax.f32 %v1910, 0.0
  %v2207 = vmax.f32 %v1913, 0.0
  %v2208 = vmax.f32 %v1915, 0.0
  %v2209 = vmax.f32 %v1918, 0.0
  %v2210 = vmax.f32 %v1920, 0.0
  %v2211 = vmax.f32 %v1923, 0.0
  %v2212 = vmax.f32 %v1925, 0.0
  %v2213 = vmax.f32 %v1928, 0.0
  %v2214 = vmax.f32 %v1930, 0.0
  %v2215 = vmax.f32 %v1933, 0.0
  %v2216 = vmax.f32 %v1935, 0.0
  %v2217 = vmax.f32 %v1938, 0.0
  %v2218 = vmax.f32 %v1940, 0.0
  %v2219 = vmax.f32 %v1943, 0.0
  %v2220 = vmax.f32 %v1945, 0.0
  %v2221 = vmax.f32 %v1948, 0.0
  %v2222 = vmax.f32 %v1950, 0.0
  %v2223 = vmax.f32 %v1953, 0.0
  %v2224 = vmax.f32 %v1955, 0.0
  %v2225 = vmax.f32 %v1958, 0.0
  %v2226 = vmax.f32 %v1960, 0.0
  %v2227 = vmax.f32 %v1963, 0.0
  %v2228 = vmax.f32 %v1965, 0.0
  %v2229 = vmax.f32 %v1968, 0.0
  %v2230 = vmax.f32 %v1970, 0.0
  %v2231 = vmax.f32 %v1973, 0.0
  %v2232 = vmax.f32 %v1975, 0.0
  %v2233 = vld [vmem:[#allocation2] sm:$0xff]
  %vm2234 = vcmask 523264
  %v2235 = vsel %vm2234, %v1977, 0.0
  %v2236 = vsel %vm2234, %v1978, 0.0
  %v2237 = vadd.f32 %v2235, %v2236
  %v2238 = vsel %vm2234, %v1979, 0.0
  %v2239 = vadd.f32 %v2237, %v2238
  %v2240 = vsel %vm2234, %v1980, 0.0
  %v2241 = vadd.f32 %v2239, %v2240
  %v2242 = vsel %vm2234, %v1981, 0.0
  %v2243 = vadd.f32 %v2241, %v2242
  %v2244 = vsel %vm2234, %v1982, 0.0
  %v2245 = vadd.f32 %v2243, %v2244
  %v2246 = vsel %vm2234, %v1983, 0.0
  %v2247 = vadd.f32 %v2245, %v2246
  %v2248 = vsel %vm2234, %v1984, 0.0
  %v2249 = vadd.f32 %v2247, %v2248
  %v2250 = vsel %vm2234, %v1985, 0.0
  %v2251 = vadd.f32 %v2249, %v2250
  %v2252 = vsel %vm2234, %v1986, 0.0
  %v2253 = vadd.f32 %v2251, %v2252
  %v2254 = vsel %vm2234, %v1987, 0.0
  %v2255 = vadd.f32 %v2253, %v2254
  %v2256 = vsel %vm2234, %v1988, 0.0
  %v2257 = vadd.f32 %v2255, %v2256
  %v2258 = vsel %vm2234, %v1989, 0.0
  %v2259 = vadd.f32 %v2257, %v2258
  %v2260 = vsel %vm2234, %v1990, 0.0
  %v2261 = vadd.f32 %v2259, %v2260
  %v2262 = vsel %vm2234, %v1991, 0.0
  %v2263 = vadd.f32 %v2261, %v2262
  %v2264 = vsel %vm2234, %v1992, 0.0
  %v2265 = vadd.f32 %v2263, %v2264
  %v2266 = vsel %vm2234, %v1993, 0.0
  %v2267 = vadd.f32 %v2265, %v2266
  %v2268 = vsel %vm2234, %v1994, 0.0
  %v2269 = vadd.f32 %v2267, %v2268
  %v2270 = vsel %vm2234, %v1995, 0.0
  %v2271 = vadd.f32 %v2269, %v2270
  %v2272 = vsel %vm2234, %v1996, 0.0
  %v2273 = vadd.f32 %v2271, %v2272
  %v2274 = vsel %vm2234, %v1997, 0.0
  %v2275 = vadd.f32 %v2273, %v2274
  %v2276 = vsel %vm2234, %v1998, 0.0
  %v2277 = vadd.f32 %v2275, %v2276
  %v2278 = vsel %vm2234, %v1999, 0.0
  %v2279 = vadd.f32 %v2277, %v2278
  %v2280 = vsel %vm2234, %v2000, 0.0
  %v2281 = vadd.f32 %v2279, %v2280
  %v2282 = vsel %vm2234, %v2001, 0.0
  %v2283 = vadd.f32 %v2281, %v2282
  %v2284 = vsel %vm2234, %v2002, 0.0
  %v2285 = vadd.f32 %v2283, %v2284
  %v2286 = vsel %vm2234, %v2003, 0.0
  %v2287 = vadd.f32 %v2285, %v2286
  %v2288 = vsel %vm2234, %v2004, 0.0
  %v2289 = vadd.f32 %v2287, %v2288
  %v2290 = vsel %vm2234, %v2005, 0.0
  %v2291 = vadd.f32 %v2289, %v2290
  %v2292 = vsel %vm2234, %v2006, 0.0
  %v2293 = vadd.f32 %v2291, %v2292
  %v2294 = vsel %vm2234, %v2007, 0.0
  %v2295 = vadd.f32 %v2293, %v2294
  %v2296 = vsel %vm2234, %v2008, 0.0
  %v2297 = vadd.f32 %v2295, %v2296
  %v2298 = vrot.slane %v2297, 4
  %v2299 = vadd.f32 %v2297, %v2298
  %v2300 = vrot.slane %v2299, 2
  %v2301 = vadd.f32 %v2299, %v2300
  %v2302 = vrot.slane %v2301, 1
  %v2303 = vadd.f32 %v2301, %v2302
  %v2304 = vsel %vm2234, %v2009, 0.0
  %v2305 = vsel %vm2234, %v2010, 0.0
  %v2306 = vadd.f32 %v2304, %v2305
  %v2307 = vsel %vm2234, %v2011, 0.0
  %v2308 = vadd.f32 %v2306, %v2307
  %v2309 = vsel %vm2234, %v2012, 0.0
  %v2310 = vadd.f32 %v2308, %v2309
  %v2311 = vsel %vm2234, %v2013, 0.0
  %v2312 = vadd.f32 %v2310, %v2311
  %v2313 = vsel %vm2234, %v2014, 0.0
  %v2314 = vadd.f32 %v2312, %v2313
  %v2315 = vsel %vm2234, %v2015, 0.0
  %v2316 = vadd.f32 %v2314, %v2315
  %v2317 = vsel %vm2234, %v2016, 0.0
  %v2318 = vadd.f32 %v2316, %v2317
  %v2319 = vsel %vm2234, %v2017, 0.0
  %v2320 = vadd.f32 %v2318, %v2319
  %v2321 = vsel %vm2234, %v2018, 0.0
  %v2322 = vadd.f32 %v2320, %v2321
  %v2323 = vsel %vm2234, %v2019, 0.0
  %v2324 = vadd.f32 %v2322, %v2323
  %v2325 = vsel %vm2234, %v2020, 0.0
  %v2326 = vadd.f32 %v2324, %v2325
  %v2327 = vsel %vm2234, %v2021, 0.0
  %v2328 = vadd.f32 %v2326, %v2327
  %v2329 = vsel %vm2234, %v2022, 0.0
  %v2330 = vadd.f32 %v2328, %v2329
  %v2331 = vsel %vm2234, %v2023, 0.0
  %v2332 = vadd.f32 %v2330, %v2331
  %v2333 = vsel %vm2234, %v2024, 0.0
  %v2334 = vadd.f32 %v2332, %v2333
  %v2335 = vsel %vm2234, %v2025, 0.0
  %v2336 = vadd.f32 %v2334, %v2335
  %v2337 = vsel %vm2234, %v2026, 0.0
  %v2338 = vadd.f32 %v2336, %v2337
  %v2339 = vsel %vm2234, %v2027, 0.0
  %v2340 = vadd.f32 %v2338, %v2339
  %v2341 = vsel %vm2234, %v2028, 0.0
  %v2342 = vadd.f32 %v2340, %v2341
  %v2343 = vsel %vm2234, %v2029, 0.0
  %v2344 = vadd.f32 %v2342, %v2343
  %v2345 = vsel %vm2234, %v2030, 0.0
  %v2346 = vadd.f32 %v2344, %v2345
  %v2347 = vsel %vm2234, %v2031, 0.0
  %v2348 = vadd.f32 %v2346, %v2347
  %v2349 = vsel %vm2234, %v2032, 0.0
  %v2350 = vadd.f32 %v2348, %v2349
  %v2351 = vsel %vm2234, %v2033, 0.0
  %v2352 = vadd.f32 %v2350, %v2351
  %v2353 = vsel %vm2234, %v2034, 0.0
  %v2354 = vadd.f32 %v2352, %v2353
  %v2355 = vsel %vm2234, %v2035, 0.0
  %v2356 = vadd.f32 %v2354, %v2355
  %v2357 = vsel %vm2234, %v2036, 0.0
  %v2358 = vadd.f32 %v2356, %v2357
  %v2359 = vsel %vm2234, %v2037, 0.0
  %v2360 = vadd.f32 %v2358, %v2359
  %v2361 = vsel %vm2234, %v2038, 0.0
  %v2362 = vadd.f32 %v2360, %v2361
  %v2363 = vsel %vm2234, %v2039, 0.0
  %v2364 = vadd.f32 %v2362, %v2363
  %v2365 = vsel %vm2234, %v2040, 0.0
  %v2366 = vadd.f32 %v2364, %v2365
  %v2367 = vrot.slane %v2366, 4
  %v2368 = vadd.f32 %v2366, %v2367
  %v2369 = vrot.slane %v2368, 2
  %v2370 = vadd.f32 %v2368, %v2369
  %v2371 = vrot.slane %v2370, 1
  %v2372 = vadd.f32 %v2370, %v2371
  %v2373 = vsel %vm2234, %v2041, 0.0
  %v2374 = vsel %vm2234, %v2042, 0.0
  %v2375 = vadd.f32 %v2373, %v2374
  %v2376 = vsel %vm2234, %v2043, 0.0
  %v2377 = vadd.f32 %v2375, %v2376
  %v2378 = vsel %vm2234, %v2044, 0.0
  %v2379 = vadd.f32 %v2377, %v2378
  %v2380 = vsel %vm2234, %v2045, 0.0
  %v2381 = vadd.f32 %v2379, %v2380
  %v2382 = vsel %vm2234, %v2046, 0.0
  %v2383 = vadd.f32 %v2381, %v2382
  %v2384 = vsel %vm2234, %v2047, 0.0
  %v2385 = vadd.f32 %v2383, %v2384
  %v2386 = vsel %vm2234, %v2048, 0.0
  %v2387 = vadd.f32 %v2385, %v2386
  %v2388 = vsel %vm2234, %v2049, 0.0
  %v2389 = vadd.f32 %v2387, %v2388
  %v2390 = vsel %vm2234, %v2050, 0.0
  %v2391 = vadd.f32 %v2389, %v2390
  %v2392 = vsel %vm2234, %v2051, 0.0
  %v2393 = vadd.f32 %v2391, %v2392
  %v2394 = vsel %vm2234, %v2052, 0.0
  %v2395 = vadd.f32 %v2393, %v2394
  %v2396 = vsel %vm2234, %v2053, 0.0
  %v2397 = vadd.f32 %v2395, %v2396
  %v2398 = vsel %vm2234, %v2054, 0.0
  %v2399 = vadd.f32 %v2397, %v2398
  %v2400 = vsel %vm2234, %v2055, 0.0
  %v2401 = vadd.f32 %v2399, %v2400
  %v2402 = vsel %vm2234, %v2056, 0.0
  %v2403 = vadd.f32 %v2401, %v2402
  %v2404 = vsel %vm2234, %v2057, 0.0
  %v2405 = vadd.f32 %v2403, %v2404
  %v2406 = vsel %vm2234, %v2058, 0.0
  %v2407 = vadd.f32 %v2405, %v2406
  %v2408 = vsel %vm2234, %v2059, 0.0
  %v2409 = vadd.f32 %v2407, %v2408
  %v2410 = vsel %vm2234, %v2060, 0.0
  %v2411 = vadd.f32 %v2409, %v2410
  %v2412 = vsel %vm2234, %v2061, 0.0
  %v2413 = vadd.f32 %v2411, %v2412
  %v2414 = vsel %vm2234, %v2062, 0.0
  %v2415 = vadd.f32 %v2413, %v2414
  %v2416 = vsel %vm2234, %v2063, 0.0
  %v2417 = vadd.f32 %v2415, %v2416
  %v2418 = vsel %vm2234, %v2064, 0.0
  %v2419 = vadd.f32 %v2417, %v2418
  %v2420 = vsel %vm2234, %v2065, 0.0
  %v2421 = vadd.f32 %v2419, %v2420
  %v2422 = vsel %vm2234, %v2066, 0.0
  %v2423 = vadd.f32 %v2421, %v2422
  %v2424 = vsel %vm2234, %v2067, 0.0
  %v2425 = vadd.f32 %v2423, %v2424
  %v2426 = vsel %vm2234, %v2068, 0.0
  %v2427 = vadd.f32 %v2425, %v2426
  %v2428 = vsel %vm2234, %v2069, 0.0
  %v2429 = vadd.f32 %v2427, %v2428
  %v2430 = vsel %vm2234, %v2070, 0.0
  %v2431 = vadd.f32 %v2429, %v2430
  %v2432 = vsel %vm2234, %v2071, 0.0
  %v2433 = vadd.f32 %v2431, %v2432
  %v2434 = vsel %vm2234, %v2072, 0.0
  %v2435 = vadd.f32 %v2433, %v2434
  %v2436 = vrot.slane %v2435, 4
  %v2437 = vadd.f32 %v2435, %v2436
  %v2438 = vrot.slane %v2437, 2
  %v2439 = vadd.f32 %v2437, %v2438
  %v2440 = vrot.slane %v2439, 1
  %v2441 = vadd.f32 %v2439, %v2440
  %v2442 = vsel %vm2234, %v2073, 0.0
  %v2443 = vsel %vm2234, %v2074, 0.0
  %v2444 = vadd.f32 %v2442, %v2443
  %v2445 = vsel %vm2234, %v2075, 0.0
  %v2446 = vadd.f32 %v2444, %v2445
  %v2447 = vsel %vm2234, %v2076, 0.0
  %v2448 = vadd.f32 %v2446, %v2447
  %v2449 = vsel %vm2234, %v2077, 0.0
  %v2450 = vadd.f32 %v2448, %v2449
  %v2451 = vsel %vm2234, %v2078, 0.0
  %v2452 = vadd.f32 %v2450, %v2451
  %v2453 = vsel %vm2234, %v2079, 0.0
  %v2454 = vadd.f32 %v2452, %v2453
  %v2455 = vsel %vm2234, %v2080, 0.0
  %v2456 = vadd.f32 %v2454, %v2455
  %v2457 = vsel %vm2234, %v2081, 0.0
  %v2458 = vadd.f32 %v2456, %v2457
  %v2459 = vsel %vm2234, %v2082, 0.0
  %v2460 = vadd.f32 %v2458, %v2459
  %v2461 = vsel %vm2234, %v2083, 0.0
  %v2462 = vadd.f32 %v2460, %v2461
  %v2463 = vsel %vm2234, %v2084, 0.0
  %v2464 = vadd.f32 %v2462, %v2463
  %v2465 = vsel %vm2234, %v2085, 0.0
  %v2466 = vadd.f32 %v2464, %v2465
  %v2467 = vsel %vm2234, %v2086, 0.0
  %v2468 = vadd.f32 %v2466, %v2467
  %v2469 = vsel %vm2234, %v2087, 0.0
  %v2470 = vadd.f32 %v2468, %v2469
  %v2471 = vsel %vm2234, %v2088, 0.0
  %v2472 = vadd.f32 %v2470, %v2471
  %v2473 = vsel %vm2234, %v2089, 0.0
  %v2474 = vadd.f32 %v2472, %v2473
  %v2475 = vsel %vm2234, %v2090, 0.0
  %v2476 = vadd.f32 %v2474, %v2475
  %v2477 = vsel %vm2234, %v2091, 0.0
  %v2478 = vadd.f32 %v2476, %v2477
  %v2479 = vsel %vm2234, %v2092, 0.0
  %v2480 = vadd.f32 %v2478, %v2479
  %v2481 = vsel %vm2234, %v2093, 0.0
  %v2482 = vadd.f32 %v2480, %v2481
  %v2483 = vsel %vm2234, %v2094, 0.0
  %v2484 = vadd.f32 %v2482, %v2483
  %v2485 = vsel %vm2234, %v2095, 0.0
  %v2486 = vadd.f32 %v2484, %v2485
  %v2487 = vsel %vm2234, %v2096, 0.0
  %v2488 = vadd.f32 %v2486, %v2487
  %v2489 = vsel %vm2234, %v2097, 0.0
  %v2490 = vadd.f32 %v2488, %v2489
  %v2491 = vsel %vm2234, %v2098, 0.0
  %v2492 = vadd.f32 %v2490, %v2491
  %v2493 = vsel %vm2234, %v2099, 0.0
  %v2494 = vadd.f32 %v2492, %v2493
  %v2495 = vsel %vm2234, %v2100, 0.0
  %v2496 = vadd.f32 %v2494, %v2495
  %v2497 = vsel %vm2234, %v2101, 0.0
  %v2498 = vadd.f32 %v2496, %v2497
  %v2499 = vsel %vm2234, %v2102, 0.0
  %v2500 = vadd.f32 %v2498, %v2499
  %v2501 = vsel %vm2234, %v2103, 0.0
  %v2502 = vadd.f32 %v2500, %v2501
  %v2503 = vsel %vm2234, %v2104, 0.0
  %v2504 = vadd.f32 %v2502, %v2503
  %v2505 = vrot.slane %v2504, 4
  %v2506 = vadd.f32 %v2504, %v2505
  %v2507 = vrot.slane %v2506, 2
  %v2508 = vadd.f32 %v2506, %v2507
  %v2509 = vrot.slane %v2508, 1
  %v2510 = vadd.f32 %v2508, %v2509
  %v2511 = vsel %vm2234, %v2105, 0.0
  %v2512 = vsel %vm2234, %v2106, 0.0
  %v2513 = vadd.f32 %v2511, %v2512
  %v2514 = vsel %vm2234, %v2107, 0.0
  %v2515 = vadd.f32 %v2513, %v2514
  %v2516 = vsel %vm2234, %v2108, 0.0
  %v2517 = vadd.f32 %v2515, %v2516
  %v2518 = vsel %vm2234, %v2109, 0.0
  %v2519 = vadd.f32 %v2517, %v2518
  %v2520 = vsel %vm2234, %v2110, 0.0
  %v2521 = vadd.f32 %v2519, %v2520
  %v2522 = vsel %vm2234, %v2111, 0.0
  %v2523 = vadd.f32 %v2521, %v2522
  %v2524 = vsel %vm2234, %v2112, 0.0
  %v2525 = vadd.f32 %v2523, %v2524
  %v2526 = vsel %vm2234, %v2113, 0.0
  %v2527 = vadd.f32 %v2525, %v2526
  %v2528 = vsel %vm2234, %v2114, 0.0
  %v2529 = vadd.f32 %v2527, %v2528
  %v2530 = vsel %vm2234, %v2115, 0.0
  %v2531 = vadd.f32 %v2529, %v2530
  %v2532 = vsel %vm2234, %v2116, 0.0
  %v2533 = vadd.f32 %v2531, %v2532
  %v2534 = vsel %vm2234, %v2117, 0.0
  %v2535 = vadd.f32 %v2533, %v2534
  %v2536 = vsel %vm2234, %v2118, 0.0
  %v2537 = vadd.f32 %v2535, %v2536
  %v2538 = vsel %vm2234, %v2119, 0.0
  %v2539 = vadd.f32 %v2537, %v2538
  %v2540 = vsel %vm2234, %v2120, 0.0
  %v2541 = vadd.f32 %v2539, %v2540
  %v2542 = vsel %vm2234, %v2121, 0.0
  %v2543 = vadd.f32 %v2541, %v2542
  %v2544 = vsel %vm2234, %v2122, 0.0
  %v2545 = vadd.f32 %v2543, %v2544
  %v2546 = vsel %vm2234, %v2123, 0.0
  %v2547 = vadd.f32 %v2545, %v2546
  %v2548 = vsel %vm2234, %v2124, 0.0
  %v2549 = vadd.f32 %v2547, %v2548
  %v2550 = vsel %vm2234, %v2125, 0.0
  %v2551 = vadd.f32 %v2549, %v2550
  %v2552 = vsel %vm2234, %v2126, 0.0
  %v2553 = vadd.f32 %v2551, %v2552
  %v2554 = vsel %vm2234, %v2127, 0.0
  %v2555 = vadd.f32 %v2553, %v2554
  %v2556 = vsel %vm2234, %v2128, 0.0
  %v2557 = vadd.f32 %v2555, %v2556
  %v2558 = vsel %vm2234, %v2129, 0.0
  %v2559 = vadd.f32 %v2557, %v2558
  %v2560 = vsel %vm2234, %v2130, 0.0
  %v2561 = vadd.f32 %v2559, %v2560
  %v2562 = vsel %vm2234, %v2131, 0.0
  %v2563 = vadd.f32 %v2561, %v2562
  %v2564 = vsel %vm2234, %v2132, 0.0
  %v2565 = vadd.f32 %v2563, %v2564
  %v2566 = vsel %vm2234, %v2133, 0.0
  %v2567 = vadd.f32 %v2565, %v2566
  %v2568 = vsel %vm2234, %v2134, 0.0
  %v2569 = vadd.f32 %v2567, %v2568
  %v2570 = vsel %vm2234, %v2135, 0.0
  %v2571 = vadd.f32 %v2569, %v2570
  %v2572 = vsel %vm2234, %v2136, 0.0
  %v2573 = vadd.f32 %v2571, %v2572
  %v2574 = vrot.slane %v2573, 4
  %v2575 = vadd.f32 %v2573, %v2574
  %v2576 = vrot.slane %v2575, 2
  %v2577 = vadd.f32 %v2575, %v2576
  %v2578 = vrot.slane %v2577, 1
  %v2579 = vadd.f32 %v2577, %v2578
  %v2580 = vsel %vm2234, %v2137, 0.0
  %v2581 = vsel %vm2234, %v2138, 0.0
  %v2582 = vadd.f32 %v2580, %v2581
  %v2583 = vsel %vm2234, %v2139, 0.0
  %v2584 = vadd.f32 %v2582, %v2583
  %v2585 = vsel %vm2234, %v2140, 0.0
  %v2586 = vadd.f32 %v2584, %v2585
  %v2587 = vsel %vm2234, %v2141, 0.0
  %v2588 = vadd.f32 %v2586, %v2587
  %v2589 = vsel %vm2234, %v2142, 0.0
  %v2590 = vadd.f32 %v2588, %v2589
  %v2591 = vsel %vm2234, %v2143, 0.0
  %v2592 = vadd.f32 %v2590, %v2591
  %v2593 = vsel %vm2234, %v2144, 0.0
  %v2594 = vadd.f32 %v2592, %v2593
  %v2595 = vsel %vm2234, %v2145, 0.0
  %v2596 = vadd.f32 %v2594, %v2595
  %v2597 = vsel %vm2234, %v2146, 0.0
  %v2598 = vadd.f32 %v2596, %v2597
  %v2599 = vsel %vm2234, %v2147, 0.0
  %v2600 = vadd.f32 %v2598, %v2599
  %v2601 = vsel %vm2234, %v2148, 0.0
  %v2602 = vadd.f32 %v2600, %v2601
  %v2603 = vsel %vm2234, %v2149, 0.0
  %v2604 = vadd.f32 %v2602, %v2603
  %v2605 = vsel %vm2234, %v2150, 0.0
  %v2606 = vadd.f32 %v2604, %v2605
  %v2607 = vsel %vm2234, %v2151, 0.0
  %v2608 = vadd.f32 %v2606, %v2607
  %v2609 = vsel %vm2234, %v2152, 0.0
  %v2610 = vadd.f32 %v2608, %v2609
  %v2611 = vsel %vm2234, %v2153, 0.0
  %v2612 = vadd.f32 %v2610, %v2611
  %v2613 = vsel %vm2234, %v2154, 0.0
  %v2614 = vadd.f32 %v2612, %v2613
  %v2615 = vsel %vm2234, %v2155, 0.0
  %v2616 = vadd.f32 %v2614, %v2615
  %v2617 = vsel %vm2234, %v2156, 0.0
  %v2618 = vadd.f32 %v2616, %v2617
  %v2619 = vsel %vm2234, %v2157, 0.0
  %v2620 = vadd.f32 %v2618, %v2619
  %v2621 = vsel %vm2234, %v2158, 0.0
  %v2622 = vadd.f32 %v2620, %v2621
  %v2623 = vsel %vm2234, %v2159, 0.0
  %v2624 = vadd.f32 %v2622, %v2623
  %v2625 = vsel %vm2234, %v2160, 0.0
  %v2626 = vadd.f32 %v2624, %v2625
  %v2627 = vsel %vm2234, %v2161, 0.0
  %v2628 = vadd.f32 %v2626, %v2627
  %v2629 = vsel %vm2234, %v2162, 0.0
  %v2630 = vadd.f32 %v2628, %v2629
  %v2631 = vsel %vm2234, %v2163, 0.0
  %v2632 = vadd.f32 %v2630, %v2631
  %v2633 = vsel %vm2234, %v2164, 0.0
  %v2634 = vadd.f32 %v2632, %v2633
  %v2635 = vsel %vm2234, %v2165, 0.0
  %v2636 = vadd.f32 %v2634, %v2635
  %v2637 = vsel %vm2234, %v2166, 0.0
  %v2638 = vadd.f32 %v2636, %v2637
  %v2639 = vsel %vm2234, %v2167, 0.0
  %v2640 = vadd.f32 %v2638, %v2639
  %v2641 = vsel %vm2234, %v2168, 0.0
  %v2642 = vadd.f32 %v2640, %v2641
  %v2643 = vrot.slane %v2642, 4
  %v2644 = vadd.f32 %v2642, %v2643
  %v2645 = vrot.slane %v2644, 2
  %v2646 = vadd.f32 %v2644, %v2645
  %v2647 = vrot.slane %v2646, 1
  %v2648 = vadd.f32 %v2646, %v2647
  %v2649 = vsel %vm2234, %v2169, 0.0
  %v2650 = vsel %vm2234, %v2170, 0.0
  %v2651 = vadd.f32 %v2649, %v2650
  %v2652 = vsel %vm2234, %v2171, 0.0
  %v2653 = vadd.f32 %v2651, %v2652
  %v2654 = vsel %vm2234, %v2172, 0.0
  %v2655 = vadd.f32 %v2653, %v2654
  %v2656 = vsel %vm2234, %v2173, 0.0
  %v2657 = vadd.f32 %v2655, %v2656
  %v2658 = vsel %vm2234, %v2174, 0.0
  %v2659 = vadd.f32 %v2657, %v2658
  %v2660 = vsel %vm2234, %v2175, 0.0
  %v2661 = vadd.f32 %v2659, %v2660
  %v2662 = vsel %vm2234, %v2176, 0.0
  %v2663 = vadd.f32 %v2661, %v2662
  %v2664 = vsel %vm2234, %v2177, 0.0
  %v2665 = vadd.f32 %v2663, %v2664
  %v2666 = vsel %vm2234, %v2178, 0.0
  %v2667 = vadd.f32 %v2665, %v2666
  %v2668 = vsel %vm2234, %v2179, 0.0
  %v2669 = vadd.f32 %v2667, %v2668
  %v2670 = vsel %vm2234, %v2180, 0.0
  %v2671 = vadd.f32 %v2669, %v2670
  %v2672 = vsel %vm2234, %v2181, 0.0
  %v2673 = vadd.f32 %v2671, %v2672
  %v2674 = vsel %vm2234, %v2182, 0.0
  %v2675 = vadd.f32 %v2673, %v2674
  %v2676 = vsel %vm2234, %v2183, 0.0
  %v2677 = vadd.f32 %v2675, %v2676
  %v2678 = vsel %vm2234, %v2184, 0.0
  %v2679 = vadd.f32 %v2677, %v2678
  %v2680 = vsel %vm2234, %v2185, 0.0
  %v2681 = vadd.f32 %v2679, %v2680
  %v2682 = vsel %vm2234, %v2186, 0.0
  %v2683 = vadd.f32 %v2681, %v2682
  %v2684 = vsel %vm2234, %v2187, 0.0
  %v2685 = vadd.f32 %v2683, %v2684
  %v2686 = vsel %vm2234, %v2188, 0.0
  %v2687 = vadd.f32 %v2685, %v2686
  %v2688 = vsel %vm2234, %v2189, 0.0
  %v2689 = vadd.f32 %v2687, %v2688
  %v2690 = vsel %vm2234, %v2190, 0.0
  %v2691 = vadd.f32 %v2689, %v2690
  %v2692 = vsel %vm2234, %v2191, 0.0
  %v2693 = vadd.f32 %v2691, %v2692
  %v2694 = vsel %vm2234, %v2192, 0.0
  %v2695 = vadd.f32 %v2693, %v2694
  %v2696 = vsel %vm2234, %v2193, 0.0
  %v2697 = vadd.f32 %v2695, %v2696
  %v2698 = vsel %vm2234, %v2194, 0.0
  %v2699 = vadd.f32 %v2697, %v2698
  %v2700 = vsel %vm2234, %v2195, 0.0
  %v2701 = vadd.f32 %v2699, %v2700
  %v2702 = vsel %vm2234, %v2196, 0.0
  %v2703 = vadd.f32 %v2701, %v2702
  %v2704 = vsel %vm2234, %v2197, 0.0
  %v2705 = vadd.f32 %v2703, %v2704
  %v2706 = vsel %vm2234, %v2198, 0.0
  %v2707 = vadd.f32 %v2705, %v2706
  %v2708 = vsel %vm2234, %v2199, 0.0
  %v2709 = vadd.f32 %v2707, %v2708
  %v2710 = vsel %vm2234, %v2200, 0.0
  %v2711 = vadd.f32 %v2709, %v2710
  %v2712 = vrot.slane %v2711, 4
  %v2713 = vadd.f32 %v2711, %v2712
  %v2714 = vrot.slane %v2713, 2
  %v2715 = vadd.f32 %v2713, %v2714
  %v2716 = vrot.slane %v2715, 1
  %v2717 = vadd.f32 %v2715, %v2716
  %v2718 = vsel %vm2234, %v2201, 0.0
  %v2719 = vsel %vm2234, %v2202, 0.0
  %v2720 = vadd.f32 %v2718, %v2719
  %v2721 = vsel %vm2234, %v2203, 0.0
  %v2722 = vadd.f32 %v2720, %v2721
  %v2723 = vsel %vm2234, %v2204, 0.0
  %v2724 = vadd.f32 %v2722, %v2723
  %v2725 = vsel %vm2234, %v2205, 0.0
  %v2726 = vadd.f32 %v2724, %v2725
  %v2727 = vsel %vm2234, %v2206, 0.0
  %v2728 = vadd.f32 %v2726, %v2727
  %v2729 = vsel %vm2234, %v2207, 0.0
  %v2730 = vadd.f32 %v2728, %v2729
  %v2731 = vsel %vm2234, %v2208, 0.0
  %v2732 = vadd.f32 %v2730, %v2731
  %v2733 = vsel %vm2234, %v2209, 0.0
  %v2734 = vadd.f32 %v2732, %v2733
  %v2735 = vsel %vm2234, %v2210, 0.0
  %v2736 = vadd.f32 %v2734, %v2735
  %v2737 = vsel %vm2234, %v2211, 0.0
  %v2738 = vadd.f32 %v2736, %v2737
  %v2739 = vsel %vm2234, %v2212, 0.0
  %v2740 = vadd.f32 %v2738, %v2739
  %v2741 = vsel %vm2234, %v2213, 0.0
  %v2742 = vadd.f32 %v2740, %v2741
  %v2743 = vsel %vm2234, %v2214, 0.0
  %v2744 = vadd.f32 %v2742, %v2743
  %v2745 = vsel %vm2234, %v2215, 0.0
  %v2746 = vadd.f32 %v2744, %v2745
  %v2747 = vsel %vm2234, %v2216, 0.0
  %v2748 = vadd.f32 %v2746, %v2747
  %v2749 = vsel %vm2234, %v2217, 0.0
  %v2750 = vadd.f32 %v2748, %v2749
  %v2751 = vsel %vm2234, %v2218, 0.0
  %v2752 = vadd.f32 %v2750, %v2751
  %v2753 = vsel %vm2234, %v2219, 0.0
  %v2754 = vadd.f32 %v2752, %v2753
  %v2755 = vsel %vm2234, %v2220, 0.0
  %v2756 = vadd.f32 %v2754, %v2755
  %v2757 = vsel %vm2234, %v2221, 0.0
  %v2758 = vadd.f32 %v2756, %v2757
  %v2759 = vsel %vm2234, %v2222, 0.0
  %v2760 = vadd.f32 %v2758, %v2759
  %v2761 = vsel %vm2234, %v2223, 0.0
  %v2762 = vadd.f32 %v2760, %v2761
  %v2763 = vsel %vm2234, %v2224, 0.0
  %v2764 = vadd.f32 %v2762, %v2763
  %v2765 = vsel %vm2234, %v2225, 0.0
  %v2766 = vadd.f32 %v2764, %v2765
  %v2767 = vsel %vm2234, %v2226, 0.0
  %v2768 = vadd.f32 %v2766, %v2767
  %v2769 = vsel %vm2234, %v2227, 0.0
  %v2770 = vadd.f32 %v2768, %v2769
  %v2771 = vsel %vm2234, %v2228, 0.0
  %v2772 = vadd.f32 %v2770, %v2771
  %v2773 = vsel %vm2234, %v2229, 0.0
  %v2774 = vadd.f32 %v2772, %v2773
  %v2775 = vsel %vm2234, %v2230, 0.0
  %v2776 = vadd.f32 %v2774, %v2775
  %v2777 = vsel %vm2234, %v2231, 0.0
  %v2778 = vadd.f32 %v2776, %v2777
  %v2779 = vsel %vm2234, %v2232, 0.0
  %v2780 = vadd.f32 %v2778, %v2779
  %v2781 = vrot.slane %v2780, 4
  %v2782 = vadd.f32 %v2780, %v2781
  %v2783 = vrot.slane %v2782, 2
  %v2784 = vadd.f32 %v2782, %v2783
  %v2785 = vrot.slane %v2784, 1
  %v2786 = vadd.f32 %v2784, %v2785
  %vm2795 = vcmask 1041409
  %v2796 = vsel %vm2795, %v2372, %v2303
  %vm2797 = vcmask 1042434
  %v2798 = vsel %vm2797, %v2441, %v2796
  %vm2799 = vcmask 1043459
  %v2800 = vsel %vm2799, %v2510, %v2798
  %vm2801 = vcmask 1044484
  %v2802 = vsel %vm2801, %v2579, %v2800
  %vm2803 = vcmask 1045509
  %v2804 = vsel %vm2803, %v2648, %v2802
  %vm2805 = vcmask 1046534
  %v2806 = vsel %vm2805, %v2717, %v2804
  %vm2807 = vcmask 1047559
  %v2808 = vsel %vm2807, %v2786, %v2806
  %v2810 = vadd.f32 %v2233, %v2808
  %2811 = vst.msk [vmem:[#allocation2] sm:$0xff] %vm2234, %v2810
  // Predicated region
  $region26: #{improved_hybrid_forward.2} parent=0 // pred_check
    %p2812 = pneg %p21
  $region27: #{improved_hybrid_forward.2} parent=0 // pred_check_branch
    %2814 = sbr.rel (%p2812) target = $region29
  $region28: #{improved_hybrid_forward.2} parent=0 // pred_region
    %v2815 = vld [vmem:[#allocation2] sm:$0xff]
    %v2816 = vmul.f32 %v2815, 0.00390625
    %v2817 = vpack.c.bf16 %v2816, %v2816
    %v2818 = vld [vmem:[%s3] sm:$0xff]
    %v2819 = vld [vmem:[%s3 + $0x8] sm:$0xff]
    %v2820 = vld [vmem:[%s3 + $0x10] sm:$0xff]
    %v2821 = vld [vmem:[%s3 + $0x18] sm:$0xff]
    %v2822 = vld [vmem:[%s3 + $0x20] sm:$0xff]
    %v2823 = vld [vmem:[%s3 + $0x28] sm:$0xff]
    %v2824 = vld [vmem:[%s3 + $0x30] sm:$0xff]
    %v2825 = vld [vmem:[%s3 + $0x38] sm:$0xff]
    %v2826 = vld [vmem:[%s3 + $0x40] sm:$0xff]
    %v2827 = vld [vmem:[%s3 + $0x48] sm:$0xff]
    %v2828 = vld [vmem:[%s3 + $0x50] sm:$0xff]
    %v2829 = vld [vmem:[%s3 + $0x58] sm:$0xff]
    %v2830 = vld [vmem:[%s3 + $0x60] sm:$0xff]
    %v2831 = vld [vmem:[%s3 + $0x68] sm:$0xff]
    %v2832 = vld [vmem:[%s3 + $0x70] sm:$0xff]
    %v2833 = vld [vmem:[%s3 + $0x78] sm:$0xff]
    %v2834 = vld [vmem:[%s3 + $0x80] sm:$0xff]
    %v2835 = vld [vmem:[%s3 + $0x88] sm:$0xff]
    %v2836 = vld [vmem:[%s3 + $0x90] sm:$0xff]
    %v2837 = vld [vmem:[%s3 + $0x98] sm:$0xff]
    %v2838 = vld [vmem:[%s3 + $0xa0] sm:$0xff]
    %v2839 = vld [vmem:[%s3 + $0xa8] sm:$0xff]
    %v2840 = vld [vmem:[%s3 + $0xb0] sm:$0xff]
    %v2841 = vld [vmem:[%s3 + $0xb8] sm:$0xff]
    %v2842 = vld [vmem:[%s3 + $0xc0] sm:$0xff]
    %v2843 = vld [vmem:[%s3 + $0xc8] sm:$0xff]
    %v2844 = vld [vmem:[%s3 + $0xd0] sm:$0xff]
    %v2845 = vld [vmem:[%s3 + $0xd8] sm:$0xff]
    %v2846 = vld [vmem:[%s3 + $0xe0] sm:$0xff]
    %v2847 = vld [vmem:[%s3 + $0xe8] sm:$0xff]
    %v2848 = vld [vmem:[%s3 + $0xf0] sm:$0xff]
    %v2849 = vld [vmem:[%s3 + $0xf8] sm:$0xff]
    %v2850 = vld [vmem:[%s3 + $0x100] sm:$0xff]
    %v2851 = vld [vmem:[%s3 + $0x108] sm:$0xff]
    %v2852 = vld [vmem:[%s3 + $0x110] sm:$0xff]
    %v2853 = vld [vmem:[%s3 + $0x118] sm:$0xff]
    %v2854 = vld [vmem:[%s3 + $0x120] sm:$0xff]
    %v2855 = vld [vmem:[%s3 + $0x128] sm:$0xff]
    %v2856 = vld [vmem:[%s3 + $0x130] sm:$0xff]
    %v2857 = vld [vmem:[%s3 + $0x138] sm:$0xff]
    %v2858 = vld [vmem:[%s3 + $0x140] sm:$0xff]
    %v2859 = vld [vmem:[%s3 + $0x148] sm:$0xff]
    %v2860 = vld [vmem:[%s3 + $0x150] sm:$0xff]
    %v2861 = vld [vmem:[%s3 + $0x158] sm:$0xff]
    %v2862 = vld [vmem:[%s3 + $0x160] sm:$0xff]
    %v2863 = vld [vmem:[%s3 + $0x168] sm:$0xff]
    %v2864 = vld [vmem:[%s3 + $0x170] sm:$0xff]
    %v2865 = vld [vmem:[%s3 + $0x178] sm:$0xff]
    %v2866 = vld [vmem:[%s3 + $0x180] sm:$0xff]
    %v2867 = vld [vmem:[%s3 + $0x188] sm:$0xff]
    %v2868 = vld [vmem:[%s3 + $0x190] sm:$0xff]
    %v2869 = vld [vmem:[%s3 + $0x198] sm:$0xff]
    %v2870 = vld [vmem:[%s3 + $0x1a0] sm:$0xff]
    %v2871 = vld [vmem:[%s3 + $0x1a8] sm:$0xff]
    %v2872 = vld [vmem:[%s3 + $0x1b0] sm:$0xff]
    %v2873 = vld [vmem:[%s3 + $0x1b8] sm:$0xff]
    %v2874 = vld [vmem:[%s3 + $0x1c0] sm:$0xff]
    %v2875 = vld [vmem:[%s3 + $0x1c8] sm:$0xff]
    %v2876 = vld [vmem:[%s3 + $0x1d0] sm:$0xff]
    %v2877 = vld [vmem:[%s3 + $0x1d8] sm:$0xff]
    %v2878 = vld [vmem:[%s3 + $0x1e0] sm:$0xff]
    %v2879 = vld [vmem:[%s3 + $0x1e8] sm:$0xff]
    %v2880 = vld [vmem:[%s3 + $0x1f0] sm:$0xff]
    %v2881 = vld [vmem:[%s3 + $0x1f8] sm:$0xff]
    %v2882 = vld [vmem:[%s4] sm:$0xff]
    %v2883 = vld [vmem:[%s4 + $0x8] sm:$0xff]
    %v2886 = vperm.slane %v2882, 0
    %v2887 = vperm.slane %v2882, 1
    %v2888 = vperm.slane %v2882, 2
    %v2889 = vperm.slane %v2882, 3
    %v2890 = vperm.slane %v2882, 4
    %v2891 = vperm.slane %v2882, 5
    %v2892 = vperm.slane %v2882, 6
    %v2893 = vperm.slane %v2882, 7
    %v2894 = vperm.slane %v2883, 0
    %v2895 = vperm.slane %v2883, 1
    %v2896 = vperm.slane %v2883, 2
    %v2897 = vperm.slane %v2883, 3
    %v2898 = vperm.slane %v2883, 4
    %v2899 = vperm.slane %v2883, 5
    %v2900 = vperm.slane %v2883, 6
    %v2901 = vperm.slane %v2883, 7
    %v2982 = vunpack.c.l.b16 %v2818
    %v2983 = vunpack.c.h.b16 %v2818
    %v2984 = vunpack.c.l.b16 %v2819
    %v2985 = vunpack.c.h.b16 %v2819
    %v2986 = vunpack.c.l.b16 %v2820
    %v2987 = vunpack.c.h.b16 %v2820
    %v2988 = vunpack.c.l.b16 %v2821
    %v2989 = vunpack.c.h.b16 %v2821
    %v2990 = vunpack.c.l.b16 %v2822
    %v2991 = vunpack.c.h.b16 %v2822
    %v2992 = vunpack.c.l.b16 %v2823
    %v2993 = vunpack.c.h.b16 %v2823
    %v2994 = vunpack.c.l.b16 %v2824
    %v2995 = vunpack.c.h.b16 %v2824
    %v2996 = vunpack.c.l.b16 %v2825
    %v2997 = vunpack.c.h.b16 %v2825
    %v2998 = vunpack.c.l.b16 %v2826
    %v2999 = vunpack.c.h.b16 %v2826
    %v3000 = vunpack.c.l.b16 %v2827
    %v3001 = vunpack.c.h.b16 %v2827
    %v3002 = vunpack.c.l.b16 %v2828
    %v3003 = vunpack.c.h.b16 %v2828
    %v3004 = vunpack.c.l.b16 %v2829
    %v3005 = vunpack.c.h.b16 %v2829
    %v3006 = vunpack.c.l.b16 %v2830
    %v3007 = vunpack.c.h.b16 %v2830
    %v3008 = vunpack.c.l.b16 %v2831
    %v3009 = vunpack.c.h.b16 %v2831
    %v3010 = vunpack.c.l.b16 %v2832
    %v3011 = vunpack.c.h.b16 %v2832
    %v3012 = vunpack.c.l.b16 %v2833
    %v3013 = vunpack.c.h.b16 %v2833
    %v3014 = vunpack.c.l.b16 %v2834
    %v3015 = vunpack.c.h.b16 %v2834
    %v3016 = vunpack.c.l.b16 %v2835
    %v3017 = vunpack.c.h.b16 %v2835
    %v3018 = vunpack.c.l.b16 %v2836
    %v3019 = vunpack.c.h.b16 %v2836
    %v3020 = vunpack.c.l.b16 %v2837
    %v3021 = vunpack.c.h.b16 %v2837
    %v3022 = vunpack.c.l.b16 %v2838
    %v3023 = vunpack.c.h.b16 %v2838
    %v3024 = vunpack.c.l.b16 %v2839
    %v3025 = vunpack.c.h.b16 %v2839
    %v3026 = vunpack.c.l.b16 %v2840
    %v3027 = vunpack.c.h.b16 %v2840
    %v3028 = vunpack.c.l.b16 %v2841
    %v3029 = vunpack.c.h.b16 %v2841
    %v3030 = vunpack.c.l.b16 %v2842
    %v3031 = vunpack.c.h.b16 %v2842
    %v3032 = vunpack.c.l.b16 %v2843
    %v3033 = vunpack.c.h.b16 %v2843
    %v3034 = vunpack.c.l.b16 %v2844
    %v3035 = vunpack.c.h.b16 %v2844
    %v3036 = vunpack.c.l.b16 %v2845
    %v3037 = vunpack.c.h.b16 %v2845
    %v3038 = vunpack.c.l.b16 %v2846
    %v3039 = vunpack.c.h.b16 %v2846
    %v3040 = vunpack.c.l.b16 %v2847
    %v3041 = vunpack.c.h.b16 %v2847
    %v3042 = vunpack.c.l.b16 %v2848
    %v3043 = vunpack.c.h.b16 %v2848
    %v3044 = vunpack.c.l.b16 %v2849
    %v3045 = vunpack.c.h.b16 %v2849
    %v3046 = vunpack.c.l.b16 %v2850
    %v3047 = vunpack.c.h.b16 %v2850
    %v3048 = vunpack.c.l.b16 %v2851
    %v3049 = vunpack.c.h.b16 %v2851
    %v3050 = vunpack.c.l.b16 %v2852
    %v3051 = vunpack.c.h.b16 %v2852
    %v3052 = vunpack.c.l.b16 %v2853
    %v3053 = vunpack.c.h.b16 %v2853
    %v3054 = vunpack.c.l.b16 %v2854
    %v3055 = vunpack.c.h.b16 %v2854
    %v3056 = vunpack.c.l.b16 %v2855
    %v3057 = vunpack.c.h.b16 %v2855
    %v3058 = vunpack.c.l.b16 %v2856
    %v3059 = vunpack.c.h.b16 %v2856
    %v3060 = vunpack.c.l.b16 %v2857
    %v3061 = vunpack.c.h.b16 %v2857
    %v3062 = vunpack.c.l.b16 %v2858
    %v3063 = vunpack.c.h.b16 %v2858
    %v3064 = vunpack.c.l.b16 %v2859
    %v3065 = vunpack.c.h.b16 %v2859
    %v3066 = vunpack.c.l.b16 %v2860
    %v3067 = vunpack.c.h.b16 %v2860
    %v3068 = vunpack.c.l.b16 %v2861
    %v3069 = vunpack.c.h.b16 %v2861
    %v3070 = vunpack.c.l.b16 %v2862
    %v3071 = vunpack.c.h.b16 %v2862
    %v3072 = vunpack.c.l.b16 %v2863
    %v3073 = vunpack.c.h.b16 %v2863
    %v3074 = vunpack.c.l.b16 %v2864
    %v3075 = vunpack.c.h.b16 %v2864
    %v3076 = vunpack.c.l.b16 %v2865
    %v3077 = vunpack.c.h.b16 %v2865
    %v3078 = vunpack.c.l.b16 %v2866
    %v3079 = vunpack.c.h.b16 %v2866
    %v3080 = vunpack.c.l.b16 %v2867
    %v3081 = vunpack.c.h.b16 %v2867
    %v3082 = vunpack.c.l.b16 %v2868
    %v3083 = vunpack.c.h.b16 %v2868
    %v3084 = vunpack.c.l.b16 %v2869
    %v3085 = vunpack.c.h.b16 %v2869
    %v3086 = vunpack.c.l.b16 %v2870
    %v3087 = vunpack.c.h.b16 %v2870
    %v3088 = vunpack.c.l.b16 %v2871
    %v3089 = vunpack.c.h.b16 %v2871
    %v3090 = vunpack.c.l.b16 %v2872
    %v3091 = vunpack.c.h.b16 %v2872
    %v3092 = vunpack.c.l.b16 %v2873
    %v3093 = vunpack.c.h.b16 %v2873
    %v3094 = vunpack.c.l.b16 %v2874
    %v3095 = vunpack.c.h.b16 %v2874
    %v3096 = vunpack.c.l.b16 %v2875
    %v3097 = vunpack.c.h.b16 %v2875
    %v3098 = vunpack.c.l.b16 %v2876
    %v3099 = vunpack.c.h.b16 %v2876
    %v3100 = vunpack.c.l.b16 %v2877
    %v3101 = vunpack.c.h.b16 %v2877
    %v3102 = vunpack.c.l.b16 %v2878
    %v3103 = vunpack.c.h.b16 %v2878
    %v3104 = vunpack.c.l.b16 %v2879
    %v3105 = vunpack.c.h.b16 %v2879
    %v3106 = vunpack.c.l.b16 %v2880
    %v3107 = vunpack.c.h.b16 %v2880
    %v3108 = vunpack.c.l.b16 %v2881
    %v3109 = vunpack.c.h.b16 %v2881
    %v3110 = vpack.c.b16 %v2998, %v2982
    %v3111 = vpack.c.b16 %v2999, %v2983
    %v3112 = vpack.c.b16 %v3000, %v2984
    %v3113 = vpack.c.b16 %v3001, %v2985
    %v3114 = vpack.c.b16 %v3002, %v2986
    %v3115 = vpack.c.b16 %v3003, %v2987
    %v3116 = vpack.c.b16 %v3004, %v2988
    %v3117 = vpack.c.b16 %v3005, %v2989
    %v3118 = vpack.c.b16 %v3006, %v2990
    %v3119 = vpack.c.b16 %v3007, %v2991
    %v3120 = vpack.c.b16 %v3008, %v2992
    %v3121 = vpack.c.b16 %v3009, %v2993
    %v3122 = vpack.c.b16 %v3010, %v2994
    %v3123 = vpack.c.b16 %v3011, %v2995
    %v3124 = vpack.c.b16 %v3012, %v2996
    %v3125 = vpack.c.b16 %v3013, %v2997
    %v3126 = vpack.c.b16 %v3030, %v3014
    %v3127 = vpack.c.b16 %v3031, %v3015
    %v3128 = vpack.c.b16 %v3032, %v3016
    %v3129 = vpack.c.b16 %v3033, %v3017
    %v3130 = vpack.c.b16 %v3034, %v3018
    %v3131 = vpack.c.b16 %v3035, %v3019
    %v3132 = vpack.c.b16 %v3036, %v3020
    %v3133 = vpack.c.b16 %v3037, %v3021
    %v3134 = vpack.c.b16 %v3038, %v3022
    %v3135 = vpack.c.b16 %v3039, %v3023
    %v3136 = vpack.c.b16 %v3040, %v3024
    %v3137 = vpack.c.b16 %v3041, %v3025
    %v3138 = vpack.c.b16 %v3042, %v3026
    %v3139 = vpack.c.b16 %v3043, %v3027
    %v3140 = vpack.c.b16 %v3044, %v3028
    %v3141 = vpack.c.b16 %v3045, %v3029
    %v3142 = vpack.c.b16 %v3062, %v3046
    %v3143 = vpack.c.b16 %v3063, %v3047
    %v3144 = vpack.c.b16 %v3064, %v3048
    %v3145 = vpack.c.b16 %v3065, %v3049
    %v3146 = vpack.c.b16 %v3066, %v3050
    %v3147 = vpack.c.b16 %v3067, %v3051
    %v3148 = vpack.c.b16 %v3068, %v3052
    %v3149 = vpack.c.b16 %v3069, %v3053
    %v3150 = vpack.c.b16 %v3070, %v3054
    %v3151 = vpack.c.b16 %v3071, %v3055
    %v3152 = vpack.c.b16 %v3072, %v3056
    %v3153 = vpack.c.b16 %v3073, %v3057
    %v3154 = vpack.c.b16 %v3074, %v3058
    %v3155 = vpack.c.b16 %v3075, %v3059
    %v3156 = vpack.c.b16 %v3076, %v3060
    %v3157 = vpack.c.b16 %v3077, %v3061
    %v3158 = vpack.c.b16 %v3094, %v3078
    %v3159 = vpack.c.b16 %v3095, %v3079
    %v3160 = vpack.c.b16 %v3096, %v3080
    %v3161 = vpack.c.b16 %v3097, %v3081
    %v3162 = vpack.c.b16 %v3098, %v3082
    %v3163 = vpack.c.b16 %v3099, %v3083
    %v3164 = vpack.c.b16 %v3100, %v3084
    %v3165 = vpack.c.b16 %v3101, %v3085
    %v3166 = vpack.c.b16 %v3102, %v3086
    %v3167 = vpack.c.b16 %v3103, %v3087
    %v3168 = vpack.c.b16 %v3104, %v3088
    %v3169 = vpack.c.b16 %v3105, %v3089
    %v3170 = vpack.c.b16 %v3106, %v3090
    %v3171 = vpack.c.b16 %v3107, %v3091
    %v3172 = vpack.c.b16 %v3108, %v3092
    %v3173 = vpack.c.b16 %v3109, %v3093
    %v3239 = vsel %vm2234, %v2817, 0
    %3241 = vmatpush.bf16.msra.mxu0 0
    %3242 = vmatpush.bf16.msra.mxu0 0
    %3243 = vmatpush.bf16.msra.mxu0 0
    %3244 = vmatpush.bf16.msra.mxu0 0
    %3245 = vmatpush.bf16.msra.mxu0 %v3158
    %3246 = vmatpush.bf16.msra.mxu0 %v3142
    %3247 = vmatpush.bf16.msra.mxu0 %v3126
    %3248 = vmatpush.bf16.msra.mxu0 %v3110
    %3249 = vmatmul.bf16.gmra.mxu0 %v3239
    %v3250 = vpop.f32.mrf.mxu0
    %v3251 = vadd.f32 %v2886, %v3250
    %v3252 = vpop.f32.mrf.mxu0
    %3253 = vdwg.mxu0
    %3254 = vmatpush.bf16.msra.mxu0 0
    %3255 = vmatpush.bf16.msra.mxu0 0
    %3256 = vmatpush.bf16.msra.mxu0 0
    %3257 = vmatpush.bf16.msra.mxu0 0
    %3258 = vmatpush.bf16.msra.mxu0 %v3159
    %3259 = vmatpush.bf16.msra.mxu0 %v3143
    %3260 = vmatpush.bf16.msra.mxu0 %v3127
    %3261 = vmatpush.bf16.msra.mxu0 %v3111
    %3262 = vmatmul.bf16.gmra.mxu0 %v3239
    %v3263 = vpop.f32.mrf.mxu0
    %v3264 = vadd.f32 %v2887, %v3263
    %v3265 = vpop.f32.mrf.mxu0
    %3266 = vdwg.mxu0
    %3267 = vmatpush.bf16.msra.mxu0 0
    %3268 = vmatpush.bf16.msra.mxu0 0
    %3269 = vmatpush.bf16.msra.mxu0 0
    %3270 = vmatpush.bf16.msra.mxu0 0
    %3271 = vmatpush.bf16.msra.mxu0 %v3160
    %3272 = vmatpush.bf16.msra.mxu0 %v3144
    %3273 = vmatpush.bf16.msra.mxu0 %v3128
    %3274 = vmatpush.bf16.msra.mxu0 %v3112
    %3275 = vmatmul.bf16.gmra.mxu0 %v3239
    %v3276 = vpop.f32.mrf.mxu0
    %v3277 = vadd.f32 %v2888, %v3276
    %v3278 = vpop.f32.mrf.mxu0
    %3279 = vdwg.mxu0
    %3280 = vmatpush.bf16.msra.mxu0 0
    %3281 = vmatpush.bf16.msra.mxu0 0
    %3282 = vmatpush.bf16.msra.mxu0 0
    %3283 = vmatpush.bf16.msra.mxu0 0
    %3284 = vmatpush.bf16.msra.mxu0 %v3161
    %3285 = vmatpush.bf16.msra.mxu0 %v3145
    %3286 = vmatpush.bf16.msra.mxu0 %v3129
    %3287 = vmatpush.bf16.msra.mxu0 %v3113
    %3288 = vmatmul.bf16.gmra.mxu0 %v3239
    %v3289 = vpop.f32.mrf.mxu0
    %v3290 = vadd.f32 %v2889, %v3289
    %v3291 = vpop.f32.mrf.mxu0
    %3292 = vdwg.mxu0
    %3293 = vmatpush.bf16.msra.mxu0 0
    %3294 = vmatpush.bf16.msra.mxu0 0
    %3295 = vmatpush.bf16.msra.mxu0 0
    %3296 = vmatpush.bf16.msra.mxu0 0
    %3297 = vmatpush.bf16.msra.mxu0 %v3162
    %3298 = vmatpush.bf16.msra.mxu0 %v3146
    %3299 = vmatpush.bf16.msra.mxu0 %v3130
    %3300 = vmatpush.bf16.msra.mxu0 %v3114
    %3301 = vmatmul.bf16.gmra.mxu0 %v3239
    %v3302 = vpop.f32.mrf.mxu0
    %v3303 = vadd.f32 %v2890, %v3302
    %v3304 = vpop.f32.mrf.mxu0
    %3305 = vdwg.mxu0
    %3306 = vmatpush.bf16.msra.mxu0 0
    %3307 = vmatpush.bf16.msra.mxu0 0
    %3308 = vmatpush.bf16.msra.mxu0 0
    %3309 = vmatpush.bf16.msra.mxu0 0
    %3310 = vmatpush.bf16.msra.mxu0 %v3163
    %3311 = vmatpush.bf16.msra.mxu0 %v3147
    %3312 = vmatpush.bf16.msra.mxu0 %v3131
    %3313 = vmatpush.bf16.msra.mxu0 %v3115
    %3314 = vmatmul.bf16.gmra.mxu0 %v3239
    %v3315 = vpop.f32.mrf.mxu0
    %v3316 = vadd.f32 %v2891, %v3315
    %v3317 = vpop.f32.mrf.mxu0
    %3318 = vdwg.mxu0
    %3319 = vmatpush.bf16.msra.mxu0 0
    %3320 = vmatpush.bf16.msra.mxu0 0
    %3321 = vmatpush.bf16.msra.mxu0 0
    %3322 = vmatpush.bf16.msra.mxu0 0
    %3323 = vmatpush.bf16.msra.mxu0 %v3164
    %3324 = vmatpush.bf16.msra.mxu0 %v3148
    %3325 = vmatpush.bf16.msra.mxu0 %v3132
    %3326 = vmatpush.bf16.msra.mxu0 %v3116
    %3327 = vmatmul.bf16.gmra.mxu0 %v3239
    %v3328 = vpop.f32.mrf.mxu0
    %v3329 = vadd.f32 %v2892, %v3328
    %v3330 = vpop.f32.mrf.mxu0
    %3331 = vdwg.mxu0
    %3332 = vmatpush.bf16.msra.mxu0 0
    %3333 = vmatpush.bf16.msra.mxu0 0
    %3334 = vmatpush.bf16.msra.mxu0 0
    %3335 = vmatpush.bf16.msra.mxu0 0
    %3336 = vmatpush.bf16.msra.mxu0 %v3165
    %3337 = vmatpush.bf16.msra.mxu0 %v3149
    %3338 = vmatpush.bf16.msra.mxu0 %v3133
    %3339 = vmatpush.bf16.msra.mxu0 %v3117
    %3340 = vmatmul.bf16.gmra.mxu0 %v3239
    %v3341 = vpop.f32.mrf.mxu0
    %v3342 = vadd.f32 %v2893, %v3341
    %v3343 = vpop.f32.mrf.mxu0
    %3344 = vdwg.mxu0
    %3345 = vmatpush.bf16.msra.mxu0 0
    %3346 = vmatpush.bf16.msra.mxu0 0
    %3347 = vmatpush.bf16.msra.mxu0 0
    %3348 = vmatpush.bf16.msra.mxu0 0
    %3349 = vmatpush.bf16.msra.mxu0 %v3166
    %3350 = vmatpush.bf16.msra.mxu0 %v3150
    %3351 = vmatpush.bf16.msra.mxu0 %v3134
    %3352 = vmatpush.bf16.msra.mxu0 %v3118
    %3353 = vmatmul.bf16.gmra.mxu0 %v3239
    %v3354 = vpop.f32.mrf.mxu0
    %v3355 = vadd.f32 %v2894, %v3354
    %v3356 = vpop.f32.mrf.mxu0
    %3357 = vdwg.mxu0
    %3358 = vmatpush.bf16.msra.mxu0 0
    %3359 = vmatpush.bf16.msra.mxu0 0
    %3360 = vmatpush.bf16.msra.mxu0 0
    %3361 = vmatpush.bf16.msra.mxu0 0
    %3362 = vmatpush.bf16.msra.mxu0 %v3167
    %3363 = vmatpush.bf16.msra.mxu0 %v3151
    %3364 = vmatpush.bf16.msra.mxu0 %v3135
    %3365 = vmatpush.bf16.msra.mxu0 %v3119
    %3366 = vmatmul.bf16.gmra.mxu0 %v3239
    %v3367 = vpop.f32.mrf.mxu0
    %v3368 = vadd.f32 %v2895, %v3367
    %v3369 = vpop.f32.mrf.mxu0
    %3370 = vdwg.mxu0
    %3371 = vmatpush.bf16.msra.mxu0 0
    %3372 = vmatpush.bf16.msra.mxu0 0
    %3373 = vmatpush.bf16.msra.mxu0 0
    %3374 = vmatpush.bf16.msra.mxu0 0
    %3375 = vmatpush.bf16.msra.mxu0 %v3168
    %3376 = vmatpush.bf16.msra.mxu0 %v3152
    %3377 = vmatpush.bf16.msra.mxu0 %v3136
    %3378 = vmatpush.bf16.msra.mxu0 %v3120
    %3379 = vmatmul.bf16.gmra.mxu0 %v3239
    %v3380 = vpop.f32.mrf.mxu0
    %v3381 = vadd.f32 %v2896, %v3380
    %v3382 = vpop.f32.mrf.mxu0
    %3383 = vdwg.mxu0
    %3384 = vmatpush.bf16.msra.mxu0 0
    %3385 = vmatpush.bf16.msra.mxu0 0
    %3386 = vmatpush.bf16.msra.mxu0 0
    %3387 = vmatpush.bf16.msra.mxu0 0
    %3388 = vmatpush.bf16.msra.mxu0 %v3169
    %3389 = vmatpush.bf16.msra.mxu0 %v3153
    %3390 = vmatpush.bf16.msra.mxu0 %v3137
    %3391 = vmatpush.bf16.msra.mxu0 %v3121
    %3392 = vmatmul.bf16.gmra.mxu0 %v3239
    %v3393 = vpop.f32.mrf.mxu0
    %v3394 = vadd.f32 %v2897, %v3393
    %v3395 = vpop.f32.mrf.mxu0
    %3396 = vdwg.mxu0
    %3397 = vmatpush.bf16.msra.mxu0 0
    %3398 = vmatpush.bf16.msra.mxu0 0
    %3399 = vmatpush.bf16.msra.mxu0 0
    %3400 = vmatpush.bf16.msra.mxu0 0
    %3401 = vmatpush.bf16.msra.mxu0 %v3170
    %3402 = vmatpush.bf16.msra.mxu0 %v3154
    %3403 = vmatpush.bf16.msra.mxu0 %v3138
    %3404 = vmatpush.bf16.msra.mxu0 %v3122
    %3405 = vmatmul.bf16.gmra.mxu0 %v3239
    %v3406 = vpop.f32.mrf.mxu0
    %v3407 = vadd.f32 %v2898, %v3406
    %v3408 = vpop.f32.mrf.mxu0
    %3409 = vdwg.mxu0
    %3410 = vmatpush.bf16.msra.mxu0 0
    %3411 = vmatpush.bf16.msra.mxu0 0
    %3412 = vmatpush.bf16.msra.mxu0 0
    %3413 = vmatpush.bf16.msra.mxu0 0
    %3414 = vmatpush.bf16.msra.mxu0 %v3171
    %3415 = vmatpush.bf16.msra.mxu0 %v3155
    %3416 = vmatpush.bf16.msra.mxu0 %v3139
    %3417 = vmatpush.bf16.msra.mxu0 %v3123
    %3418 = vmatmul.bf16.gmra.mxu0 %v3239
    %v3419 = vpop.f32.mrf.mxu0
    %v3420 = vadd.f32 %v2899, %v3419
    %v3421 = vpop.f32.mrf.mxu0
    %3422 = vdwg.mxu0
    %3423 = vmatpush.bf16.msra.mxu0 0
    %3424 = vmatpush.bf16.msra.mxu0 0
    %3425 = vmatpush.bf16.msra.mxu0 0
    %3426 = vmatpush.bf16.msra.mxu0 0
    %3427 = vmatpush.bf16.msra.mxu0 %v3172
    %3428 = vmatpush.bf16.msra.mxu0 %v3156
    %3429 = vmatpush.bf16.msra.mxu0 %v3140
    %3430 = vmatpush.bf16.msra.mxu0 %v3124
    %3431 = vmatmul.bf16.gmra.mxu0 %v3239
    %v3432 = vpop.f32.mrf.mxu0
    %v3433 = vadd.f32 %v2900, %v3432
    %v3434 = vpop.f32.mrf.mxu0
    %3435 = vdwg.mxu0
    %3436 = vmatpush.bf16.msra.mxu0 0
    %3437 = vmatpush.bf16.msra.mxu0 0
    %3438 = vmatpush.bf16.msra.mxu0 0
    %3439 = vmatpush.bf16.msra.mxu0 0
    %3440 = vmatpush.bf16.msra.mxu0 %v3173
    %3441 = vmatpush.bf16.msra.mxu0 %v3157
    %3442 = vmatpush.bf16.msra.mxu0 %v3141
    %3443 = vmatpush.bf16.msra.mxu0 %v3125
    %3444 = vmatmul.bf16.gmra.mxu0 %v3239
    %v3445 = vpop.f32.mrf.mxu0
    %v3446 = vadd.f32 %v2901, %v3445
    %v3447 = vpop.f32.mrf.mxu0
    %3448 = vdwg.mxu0
    %v3449 = vpack.c.bf16 %v3264, %v3251
    %v3450 = vpack.c.bf16 %v3290, %v3277
    %v3451 = vpack.c.bf16 %v3316, %v3303
    %v3452 = vpack.c.bf16 %v3342, %v3329
    %v3453 = vpack.c.bf16 %v3368, %v3355
    %v3454 = vpack.c.bf16 %v3394, %v3381
    %v3455 = vpack.c.bf16 %v3420, %v3407
    %v3456 = vpack.c.bf16 %v3446, %v3433
    %3457 = vst [vmem:[%s5] sm:$0xff] %v3449
    %3458 = vst [vmem:[%s5 + $0x8] sm:$0xff] %v3450
    %3459 = vst [vmem:[%s5 + $0x10] sm:$0xff] %v3451
    %3460 = vst [vmem:[%s5 + $0x18] sm:$0xff] %v3452
    %3461 = vst [vmem:[%s5 + $0x20] sm:$0xff] %v3453
    %3462 = vst [vmem:[%s5 + $0x28] sm:$0xff] %v3454
    %3463 = vst [vmem:[%s5 + $0x30] sm:$0xff] %v3455
    %3464 = vst [vmem:[%s5 + $0x38] sm:$0xff] %v3456
  $region29: #{improved_hybrid_forward.2} parent=0 // pred_fallthru
    _
  // Predicated region
  $region30: #{improved_hybrid_forward.2} parent=0 // pred_check
    _
  $region31: #{improved_hybrid_forward.2} parent=0 // pred_check_branch
    %3466 = sbr.rel (0) target = $region33
  $region32: #{improved_hybrid_forward.2} parent=0 // pred_region
    _
  $region33: #{improved_hybrid_forward.2} parent=0 // pred_fallthru
    _
  // Predicated region
  $region34: #{improved_hybrid_forward.2} parent=0 // pred_check
    _
  $region35: #{improved_hybrid_forward.2} parent=0 // pred_check_branch
    %3468 = sbr.rel (0) target = $region37
  $region36: #{improved_hybrid_forward.2} parent=0 // pred_region
    _
  $region37: #{improved_hybrid_forward.2} parent=0 // pred_fallthru
    _

// kernel: improved_hybrid_forward.3
$region0: #{improved_hybrid_forward.3}
  #allocation0 [shape = 'u32[]', space=smem, size = 0x4, offset = 0x4, fixed_abs, tag = 'smem constant byte address 0x4 - core index']
  #allocation1 [shape = 'u32[72,128]{1,0:T(1,128)}', space=vmem, size = 0x9000, scoped, tag = 'internal scratch']
  #allocation2 [shape = 'f32[8,8,512]{2,1,0:T(8,128)}', space=vmem, size = 0x20000, scoped, tag = 'scratch operand']
  #allocation3 [shape = 'f32[8,8,512]{2,1,0:T(8,128)}', space=vmem, size = 0x20000, scoped, tag = 'scratch operand']
  #allocation4 [shape = 'f32[8,8,512]{2,1,0:T(8,128)}', space=vmem, size = 0x20000, scoped, tag = 'scratch operand']
  #allocation5 [shape = 'f32[8,8,256]{2,1,0:T(8,128)}', space=vmem, size = 0x10000, scoped, tag = 'scratch operand']
  #allocation6 [shape = 'bf16[8,256]{1,0:T(8,128)(2,1)}', space=vmem, size = 0x1000, scoped, tag = 'scratch operand']
  #allocation7 [shape = 'f32[8,128]{1,0:T(8,128)}', space=vmem, size = 0x1000, scoped, tag = 'scratch operand']
  #allocation8 [shape = 'f32[8,128]{1,0:T(8,128)}', space=vmem, size = 0x1000, scoped, tag = 'scratch operand']
  #allocation9 [shape = 'bf16[8,128]{1,0:T(8,128)(2,1)}', space=vmem, size = 0x800, scoped, tag = 'scratch operand']
  #allocation10 [shape = 'f32[8,128]{1,0:T(8,128)}', space=vmem, size = 0x1000, scoped, tag = 'scratch operand']
  %s0 = inlined_call_operand.vmem [shape: f32[8,8,64], index: 0, kind: input, shape index: {}]
  %s1 = inlined_call_operand.vmem [shape: bf16[8,2048], index: 1, kind: input, shape index: {}]
  %s2 = inlined_call_operand.vmem [shape: f32[8,128], index: 2, kind: input, shape index: {}]
  %s3 = inlined_call_operand.vmem [shape: bf16[64,1024], index: 3, kind: input, shape index: {}]
  %s4 = inlined_call_operand.vmem [shape: f32[1,512], index: 4, kind: input, shape index: {}]
  %s5 = inlined_call_operand.vmem [shape: f32[1,512], index: 5, kind: input, shape index: {}]
  %s6 = inlined_call_operand.vmem [shape: bf16[256,1024], index: 6, kind: input, shape index: {}]
  %s7 = inlined_call_operand.vmem [shape: bf16[256,512], index: 7, kind: input, shape index: {}]
  %s8 = inlined_call_operand.vmem [shape: f32[1,512], index: 8, kind: input, shape index: {}]
  %s9 = inlined_call_operand.vmem [shape: bf16[128,512], index: 9, kind: input, shape index: {}]
  %s10 = inlined_call_operand.vmem [shape: bf16[256,512], index: 10, kind: input, shape index: {}]
  %s11 = inlined_call_operand.vmem [shape: f32[1,512], index: 11, kind: input, shape index: {}]
  %s12 = inlined_call_operand.vmem [shape: bf16[128,128], index: 12, kind: input, shape index: {}]
  %s13 = inlined_call_operand.vmem [shape: f32[1,128], index: 13, kind: input, shape index: {}]
  %s14 = inlined_call_operand.vmem [shape: bf16[128,128], index: 14, kind: input, shape index: {}]
  %s15 = inlined_call_operand.vmem [shape: f32[1,128], index: 15, kind: input, shape index: {}]
  %s16 = inlined_call_operand.vmem [shape: bf16[2048,512], index: 16, kind: input, shape index: {}]
  %s17 = inlined_call_operand.vmem [shape: bf16[256,512], index: 17, kind: input, shape index: {}]
  %s18 = inlined_call_operand.vmem [shape: bf16[128,512], index: 18, kind: input, shape index: {}]
  %s19 = inlined_call_operand.vmem [shape: f32[1,512], index: 19, kind: input, shape index: {}]
  %s20 = inlined_call_operand.vmem [shape: bf16[512,128], index: 20, kind: input, shape index: {}]
  %s21 = inlined_call_operand.vmem [shape: f32[1,128], index: 21, kind: input, shape index: {}]
  %s22 = inlined_call_operand.vmem [shape: bf16[128,128], index: 22, kind: input, shape index: {}]
  %s23 = inlined_call_operand.vmem [shape: f32[1,128], index: 23, kind: input, shape index: {}]
  %s24 = inlined_call_operand.vmem [shape: f32[8,128], index: 24, kind: output, shape index: {}]
  %s25 = sld [smem:[#allocation0]]
  $region120: #{improved_hybrid_forward.3} parent=0
    _
  %s27 = ssub.s32 1, %s25
  %s28 = scalar_select 0, %s27, %s25
  // Predicated region
  $region2: #{improved_hybrid_forward.3} parent=0 // pred_check
    _
  $region3: #{improved_hybrid_forward.3} parent=0 // pred_check_branch
    %30 = sbr.rel (0) target = $region5
  $region4: #{improved_hybrid_forward.3} parent=0 // pred_region
    _
  $region5: #{improved_hybrid_forward.3} parent=0 // pred_fallthru
    _
  // Predicated region
  $region6: #{improved_hybrid_forward.3} parent=0 // pred_check
    _
  $region7: #{improved_hybrid_forward.3} parent=0 // pred_check_branch
    %32 = sbr.rel (0) target = $region9
  $region8: #{improved_hybrid_forward.3} parent=0 // pred_region
    _
  $region9: #{improved_hybrid_forward.3} parent=0 // pred_fallthru
    _
  // Predicated region
  $region10: #{improved_hybrid_forward.3} parent=0 // pred_check
    _
  $region11: #{improved_hybrid_forward.3} parent=0 // pred_check_branch
    %34 = sbr.rel (0) target = $region13
  $region12: #{improved_hybrid_forward.3} parent=0 // pred_region
    _
  $region13: #{improved_hybrid_forward.3} parent=0 // pred_fallthru
    _
  // Predicated region
  $region14: #{improved_hybrid_forward.3} parent=0 // pred_check
    _
  $region15: #{improved_hybrid_forward.3} parent=0 // pred_check_branch
    %36 = sbr.rel (0) target = $region17
  $region16: #{improved_hybrid_forward.3} parent=0 // pred_region
    _
  $region17: #{improved_hybrid_forward.3} parent=0 // pred_fallthru
    _
  // Predicated region
  $region18: #{improved_hybrid_forward.3} parent=0 // pred_check
    _
  $region19: #{improved_hybrid_forward.3} parent=0 // pred_check_branch
    %38 = sbr.rel (0) target = $region21
  $region20: #{improved_hybrid_forward.3} parent=0 // pred_region
    _
  $region21: #{improved_hybrid_forward.3} parent=0 // pred_fallthru
    _
  // Predicated region
  $region22: #{improved_hybrid_forward.3} parent=0 // pred_check
    _
  $region23: #{improved_hybrid_forward.3} parent=0 // pred_check_branch
    %40 = sbr.rel (0) target = $region25
  $region24: #{improved_hybrid_forward.3} parent=0 // pred_region
    _
  $region25: #{improved_hybrid_forward.3} parent=0 // pred_fallthru
    _
  // Predicated region
  $region26: #{improved_hybrid_forward.3} parent=0 // pred_check
    _
  $region27: #{improved_hybrid_forward.3} parent=0 // pred_check_branch
    %42 = sbr.rel (0) target = $region29
  $region28: #{improved_hybrid_forward.3} parent=0 // pred_region
    _
  $region29: #{improved_hybrid_forward.3} parent=0 // pred_fallthru
    _
  // Predicated region
  $region30: #{improved_hybrid_forward.3} parent=0 // pred_check
    _
  $region31: #{improved_hybrid_forward.3} parent=0 // pred_check_branch
    %44 = sbr.rel (0) target = $region33
  $region32: #{improved_hybrid_forward.3} parent=0 // pred_region
    _
  $region33: #{improved_hybrid_forward.3} parent=0 // pred_fallthru
    _
  // Predicated region
  $region34: #{improved_hybrid_forward.3} parent=0 // pred_check
    _
  $region35: #{improved_hybrid_forward.3} parent=0 // pred_check_branch
    %46 = sbr.rel (0) target = $region37
  $region36: #{improved_hybrid_forward.3} parent=0 // pred_region
    _
  $region37: #{improved_hybrid_forward.3} parent=0 // pred_fallthru
    _
  // Predicated region
  $region38: #{improved_hybrid_forward.3} parent=0 // pred_check
    _
  $region39: #{improved_hybrid_forward.3} parent=0 // pred_check_branch
    %48 = sbr.rel (0) target = $region41
  $region40: #{improved_hybrid_forward.3} parent=0 // pred_region
    _
  $region41: #{improved_hybrid_forward.3} parent=0 // pred_fallthru
    _
  // Predicated region
  $region42: #{improved_hybrid_forward.3} parent=0 // pred_check
    _
  $region43: #{improved_hybrid_forward.3} parent=0 // pred_check_branch
    %50 = sbr.rel (0) target = $region45
  $region44: #{improved_hybrid_forward.3} parent=0 // pred_region
    _
  $region45: #{improved_hybrid_forward.3} parent=0 // pred_fallthru
    _
  // Predicated region
  $region46: #{improved_hybrid_forward.3} parent=0 // pred_check
    _
  $region47: #{improved_hybrid_forward.3} parent=0 // pred_check_branch
    %52 = sbr.rel (0) target = $region49
  $region48: #{improved_hybrid_forward.3} parent=0 // pred_region
    _
  $region49: #{improved_hybrid_forward.3} parent=0 // pred_fallthru
    _
  // Predicated region
  $region50: #{improved_hybrid_forward.3} parent=0 // pred_check
    _
  $region51: #{improved_hybrid_forward.3} parent=0 // pred_check_branch
    %54 = sbr.rel (0) target = $region53
  $region52: #{improved_hybrid_forward.3} parent=0 // pred_region
    _
  $region53: #{improved_hybrid_forward.3} parent=0 // pred_fallthru
    _
  // Predicated region
  $region54: #{improved_hybrid_forward.3} parent=0 // pred_check
    _
  $region55: #{improved_hybrid_forward.3} parent=0 // pred_check_branch
    %56 = sbr.rel (0) target = $region57
  $region56: #{improved_hybrid_forward.3} parent=0 // pred_region
    _
  $region57: #{improved_hybrid_forward.3} parent=0 // pred_fallthru
    _
  // Predicated region
  $region58: #{improved_hybrid_forward.3} parent=0 // pred_check
    _
  $region59: #{improved_hybrid_forward.3} parent=0 // pred_check_branch
    %58 = sbr.rel (0) target = $region61
  $region60: #{improved_hybrid_forward.3} parent=0 // pred_region
    _
  $region61: #{improved_hybrid_forward.3} parent=0 // pred_fallthru
    _
  // Predicated region
  $region62: #{improved_hybrid_forward.3} parent=0 // pred_check
    _
  $region63: #{improved_hybrid_forward.3} parent=0 // pred_check_branch
    %60 = sbr.rel (0) target = $region65
  $region64: #{improved_hybrid_forward.3} parent=0 // pred_region
    _
  $region65: #{improved_hybrid_forward.3} parent=0 // pred_fallthru
    _
  // Predicated region
  $region66: #{improved_hybrid_forward.3} parent=0 // pred_check
    _
  $region67: #{improved_hybrid_forward.3} parent=0 // pred_check_branch
    %62 = sbr.rel (0) target = $region69
  $region68: #{improved_hybrid_forward.3} parent=0 // pred_region
    _
  $region69: #{improved_hybrid_forward.3} parent=0 // pred_fallthru
    _
  // Predicated region
  $region70: #{improved_hybrid_forward.3} parent=0 // pred_check
    _
  $region71: #{improved_hybrid_forward.3} parent=0 // pred_check_branch
    %64 = sbr.rel (0) target = $region73
  $region72: #{improved_hybrid_forward.3} parent=0 // pred_region
    _
  $region73: #{improved_hybrid_forward.3} parent=0 // pred_fallthru
    _
  // Predicated region
  $region74: #{improved_hybrid_forward.3} parent=0 // pred_check
    _
  $region75: #{improved_hybrid_forward.3} parent=0 // pred_check_branch
    %66 = sbr.rel (0) target = $region77
  $region76: #{improved_hybrid_forward.3} parent=0 // pred_region
    _
  $region77: #{improved_hybrid_forward.3} parent=0 // pred_fallthru
    _
  // Predicated region
  $region78: #{improved_hybrid_forward.3} parent=0 // pred_check
    _
  $region79: #{improved_hybrid_forward.3} parent=0 // pred_check_branch
    %68 = sbr.rel (0) target = $region81
  $region80: #{improved_hybrid_forward.3} parent=0 // pred_region
    _
  $region81: #{improved_hybrid_forward.3} parent=0 // pred_fallthru
    _
  // Predicated region
  $region82: #{improved_hybrid_forward.3} parent=0 // pred_check
    _
  $region83: #{improved_hybrid_forward.3} parent=0 // pred_check_branch
    %70 = sbr.rel (0) target = $region85
  $region84: #{improved_hybrid_forward.3} parent=0 // pred_region
    _
  $region85: #{improved_hybrid_forward.3} parent=0 // pred_fallthru
    _
  // Predicated region
  $region86: #{improved_hybrid_forward.3} parent=0 // pred_check
    _
  $region87: #{improved_hybrid_forward.3} parent=0 // pred_check_branch
    %72 = sbr.rel (0) target = $region89
  $region88: #{improved_hybrid_forward.3} parent=0 // pred_region
    _
  $region89: #{improved_hybrid_forward.3} parent=0 // pred_fallthru
    _
  // Predicated region
  $region90: #{improved_hybrid_forward.3} parent=0 // pred_check
    _
  $region91: #{improved_hybrid_forward.3} parent=0 // pred_check_branch
    %74 = sbr.rel (0) target = $region93
  $region92: #{improved_hybrid_forward.3} parent=0 // pred_region
    _
  $region93: #{improved_hybrid_forward.3} parent=0 // pred_fallthru
    _
  // Predicated region
  $region94: #{improved_hybrid_forward.3} parent=0 // pred_check
    _
  $region95: #{improved_hybrid_forward.3} parent=0 // pred_check_branch
    %76 = sbr.rel (0) target = $region97
  $region96: #{improved_hybrid_forward.3} parent=0 // pred_region
    _
  $region97: #{improved_hybrid_forward.3} parent=0 // pred_fallthru
    _
  %v78 = vld [vmem:[%s0] sm:$0xff]
  %v79 = vld [vmem:[%s0 + $0x8] sm:$0xff]
  %v80 = vld [vmem:[%s0 + $0x10] sm:$0xff]
  %v81 = vld [vmem:[%s0 + $0x18] sm:$0xff]
  %v82 = vld [vmem:[%s0 + $0x20] sm:$0xff]
  %v83 = vld [vmem:[%s0 + $0x28] sm:$0xff]
  %v84 = vld [vmem:[%s0 + $0x30] sm:$0xff]
  %v85 = vld [vmem:[%s0 + $0x38] sm:$0xff]
  %v86 = vpack.c.bf16 %v79, %v78
  %v87 = vpack.c.bf16 %v81, %v80
  %v88 = vpack.c.bf16 %v83, %v82
  %v89 = vpack.c.bf16 %v85, %v84
  %v90 = vld [vmem:[%s3] sm:$0xff]
  %v91 = vld [vmem:[%s3 + $0x8] sm:$0xff]
  %v92 = vld [vmem:[%s3 + $0x10] sm:$0xff]
  %v93 = vld [vmem:[%s3 + $0x18] sm:$0xff]
  %v94 = vld [vmem:[%s3 + $0x20] sm:$0xff]
  %v95 = vld [vmem:[%s3 + $0x28] sm:$0xff]
  %v96 = vld [vmem:[%s3 + $0x30] sm:$0xff]
  %v97 = vld [vmem:[%s3 + $0x38] sm:$0xff]
  %v98 = vld [vmem:[%s3 + $0x40] sm:$0xff]
  %v99 = vld [vmem:[%s3 + $0x48] sm:$0xff]
  %v100 = vld [vmem:[%s3 + $0x50] sm:$0xff]
  %v101 = vld [vmem:[%s3 + $0x58] sm:$0xff]
  %v102 = vld [vmem:[%s3 + $0x60] sm:$0xff]
  %v103 = vld [vmem:[%s3 + $0x68] sm:$0xff]
  %v104 = vld [vmem:[%s3 + $0x70] sm:$0xff]
  %v105 = vld [vmem:[%s3 + $0x78] sm:$0xff]
  %v106 = vld [vmem:[%s3 + $0x80] sm:$0xff]
  %v107 = vld [vmem:[%s3 + $0x88] sm:$0xff]
  %v108 = vld [vmem:[%s3 + $0x90] sm:$0xff]
  %v109 = vld [vmem:[%s3 + $0x98] sm:$0xff]
  %v110 = vld [vmem:[%s3 + $0xa0] sm:$0xff]
  %v111 = vld [vmem:[%s3 + $0xa8] sm:$0xff]
  %v112 = vld [vmem:[%s3 + $0xb0] sm:$0xff]
  %v113 = vld [vmem:[%s3 + $0xb8] sm:$0xff]
  %v114 = vld [vmem:[%s3 + $0xc0] sm:$0xff]
  %v115 = vld [vmem:[%s3 + $0xc8] sm:$0xff]
  %v116 = vld [vmem:[%s3 + $0xd0] sm:$0xff]
  %v117 = vld [vmem:[%s3 + $0xd8] sm:$0xff]
  %v118 = vld [vmem:[%s3 + $0xe0] sm:$0xff]
  %v119 = vld [vmem:[%s3 + $0xe8] sm:$0xff]
  %v120 = vld [vmem:[%s3 + $0xf0] sm:$0xff]
  %v121 = vld [vmem:[%s3 + $0xf8] sm:$0xff]
  %v154 = vunpack.c.l.b16 %v90
  %v155 = vunpack.c.h.b16 %v90
  %v156 = vunpack.c.l.b16 %v91
  %v157 = vunpack.c.h.b16 %v91
  %v158 = vunpack.c.l.b16 %v92
  %v159 = vunpack.c.h.b16 %v92
  %v160 = vunpack.c.l.b16 %v93
  %v161 = vunpack.c.h.b16 %v93
  %v162 = vunpack.c.l.b16 %v94
  %v163 = vunpack.c.h.b16 %v94
  %v164 = vunpack.c.l.b16 %v95
  %v165 = vunpack.c.h.b16 %v95
  %v166 = vunpack.c.l.b16 %v96
  %v167 = vunpack.c.h.b16 %v96
  %v168 = vunpack.c.l.b16 %v97
  %v169 = vunpack.c.h.b16 %v97
  %v170 = vunpack.c.l.b16 %v98
  %v171 = vunpack.c.h.b16 %v98
  %v172 = vunpack.c.l.b16 %v99
  %v173 = vunpack.c.h.b16 %v99
  %v174 = vunpack.c.l.b16 %v100
  %v175 = vunpack.c.h.b16 %v100
  %v176 = vunpack.c.l.b16 %v101
  %v177 = vunpack.c.h.b16 %v101
  %v178 = vunpack.c.l.b16 %v102
  %v179 = vunpack.c.h.b16 %v102
  %v180 = vunpack.c.l.b16 %v103
  %v181 = vunpack.c.h.b16 %v103
  %v182 = vunpack.c.l.b16 %v104
  %v183 = vunpack.c.h.b16 %v104
  %v184 = vunpack.c.l.b16 %v105
  %v185 = vunpack.c.h.b16 %v105
  %v186 = vunpack.c.l.b16 %v106
  %v187 = vunpack.c.h.b16 %v106
  %v188 = vunpack.c.l.b16 %v107
  %v189 = vunpack.c.h.b16 %v107
  %v190 = vunpack.c.l.b16 %v108
  %v191 = vunpack.c.h.b16 %v108
  %v192 = vunpack.c.l.b16 %v109
  %v193 = vunpack.c.h.b16 %v109
  %v194 = vunpack.c.l.b16 %v110
  %v195 = vunpack.c.h.b16 %v110
  %v196 = vunpack.c.l.b16 %v111
  %v197 = vunpack.c.h.b16 %v111
  %v198 = vunpack.c.l.b16 %v112
  %v199 = vunpack.c.h.b16 %v112
  %v200 = vunpack.c.l.b16 %v113
  %v201 = vunpack.c.h.b16 %v113
  %v202 = vunpack.c.l.b16 %v114
  %v203 = vunpack.c.h.b16 %v114
  %v204 = vunpack.c.l.b16 %v115
  %v205 = vunpack.c.h.b16 %v115
  %v206 = vunpack.c.l.b16 %v116
  %v207 = vunpack.c.h.b16 %v116
  %v208 = vunpack.c.l.b16 %v117
  %v209 = vunpack.c.h.b16 %v117
  %v210 = vunpack.c.l.b16 %v118
  %v211 = vunpack.c.h.b16 %v118
  %v212 = vunpack.c.l.b16 %v119
  %v213 = vunpack.c.h.b16 %v119
  %v214 = vunpack.c.l.b16 %v120
  %v215 = vunpack.c.h.b16 %v120
  %v216 = vunpack.c.l.b16 %v121
  %v217 = vunpack.c.h.b16 %v121
  %v218 = vpack.c.b16 %v162, %v154
  %v219 = vpack.c.b16 %v163, %v155
  %v220 = vpack.c.b16 %v164, %v156
  %v221 = vpack.c.b16 %v165, %v157
  %v222 = vpack.c.b16 %v166, %v158
  %v223 = vpack.c.b16 %v167, %v159
  %v224 = vpack.c.b16 %v168, %v160
  %v225 = vpack.c.b16 %v169, %v161
  %v226 = vpack.c.b16 %v178, %v170
  %v227 = vpack.c.b16 %v179, %v171
  %v228 = vpack.c.b16 %v180, %v172
  %v229 = vpack.c.b16 %v181, %v173
  %v230 = vpack.c.b16 %v182, %v174
  %v231 = vpack.c.b16 %v183, %v175
  %v232 = vpack.c.b16 %v184, %v176
  %v233 = vpack.c.b16 %v185, %v177
  %v234 = vpack.c.b16 %v194, %v186
  %v235 = vpack.c.b16 %v195, %v187
  %v236 = vpack.c.b16 %v196, %v188
  %v237 = vpack.c.b16 %v197, %v189
  %v238 = vpack.c.b16 %v198, %v190
  %v239 = vpack.c.b16 %v199, %v191
  %v240 = vpack.c.b16 %v200, %v192
  %v241 = vpack.c.b16 %v201, %v193
  %v242 = vpack.c.b16 %v210, %v202
  %v243 = vpack.c.b16 %v211, %v203
  %v244 = vpack.c.b16 %v212, %v204
  %v245 = vpack.c.b16 %v213, %v205
  %v246 = vpack.c.b16 %v214, %v206
  %v247 = vpack.c.b16 %v215, %v207
  %v248 = vpack.c.b16 %v216, %v208
  %v249 = vpack.c.b16 %v217, %v209
  %vm282 = vcmask 523264
  %v284 = vsel %vm282, %v86, 0
  %v287 = vsel %vm282, %v87, 0
  %v290 = vsel %vm282, %v88, 0
  %v293 = vsel %vm282, %v89, 0
  %295 = vmatpush.bf16.msra.mxu0 0
  %296 = vmatpush.bf16.msra.mxu0 0
  %297 = vmatpush.bf16.msra.mxu0 0
  %298 = vmatpush.bf16.msra.mxu0 0
  %299 = vmatpush.bf16.msra.mxu0 %v242
  %300 = vmatpush.bf16.msra.mxu0 %v234
  %301 = vmatpush.bf16.msra.mxu0 %v226
  %302 = vmatpush.bf16.msra.mxu0 %v218
  %303 = vmatmul.bf16.gmra.mxu0 %v284
  %v304 = vpop.f32.mrf.mxu0
  %v305 = vadd.f32 0.0, %v304
  %v306 = vpop.f32.mrf.mxu0
  %v307 = vadd.f32 0.0, %v306
  %308 = vmatmul.bf16.gmra.mxu0 %v287
  %v309 = vpop.f32.mrf.mxu0
  %v310 = vadd.f32 0.0, %v309
  %v311 = vpop.f32.mrf.mxu0
  %v312 = vadd.f32 0.0, %v311
  %313 = vmatmul.bf16.gmra.mxu0 %v290
  %v314 = vpop.f32.mrf.mxu0
  %v315 = vadd.f32 0.0, %v314
  %v316 = vpop.f32.mrf.mxu0
  %v317 = vadd.f32 0.0, %v316
  %318 = vmatmul.bf16.gmra.mxu0 %v293
  %v319 = vpop.f32.mrf.mxu0
  %v320 = vadd.f32 0.0, %v319
  %v321 = vpop.f32.mrf.mxu0
  %v322 = vadd.f32 0.0, %v321
  %323 = vdwg.mxu0
  %324 = vmatpush.bf16.msra.mxu0 0
  %325 = vmatpush.bf16.msra.mxu0 0
  %326 = vmatpush.bf16.msra.mxu0 0
  %327 = vmatpush.bf16.msra.mxu0 0
  %328 = vmatpush.bf16.msra.mxu0 %v243
  %329 = vmatpush.bf16.msra.mxu0 %v235
  %330 = vmatpush.bf16.msra.mxu0 %v227
  %331 = vmatpush.bf16.msra.mxu0 %v219
  %332 = vmatmul.bf16.gmra.mxu0 %v284
  %v333 = vpop.f32.mrf.mxu0
  %v334 = vadd.f32 0.0, %v333
  %v335 = vpop.f32.mrf.mxu0
  %v336 = vadd.f32 0.0, %v335
  %337 = vmatmul.bf16.gmra.mxu0 %v287
  %v338 = vpop.f32.mrf.mxu0
  %v339 = vadd.f32 0.0, %v338
  %v340 = vpop.f32.mrf.mxu0
  %v341 = vadd.f32 0.0, %v340
  %342 = vmatmul.bf16.gmra.mxu0 %v290
  %v343 = vpop.f32.mrf.mxu0
  %v344 = vadd.f32 0.0, %v343
  %v345 = vpop.f32.mrf.mxu0
  %v346 = vadd.f32 0.0, %v345
  %347 = vmatmul.bf16.gmra.mxu0 %v293
  %v348 = vpop.f32.mrf.mxu0
  %v349 = vadd.f32 0.0, %v348
  %v350 = vpop.f32.mrf.mxu0
  %v351 = vadd.f32 0.0, %v350
  %352 = vdwg.mxu0
  %353 = vmatpush.bf16.msra.mxu0 0
  %354 = vmatpush.bf16.msra.mxu0 0
  %355 = vmatpush.bf16.msra.mxu0 0
  %356 = vmatpush.bf16.msra.mxu0 0
  %357 = vmatpush.bf16.msra.mxu0 %v244
  %358 = vmatpush.bf16.msra.mxu0 %v236
  %359 = vmatpush.bf16.msra.mxu0 %v228
  %360 = vmatpush.bf16.msra.mxu0 %v220
  %361 = vmatmul.bf16.gmra.mxu0 %v284
  %v362 = vpop.f32.mrf.mxu0
  %v363 = vadd.f32 0.0, %v362
  %v364 = vpop.f32.mrf.mxu0
  %v365 = vadd.f32 0.0, %v364
  %366 = vmatmul.bf16.gmra.mxu0 %v287
  %v367 = vpop.f32.mrf.mxu0
  %v368 = vadd.f32 0.0, %v367
  %v369 = vpop.f32.mrf.mxu0
  %v370 = vadd.f32 0.0, %v369
  %371 = vmatmul.bf16.gmra.mxu0 %v290
  %v372 = vpop.f32.mrf.mxu0
  %v373 = vadd.f32 0.0, %v372
  %v374 = vpop.f32.mrf.mxu0
  %v375 = vadd.f32 0.0, %v374
  %376 = vmatmul.bf16.gmra.mxu0 %v293
  %v377 = vpop.f32.mrf.mxu0
  %v378 = vadd.f32 0.0, %v377
  %v379 = vpop.f32.mrf.mxu0
  %v380 = vadd.f32 0.0, %v379
  %381 = vdwg.mxu0
  %382 = vmatpush.bf16.msra.mxu0 0
  %383 = vmatpush.bf16.msra.mxu0 0
  %384 = vmatpush.bf16.msra.mxu0 0
  %385 = vmatpush.bf16.msra.mxu0 0
  %386 = vmatpush.bf16.msra.mxu0 %v245
  %387 = vmatpush.bf16.msra.mxu0 %v237
  %388 = vmatpush.bf16.msra.mxu0 %v229
  %389 = vmatpush.bf16.msra.mxu0 %v221
  %390 = vmatmul.bf16.gmra.mxu0 %v284
  %v391 = vpop.f32.mrf.mxu0
  %v392 = vadd.f32 0.0, %v391
  %v393 = vpop.f32.mrf.mxu0
  %v394 = vadd.f32 0.0, %v393
  %395 = vmatmul.bf16.gmra.mxu0 %v287
  %v396 = vpop.f32.mrf.mxu0
  %v397 = vadd.f32 0.0, %v396
  %v398 = vpop.f32.mrf.mxu0
  %v399 = vadd.f32 0.0, %v398
  %400 = vmatmul.bf16.gmra.mxu0 %v290
  %v401 = vpop.f32.mrf.mxu0
  %v402 = vadd.f32 0.0, %v401
  %v403 = vpop.f32.mrf.mxu0
  %v404 = vadd.f32 0.0, %v403
  %405 = vmatmul.bf16.gmra.mxu0 %v293
  %v406 = vpop.f32.mrf.mxu0
  %v407 = vadd.f32 0.0, %v406
  %v408 = vpop.f32.mrf.mxu0
  %v409 = vadd.f32 0.0, %v408
  %410 = vdwg.mxu0
  %411 = vmatpush.bf16.msra.mxu0 0
  %412 = vmatpush.bf16.msra.mxu0 0
  %413 = vmatpush.bf16.msra.mxu0 0
  %414 = vmatpush.bf16.msra.mxu0 0
  %415 = vmatpush.bf16.msra.mxu0 %v246
  %416 = vmatpush.bf16.msra.mxu0 %v238
  %417 = vmatpush.bf16.msra.mxu0 %v230
  %418 = vmatpush.bf16.msra.mxu0 %v222
  %419 = vmatmul.bf16.gmra.mxu0 %v284
  %v420 = vpop.f32.mrf.mxu0
  %v421 = vadd.f32 0.0, %v420
  %v422 = vpop.f32.mrf.mxu0
  %v423 = vadd.f32 0.0, %v422
  %424 = vmatmul.bf16.gmra.mxu0 %v287
  %v425 = vpop.f32.mrf.mxu0
  %v426 = vadd.f32 0.0, %v425
  %v427 = vpop.f32.mrf.mxu0
  %v428 = vadd.f32 0.0, %v427
  %429 = vmatmul.bf16.gmra.mxu0 %v290
  %v430 = vpop.f32.mrf.mxu0
  %v431 = vadd.f32 0.0, %v430
  %v432 = vpop.f32.mrf.mxu0
  %v433 = vadd.f32 0.0, %v432
  %434 = vmatmul.bf16.gmra.mxu0 %v293
  %v435 = vpop.f32.mrf.mxu0
  %v436 = vadd.f32 0.0, %v435
  %v437 = vpop.f32.mrf.mxu0
  %v438 = vadd.f32 0.0, %v437
  %439 = vdwg.mxu0
  %440 = vmatpush.bf16.msra.mxu0 0
  %441 = vmatpush.bf16.msra.mxu0 0
  %442 = vmatpush.bf16.msra.mxu0 0
  %443 = vmatpush.bf16.msra.mxu0 0
  %444 = vmatpush.bf16.msra.mxu0 %v247
  %445 = vmatpush.bf16.msra.mxu0 %v239
  %446 = vmatpush.bf16.msra.mxu0 %v231
  %447 = vmatpush.bf16.msra.mxu0 %v223
  %448 = vmatmul.bf16.gmra.mxu0 %v284
  %v449 = vpop.f32.mrf.mxu0
  %v450 = vadd.f32 0.0, %v449
  %v451 = vpop.f32.mrf.mxu0
  %v452 = vadd.f32 0.0, %v451
  %453 = vmatmul.bf16.gmra.mxu0 %v287
  %v454 = vpop.f32.mrf.mxu0
  %v455 = vadd.f32 0.0, %v454
  %v456 = vpop.f32.mrf.mxu0
  %v457 = vadd.f32 0.0, %v456
  %458 = vmatmul.bf16.gmra.mxu0 %v290
  %v459 = vpop.f32.mrf.mxu0
  %v460 = vadd.f32 0.0, %v459
  %v461 = vpop.f32.mrf.mxu0
  %v462 = vadd.f32 0.0, %v461
  %463 = vmatmul.bf16.gmra.mxu0 %v293
  %v464 = vpop.f32.mrf.mxu0
  %v465 = vadd.f32 0.0, %v464
  %v466 = vpop.f32.mrf.mxu0
  %v467 = vadd.f32 0.0, %v466
  %468 = vdwg.mxu0
  %469 = vmatpush.bf16.msra.mxu0 0
  %470 = vmatpush.bf16.msra.mxu0 0
  %471 = vmatpush.bf16.msra.mxu0 0
  %472 = vmatpush.bf16.msra.mxu0 0
  %473 = vmatpush.bf16.msra.mxu0 %v248
  %474 = vmatpush.bf16.msra.mxu0 %v240
  %475 = vmatpush.bf16.msra.mxu0 %v232
  %476 = vmatpush.bf16.msra.mxu0 %v224
  %477 = vmatmul.bf16.gmra.mxu0 %v284
  %v478 = vpop.f32.mrf.mxu0
  %v479 = vadd.f32 0.0, %v478
  %v480 = vpop.f32.mrf.mxu0
  %v481 = vadd.f32 0.0, %v480
  %482 = vmatmul.bf16.gmra.mxu0 %v287
  %v483 = vpop.f32.mrf.mxu0
  %v484 = vadd.f32 0.0, %v483
  %v485 = vpop.f32.mrf.mxu0
  %v486 = vadd.f32 0.0, %v485
  %487 = vmatmul.bf16.gmra.mxu0 %v290
  %v488 = vpop.f32.mrf.mxu0
  %v489 = vadd.f32 0.0, %v488
  %v490 = vpop.f32.mrf.mxu0
  %v491 = vadd.f32 0.0, %v490
  %492 = vmatmul.bf16.gmra.mxu0 %v293
  %v493 = vpop.f32.mrf.mxu0
  %v494 = vadd.f32 0.0, %v493
  %v495 = vpop.f32.mrf.mxu0
  %v496 = vadd.f32 0.0, %v495
  %497 = vdwg.mxu0
  %498 = vmatpush.bf16.msra.mxu0 0
  %499 = vmatpush.bf16.msra.mxu0 0
  %500 = vmatpush.bf16.msra.mxu0 0
  %501 = vmatpush.bf16.msra.mxu0 0
  %502 = vmatpush.bf16.msra.mxu0 %v249
  %503 = vmatpush.bf16.msra.mxu0 %v241
  %504 = vmatpush.bf16.msra.mxu0 %v233
  %505 = vmatpush.bf16.msra.mxu0 %v225
  %506 = vmatmul.bf16.gmra.mxu0 %v284
  %v507 = vpop.f32.mrf.mxu0
  %v508 = vadd.f32 0.0, %v507
  %v509 = vpop.f32.mrf.mxu0
  %v510 = vadd.f32 0.0, %v509
  %511 = vmatmul.bf16.gmra.mxu0 %v287
  %v512 = vpop.f32.mrf.mxu0
  %v513 = vadd.f32 0.0, %v512
  %v514 = vpop.f32.mrf.mxu0
  %v515 = vadd.f32 0.0, %v514
  %516 = vmatmul.bf16.gmra.mxu0 %v290
  %v517 = vpop.f32.mrf.mxu0
  %v518 = vadd.f32 0.0, %v517
  %v519 = vpop.f32.mrf.mxu0
  %v520 = vadd.f32 0.0, %v519
  %521 = vmatmul.bf16.gmra.mxu0 %v293
  %v522 = vpop.f32.mrf.mxu0
  %v523 = vadd.f32 0.0, %v522
  %v524 = vpop.f32.mrf.mxu0
  %v525 = vadd.f32 0.0, %v524
  %526 = vdwg.mxu0
  %v527 = vld [vmem:[%s4] sm:$0xf]
  %v529 = vperm.slane %v527, 0
  %v530 = vperm.slane %v527, 1
  %v531 = vperm.slane %v527, 2
  %v532 = vperm.slane %v527, 3
  %v537 = vadd.f32 %v305, %v529
  %v538 = vadd.f32 %v334, %v530
  %v539 = vadd.f32 %v363, %v531
  %v540 = vadd.f32 %v392, %v532
  %v541 = vadd.f32 %v307, %v529
  %v542 = vadd.f32 %v336, %v530
  %v543 = vadd.f32 %v365, %v531
  %v544 = vadd.f32 %v394, %v532
  %v545 = vadd.f32 %v310, %v529
  %v546 = vadd.f32 %v339, %v530
  %v547 = vadd.f32 %v368, %v531
  %v548 = vadd.f32 %v397, %v532
  %v549 = vadd.f32 %v312, %v529
  %v550 = vadd.f32 %v341, %v530
  %v551 = vadd.f32 %v370, %v531
  %v552 = vadd.f32 %v399, %v532
  %v553 = vadd.f32 %v315, %v529
  %v554 = vadd.f32 %v344, %v530
  %v555 = vadd.f32 %v373, %v531
  %v556 = vadd.f32 %v402, %v532
  %v557 = vadd.f32 %v317, %v529
  %v558 = vadd.f32 %v346, %v530
  %v559 = vadd.f32 %v375, %v531
  %v560 = vadd.f32 %v404, %v532
  %v561 = vadd.f32 %v320, %v529
  %v562 = vadd.f32 %v349, %v530
  %v563 = vadd.f32 %v378, %v531
  %v564 = vadd.f32 %v407, %v532
  %v565 = vadd.f32 %v322, %v529
  %v566 = vadd.f32 %v351, %v530
  %v567 = vadd.f32 %v380, %v531
  %v568 = vadd.f32 %v409, %v532
  %569 = vst [vmem:[#allocation2] sm:$0xff] %v537
  %570 = vst [vmem:[#allocation2 + $0x8] sm:$0xff] %v538
  %571 = vst [vmem:[#allocation2 + $0x10] sm:$0xff] %v539
  %572 = vst [vmem:[#allocation2 + $0x18] sm:$0xff] %v540
  %573 = vst [vmem:[#allocation2 + $0x20] sm:$0xff] %v541
  %574 = vst [vmem:[#allocation2 + $0x28] sm:$0xff] %v542
  %575 = vst [vmem:[#allocation2 + $0x30] sm:$0xff] %v543
  %576 = vst [vmem:[#allocation2 + $0x38] sm:$0xff] %v544
  %577 = vst [vmem:[#allocation2 + $0x40] sm:$0xff] %v545
  %578 = vst [vmem:[#allocation2 + $0x48] sm:$0xff] %v546
  %579 = vst [vmem:[#allocation2 + $0x50] sm:$0xff] %v547
  %580 = vst [vmem:[#allocation2 + $0x58] sm:$0xff] %v548
  %581 = vst [vmem:[#allocation2 + $0x60] sm:$0xff] %v549
  %582 = vst [vmem:[#allocation2 + $0x68] sm:$0xff] %v550
  %583 = vst [vmem:[#allocation2 + $0x70] sm:$0xff] %v551
  %584 = vst [vmem:[#allocation2 + $0x78] sm:$0xff] %v552
  %585 = vst [vmem:[#allocation2 + $0x80] sm:$0xff] %v553
  %586 = vst [vmem:[#allocation2 + $0x88] sm:$0xff] %v554
  %587 = vst [vmem:[#allocation2 + $0x90] sm:$0xff] %v555
  %588 = vst [vmem:[#allocation2 + $0x98] sm:$0xff] %v556
  %589 = vst [vmem:[#allocation2 + $0xa0] sm:$0xff] %v557
  %590 = vst [vmem:[#allocation2 + $0xa8] sm:$0xff] %v558
  %591 = vst [vmem:[#allocation2 + $0xb0] sm:$0xff] %v559
  %592 = vst [vmem:[#allocation2 + $0xb8] sm:$0xff] %v560
  %593 = vst [vmem:[#allocation2 + $0xc0] sm:$0xff] %v561
  %594 = vst [vmem:[#allocation2 + $0xc8] sm:$0xff] %v562
  %595 = vst [vmem:[#allocation2 + $0xd0] sm:$0xff] %v563
  %596 = vst [vmem:[#allocation2 + $0xd8] sm:$0xff] %v564
  %597 = vst [vmem:[#allocation2 + $0xe0] sm:$0xff] %v565
  %598 = vst [vmem:[#allocation2 + $0xe8] sm:$0xff] %v566
  %599 = vst [vmem:[#allocation2 + $0xf0] sm:$0xff] %v567
  %600 = vst [vmem:[#allocation2 + $0xf8] sm:$0xff] %v568
  %v601 = vld [vmem:[%s5] sm:$0xf]
  %v603 = vperm.slane %v601, 0
  %v604 = vperm.slane %v601, 1
  %v605 = vperm.slane %v601, 2
  %v606 = vperm.slane %v601, 3
  %v611 = vadd.f32 %v421, %v603
  %v612 = vadd.f32 %v450, %v604
  %v613 = vadd.f32 %v479, %v605
  %v614 = vadd.f32 %v508, %v606
  %v615 = vadd.f32 %v423, %v603
  %v616 = vadd.f32 %v452, %v604
  %v617 = vadd.f32 %v481, %v605
  %v618 = vadd.f32 %v510, %v606
  %v619 = vadd.f32 %v426, %v603
  %v620 = vadd.f32 %v455, %v604
  %v621 = vadd.f32 %v484, %v605
  %v622 = vadd.f32 %v513, %v606
  %v623 = vadd.f32 %v428, %v603
  %v624 = vadd.f32 %v457, %v604
  %v625 = vadd.f32 %v486, %v605
  %v626 = vadd.f32 %v515, %v606
  %v627 = vadd.f32 %v431, %v603
  %v628 = vadd.f32 %v460, %v604
  %v629 = vadd.f32 %v489, %v605
  %v630 = vadd.f32 %v518, %v606
  %v631 = vadd.f32 %v433, %v603
  %v632 = vadd.f32 %v462, %v604
  %v633 = vadd.f32 %v491, %v605
  %v634 = vadd.f32 %v520, %v606
  %v635 = vadd.f32 %v436, %v603
  %v636 = vadd.f32 %v465, %v604
  %v637 = vadd.f32 %v494, %v605
  %v638 = vadd.f32 %v523, %v606
  %v639 = vadd.f32 %v438, %v603
  %v640 = vadd.f32 %v467, %v604
  %v641 = vadd.f32 %v496, %v605
  %v642 = vadd.f32 %v525, %v606
  %643 = vst [vmem:[#allocation3] sm:$0xff] %v611
  %644 = vst [vmem:[#allocation3 + $0x8] sm:$0xff] %v612
  %645 = vst [vmem:[#allocation3 + $0x10] sm:$0xff] %v613
  %646 = vst [vmem:[#allocation3 + $0x18] sm:$0xff] %v614
  %647 = vst [vmem:[#allocation3 + $0x20] sm:$0xff] %v615
  %648 = vst [vmem:[#allocation3 + $0x28] sm:$0xff] %v616
  %649 = vst [vmem:[#allocation3 + $0x30] sm:$0xff] %v617
  %650 = vst [vmem:[#allocation3 + $0x38] sm:$0xff] %v618
  %651 = vst [vmem:[#allocation3 + $0x40] sm:$0xff] %v619
  %652 = vst [vmem:[#allocation3 + $0x48] sm:$0xff] %v620
  %653 = vst [vmem:[#allocation3 + $0x50] sm:$0xff] %v621
  %654 = vst [vmem:[#allocation3 + $0x58] sm:$0xff] %v622
  %655 = vst [vmem:[#allocation3 + $0x60] sm:$0xff] %v623
  %656 = vst [vmem:[#allocation3 + $0x68] sm:$0xff] %v624
  %657 = vst [vmem:[#allocation3 + $0x70] sm:$0xff] %v625
  %658 = vst [vmem:[#allocation3 + $0x78] sm:$0xff] %v626
  %659 = vst [vmem:[#allocation3 + $0x80] sm:$0xff] %v627
  %660 = vst [vmem:[#allocation3 + $0x88] sm:$0xff] %v628
  %661 = vst [vmem:[#allocation3 + $0x90] sm:$0xff] %v629
  %662 = vst [vmem:[#allocation3 + $0x98] sm:$0xff] %v630
  %663 = vst [vmem:[#allocation3 + $0xa0] sm:$0xff] %v631
  %664 = vst [vmem:[#allocation3 + $0xa8] sm:$0xff] %v632
  %665 = vst [vmem:[#allocation3 + $0xb0] sm:$0xff] %v633
  %666 = vst [vmem:[#allocation3 + $0xb8] sm:$0xff] %v634
  %667 = vst [vmem:[#allocation3 + $0xc0] sm:$0xff] %v635
  %668 = vst [vmem:[#allocation3 + $0xc8] sm:$0xff] %v636
  %669 = vst [vmem:[#allocation3 + $0xd0] sm:$0xff] %v637
  %670 = vst [vmem:[#allocation3 + $0xd8] sm:$0xff] %v638
  %671 = vst [vmem:[#allocation3 + $0xe0] sm:$0xff] %v639
  %672 = vst [vmem:[#allocation3 + $0xe8] sm:$0xff] %v640
  %673 = vst [vmem:[#allocation3 + $0xf0] sm:$0xff] %v641
  %674 = vst [vmem:[#allocation3 + $0xf8] sm:$0xff] %v642
  %675 = vst [vmem:[#allocation6] sm:$0xff] 0
  %676 = vst [vmem:[#allocation7] sm:$0xff] 0.0
  %677 = vst [vmem:[#allocation8] sm:$0xff] 0.0
  loop: start=0, step=1, limit=8
  $region98: #{improved_hybrid_forward.3} parent=0 // loop_pre_header
    _
  $region99: #{improved_hybrid_forward.3} parent=0 // loop_header
    %s679 = sphi 0, %s683
    %p680 = scmp.ge.s32.totalorder %s679, 8
  $region100: #{improved_hybrid_forward.3} parent=0 // loop_header_branch
    %682 = sbr.rel (%p680) target = $region104
  $region101: #{improved_hybrid_forward.3} parent=0 // loop_body
    %v684 = vld [vmem:[#allocation6] sm:$0xff]
    %v685 = vld [vmem:[%s6] sm:$0xff]
    %v686 = vld [vmem:[%s6 + $0x8] sm:$0xff]
    %v687 = vld [vmem:[%s6 + $0x10] sm:$0xff]
    %v688 = vld [vmem:[%s6 + $0x18] sm:$0xff]
    %v689 = vld [vmem:[%s6 + $0x20] sm:$0xff]
    %v690 = vld [vmem:[%s6 + $0x28] sm:$0xff]
    %v691 = vld [vmem:[%s6 + $0x30] sm:$0xff]
    %v692 = vld [vmem:[%s6 + $0x38] sm:$0xff]
    %v693 = vld [vmem:[%s6 + $0x40] sm:$0xff]
    %v694 = vld [vmem:[%s6 + $0x48] sm:$0xff]
    %v695 = vld [vmem:[%s6 + $0x50] sm:$0xff]
    %v696 = vld [vmem:[%s6 + $0x58] sm:$0xff]
    %v697 = vld [vmem:[%s6 + $0x60] sm:$0xff]
    %v698 = vld [vmem:[%s6 + $0x68] sm:$0xff]
    %v699 = vld [vmem:[%s6 + $0x70] sm:$0xff]
    %v700 = vld [vmem:[%s6 + $0x78] sm:$0xff]
    %v701 = vld [vmem:[%s6 + $0x80] sm:$0xff]
    %v702 = vld [vmem:[%s6 + $0x88] sm:$0xff]
    %v703 = vld [vmem:[%s6 + $0x90] sm:$0xff]
    %v704 = vld [vmem:[%s6 + $0x98] sm:$0xff]
    %v705 = vld [vmem:[%s6 + $0xa0] sm:$0xff]
    %v706 = vld [vmem:[%s6 + $0xa8] sm:$0xff]
    %v707 = vld [vmem:[%s6 + $0xb0] sm:$0xff]
    %v708 = vld [vmem:[%s6 + $0xb8] sm:$0xff]
    %v709 = vld [vmem:[%s6 + $0xc0] sm:$0xff]
    %v710 = vld [vmem:[%s6 + $0xc8] sm:$0xff]
    %v711 = vld [vmem:[%s6 + $0xd0] sm:$0xff]
    %v712 = vld [vmem:[%s6 + $0xd8] sm:$0xff]
    %v713 = vld [vmem:[%s6 + $0xe0] sm:$0xff]
    %v714 = vld [vmem:[%s6 + $0xe8] sm:$0xff]
    %v715 = vld [vmem:[%s6 + $0xf0] sm:$0xff]
    %v716 = vld [vmem:[%s6 + $0xf8] sm:$0xff]
    %v717 = vld [vmem:[%s6 + $0x100] sm:$0xff]
    %v718 = vld [vmem:[%s6 + $0x108] sm:$0xff]
    %v719 = vld [vmem:[%s6 + $0x110] sm:$0xff]
    %v720 = vld [vmem:[%s6 + $0x118] sm:$0xff]
    %v721 = vld [vmem:[%s6 + $0x120] sm:$0xff]
    %v722 = vld [vmem:[%s6 + $0x128] sm:$0xff]
    %v723 = vld [vmem:[%s6 + $0x130] sm:$0xff]
    %v724 = vld [vmem:[%s6 + $0x138] sm:$0xff]
    %v725 = vld [vmem:[%s6 + $0x140] sm:$0xff]
    %v726 = vld [vmem:[%s6 + $0x148] sm:$0xff]
    %v727 = vld [vmem:[%s6 + $0x150] sm:$0xff]
    %v728 = vld [vmem:[%s6 + $0x158] sm:$0xff]
    %v729 = vld [vmem:[%s6 + $0x160] sm:$0xff]
    %v730 = vld [vmem:[%s6 + $0x168] sm:$0xff]
    %v731 = vld [vmem:[%s6 + $0x170] sm:$0xff]
    %v732 = vld [vmem:[%s6 + $0x178] sm:$0xff]
    %v733 = vld [vmem:[%s6 + $0x180] sm:$0xff]
    %v734 = vld [vmem:[%s6 + $0x188] sm:$0xff]
    %v735 = vld [vmem:[%s6 + $0x190] sm:$0xff]
    %v736 = vld [vmem:[%s6 + $0x198] sm:$0xff]
    %v737 = vld [vmem:[%s6 + $0x1a0] sm:$0xff]
    %v738 = vld [vmem:[%s6 + $0x1a8] sm:$0xff]
    %v739 = vld [vmem:[%s6 + $0x1b0] sm:$0xff]
    %v740 = vld [vmem:[%s6 + $0x1b8] sm:$0xff]
    %v741 = vld [vmem:[%s6 + $0x1c0] sm:$0xff]
    %v742 = vld [vmem:[%s6 + $0x1c8] sm:$0xff]
    %v743 = vld [vmem:[%s6 + $0x1d0] sm:$0xff]
    %v744 = vld [vmem:[%s6 + $0x1d8] sm:$0xff]
    %v745 = vld [vmem:[%s6 + $0x1e0] sm:$0xff]
    %v746 = vld [vmem:[%s6 + $0x1e8] sm:$0xff]
    %v747 = vld [vmem:[%s6 + $0x1f0] sm:$0xff]
    %v748 = vld [vmem:[%s6 + $0x1f8] sm:$0xff]
    %v749 = vld [vmem:[%s6 + $0x200] sm:$0xff]
    %v750 = vld [vmem:[%s6 + $0x208] sm:$0xff]
    %v751 = vld [vmem:[%s6 + $0x210] sm:$0xff]
    %v752 = vld [vmem:[%s6 + $0x218] sm:$0xff]
    %v753 = vld [vmem:[%s6 + $0x220] sm:$0xff]
    %v754 = vld [vmem:[%s6 + $0x228] sm:$0xff]
    %v755 = vld [vmem:[%s6 + $0x230] sm:$0xff]
    %v756 = vld [vmem:[%s6 + $0x238] sm:$0xff]
    %v757 = vld [vmem:[%s6 + $0x240] sm:$0xff]
    %v758 = vld [vmem:[%s6 + $0x248] sm:$0xff]
    %v759 = vld [vmem:[%s6 + $0x250] sm:$0xff]
    %v760 = vld [vmem:[%s6 + $0x258] sm:$0xff]
    %v761 = vld [vmem:[%s6 + $0x260] sm:$0xff]
    %v762 = vld [vmem:[%s6 + $0x268] sm:$0xff]
    %v763 = vld [vmem:[%s6 + $0x270] sm:$0xff]
    %v764 = vld [vmem:[%s6 + $0x278] sm:$0xff]
    %v765 = vld [vmem:[%s6 + $0x280] sm:$0xff]
    %v766 = vld [vmem:[%s6 + $0x288] sm:$0xff]
    %v767 = vld [vmem:[%s6 + $0x290] sm:$0xff]
    %v768 = vld [vmem:[%s6 + $0x298] sm:$0xff]
    %v769 = vld [vmem:[%s6 + $0x2a0] sm:$0xff]
    %v770 = vld [vmem:[%s6 + $0x2a8] sm:$0xff]
    %v771 = vld [vmem:[%s6 + $0x2b0] sm:$0xff]
    %v772 = vld [vmem:[%s6 + $0x2b8] sm:$0xff]
    %v773 = vld [vmem:[%s6 + $0x2c0] sm:$0xff]
    %v774 = vld [vmem:[%s6 + $0x2c8] sm:$0xff]
    %v775 = vld [vmem:[%s6 + $0x2d0] sm:$0xff]
    %v776 = vld [vmem:[%s6 + $0x2d8] sm:$0xff]
    %v777 = vld [vmem:[%s6 + $0x2e0] sm:$0xff]
    %v778 = vld [vmem:[%s6 + $0x2e8] sm:$0xff]
    %v779 = vld [vmem:[%s6 + $0x2f0] sm:$0xff]
    %v780 = vld [vmem:[%s6 + $0x2f8] sm:$0xff]
    %v781 = vld [vmem:[%s6 + $0x300] sm:$0xff]
    %v782 = vld [vmem:[%s6 + $0x308] sm:$0xff]
    %v783 = vld [vmem:[%s6 + $0x310] sm:$0xff]
    %v784 = vld [vmem:[%s6 + $0x318] sm:$0xff]
    %v785 = vld [vmem:[%s6 + $0x320] sm:$0xff]
    %v786 = vld [vmem:[%s6 + $0x328] sm:$0xff]
    %v787 = vld [vmem:[%s6 + $0x330] sm:$0xff]
    %v788 = vld [vmem:[%s6 + $0x338] sm:$0xff]
    %v789 = vld [vmem:[%s6 + $0x340] sm:$0xff]
    %v790 = vld [vmem:[%s6 + $0x348] sm:$0xff]
    %v791 = vld [vmem:[%s6 + $0x350] sm:$0xff]
    %v792 = vld [vmem:[%s6 + $0x358] sm:$0xff]
    %v793 = vld [vmem:[%s6 + $0x360] sm:$0xff]
    %v794 = vld [vmem:[%s6 + $0x368] sm:$0xff]
    %v795 = vld [vmem:[%s6 + $0x370] sm:$0xff]
    %v796 = vld [vmem:[%s6 + $0x378] sm:$0xff]
    %v797 = vld [vmem:[%s6 + $0x380] sm:$0xff]
    %v798 = vld [vmem:[%s6 + $0x388] sm:$0xff]
    %v799 = vld [vmem:[%s6 + $0x390] sm:$0xff]
    %v800 = vld [vmem:[%s6 + $0x398] sm:$0xff]
    %v801 = vld [vmem:[%s6 + $0x3a0] sm:$0xff]
    %v802 = vld [vmem:[%s6 + $0x3a8] sm:$0xff]
    %v803 = vld [vmem:[%s6 + $0x3b0] sm:$0xff]
    %v804 = vld [vmem:[%s6 + $0x3b8] sm:$0xff]
    %v805 = vld [vmem:[%s6 + $0x3c0] sm:$0xff]
    %v806 = vld [vmem:[%s6 + $0x3c8] sm:$0xff]
    %v807 = vld [vmem:[%s6 + $0x3d0] sm:$0xff]
    %v808 = vld [vmem:[%s6 + $0x3d8] sm:$0xff]
    %v809 = vld [vmem:[%s6 + $0x3e0] sm:$0xff]
    %v810 = vld [vmem:[%s6 + $0x3e8] sm:$0xff]
    %v811 = vld [vmem:[%s6 + $0x3f0] sm:$0xff]
    %v812 = vld [vmem:[%s6 + $0x3f8] sm:$0xff]
    %v814 = vunpack.c.l.b16 %v684
    %v815 = vunpack.c.h.b16 %v684
    %v816 = vpack.c.b16 %v814, %v814
    %v817 = vpack.c.b16 %v815, %v815
    %v948 = vunpack.c.l.b16 %v685
    %v949 = vunpack.c.h.b16 %v685
    %v950 = vunpack.c.l.b16 %v686
    %v951 = vunpack.c.h.b16 %v686
    %v952 = vunpack.c.l.b16 %v687
    %v953 = vunpack.c.h.b16 %v687
    %v954 = vunpack.c.l.b16 %v688
    %v955 = vunpack.c.h.b16 %v688
    %v956 = vunpack.c.l.b16 %v689
    %v957 = vunpack.c.h.b16 %v689
    %v958 = vunpack.c.l.b16 %v690
    %v959 = vunpack.c.h.b16 %v690
    %v960 = vunpack.c.l.b16 %v691
    %v961 = vunpack.c.h.b16 %v691
    %v962 = vunpack.c.l.b16 %v692
    %v963 = vunpack.c.h.b16 %v692
    %v964 = vunpack.c.l.b16 %v693
    %v965 = vunpack.c.h.b16 %v693
    %v966 = vunpack.c.l.b16 %v694
    %v967 = vunpack.c.h.b16 %v694
    %v968 = vunpack.c.l.b16 %v695
    %v969 = vunpack.c.h.b16 %v695
    %v970 = vunpack.c.l.b16 %v696
    %v971 = vunpack.c.h.b16 %v696
    %v972 = vunpack.c.l.b16 %v697
    %v973 = vunpack.c.h.b16 %v697
    %v974 = vunpack.c.l.b16 %v698
    %v975 = vunpack.c.h.b16 %v698
    %v976 = vunpack.c.l.b16 %v699
    %v977 = vunpack.c.h.b16 %v699
    %v978 = vunpack.c.l.b16 %v700
    %v979 = vunpack.c.h.b16 %v700
    %v980 = vunpack.c.l.b16 %v701
    %v981 = vunpack.c.h.b16 %v701
    %v982 = vunpack.c.l.b16 %v702
    %v983 = vunpack.c.h.b16 %v702
    %v984 = vunpack.c.l.b16 %v703
    %v985 = vunpack.c.h.b16 %v703
    %v986 = vunpack.c.l.b16 %v704
    %v987 = vunpack.c.h.b16 %v704
    %v988 = vunpack.c.l.b16 %v705
    %v989 = vunpack.c.h.b16 %v705
    %v990 = vunpack.c.l.b16 %v706
    %v991 = vunpack.c.h.b16 %v706
    %v992 = vunpack.c.l.b16 %v707
    %v993 = vunpack.c.h.b16 %v707
    %v994 = vunpack.c.l.b16 %v708
    %v995 = vunpack.c.h.b16 %v708
    %v996 = vunpack.c.l.b16 %v709
    %v997 = vunpack.c.h.b16 %v709
    %v998 = vunpack.c.l.b16 %v710
    %v999 = vunpack.c.h.b16 %v710
    %v1000 = vunpack.c.l.b16 %v711
    %v1001 = vunpack.c.h.b16 %v711
    %v1002 = vunpack.c.l.b16 %v712
    %v1003 = vunpack.c.h.b16 %v712
    %v1004 = vunpack.c.l.b16 %v713
    %v1005 = vunpack.c.h.b16 %v713
    %v1006 = vunpack.c.l.b16 %v714
    %v1007 = vunpack.c.h.b16 %v714
    %v1008 = vunpack.c.l.b16 %v715
    %v1009 = vunpack.c.h.b16 %v715
    %v1010 = vunpack.c.l.b16 %v716
    %v1011 = vunpack.c.h.b16 %v716
    %v1012 = vunpack.c.l.b16 %v717
    %v1013 = vunpack.c.h.b16 %v717
    %v1014 = vunpack.c.l.b16 %v718
    %v1015 = vunpack.c.h.b16 %v718
    %v1016 = vunpack.c.l.b16 %v719
    %v1017 = vunpack.c.h.b16 %v719
    %v1018 = vunpack.c.l.b16 %v720
    %v1019 = vunpack.c.h.b16 %v720
    %v1020 = vunpack.c.l.b16 %v721
    %v1021 = vunpack.c.h.b16 %v721
    %v1022 = vunpack.c.l.b16 %v722
    %v1023 = vunpack.c.h.b16 %v722
    %v1024 = vunpack.c.l.b16 %v723
    %v1025 = vunpack.c.h.b16 %v723
    %v1026 = vunpack.c.l.b16 %v724
    %v1027 = vunpack.c.h.b16 %v724
    %v1028 = vunpack.c.l.b16 %v725
    %v1029 = vunpack.c.h.b16 %v725
    %v1030 = vunpack.c.l.b16 %v726
    %v1031 = vunpack.c.h.b16 %v726
    %v1032 = vunpack.c.l.b16 %v727
    %v1033 = vunpack.c.h.b16 %v727
    %v1034 = vunpack.c.l.b16 %v728
    %v1035 = vunpack.c.h.b16 %v728
    %v1036 = vunpack.c.l.b16 %v729
    %v1037 = vunpack.c.h.b16 %v729
    %v1038 = vunpack.c.l.b16 %v730
    %v1039 = vunpack.c.h.b16 %v730
    %v1040 = vunpack.c.l.b16 %v731
    %v1041 = vunpack.c.h.b16 %v731
    %v1042 = vunpack.c.l.b16 %v732
    %v1043 = vunpack.c.h.b16 %v732
    %v1044 = vunpack.c.l.b16 %v733
    %v1045 = vunpack.c.h.b16 %v733
    %v1046 = vunpack.c.l.b16 %v734
    %v1047 = vunpack.c.h.b16 %v734
    %v1048 = vunpack.c.l.b16 %v735
    %v1049 = vunpack.c.h.b16 %v735
    %v1050 = vunpack.c.l.b16 %v736
    %v1051 = vunpack.c.h.b16 %v736
    %v1052 = vunpack.c.l.b16 %v737
    %v1053 = vunpack.c.h.b16 %v737
    %v1054 = vunpack.c.l.b16 %v738
    %v1055 = vunpack.c.h.b16 %v738
    %v1056 = vunpack.c.l.b16 %v739
    %v1057 = vunpack.c.h.b16 %v739
    %v1058 = vunpack.c.l.b16 %v740
    %v1059 = vunpack.c.h.b16 %v740
    %v1060 = vunpack.c.l.b16 %v741
    %v1061 = vunpack.c.h.b16 %v741
    %v1062 = vunpack.c.l.b16 %v742
    %v1063 = vunpack.c.h.b16 %v742
    %v1064 = vunpack.c.l.b16 %v743
    %v1065 = vunpack.c.h.b16 %v743
    %v1066 = vunpack.c.l.b16 %v744
    %v1067 = vunpack.c.h.b16 %v744
    %v1068 = vunpack.c.l.b16 %v745
    %v1069 = vunpack.c.h.b16 %v745
    %v1070 = vunpack.c.l.b16 %v746
    %v1071 = vunpack.c.h.b16 %v746
    %v1072 = vunpack.c.l.b16 %v747
    %v1073 = vunpack.c.h.b16 %v747
    %v1074 = vunpack.c.l.b16 %v748
    %v1075 = vunpack.c.h.b16 %v748
    %v1076 = vunpack.c.l.b16 %v749
    %v1077 = vunpack.c.h.b16 %v749
    %v1078 = vunpack.c.l.b16 %v750
    %v1079 = vunpack.c.h.b16 %v750
    %v1080 = vunpack.c.l.b16 %v751
    %v1081 = vunpack.c.h.b16 %v751
    %v1082 = vunpack.c.l.b16 %v752
    %v1083 = vunpack.c.h.b16 %v752
    %v1084 = vunpack.c.l.b16 %v753
    %v1085 = vunpack.c.h.b16 %v753
    %v1086 = vunpack.c.l.b16 %v754
    %v1087 = vunpack.c.h.b16 %v754
    %v1088 = vunpack.c.l.b16 %v755
    %v1089 = vunpack.c.h.b16 %v755
    %v1090 = vunpack.c.l.b16 %v756
    %v1091 = vunpack.c.h.b16 %v756
    %v1092 = vunpack.c.l.b16 %v757
    %v1093 = vunpack.c.h.b16 %v757
    %v1094 = vunpack.c.l.b16 %v758
    %v1095 = vunpack.c.h.b16 %v758
    %v1096 = vunpack.c.l.b16 %v759
    %v1097 = vunpack.c.h.b16 %v759
    %v1098 = vunpack.c.l.b16 %v760
    %v1099 = vunpack.c.h.b16 %v760
    %v1100 = vunpack.c.l.b16 %v761
    %v1101 = vunpack.c.h.b16 %v761
    %v1102 = vunpack.c.l.b16 %v762
    %v1103 = vunpack.c.h.b16 %v762
    %v1104 = vunpack.c.l.b16 %v763
    %v1105 = vunpack.c.h.b16 %v763
    %v1106 = vunpack.c.l.b16 %v764
    %v1107 = vunpack.c.h.b16 %v764
    %v1108 = vunpack.c.l.b16 %v765
    %v1109 = vunpack.c.h.b16 %v765
    %v1110 = vunpack.c.l.b16 %v766
    %v1111 = vunpack.c.h.b16 %v766
    %v1112 = vunpack.c.l.b16 %v767
    %v1113 = vunpack.c.h.b16 %v767
    %v1114 = vunpack.c.l.b16 %v768
    %v1115 = vunpack.c.h.b16 %v768
    %v1116 = vunpack.c.l.b16 %v769
    %v1117 = vunpack.c.h.b16 %v769
    %v1118 = vunpack.c.l.b16 %v770
    %v1119 = vunpack.c.h.b16 %v770
    %v1120 = vunpack.c.l.b16 %v771
    %v1121 = vunpack.c.h.b16 %v771
    %v1122 = vunpack.c.l.b16 %v772
    %v1123 = vunpack.c.h.b16 %v772
    %v1124 = vunpack.c.l.b16 %v773
    %v1125 = vunpack.c.h.b16 %v773
    %v1126 = vunpack.c.l.b16 %v774
    %v1127 = vunpack.c.h.b16 %v774
    %v1128 = vunpack.c.l.b16 %v775
    %v1129 = vunpack.c.h.b16 %v775
    %v1130 = vunpack.c.l.b16 %v776
    %v1131 = vunpack.c.h.b16 %v776
    %v1132 = vunpack.c.l.b16 %v777
    %v1133 = vunpack.c.h.b16 %v777
    %v1134 = vunpack.c.l.b16 %v778
    %v1135 = vunpack.c.h.b16 %v778
    %v1136 = vunpack.c.l.b16 %v779
    %v1137 = vunpack.c.h.b16 %v779
    %v1138 = vunpack.c.l.b16 %v780
    %v1139 = vunpack.c.h.b16 %v780
    %v1140 = vunpack.c.l.b16 %v781
    %v1141 = vunpack.c.h.b16 %v781
    %v1142 = vunpack.c.l.b16 %v782
    %v1143 = vunpack.c.h.b16 %v782
    %v1144 = vunpack.c.l.b16 %v783
    %v1145 = vunpack.c.h.b16 %v783
    %v1146 = vunpack.c.l.b16 %v784
    %v1147 = vunpack.c.h.b16 %v784
    %v1148 = vunpack.c.l.b16 %v785
    %v1149 = vunpack.c.h.b16 %v785
    %v1150 = vunpack.c.l.b16 %v786
    %v1151 = vunpack.c.h.b16 %v786
    %v1152 = vunpack.c.l.b16 %v787
    %v1153 = vunpack.c.h.b16 %v787
    %v1154 = vunpack.c.l.b16 %v788
    %v1155 = vunpack.c.h.b16 %v788
    %v1156 = vunpack.c.l.b16 %v789
    %v1157 = vunpack.c.h.b16 %v789
    %v1158 = vunpack.c.l.b16 %v790
    %v1159 = vunpack.c.h.b16 %v790
    %v1160 = vunpack.c.l.b16 %v791
    %v1161 = vunpack.c.h.b16 %v791
    %v1162 = vunpack.c.l.b16 %v792
    %v1163 = vunpack.c.h.b16 %v792
    %v1164 = vunpack.c.l.b16 %v793
    %v1165 = vunpack.c.h.b16 %v793
    %v1166 = vunpack.c.l.b16 %v794
    %v1167 = vunpack.c.h.b16 %v794
    %v1168 = vunpack.c.l.b16 %v795
    %v1169 = vunpack.c.h.b16 %v795
    %v1170 = vunpack.c.l.b16 %v796
    %v1171 = vunpack.c.h.b16 %v796
    %v1172 = vunpack.c.l.b16 %v797
    %v1173 = vunpack.c.h.b16 %v797
    %v1174 = vunpack.c.l.b16 %v798
    %v1175 = vunpack.c.h.b16 %v798
    %v1176 = vunpack.c.l.b16 %v799
    %v1177 = vunpack.c.h.b16 %v799
    %v1178 = vunpack.c.l.b16 %v800
    %v1179 = vunpack.c.h.b16 %v800
    %v1180 = vunpack.c.l.b16 %v801
    %v1181 = vunpack.c.h.b16 %v801
    %v1182 = vunpack.c.l.b16 %v802
    %v1183 = vunpack.c.h.b16 %v802
    %v1184 = vunpack.c.l.b16 %v803
    %v1185 = vunpack.c.h.b16 %v803
    %v1186 = vunpack.c.l.b16 %v804
    %v1187 = vunpack.c.h.b16 %v804
    %v1188 = vunpack.c.l.b16 %v805
    %v1189 = vunpack.c.h.b16 %v805
    %v1190 = vunpack.c.l.b16 %v806
    %v1191 = vunpack.c.h.b16 %v806
    %v1192 = vunpack.c.l.b16 %v807
    %v1193 = vunpack.c.h.b16 %v807
    %v1194 = vunpack.c.l.b16 %v808
    %v1195 = vunpack.c.h.b16 %v808
    %v1196 = vunpack.c.l.b16 %v809
    %v1197 = vunpack.c.h.b16 %v809
    %v1198 = vunpack.c.l.b16 %v810
    %v1199 = vunpack.c.h.b16 %v810
    %v1200 = vunpack.c.l.b16 %v811
    %v1201 = vunpack.c.h.b16 %v811
    %v1202 = vunpack.c.l.b16 %v812
    %v1203 = vunpack.c.h.b16 %v812
    %v1204 = vpack.c.b16 %v956, %v948
    %v1205 = vpack.c.b16 %v957, %v949
    %v1206 = vpack.c.b16 %v958, %v950
    %v1207 = vpack.c.b16 %v959, %v951
    %v1208 = vpack.c.b16 %v960, %v952
    %v1209 = vpack.c.b16 %v961, %v953
    %v1210 = vpack.c.b16 %v962, %v954
    %v1211 = vpack.c.b16 %v963, %v955
    %v1212 = vpack.c.b16 %v972, %v964
    %v1213 = vpack.c.b16 %v973, %v965
    %v1214 = vpack.c.b16 %v974, %v966
    %v1215 = vpack.c.b16 %v975, %v967
    %v1216 = vpack.c.b16 %v976, %v968
    %v1217 = vpack.c.b16 %v977, %v969
    %v1218 = vpack.c.b16 %v978, %v970
    %v1219 = vpack.c.b16 %v979, %v971
    %v1220 = vpack.c.b16 %v988, %v980
    %v1221 = vpack.c.b16 %v989, %v981
    %v1222 = vpack.c.b16 %v990, %v982
    %v1223 = vpack.c.b16 %v991, %v983
    %v1224 = vpack.c.b16 %v992, %v984
    %v1225 = vpack.c.b16 %v993, %v985
    %v1226 = vpack.c.b16 %v994, %v986
    %v1227 = vpack.c.b16 %v995, %v987
    %v1228 = vpack.c.b16 %v1004, %v996
    %v1229 = vpack.c.b16 %v1005, %v997
    %v1230 = vpack.c.b16 %v1006, %v998
    %v1231 = vpack.c.b16 %v1007, %v999
    %v1232 = vpack.c.b16 %v1008, %v1000
    %v1233 = vpack.c.b16 %v1009, %v1001
    %v1234 = vpack.c.b16 %v1010, %v1002
    %v1235 = vpack.c.b16 %v1011, %v1003
    %v1236 = vpack.c.b16 %v1020, %v1012
    %v1237 = vpack.c.b16 %v1021, %v1013
    %v1238 = vpack.c.b16 %v1022, %v1014
    %v1239 = vpack.c.b16 %v1023, %v1015
    %v1240 = vpack.c.b16 %v1024, %v1016
    %v1241 = vpack.c.b16 %v1025, %v1017
    %v1242 = vpack.c.b16 %v1026, %v1018
    %v1243 = vpack.c.b16 %v1027, %v1019
    %v1244 = vpack.c.b16 %v1036, %v1028
    %v1245 = vpack.c.b16 %v1037, %v1029
    %v1246 = vpack.c.b16 %v1038, %v1030
    %v1247 = vpack.c.b16 %v1039, %v1031
    %v1248 = vpack.c.b16 %v1040, %v1032
    %v1249 = vpack.c.b16 %v1041, %v1033
    %v1250 = vpack.c.b16 %v1042, %v1034
    %v1251 = vpack.c.b16 %v1043, %v1035
    %v1252 = vpack.c.b16 %v1052, %v1044
    %v1253 = vpack.c.b16 %v1053, %v1045
    %v1254 = vpack.c.b16 %v1054, %v1046
    %v1255 = vpack.c.b16 %v1055, %v1047
    %v1256 = vpack.c.b16 %v1056, %v1048
    %v1257 = vpack.c.b16 %v1057, %v1049
    %v1258 = vpack.c.b16 %v1058, %v1050
    %v1259 = vpack.c.b16 %v1059, %v1051
    %v1260 = vpack.c.b16 %v1068, %v1060
    %v1261 = vpack.c.b16 %v1069, %v1061
    %v1262 = vpack.c.b16 %v1070, %v1062
    %v1263 = vpack.c.b16 %v1071, %v1063
    %v1264 = vpack.c.b16 %v1072, %v1064
    %v1265 = vpack.c.b16 %v1073, %v1065
    %v1266 = vpack.c.b16 %v1074, %v1066
    %v1267 = vpack.c.b16 %v1075, %v1067
    %v1268 = vpack.c.b16 %v1084, %v1076
    %v1269 = vpack.c.b16 %v1085, %v1077
    %v1270 = vpack.c.b16 %v1086, %v1078
    %v1271 = vpack.c.b16 %v1087, %v1079
    %v1272 = vpack.c.b16 %v1088, %v1080
    %v1273 = vpack.c.b16 %v1089, %v1081
    %v1274 = vpack.c.b16 %v1090, %v1082
    %v1275 = vpack.c.b16 %v1091, %v1083
    %v1276 = vpack.c.b16 %v1100, %v1092
    %v1277 = vpack.c.b16 %v1101, %v1093
    %v1278 = vpack.c.b16 %v1102, %v1094
    %v1279 = vpack.c.b16 %v1103, %v1095
    %v1280 = vpack.c.b16 %v1104, %v1096
    %v1281 = vpack.c.b16 %v1105, %v1097
    %v1282 = vpack.c.b16 %v1106, %v1098
    %v1283 = vpack.c.b16 %v1107, %v1099
    %v1284 = vpack.c.b16 %v1116, %v1108
    %v1285 = vpack.c.b16 %v1117, %v1109
    %v1286 = vpack.c.b16 %v1118, %v1110
    %v1287 = vpack.c.b16 %v1119, %v1111
    %v1288 = vpack.c.b16 %v1120, %v1112
    %v1289 = vpack.c.b16 %v1121, %v1113
    %v1290 = vpack.c.b16 %v1122, %v1114
    %v1291 = vpack.c.b16 %v1123, %v1115
    %v1292 = vpack.c.b16 %v1132, %v1124
    %v1293 = vpack.c.b16 %v1133, %v1125
    %v1294 = vpack.c.b16 %v1134, %v1126
    %v1295 = vpack.c.b16 %v1135, %v1127
    %v1296 = vpack.c.b16 %v1136, %v1128
    %v1297 = vpack.c.b16 %v1137, %v1129
    %v1298 = vpack.c.b16 %v1138, %v1130
    %v1299 = vpack.c.b16 %v1139, %v1131
    %v1300 = vpack.c.b16 %v1148, %v1140
    %v1301 = vpack.c.b16 %v1149, %v1141
    %v1302 = vpack.c.b16 %v1150, %v1142
    %v1303 = vpack.c.b16 %v1151, %v1143
    %v1304 = vpack.c.b16 %v1152, %v1144
    %v1305 = vpack.c.b16 %v1153, %v1145
    %v1306 = vpack.c.b16 %v1154, %v1146
    %v1307 = vpack.c.b16 %v1155, %v1147
    %v1308 = vpack.c.b16 %v1164, %v1156
    %v1309 = vpack.c.b16 %v1165, %v1157
    %v1310 = vpack.c.b16 %v1166, %v1158
    %v1311 = vpack.c.b16 %v1167, %v1159
    %v1312 = vpack.c.b16 %v1168, %v1160
    %v1313 = vpack.c.b16 %v1169, %v1161
    %v1314 = vpack.c.b16 %v1170, %v1162
    %v1315 = vpack.c.b16 %v1171, %v1163
    %v1316 = vpack.c.b16 %v1180, %v1172
    %v1317 = vpack.c.b16 %v1181, %v1173
    %v1318 = vpack.c.b16 %v1182, %v1174
    %v1319 = vpack.c.b16 %v1183, %v1175
    %v1320 = vpack.c.b16 %v1184, %v1176
    %v1321 = vpack.c.b16 %v1185, %v1177
    %v1322 = vpack.c.b16 %v1186, %v1178
    %v1323 = vpack.c.b16 %v1187, %v1179
    %v1324 = vpack.c.b16 %v1196, %v1188
    %v1325 = vpack.c.b16 %v1197, %v1189
    %v1326 = vpack.c.b16 %v1198, %v1190
    %v1327 = vpack.c.b16 %v1199, %v1191
    %v1328 = vpack.c.b16 %v1200, %v1192
    %v1329 = vpack.c.b16 %v1201, %v1193
    %v1330 = vpack.c.b16 %v1202, %v1194
    %v1331 = vpack.c.b16 %v1203, %v1195
    %1460 = vmatpush.bf16.msra.mxu0 %v1260
    %1461 = vmatpush.bf16.msra.mxu0 %v1252
    %1462 = vmatpush.bf16.msra.mxu0 %v1244
    %1463 = vmatpush.bf16.msra.mxu0 %v1236
    %1464 = vmatpush.bf16.msra.mxu0 %v1228
    %1465 = vmatpush.bf16.msra.mxu0 %v1220
    %1466 = vmatpush.bf16.msra.mxu0 %v1212
    %1467 = vmatpush.bf16.msra.mxu0 %v1204
    %1468 = vmatmul.bf16.gmra.mxu0 %v816
    %v1469 = vpop.f32.mrf.mxu0
    %v1470 = vadd.f32 0.0, %v1469
    %v1471 = vpop.f32.mrf.mxu0
    %1472 = vdwg.mxu0
    %1473 = vmatpush.bf16.msra.mxu0 %v1324
    %1474 = vmatpush.bf16.msra.mxu0 %v1316
    %1475 = vmatpush.bf16.msra.mxu0 %v1308
    %1476 = vmatpush.bf16.msra.mxu0 %v1300
    %1477 = vmatpush.bf16.msra.mxu0 %v1292
    %1478 = vmatpush.bf16.msra.mxu0 %v1284
    %1479 = vmatpush.bf16.msra.mxu0 %v1276
    %1480 = vmatpush.bf16.msra.mxu0 %v1268
    %1481 = vmatmul.bf16.gmra.mxu0 %v817
    %v1482 = vpop.f32.mrf.mxu0
    %v1483 = vadd.f32 %v1470, %v1482
    %v1484 = vpop.f32.mrf.mxu0
    %1485 = vdwg.mxu0
    %1486 = vmatpush.bf16.msra.mxu0 %v1261
    %1487 = vmatpush.bf16.msra.mxu0 %v1253
    %1488 = vmatpush.bf16.msra.mxu0 %v1245
    %1489 = vmatpush.bf16.msra.mxu0 %v1237
    %1490 = vmatpush.bf16.msra.mxu0 %v1229
    %1491 = vmatpush.bf16.msra.mxu0 %v1221
    %1492 = vmatpush.bf16.msra.mxu0 %v1213
    %1493 = vmatpush.bf16.msra.mxu0 %v1205
    %1494 = vmatmul.bf16.gmra.mxu0 %v816
    %v1495 = vpop.f32.mrf.mxu0
    %v1496 = vadd.f32 0.0, %v1495
    %v1497 = vpop.f32.mrf.mxu0
    %1498 = vdwg.mxu0
    %1499 = vmatpush.bf16.msra.mxu0 %v1325
    %1500 = vmatpush.bf16.msra.mxu0 %v1317
    %1501 = vmatpush.bf16.msra.mxu0 %v1309
    %1502 = vmatpush.bf16.msra.mxu0 %v1301
    %1503 = vmatpush.bf16.msra.mxu0 %v1293
    %1504 = vmatpush.bf16.msra.mxu0 %v1285
    %1505 = vmatpush.bf16.msra.mxu0 %v1277
    %1506 = vmatpush.bf16.msra.mxu0 %v1269
    %1507 = vmatmul.bf16.gmra.mxu0 %v817
    %v1508 = vpop.f32.mrf.mxu0
    %v1509 = vadd.f32 %v1496, %v1508
    %v1510 = vpop.f32.mrf.mxu0
    %1511 = vdwg.mxu0
    %1512 = vmatpush.bf16.msra.mxu0 %v1262
    %1513 = vmatpush.bf16.msra.mxu0 %v1254
    %1514 = vmatpush.bf16.msra.mxu0 %v1246
    %1515 = vmatpush.bf16.msra.mxu0 %v1238
    %1516 = vmatpush.bf16.msra.mxu0 %v1230
    %1517 = vmatpush.bf16.msra.mxu0 %v1222
    %1518 = vmatpush.bf16.msra.mxu0 %v1214
    %1519 = vmatpush.bf16.msra.mxu0 %v1206
    %1520 = vmatmul.bf16.gmra.mxu0 %v816
    %v1521 = vpop.f32.mrf.mxu0
    %v1522 = vadd.f32 0.0, %v1521
    %v1523 = vpop.f32.mrf.mxu0
    %1524 = vdwg.mxu0
    %1525 = vmatpush.bf16.msra.mxu0 %v1326
    %1526 = vmatpush.bf16.msra.mxu0 %v1318
    %1527 = vmatpush.bf16.msra.mxu0 %v1310
    %1528 = vmatpush.bf16.msra.mxu0 %v1302
    %1529 = vmatpush.bf16.msra.mxu0 %v1294
    %1530 = vmatpush.bf16.msra.mxu0 %v1286
    %1531 = vmatpush.bf16.msra.mxu0 %v1278
    %1532 = vmatpush.bf16.msra.mxu0 %v1270
    %1533 = vmatmul.bf16.gmra.mxu0 %v817
    %v1534 = vpop.f32.mrf.mxu0
    %v1535 = vadd.f32 %v1522, %v1534
    %v1536 = vpop.f32.mrf.mxu0
    %1537 = vdwg.mxu0
    %1538 = vmatpush.bf16.msra.mxu0 %v1263
    %1539 = vmatpush.bf16.msra.mxu0 %v1255
    %1540 = vmatpush.bf16.msra.mxu0 %v1247
    %1541 = vmatpush.bf16.msra.mxu0 %v1239
    %1542 = vmatpush.bf16.msra.mxu0 %v1231
    %1543 = vmatpush.bf16.msra.mxu0 %v1223
    %1544 = vmatpush.bf16.msra.mxu0 %v1215
    %1545 = vmatpush.bf16.msra.mxu0 %v1207
    %1546 = vmatmul.bf16.gmra.mxu0 %v816
    %v1547 = vpop.f32.mrf.mxu0
    %v1548 = vadd.f32 0.0, %v1547
    %v1549 = vpop.f32.mrf.mxu0
    %1550 = vdwg.mxu0
    %1551 = vmatpush.bf16.msra.mxu0 %v1327
    %1552 = vmatpush.bf16.msra.mxu0 %v1319
    %1553 = vmatpush.bf16.msra.mxu0 %v1311
    %1554 = vmatpush.bf16.msra.mxu0 %v1303
    %1555 = vmatpush.bf16.msra.mxu0 %v1295
    %1556 = vmatpush.bf16.msra.mxu0 %v1287
    %1557 = vmatpush.bf16.msra.mxu0 %v1279
    %1558 = vmatpush.bf16.msra.mxu0 %v1271
    %1559 = vmatmul.bf16.gmra.mxu0 %v817
    %v1560 = vpop.f32.mrf.mxu0
    %v1561 = vadd.f32 %v1548, %v1560
    %v1562 = vpop.f32.mrf.mxu0
    %1563 = vdwg.mxu0
    %1564 = vmatpush.bf16.msra.mxu0 %v1264
    %1565 = vmatpush.bf16.msra.mxu0 %v1256
    %1566 = vmatpush.bf16.msra.mxu0 %v1248
    %1567 = vmatpush.bf16.msra.mxu0 %v1240
    %1568 = vmatpush.bf16.msra.mxu0 %v1232
    %1569 = vmatpush.bf16.msra.mxu0 %v1224
    %1570 = vmatpush.bf16.msra.mxu0 %v1216
    %1571 = vmatpush.bf16.msra.mxu0 %v1208
    %1572 = vmatmul.bf16.gmra.mxu0 %v816
    %v1573 = vpop.f32.mrf.mxu0
    %v1574 = vadd.f32 0.0, %v1573
    %v1575 = vpop.f32.mrf.mxu0
    %1576 = vdwg.mxu0
    %1577 = vmatpush.bf16.msra.mxu0 %v1328
    %1578 = vmatpush.bf16.msra.mxu0 %v1320
    %1579 = vmatpush.bf16.msra.mxu0 %v1312
    %1580 = vmatpush.bf16.msra.mxu0 %v1304
    %1581 = vmatpush.bf16.msra.mxu0 %v1296
    %1582 = vmatpush.bf16.msra.mxu0 %v1288
    %1583 = vmatpush.bf16.msra.mxu0 %v1280
    %1584 = vmatpush.bf16.msra.mxu0 %v1272
    %1585 = vmatmul.bf16.gmra.mxu0 %v817
    %v1586 = vpop.f32.mrf.mxu0
    %v1587 = vadd.f32 %v1574, %v1586
    %v1588 = vpop.f32.mrf.mxu0
    %1589 = vdwg.mxu0
    %1590 = vmatpush.bf16.msra.mxu0 %v1265
    %1591 = vmatpush.bf16.msra.mxu0 %v1257
    %1592 = vmatpush.bf16.msra.mxu0 %v1249
    %1593 = vmatpush.bf16.msra.mxu0 %v1241
    %1594 = vmatpush.bf16.msra.mxu0 %v1233
    %1595 = vmatpush.bf16.msra.mxu0 %v1225
    %1596 = vmatpush.bf16.msra.mxu0 %v1217
    %1597 = vmatpush.bf16.msra.mxu0 %v1209
    %1598 = vmatmul.bf16.gmra.mxu0 %v816
    %v1599 = vpop.f32.mrf.mxu0
    %v1600 = vadd.f32 0.0, %v1599
    %v1601 = vpop.f32.mrf.mxu0
    %1602 = vdwg.mxu0
    %1603 = vmatpush.bf16.msra.mxu0 %v1329
    %1604 = vmatpush.bf16.msra.mxu0 %v1321
    %1605 = vmatpush.bf16.msra.mxu0 %v1313
    %1606 = vmatpush.bf16.msra.mxu0 %v1305
    %1607 = vmatpush.bf16.msra.mxu0 %v1297
    %1608 = vmatpush.bf16.msra.mxu0 %v1289
    %1609 = vmatpush.bf16.msra.mxu0 %v1281
    %1610 = vmatpush.bf16.msra.mxu0 %v1273
    %1611 = vmatmul.bf16.gmra.mxu0 %v817
    %v1612 = vpop.f32.mrf.mxu0
    %v1613 = vadd.f32 %v1600, %v1612
    %v1614 = vpop.f32.mrf.mxu0
    %1615 = vdwg.mxu0
    %1616 = vmatpush.bf16.msra.mxu0 %v1266
    %1617 = vmatpush.bf16.msra.mxu0 %v1258
    %1618 = vmatpush.bf16.msra.mxu0 %v1250
    %1619 = vmatpush.bf16.msra.mxu0 %v1242
    %1620 = vmatpush.bf16.msra.mxu0 %v1234
    %1621 = vmatpush.bf16.msra.mxu0 %v1226
    %1622 = vmatpush.bf16.msra.mxu0 %v1218
    %1623 = vmatpush.bf16.msra.mxu0 %v1210
    %1624 = vmatmul.bf16.gmra.mxu0 %v816
    %v1625 = vpop.f32.mrf.mxu0
    %v1626 = vadd.f32 0.0, %v1625
    %v1627 = vpop.f32.mrf.mxu0
    %1628 = vdwg.mxu0
    %1629 = vmatpush.bf16.msra.mxu0 %v1330
    %1630 = vmatpush.bf16.msra.mxu0 %v1322
    %1631 = vmatpush.bf16.msra.mxu0 %v1314
    %1632 = vmatpush.bf16.msra.mxu0 %v1306
    %1633 = vmatpush.bf16.msra.mxu0 %v1298
    %1634 = vmatpush.bf16.msra.mxu0 %v1290
    %1635 = vmatpush.bf16.msra.mxu0 %v1282
    %1636 = vmatpush.bf16.msra.mxu0 %v1274
    %1637 = vmatmul.bf16.gmra.mxu0 %v817
    %v1638 = vpop.f32.mrf.mxu0
    %v1639 = vadd.f32 %v1626, %v1638
    %v1640 = vpop.f32.mrf.mxu0
    %1641 = vdwg.mxu0
    %1642 = vmatpush.bf16.msra.mxu0 %v1267
    %1643 = vmatpush.bf16.msra.mxu0 %v1259
    %1644 = vmatpush.bf16.msra.mxu0 %v1251
    %1645 = vmatpush.bf16.msra.mxu0 %v1243
    %1646 = vmatpush.bf16.msra.mxu0 %v1235
    %1647 = vmatpush.bf16.msra.mxu0 %v1227
    %1648 = vmatpush.bf16.msra.mxu0 %v1219
    %1649 = vmatpush.bf16.msra.mxu0 %v1211
    %1650 = vmatmul.bf16.gmra.mxu0 %v816
    %v1651 = vpop.f32.mrf.mxu0
    %v1652 = vadd.f32 0.0, %v1651
    %v1653 = vpop.f32.mrf.mxu0
    %1654 = vdwg.mxu0
    %1655 = vmatpush.bf16.msra.mxu0 %v1331
    %1656 = vmatpush.bf16.msra.mxu0 %v1323
    %1657 = vmatpush.bf16.msra.mxu0 %v1315
    %1658 = vmatpush.bf16.msra.mxu0 %v1307
    %1659 = vmatpush.bf16.msra.mxu0 %v1299
    %1660 = vmatpush.bf16.msra.mxu0 %v1291
    %1661 = vmatpush.bf16.msra.mxu0 %v1283
    %1662 = vmatpush.bf16.msra.mxu0 %v1275
    %1663 = vmatmul.bf16.gmra.mxu0 %v817
    %v1664 = vpop.f32.mrf.mxu0
    %v1665 = vadd.f32 %v1652, %v1664
    %v1666 = vpop.f32.mrf.mxu0
    %1667 = vdwg.mxu0
    %s1668 = ssub.s32 7, %s679
    %s1669 = smul.u32 %s679, 4
    %s1670 = smul.addr %s1669, 8
    %s1671 = scalar_lea.vmem [#allocation2], %s1670
    %v1672 = vld [vmem:[%s1671] sm:$0xff]
    %v1673 = vld [vmem:[%s1671 + $0x8] sm:$0xff]
    %v1674 = vld [vmem:[%s1671 + $0x10] sm:$0xff]
    %v1675 = vld [vmem:[%s1671 + $0x18] sm:$0xff]
    %v1676 = vadd.f32 %v1483, %v1672
    %v1677 = vadd.f32 %v1509, %v1673
    %v1678 = vadd.f32 %v1535, %v1674
    %v1679 = vadd.f32 %v1561, %v1675
    %s1680 = smul.u32 %s1668, 4
    %s1681 = smul.addr %s1680, 8
    %s1682 = scalar_lea.vmem [#allocation3], %s1681
    %v1683 = vld [vmem:[%s1682] sm:$0xff]
    %v1684 = vld [vmem:[%s1682 + $0x8] sm:$0xff]
    %v1685 = vld [vmem:[%s1682 + $0x10] sm:$0xff]
    %v1686 = vld [vmem:[%s1682 + $0x18] sm:$0xff]
    %v1687 = vadd.f32 %v1587, %v1683
    %v1688 = vadd.f32 %v1613, %v1684
    %v1689 = vadd.f32 %v1639, %v1685
    %v1690 = vadd.f32 %v1665, %v1686
    %v1691 = vxor.u32 %v1676, 2147483648
    %v1692 = vmul.f32 %v1691, 1.442695
    %v1693 = vpow.pop %v1692
    %v1694 = vadd.f32 %v1693, 1.0
    %v1695 = vrcp.pop %v1694
    %v1696 = vmul.f32 %v1694, %v1695
    %v1697 = vsub.f32 1.0, %v1696
    %v1698 = vmul.f32 %v1695, %v1697
    %v1699 = vadd.f32 %v1695, %v1698
    %vm1700 = vweird.f32 %v1694
    %vm1701 = vweird.f32 %v1695
    %vm1702 = vmor %vm1700, %vm1701
    %v1703 = vsel %vm1702, %v1695, %v1699
    %v1704 = vand.u32 2147483647, %v1694
    %vm1705 = vcmp.eq.f32.partialorder %v1704, 8.507059e+37
    %v1706 = vand.u32 %v1694, 2147483648
    %v1707 = vor.u32 1.1754944e-38, %v1706
    %v1708 = vsel %vm1705, %v1707, %v1703
    %v1709 = vmul.f32 1.0, %v1708
    %v1710 = vxor.u32 %v1677, 2147483648
    %v1711 = vmul.f32 %v1710, 1.442695
    %v1712 = vpow.pop %v1711
    %v1713 = vadd.f32 %v1712, 1.0
    %v1714 = vrcp.pop %v1713
    %v1715 = vmul.f32 %v1713, %v1714
    %v1716 = vsub.f32 1.0, %v1715
    %v1717 = vmul.f32 %v1714, %v1716
    %v1718 = vadd.f32 %v1714, %v1717
    %vm1719 = vweird.f32 %v1713
    %vm1720 = vweird.f32 %v1714
    %vm1721 = vmor %vm1719, %vm1720
    %v1722 = vsel %vm1721, %v1714, %v1718
    %v1723 = vand.u32 2147483647, %v1713
    %vm1724 = vcmp.eq.f32.partialorder %v1723, 8.507059e+37
    %v1725 = vand.u32 %v1713, 2147483648
    %v1726 = vor.u32 1.1754944e-38, %v1725
    %v1727 = vsel %vm1724, %v1726, %v1722
    %v1728 = vmul.f32 1.0, %v1727
    %v1729 = vtanh.pop %v1678
    %v1730 = vxor.u32 %v1679, 2147483648
    %v1731 = vmul.f32 %v1730, 1.442695
    %v1732 = vpow.pop %v1731
    %v1733 = vadd.f32 %v1732, 1.0
    %v1734 = vrcp.pop %v1733
    %v1735 = vmul.f32 %v1733, %v1734
    %v1736 = vsub.f32 1.0, %v1735
    %v1737 = vmul.f32 %v1734, %v1736
    %v1738 = vadd.f32 %v1734, %v1737
    %vm1739 = vweird.f32 %v1733
    %vm1740 = vweird.f32 %v1734
    %vm1741 = vmor %vm1739, %vm1740
    %v1742 = vsel %vm1741, %v1734, %v1738
    %v1743 = vand.u32 2147483647, %v1733
    %vm1744 = vcmp.eq.f32.partialorder %v1743, 8.507059e+37
    %v1745 = vand.u32 %v1733, 2147483648
    %v1746 = vor.u32 1.1754944e-38, %v1745
    %v1747 = vsel %vm1744, %v1746, %v1742
    %v1748 = vmul.f32 1.0, %v1747
    %v1749 = vld [vmem:[#allocation7] sm:$0xff]
    %v1750 = vmul.f32 %v1728, %v1749
    %v1751 = vmul.f32 %v1709, %v1729
    %v1752 = vadd.f32 %v1750, %v1751
    %v1753 = vtanh.pop %v1752
    %v1754 = vmul.f32 %v1748, %v1753
    %v1755 = vxor.u32 %v1687, 2147483648
    %v1756 = vmul.f32 %v1755, 1.442695
    %v1757 = vpow.pop %v1756
    %v1758 = vadd.f32 %v1757, 1.0
    %v1759 = vrcp.pop %v1758
    %v1760 = vmul.f32 %v1758, %v1759
    %v1761 = vsub.f32 1.0, %v1760
    %v1762 = vmul.f32 %v1759, %v1761
    %v1763 = vadd.f32 %v1759, %v1762
    %vm1764 = vweird.f32 %v1758
    %vm1765 = vweird.f32 %v1759
    %vm1766 = vmor %vm1764, %vm1765
    %v1767 = vsel %vm1766, %v1759, %v1763
    %v1768 = vand.u32 2147483647, %v1758
    %vm1769 = vcmp.eq.f32.partialorder %v1768, 8.507059e+37
    %v1770 = vand.u32 %v1758, 2147483648
    %v1771 = vor.u32 1.1754944e-38, %v1770
    %v1772 = vsel %vm1769, %v1771, %v1767
    %v1773 = vmul.f32 1.0, %v1772
    %v1774 = vxor.u32 %v1688, 2147483648
    %v1775 = vmul.f32 %v1774, 1.442695
    %v1776 = vpow.pop %v1775
    %v1777 = vadd.f32 %v1776, 1.0
    %v1778 = vrcp.pop %v1777
    %v1779 = vmul.f32 %v1777, %v1778
    %v1780 = vsub.f32 1.0, %v1779
    %v1781 = vmul.f32 %v1778, %v1780
    %v1782 = vadd.f32 %v1778, %v1781
    %vm1783 = vweird.f32 %v1777
    %vm1784 = vweird.f32 %v1778
    %vm1785 = vmor %vm1783, %vm1784
    %v1786 = vsel %vm1785, %v1778, %v1782
    %v1787 = vand.u32 2147483647, %v1777
    %vm1788 = vcmp.eq.f32.partialorder %v1787, 8.507059e+37
    %v1789 = vand.u32 %v1777, 2147483648
    %v1790 = vor.u32 1.1754944e-38, %v1789
    %v1791 = vsel %vm1788, %v1790, %v1786
    %v1792 = vmul.f32 1.0, %v1791
    %v1793 = vtanh.pop %v1689
    %v1794 = vxor.u32 %v1690, 2147483648
    %v1795 = vmul.f32 %v1794, 1.442695
    %v1796 = vpow.pop %v1795
    %v1797 = vadd.f32 %v1796, 1.0
    %v1798 = vrcp.pop %v1797
    %v1799 = vmul.f32 %v1797, %v1798
    %v1800 = vsub.f32 1.0, %v1799
    %v1801 = vmul.f32 %v1798, %v1800
    %v1802 = vadd.f32 %v1798, %v1801
    %vm1803 = vweird.f32 %v1797
    %vm1804 = vweird.f32 %v1798
    %vm1805 = vmor %vm1803, %vm1804
    %v1806 = vsel %vm1805, %v1798, %v1802
    %v1807 = vand.u32 2147483647, %v1797
    %vm1808 = vcmp.eq.f32.partialorder %v1807, 8.507059e+37
    %v1809 = vand.u32 %v1797, 2147483648
    %v1810 = vor.u32 1.1754944e-38, %v1809
    %v1811 = vsel %vm1808, %v1810, %v1806
    %v1812 = vmul.f32 1.0, %v1811
    %v1813 = vld [vmem:[#allocation8] sm:$0xff]
    %v1814 = vmul.f32 %v1792, %v1813
    %v1815 = vmul.f32 %v1773, %v1793
    %v1816 = vadd.f32 %v1814, %v1815
    %v1817 = vtanh.pop %v1816
    %v1818 = vmul.f32 %v1812, %v1817
    %1819 = vst [vmem:[#allocation7] sm:$0xff] %v1752
    %1820 = vst [vmem:[#allocation8] sm:$0xff] %v1816
    %v1821 = vpack.c.bf16 %v1754, %v1754
    %v1822 = vpack.c.bf16 %v1818, %v1818
    %v1825 = vunpack.c.l.b16 %v1821
    %v1826 = vunpack.c.l.b16 %v1822
    %v1827 = vpack.c.b16 %v1826, %v1825
    %1829 = vst [vmem:[#allocation6] sm:$0xff] %v1827
    %s1830 = smul.u32 %s679, 2
    %s1831 = smul.addr %s1830, 8
    %s1832 = scalar_lea.vmem [#allocation5], %s1831
    %1833 = vst [vmem:[%s1832] sm:$0xff] %v1754
    %s1834 = smul.u32 %s1668, 2
    %s1835 = smul.addr %s1834, 8
    %s1836 = scalar_lea.vmem [#allocation5], %s1835
    %1837 = vst [vmem:[%s1836 + $0x8] sm:$0xff] %v1818
  $region102: #{improved_hybrid_forward.3} parent=0 // loop_footer
    %s683 = sadd.s32 1, %s679
  $region103: #{improved_hybrid_forward.3} parent=0 // loop_footer_branch
    %678 = sbr.rel target = $region99
  $region104: #{improved_hybrid_forward.3} parent=0 // loop_exit
    _
  %v1838 = vld [vmem:[#allocation5] sm:$0xff]
  %v1839 = vld [vmem:[#allocation5 + $0x8] sm:$0xff]
  %v1840 = vld [vmem:[#allocation5 + $0x10] sm:$0xff]
  %v1841 = vld [vmem:[#allocation5 + $0x18] sm:$0xff]
  %v1842 = vld [vmem:[#allocation5 + $0x20] sm:$0xff]
  %v1843 = vld [vmem:[#allocation5 + $0x28] sm:$0xff]
  %v1844 = vld [vmem:[#allocation5 + $0x30] sm:$0xff]
  %v1845 = vld [vmem:[#allocation5 + $0x38] sm:$0xff]
  %v1846 = vld [vmem:[#allocation5 + $0x40] sm:$0xff]
  %v1847 = vld [vmem:[#allocation5 + $0x48] sm:$0xff]
  %v1848 = vld [vmem:[#allocation5 + $0x50] sm:$0xff]
  %v1849 = vld [vmem:[#allocation5 + $0x58] sm:$0xff]
  %v1850 = vld [vmem:[#allocation5 + $0x60] sm:$0xff]
  %v1851 = vld [vmem:[#allocation5 + $0x68] sm:$0xff]
  %v1852 = vld [vmem:[#allocation5 + $0x70] sm:$0xff]
  %v1853 = vld [vmem:[#allocation5 + $0x78] sm:$0xff]
  %v1854 = vpack.c.bf16 %v1840, %v1838
  %v1855 = vpack.c.bf16 %v1841, %v1839
  %v1856 = vpack.c.bf16 %v1844, %v1842
  %v1857 = vpack.c.bf16 %v1845, %v1843
  %v1858 = vpack.c.bf16 %v1848, %v1846
  %v1859 = vpack.c.bf16 %v1849, %v1847
  %v1860 = vpack.c.bf16 %v1852, %v1850
  %v1861 = vpack.c.bf16 %v1853, %v1851
  %v1862 = vld [vmem:[%s7] sm:$0xff]
  %v1863 = vld [vmem:[%s7 + $0x8] sm:$0xff]
  %v1864 = vld [vmem:[%s7 + $0x10] sm:$0xff]
  %v1865 = vld [vmem:[%s7 + $0x18] sm:$0xff]
  %v1866 = vld [vmem:[%s7 + $0x20] sm:$0xff]
  %v1867 = vld [vmem:[%s7 + $0x28] sm:$0xff]
  %v1868 = vld [vmem:[%s7 + $0x30] sm:$0xff]
  %v1869 = vld [vmem:[%s7 + $0x38] sm:$0xff]
  %v1870 = vld [vmem:[%s7 + $0x40] sm:$0xff]
  %v1871 = vld [vmem:[%s7 + $0x48] sm:$0xff]
  %v1872 = vld [vmem:[%s7 + $0x50] sm:$0xff]
  %v1873 = vld [vmem:[%s7 + $0x58] sm:$0xff]
  %v1874 = vld [vmem:[%s7 + $0x60] sm:$0xff]
  %v1875 = vld [vmem:[%s7 + $0x68] sm:$0xff]
  %v1876 = vld [vmem:[%s7 + $0x70] sm:$0xff]
  %v1877 = vld [vmem:[%s7 + $0x78] sm:$0xff]
  %v1878 = vld [vmem:[%s7 + $0x80] sm:$0xff]
  %v1879 = vld [vmem:[%s7 + $0x88] sm:$0xff]
  %v1880 = vld [vmem:[%s7 + $0x90] sm:$0xff]
  %v1881 = vld [vmem:[%s7 + $0x98] sm:$0xff]
  %v1882 = vld [vmem:[%s7 + $0xa0] sm:$0xff]
  %v1883 = vld [vmem:[%s7 + $0xa8] sm:$0xff]
  %v1884 = vld [vmem:[%s7 + $0xb0] sm:$0xff]
  %v1885 = vld [vmem:[%s7 + $0xb8] sm:$0xff]
  %v1886 = vld [vmem:[%s7 + $0xc0] sm:$0xff]
  %v1887 = vld [vmem:[%s7 + $0xc8] sm:$0xff]
  %v1888 = vld [vmem:[%s7 + $0xd0] sm:$0xff]
  %v1889 = vld [vmem:[%s7 + $0xd8] sm:$0xff]
  %v1890 = vld [vmem:[%s7 + $0xe0] sm:$0xff]
  %v1891 = vld [vmem:[%s7 + $0xe8] sm:$0xff]
  %v1892 = vld [vmem:[%s7 + $0xf0] sm:$0xff]
  %v1893 = vld [vmem:[%s7 + $0xf8] sm:$0xff]
  %v1894 = vld [vmem:[%s7 + $0x100] sm:$0xff]
  %v1895 = vld [vmem:[%s7 + $0x108] sm:$0xff]
  %v1896 = vld [vmem:[%s7 + $0x110] sm:$0xff]
  %v1897 = vld [vmem:[%s7 + $0x118] sm:$0xff]
  %v1898 = vld [vmem:[%s7 + $0x120] sm:$0xff]
  %v1899 = vld [vmem:[%s7 + $0x128] sm:$0xff]
  %v1900 = vld [vmem:[%s7 + $0x130] sm:$0xff]
  %v1901 = vld [vmem:[%s7 + $0x138] sm:$0xff]
  %v1902 = vld [vmem:[%s7 + $0x140] sm:$0xff]
  %v1903 = vld [vmem:[%s7 + $0x148] sm:$0xff]
  %v1904 = vld [vmem:[%s7 + $0x150] sm:$0xff]
  %v1905 = vld [vmem:[%s7 + $0x158] sm:$0xff]
  %v1906 = vld [vmem:[%s7 + $0x160] sm:$0xff]
  %v1907 = vld [vmem:[%s7 + $0x168] sm:$0xff]
  %v1908 = vld [vmem:[%s7 + $0x170] sm:$0xff]
  %v1909 = vld [vmem:[%s7 + $0x178] sm:$0xff]
  %v1910 = vld [vmem:[%s7 + $0x180] sm:$0xff]
  %v1911 = vld [vmem:[%s7 + $0x188] sm:$0xff]
  %v1912 = vld [vmem:[%s7 + $0x190] sm:$0xff]
  %v1913 = vld [vmem:[%s7 + $0x198] sm:$0xff]
  %v1914 = vld [vmem:[%s7 + $0x1a0] sm:$0xff]
  %v1915 = vld [vmem:[%s7 + $0x1a8] sm:$0xff]
  %v1916 = vld [vmem:[%s7 + $0x1b0] sm:$0xff]
  %v1917 = vld [vmem:[%s7 + $0x1b8] sm:$0xff]
  %v1918 = vld [vmem:[%s7 + $0x1c0] sm:$0xff]
  %v1919 = vld [vmem:[%s7 + $0x1c8] sm:$0xff]
  %v1920 = vld [vmem:[%s7 + $0x1d0] sm:$0xff]
  %v1921 = vld [vmem:[%s7 + $0x1d8] sm:$0xff]
  %v1922 = vld [vmem:[%s7 + $0x1e0] sm:$0xff]
  %v1923 = vld [vmem:[%s7 + $0x1e8] sm:$0xff]
  %v1924 = vld [vmem:[%s7 + $0x1f0] sm:$0xff]
  %v1925 = vld [vmem:[%s7 + $0x1f8] sm:$0xff]
  %v1926 = vld [vmem:[%s8] sm:$0xf]
  %v1928 = vperm.slane %v1926, 0
  %v1929 = vperm.slane %v1926, 1
  %v1930 = vperm.slane %v1926, 2
  %v1931 = vperm.slane %v1926, 3
  %v2000 = vunpack.c.l.b16 %v1862
  %v2001 = vunpack.c.h.b16 %v1862
  %v2002 = vunpack.c.l.b16 %v1863
  %v2003 = vunpack.c.h.b16 %v1863
  %v2004 = vunpack.c.l.b16 %v1864
  %v2005 = vunpack.c.h.b16 %v1864
  %v2006 = vunpack.c.l.b16 %v1865
  %v2007 = vunpack.c.h.b16 %v1865
  %v2008 = vunpack.c.l.b16 %v1866
  %v2009 = vunpack.c.h.b16 %v1866
  %v2010 = vunpack.c.l.b16 %v1867
  %v2011 = vunpack.c.h.b16 %v1867
  %v2012 = vunpack.c.l.b16 %v1868
  %v2013 = vunpack.c.h.b16 %v1868
  %v2014 = vunpack.c.l.b16 %v1869
  %v2015 = vunpack.c.h.b16 %v1869
  %v2016 = vunpack.c.l.b16 %v1870
  %v2017 = vunpack.c.h.b16 %v1870
  %v2018 = vunpack.c.l.b16 %v1871
  %v2019 = vunpack.c.h.b16 %v1871
  %v2020 = vunpack.c.l.b16 %v1872
  %v2021 = vunpack.c.h.b16 %v1872
  %v2022 = vunpack.c.l.b16 %v1873
  %v2023 = vunpack.c.h.b16 %v1873
  %v2024 = vunpack.c.l.b16 %v1874
  %v2025 = vunpack.c.h.b16 %v1874
  %v2026 = vunpack.c.l.b16 %v1875
  %v2027 = vunpack.c.h.b16 %v1875
  %v2028 = vunpack.c.l.b16 %v1876
  %v2029 = vunpack.c.h.b16 %v1876
  %v2030 = vunpack.c.l.b16 %v1877
  %v2031 = vunpack.c.h.b16 %v1877
  %v2032 = vunpack.c.l.b16 %v1878
  %v2033 = vunpack.c.h.b16 %v1878
  %v2034 = vunpack.c.l.b16 %v1879
  %v2035 = vunpack.c.h.b16 %v1879
  %v2036 = vunpack.c.l.b16 %v1880
  %v2037 = vunpack.c.h.b16 %v1880
  %v2038 = vunpack.c.l.b16 %v1881
  %v2039 = vunpack.c.h.b16 %v1881
  %v2040 = vunpack.c.l.b16 %v1882
  %v2041 = vunpack.c.h.b16 %v1882
  %v2042 = vunpack.c.l.b16 %v1883
  %v2043 = vunpack.c.h.b16 %v1883
  %v2044 = vunpack.c.l.b16 %v1884
  %v2045 = vunpack.c.h.b16 %v1884
  %v2046 = vunpack.c.l.b16 %v1885
  %v2047 = vunpack.c.h.b16 %v1885
  %v2048 = vunpack.c.l.b16 %v1886
  %v2049 = vunpack.c.h.b16 %v1886
  %v2050 = vunpack.c.l.b16 %v1887
  %v2051 = vunpack.c.h.b16 %v1887
  %v2052 = vunpack.c.l.b16 %v1888
  %v2053 = vunpack.c.h.b16 %v1888
  %v2054 = vunpack.c.l.b16 %v1889
  %v2055 = vunpack.c.h.b16 %v1889
  %v2056 = vunpack.c.l.b16 %v1890
  %v2057 = vunpack.c.h.b16 %v1890
  %v2058 = vunpack.c.l.b16 %v1891
  %v2059 = vunpack.c.h.b16 %v1891
  %v2060 = vunpack.c.l.b16 %v1892
  %v2061 = vunpack.c.h.b16 %v1892
  %v2062 = vunpack.c.l.b16 %v1893
  %v2063 = vunpack.c.h.b16 %v1893
  %v2064 = vunpack.c.l.b16 %v1894
  %v2065 = vunpack.c.h.b16 %v1894
  %v2066 = vunpack.c.l.b16 %v1895
  %v2067 = vunpack.c.h.b16 %v1895
  %v2068 = vunpack.c.l.b16 %v1896
  %v2069 = vunpack.c.h.b16 %v1896
  %v2070 = vunpack.c.l.b16 %v1897
  %v2071 = vunpack.c.h.b16 %v1897
  %v2072 = vunpack.c.l.b16 %v1898
  %v2073 = vunpack.c.h.b16 %v1898
  %v2074 = vunpack.c.l.b16 %v1899
  %v2075 = vunpack.c.h.b16 %v1899
  %v2076 = vunpack.c.l.b16 %v1900
  %v2077 = vunpack.c.h.b16 %v1900
  %v2078 = vunpack.c.l.b16 %v1901
  %v2079 = vunpack.c.h.b16 %v1901
  %v2080 = vunpack.c.l.b16 %v1902
  %v2081 = vunpack.c.h.b16 %v1902
  %v2082 = vunpack.c.l.b16 %v1903
  %v2083 = vunpack.c.h.b16 %v1903
  %v2084 = vunpack.c.l.b16 %v1904
  %v2085 = vunpack.c.h.b16 %v1904
  %v2086 = vunpack.c.l.b16 %v1905
  %v2087 = vunpack.c.h.b16 %v1905
  %v2088 = vunpack.c.l.b16 %v1906
  %v2089 = vunpack.c.h.b16 %v1906
  %v2090 = vunpack.c.l.b16 %v1907
  %v2091 = vunpack.c.h.b16 %v1907
  %v2092 = vunpack.c.l.b16 %v1908
  %v2093 = vunpack.c.h.b16 %v1908
  %v2094 = vunpack.c.l.b16 %v1909
  %v2095 = vunpack.c.h.b16 %v1909
  %v2096 = vunpack.c.l.b16 %v1910
  %v2097 = vunpack.c.h.b16 %v1910
  %v2098 = vunpack.c.l.b16 %v1911
  %v2099 = vunpack.c.h.b16 %v1911
  %v2100 = vunpack.c.l.b16 %v1912
  %v2101 = vunpack.c.h.b16 %v1912
  %v2102 = vunpack.c.l.b16 %v1913
  %v2103 = vunpack.c.h.b16 %v1913
  %v2104 = vunpack.c.l.b16 %v1914
  %v2105 = vunpack.c.h.b16 %v1914
  %v2106 = vunpack.c.l.b16 %v1915
  %v2107 = vunpack.c.h.b16 %v1915
  %v2108 = vunpack.c.l.b16 %v1916
  %v2109 = vunpack.c.h.b16 %v1916
  %v2110 = vunpack.c.l.b16 %v1917
  %v2111 = vunpack.c.h.b16 %v1917
  %v2112 = vunpack.c.l.b16 %v1918
  %v2113 = vunpack.c.h.b16 %v1918
  %v2114 = vunpack.c.l.b16 %v1919
  %v2115 = vunpack.c.h.b16 %v1919
  %v2116 = vunpack.c.l.b16 %v1920
  %v2117 = vunpack.c.h.b16 %v1920
  %v2118 = vunpack.c.l.b16 %v1921
  %v2119 = vunpack.c.h.b16 %v1921
  %v2120 = vunpack.c.l.b16 %v1922
  %v2121 = vunpack.c.h.b16 %v1922
  %v2122 = vunpack.c.l.b16 %v1923
  %v2123 = vunpack.c.h.b16 %v1923
  %v2124 = vunpack.c.l.b16 %v1924
  %v2125 = vunpack.c.h.b16 %v1924
  %v2126 = vunpack.c.l.b16 %v1925
  %v2127 = vunpack.c.h.b16 %v1925
  %v2128 = vpack.c.b16 %v2004, %v2000
  %v2129 = vpack.c.b16 %v2005, %v2001
  %v2130 = vpack.c.b16 %v2006, %v2002
  %v2131 = vpack.c.b16 %v2007, %v2003
  %v2132 = vpack.c.b16 %v2012, %v2008
  %v2133 = vpack.c.b16 %v2013, %v2009
  %v2134 = vpack.c.b16 %v2014, %v2010
  %v2135 = vpack.c.b16 %v2015, %v2011
  %v2136 = vpack.c.b16 %v2020, %v2016
  %v2137 = vpack.c.b16 %v2021, %v2017
  %v2138 = vpack.c.b16 %v2022, %v2018
  %v2139 = vpack.c.b16 %v2023, %v2019
  %v2140 = vpack.c.b16 %v2028, %v2024
  %v2141 = vpack.c.b16 %v2029, %v2025
  %v2142 = vpack.c.b16 %v2030, %v2026
  %v2143 = vpack.c.b16 %v2031, %v2027
  %v2144 = vpack.c.b16 %v2036, %v2032
  %v2145 = vpack.c.b16 %v2037, %v2033
  %v2146 = vpack.c.b16 %v2038, %v2034
  %v2147 = vpack.c.b16 %v2039, %v2035
  %v2148 = vpack.c.b16 %v2044, %v2040
  %v2149 = vpack.c.b16 %v2045, %v2041
  %v2150 = vpack.c.b16 %v2046, %v2042
  %v2151 = vpack.c.b16 %v2047, %v2043
  %v2152 = vpack.c.b16 %v2052, %v2048
  %v2153 = vpack.c.b16 %v2053, %v2049
  %v2154 = vpack.c.b16 %v2054, %v2050
  %v2155 = vpack.c.b16 %v2055, %v2051
  %v2156 = vpack.c.b16 %v2060, %v2056
  %v2157 = vpack.c.b16 %v2061, %v2057
  %v2158 = vpack.c.b16 %v2062, %v2058
  %v2159 = vpack.c.b16 %v2063, %v2059
  %v2160 = vpack.c.b16 %v2068, %v2064
  %v2161 = vpack.c.b16 %v2069, %v2065
  %v2162 = vpack.c.b16 %v2070, %v2066
  %v2163 = vpack.c.b16 %v2071, %v2067
  %v2164 = vpack.c.b16 %v2076, %v2072
  %v2165 = vpack.c.b16 %v2077, %v2073
  %v2166 = vpack.c.b16 %v2078, %v2074
  %v2167 = vpack.c.b16 %v2079, %v2075
  %v2168 = vpack.c.b16 %v2084, %v2080
  %v2169 = vpack.c.b16 %v2085, %v2081
  %v2170 = vpack.c.b16 %v2086, %v2082
  %v2171 = vpack.c.b16 %v2087, %v2083
  %v2172 = vpack.c.b16 %v2092, %v2088
  %v2173 = vpack.c.b16 %v2093, %v2089
  %v2174 = vpack.c.b16 %v2094, %v2090
  %v2175 = vpack.c.b16 %v2095, %v2091
  %v2176 = vpack.c.b16 %v2100, %v2096
  %v2177 = vpack.c.b16 %v2101, %v2097
  %v2178 = vpack.c.b16 %v2102, %v2098
  %v2179 = vpack.c.b16 %v2103, %v2099
  %v2180 = vpack.c.b16 %v2108, %v2104
  %v2181 = vpack.c.b16 %v2109, %v2105
  %v2182 = vpack.c.b16 %v2110, %v2106
  %v2183 = vpack.c.b16 %v2111, %v2107
  %v2184 = vpack.c.b16 %v2116, %v2112
  %v2185 = vpack.c.b16 %v2117, %v2113
  %v2186 = vpack.c.b16 %v2118, %v2114
  %v2187 = vpack.c.b16 %v2119, %v2115
  %v2188 = vpack.c.b16 %v2124, %v2120
  %v2189 = vpack.c.b16 %v2125, %v2121
  %v2190 = vpack.c.b16 %v2126, %v2122
  %v2191 = vpack.c.b16 %v2127, %v2123
  %2256 = vmatpush.bf16.msra.mxu0 %v2156
  %2257 = vmatpush.bf16.msra.mxu0 %v2152
  %2258 = vmatpush.bf16.msra.mxu0 %v2148
  %2259 = vmatpush.bf16.msra.mxu0 %v2144
  %2260 = vmatpush.bf16.msra.mxu0 %v2140
  %2261 = vmatpush.bf16.msra.mxu0 %v2136
  %2262 = vmatpush.bf16.msra.mxu0 %v2132
  %2263 = vmatpush.bf16.msra.mxu0 %v2128
  %2264 = vmatmul.bf16.gmra.mxu0 %v1854
  %v2265 = vpop.f32.mrf.mxu0
  %v2266 = vadd.f32 %v1928, %v2265
  %v2267 = vpop.f32.mrf.mxu0
  %v2268 = vadd.f32 %v1928, %v2267
  %2269 = vmatmul.bf16.gmra.mxu0 %v1856
  %v2270 = vpop.f32.mrf.mxu0
  %v2271 = vadd.f32 %v1928, %v2270
  %v2272 = vpop.f32.mrf.mxu0
  %v2273 = vadd.f32 %v1928, %v2272
  %2274 = vmatmul.bf16.gmra.mxu0 %v1858
  %v2275 = vpop.f32.mrf.mxu0
  %v2276 = vadd.f32 %v1928, %v2275
  %v2277 = vpop.f32.mrf.mxu0
  %v2278 = vadd.f32 %v1928, %v2277
  %2279 = vmatmul.bf16.gmra.mxu0 %v1860
  %v2280 = vpop.f32.mrf.mxu0
  %v2281 = vadd.f32 %v1928, %v2280
  %v2282 = vpop.f32.mrf.mxu0
  %v2283 = vadd.f32 %v1928, %v2282
  %2284 = vdwg.mxu0
  %2285 = vmatpush.bf16.msra.mxu0 %v2188
  %2286 = vmatpush.bf16.msra.mxu0 %v2184
  %2287 = vmatpush.bf16.msra.mxu0 %v2180
  %2288 = vmatpush.bf16.msra.mxu0 %v2176
  %2289 = vmatpush.bf16.msra.mxu0 %v2172
  %2290 = vmatpush.bf16.msra.mxu0 %v2168
  %2291 = vmatpush.bf16.msra.mxu0 %v2164
  %2292 = vmatpush.bf16.msra.mxu0 %v2160
  %2293 = vmatmul.bf16.gmra.mxu0 %v1855
  %v2294 = vpop.f32.mrf.mxu0
  %v2295 = vadd.f32 %v2266, %v2294
  %v2296 = vpop.f32.mrf.mxu0
  %v2297 = vadd.f32 %v2268, %v2296
  %2298 = vmatmul.bf16.gmra.mxu0 %v1857
  %v2299 = vpop.f32.mrf.mxu0
  %v2300 = vadd.f32 %v2271, %v2299
  %v2301 = vpop.f32.mrf.mxu0
  %v2302 = vadd.f32 %v2273, %v2301
  %2303 = vmatmul.bf16.gmra.mxu0 %v1859
  %v2304 = vpop.f32.mrf.mxu0
  %v2305 = vadd.f32 %v2276, %v2304
  %v2306 = vpop.f32.mrf.mxu0
  %v2307 = vadd.f32 %v2278, %v2306
  %2308 = vmatmul.bf16.gmra.mxu0 %v1861
  %v2309 = vpop.f32.mrf.mxu0
  %v2310 = vadd.f32 %v2281, %v2309
  %v2311 = vpop.f32.mrf.mxu0
  %v2312 = vadd.f32 %v2283, %v2311
  %2313 = vdwg.mxu0
  %2314 = vmatpush.bf16.msra.mxu0 %v2157
  %2315 = vmatpush.bf16.msra.mxu0 %v2153
  %2316 = vmatpush.bf16.msra.mxu0 %v2149
  %2317 = vmatpush.bf16.msra.mxu0 %v2145
  %2318 = vmatpush.bf16.msra.mxu0 %v2141
  %2319 = vmatpush.bf16.msra.mxu0 %v2137
  %2320 = vmatpush.bf16.msra.mxu0 %v2133
  %2321 = vmatpush.bf16.msra.mxu0 %v2129
  %2322 = vmatmul.bf16.gmra.mxu0 %v1854
  %v2323 = vpop.f32.mrf.mxu0
  %v2324 = vadd.f32 %v1929, %v2323
  %v2325 = vpop.f32.mrf.mxu0
  %v2326 = vadd.f32 %v1929, %v2325
  %2327 = vmatmul.bf16.gmra.mxu0 %v1856
  %v2328 = vpop.f32.mrf.mxu0
  %v2329 = vadd.f32 %v1929, %v2328
  %v2330 = vpop.f32.mrf.mxu0
  %v2331 = vadd.f32 %v1929, %v2330
  %2332 = vmatmul.bf16.gmra.mxu0 %v1858
  %v2333 = vpop.f32.mrf.mxu0
  %v2334 = vadd.f32 %v1929, %v2333
  %v2335 = vpop.f32.mrf.mxu0
  %v2336 = vadd.f32 %v1929, %v2335
  %2337 = vmatmul.bf16.gmra.mxu0 %v1860
  %v2338 = vpop.f32.mrf.mxu0
  %v2339 = vadd.f32 %v1929, %v2338
  %v2340 = vpop.f32.mrf.mxu0
  %v2341 = vadd.f32 %v1929, %v2340
  %2342 = vdwg.mxu0
  %2343 = vmatpush.bf16.msra.mxu0 %v2189
  %2344 = vmatpush.bf16.msra.mxu0 %v2185
  %2345 = vmatpush.bf16.msra.mxu0 %v2181
  %2346 = vmatpush.bf16.msra.mxu0 %v2177
  %2347 = vmatpush.bf16.msra.mxu0 %v2173
  %2348 = vmatpush.bf16.msra.mxu0 %v2169
  %2349 = vmatpush.bf16.msra.mxu0 %v2165
  %2350 = vmatpush.bf16.msra.mxu0 %v2161
  %2351 = vmatmul.bf16.gmra.mxu0 %v1855
  %v2352 = vpop.f32.mrf.mxu0
  %v2353 = vadd.f32 %v2324, %v2352
  %v2354 = vpop.f32.mrf.mxu0
  %v2355 = vadd.f32 %v2326, %v2354
  %2356 = vmatmul.bf16.gmra.mxu0 %v1857
  %v2357 = vpop.f32.mrf.mxu0
  %v2358 = vadd.f32 %v2329, %v2357
  %v2359 = vpop.f32.mrf.mxu0
  %v2360 = vadd.f32 %v2331, %v2359
  %2361 = vmatmul.bf16.gmra.mxu0 %v1859
  %v2362 = vpop.f32.mrf.mxu0
  %v2363 = vadd.f32 %v2334, %v2362
  %v2364 = vpop.f32.mrf.mxu0
  %v2365 = vadd.f32 %v2336, %v2364
  %2366 = vmatmul.bf16.gmra.mxu0 %v1861
  %v2367 = vpop.f32.mrf.mxu0
  %v2368 = vadd.f32 %v2339, %v2367
  %v2369 = vpop.f32.mrf.mxu0
  %v2370 = vadd.f32 %v2341, %v2369
  %2371 = vdwg.mxu0
  %2372 = vmatpush.bf16.msra.mxu0 %v2158
  %2373 = vmatpush.bf16.msra.mxu0 %v2154
  %2374 = vmatpush.bf16.msra.mxu0 %v2150
  %2375 = vmatpush.bf16.msra.mxu0 %v2146
  %2376 = vmatpush.bf16.msra.mxu0 %v2142
  %2377 = vmatpush.bf16.msra.mxu0 %v2138
  %2378 = vmatpush.bf16.msra.mxu0 %v2134
  %2379 = vmatpush.bf16.msra.mxu0 %v2130
  %2380 = vmatmul.bf16.gmra.mxu0 %v1854
  %v2381 = vpop.f32.mrf.mxu0
  %v2382 = vadd.f32 %v1930, %v2381
  %v2383 = vpop.f32.mrf.mxu0
  %v2384 = vadd.f32 %v1930, %v2383
  %2385 = vmatmul.bf16.gmra.mxu0 %v1856
  %v2386 = vpop.f32.mrf.mxu0
  %v2387 = vadd.f32 %v1930, %v2386
  %v2388 = vpop.f32.mrf.mxu0
  %v2389 = vadd.f32 %v1930, %v2388
  %2390 = vmatmul.bf16.gmra.mxu0 %v1858
  %v2391 = vpop.f32.mrf.mxu0
  %v2392 = vadd.f32 %v1930, %v2391
  %v2393 = vpop.f32.mrf.mxu0
  %v2394 = vadd.f32 %v1930, %v2393
  %2395 = vmatmul.bf16.gmra.mxu0 %v1860
  %v2396 = vpop.f32.mrf.mxu0
  %v2397 = vadd.f32 %v1930, %v2396
  %v2398 = vpop.f32.mrf.mxu0
  %v2399 = vadd.f32 %v1930, %v2398
  %2400 = vdwg.mxu0
  %2401 = vmatpush.bf16.msra.mxu0 %v2190
  %2402 = vmatpush.bf16.msra.mxu0 %v2186
  %2403 = vmatpush.bf16.msra.mxu0 %v2182
  %2404 = vmatpush.bf16.msra.mxu0 %v2178
  %2405 = vmatpush.bf16.msra.mxu0 %v2174
  %2406 = vmatpush.bf16.msra.mxu0 %v2170
  %2407 = vmatpush.bf16.msra.mxu0 %v2166
  %2408 = vmatpush.bf16.msra.mxu0 %v2162
  %2409 = vmatmul.bf16.gmra.mxu0 %v1855
  %v2410 = vpop.f32.mrf.mxu0
  %v2411 = vadd.f32 %v2382, %v2410
  %v2412 = vpop.f32.mrf.mxu0
  %v2413 = vadd.f32 %v2384, %v2412
  %2414 = vmatmul.bf16.gmra.mxu0 %v1857
  %v2415 = vpop.f32.mrf.mxu0
  %v2416 = vadd.f32 %v2387, %v2415
  %v2417 = vpop.f32.mrf.mxu0
  %v2418 = vadd.f32 %v2389, %v2417
  %2419 = vmatmul.bf16.gmra.mxu0 %v1859
  %v2420 = vpop.f32.mrf.mxu0
  %v2421 = vadd.f32 %v2392, %v2420
  %v2422 = vpop.f32.mrf.mxu0
  %v2423 = vadd.f32 %v2394, %v2422
  %2424 = vmatmul.bf16.gmra.mxu0 %v1861
  %v2425 = vpop.f32.mrf.mxu0
  %v2426 = vadd.f32 %v2397, %v2425
  %v2427 = vpop.f32.mrf.mxu0
  %v2428 = vadd.f32 %v2399, %v2427
  %2429 = vdwg.mxu0
  %2430 = vmatpush.bf16.msra.mxu0 %v2159
  %2431 = vmatpush.bf16.msra.mxu0 %v2155
  %2432 = vmatpush.bf16.msra.mxu0 %v2151
  %2433 = vmatpush.bf16.msra.mxu0 %v2147
  %2434 = vmatpush.bf16.msra.mxu0 %v2143
  %2435 = vmatpush.bf16.msra.mxu0 %v2139
  %2436 = vmatpush.bf16.msra.mxu0 %v2135
  %2437 = vmatpush.bf16.msra.mxu0 %v2131
  %2438 = vmatmul.bf16.gmra.mxu0 %v1854
  %v2439 = vpop.f32.mrf.mxu0
  %v2440 = vadd.f32 %v1931, %v2439
  %v2441 = vpop.f32.mrf.mxu0
  %v2442 = vadd.f32 %v1931, %v2441
  %2443 = vmatmul.bf16.gmra.mxu0 %v1856
  %v2444 = vpop.f32.mrf.mxu0
  %v2445 = vadd.f32 %v1931, %v2444
  %v2446 = vpop.f32.mrf.mxu0
  %v2447 = vadd.f32 %v1931, %v2446
  %2448 = vmatmul.bf16.gmra.mxu0 %v1858
  %v2449 = vpop.f32.mrf.mxu0
  %v2450 = vadd.f32 %v1931, %v2449
  %v2451 = vpop.f32.mrf.mxu0
  %v2452 = vadd.f32 %v1931, %v2451
  %2453 = vmatmul.bf16.gmra.mxu0 %v1860
  %v2454 = vpop.f32.mrf.mxu0
  %v2455 = vadd.f32 %v1931, %v2454
  %v2456 = vpop.f32.mrf.mxu0
  %v2457 = vadd.f32 %v1931, %v2456
  %2458 = vdwg.mxu0
  %2459 = vmatpush.bf16.msra.mxu0 %v2191
  %2460 = vmatpush.bf16.msra.mxu0 %v2187
  %2461 = vmatpush.bf16.msra.mxu0 %v2183
  %2462 = vmatpush.bf16.msra.mxu0 %v2179
  %2463 = vmatpush.bf16.msra.mxu0 %v2175
  %2464 = vmatpush.bf16.msra.mxu0 %v2171
  %2465 = vmatpush.bf16.msra.mxu0 %v2167
  %2466 = vmatpush.bf16.msra.mxu0 %v2163
  %2467 = vmatmul.bf16.gmra.mxu0 %v1855
  %v2468 = vpop.f32.mrf.mxu0
  %v2469 = vadd.f32 %v2440, %v2468
  %v2470 = vpop.f32.mrf.mxu0
  %v2471 = vadd.f32 %v2442, %v2470
  %2472 = vmatmul.bf16.gmra.mxu0 %v1857
  %v2473 = vpop.f32.mrf.mxu0
  %v2474 = vadd.f32 %v2445, %v2473
  %v2475 = vpop.f32.mrf.mxu0
  %v2476 = vadd.f32 %v2447, %v2475
  %2477 = vmatmul.bf16.gmra.mxu0 %v1859
  %v2478 = vpop.f32.mrf.mxu0
  %v2479 = vadd.f32 %v2450, %v2478
  %v2480 = vpop.f32.mrf.mxu0
  %v2481 = vadd.f32 %v2452, %v2480
  %2482 = vmatmul.bf16.gmra.mxu0 %v1861
  %v2483 = vpop.f32.mrf.mxu0
  %v2484 = vadd.f32 %v2455, %v2483
  %v2485 = vpop.f32.mrf.mxu0
  %v2486 = vadd.f32 %v2457, %v2485
  %2487 = vdwg.mxu0
  %2488 = vst [vmem:[#allocation4] sm:$0xff] %v2295
  %2489 = vst [vmem:[#allocation4 + $0x8] sm:$0xff] %v2353
  %2490 = vst [vmem:[#allocation4 + $0x10] sm:$0xff] %v2411
  %2491 = vst [vmem:[#allocation4 + $0x18] sm:$0xff] %v2469
  %2492 = vst [vmem:[#allocation4 + $0x20] sm:$0xff] %v2297
  %2493 = vst [vmem:[#allocation4 + $0x28] sm:$0xff] %v2355
  %2494 = vst [vmem:[#allocation4 + $0x30] sm:$0xff] %v2413
  %2495 = vst [vmem:[#allocation4 + $0x38] sm:$0xff] %v2471
  %2496 = vst [vmem:[#allocation4 + $0x40] sm:$0xff] %v2300
  %2497 = vst [vmem:[#allocation4 + $0x48] sm:$0xff] %v2358
  %2498 = vst [vmem:[#allocation4 + $0x50] sm:$0xff] %v2416
  %2499 = vst [vmem:[#allocation4 + $0x58] sm:$0xff] %v2474
  %2500 = vst [vmem:[#allocation4 + $0x60] sm:$0xff] %v2302
  %2501 = vst [vmem:[#allocation4 + $0x68] sm:$0xff] %v2360
  %2502 = vst [vmem:[#allocation4 + $0x70] sm:$0xff] %v2418
  %2503 = vst [vmem:[#allocation4 + $0x78] sm:$0xff] %v2476
  %2504 = vst [vmem:[#allocation4 + $0x80] sm:$0xff] %v2305
  %2505 = vst [vmem:[#allocation4 + $0x88] sm:$0xff] %v2363
  %2506 = vst [vmem:[#allocation4 + $0x90] sm:$0xff] %v2421
  %2507 = vst [vmem:[#allocation4 + $0x98] sm:$0xff] %v2479
  %2508 = vst [vmem:[#allocation4 + $0xa0] sm:$0xff] %v2307
  %2509 = vst [vmem:[#allocation4 + $0xa8] sm:$0xff] %v2365
  %2510 = vst [vmem:[#allocation4 + $0xb0] sm:$0xff] %v2423
  %2511 = vst [vmem:[#allocation4 + $0xb8] sm:$0xff] %v2481
  %2512 = vst [vmem:[#allocation4 + $0xc0] sm:$0xff] %v2310
  %2513 = vst [vmem:[#allocation4 + $0xc8] sm:$0xff] %v2368
  %2514 = vst [vmem:[#allocation4 + $0xd0] sm:$0xff] %v2426
  %2515 = vst [vmem:[#allocation4 + $0xd8] sm:$0xff] %v2484
  %2516 = vst [vmem:[#allocation4 + $0xe0] sm:$0xff] %v2312
  %2517 = vst [vmem:[#allocation4 + $0xe8] sm:$0xff] %v2370
  %2518 = vst [vmem:[#allocation4 + $0xf0] sm:$0xff] %v2428
  %2519 = vst [vmem:[#allocation4 + $0xf8] sm:$0xff] %v2486
  %2520 = vst [vmem:[#allocation9] sm:$0xf] 0
  %2521 = vst [vmem:[#allocation10] sm:$0xff] 0.0
  loop: start=0, step=1, limit=8
  $region105: #{improved_hybrid_forward.3} parent=0 // loop_pre_header
    _
  $region106: #{improved_hybrid_forward.3} parent=0 // loop_header
    %s2523 = sphi 0, %s2527
    %p2524 = scmp.ge.s32.totalorder %s2523, 8
  $region107: #{improved_hybrid_forward.3} parent=0 // loop_header_branch
    %2526 = sbr.rel (%p2524) target = $region111
  $region108: #{improved_hybrid_forward.3} parent=0 // loop_body
    %v2528 = vld [vmem:[#allocation9] sm:$0xf]
    %v2529 = vld [vmem:[%s9] sm:$0xff]
    %v2530 = vld [vmem:[%s9 + $0x8] sm:$0xff]
    %v2531 = vld [vmem:[%s9 + $0x10] sm:$0xff]
    %v2532 = vld [vmem:[%s9 + $0x18] sm:$0xff]
    %v2533 = vld [vmem:[%s9 + $0x20] sm:$0xff]
    %v2534 = vld [vmem:[%s9 + $0x28] sm:$0xff]
    %v2535 = vld [vmem:[%s9 + $0x30] sm:$0xff]
    %v2536 = vld [vmem:[%s9 + $0x38] sm:$0xff]
    %v2537 = vld [vmem:[%s9 + $0x40] sm:$0xff]
    %v2538 = vld [vmem:[%s9 + $0x48] sm:$0xff]
    %v2539 = vld [vmem:[%s9 + $0x50] sm:$0xff]
    %v2540 = vld [vmem:[%s9 + $0x58] sm:$0xff]
    %v2541 = vld [vmem:[%s9 + $0x60] sm:$0xff]
    %v2542 = vld [vmem:[%s9 + $0x68] sm:$0xff]
    %v2543 = vld [vmem:[%s9 + $0x70] sm:$0xff]
    %v2544 = vld [vmem:[%s9 + $0x78] sm:$0xff]
    %v2545 = vld [vmem:[%s9 + $0x80] sm:$0xff]
    %v2546 = vld [vmem:[%s9 + $0x88] sm:$0xff]
    %v2547 = vld [vmem:[%s9 + $0x90] sm:$0xff]
    %v2548 = vld [vmem:[%s9 + $0x98] sm:$0xff]
    %v2549 = vld [vmem:[%s9 + $0xa0] sm:$0xff]
    %v2550 = vld [vmem:[%s9 + $0xa8] sm:$0xff]
    %v2551 = vld [vmem:[%s9 + $0xb0] sm:$0xff]
    %v2552 = vld [vmem:[%s9 + $0xb8] sm:$0xff]
    %v2553 = vld [vmem:[%s9 + $0xc0] sm:$0xff]
    %v2554 = vld [vmem:[%s9 + $0xc8] sm:$0xff]
    %v2555 = vld [vmem:[%s9 + $0xd0] sm:$0xff]
    %v2556 = vld [vmem:[%s9 + $0xd8] sm:$0xff]
    %v2557 = vld [vmem:[%s9 + $0xe0] sm:$0xff]
    %v2558 = vld [vmem:[%s9 + $0xe8] sm:$0xff]
    %v2559 = vld [vmem:[%s9 + $0xf0] sm:$0xff]
    %v2560 = vld [vmem:[%s9 + $0xf8] sm:$0xff]
    %s2561 = smul.u32 %s2523, 4
    %s2562 = smul.addr %s2561, 8
    %s2563 = scalar_lea.vmem [#allocation4], %s2562
    %v2564 = vld [vmem:[%s2563] sm:$0xff]
    %v2565 = vld [vmem:[%s2563 + $0x8] sm:$0xff]
    %v2566 = vld [vmem:[%s2563 + $0x10] sm:$0xff]
    %v2567 = vld [vmem:[%s2563 + $0x18] sm:$0xff]
    %v2600 = vunpack.c.l.b16 %v2529
    %v2601 = vunpack.c.h.b16 %v2529
    %v2602 = vunpack.c.l.b16 %v2530
    %v2603 = vunpack.c.h.b16 %v2530
    %v2604 = vunpack.c.l.b16 %v2531
    %v2605 = vunpack.c.h.b16 %v2531
    %v2606 = vunpack.c.l.b16 %v2532
    %v2607 = vunpack.c.h.b16 %v2532
    %v2608 = vunpack.c.l.b16 %v2533
    %v2609 = vunpack.c.h.b16 %v2533
    %v2610 = vunpack.c.l.b16 %v2534
    %v2611 = vunpack.c.h.b16 %v2534
    %v2612 = vunpack.c.l.b16 %v2535
    %v2613 = vunpack.c.h.b16 %v2535
    %v2614 = vunpack.c.l.b16 %v2536
    %v2615 = vunpack.c.h.b16 %v2536
    %v2616 = vunpack.c.l.b16 %v2537
    %v2617 = vunpack.c.h.b16 %v2537
    %v2618 = vunpack.c.l.b16 %v2538
    %v2619 = vunpack.c.h.b16 %v2538
    %v2620 = vunpack.c.l.b16 %v2539
    %v2621 = vunpack.c.h.b16 %v2539
    %v2622 = vunpack.c.l.b16 %v2540
    %v2623 = vunpack.c.h.b16 %v2540
    %v2624 = vunpack.c.l.b16 %v2541
    %v2625 = vunpack.c.h.b16 %v2541
    %v2626 = vunpack.c.l.b16 %v2542
    %v2627 = vunpack.c.h.b16 %v2542
    %v2628 = vunpack.c.l.b16 %v2543
    %v2629 = vunpack.c.h.b16 %v2543
    %v2630 = vunpack.c.l.b16 %v2544
    %v2631 = vunpack.c.h.b16 %v2544
    %v2632 = vunpack.c.l.b16 %v2545
    %v2633 = vunpack.c.h.b16 %v2545
    %v2634 = vunpack.c.l.b16 %v2546
    %v2635 = vunpack.c.h.b16 %v2546
    %v2636 = vunpack.c.l.b16 %v2547
    %v2637 = vunpack.c.h.b16 %v2547
    %v2638 = vunpack.c.l.b16 %v2548
    %v2639 = vunpack.c.h.b16 %v2548
    %v2640 = vunpack.c.l.b16 %v2549
    %v2641 = vunpack.c.h.b16 %v2549
    %v2642 = vunpack.c.l.b16 %v2550
    %v2643 = vunpack.c.h.b16 %v2550
    %v2644 = vunpack.c.l.b16 %v2551
    %v2645 = vunpack.c.h.b16 %v2551
    %v2646 = vunpack.c.l.b16 %v2552
    %v2647 = vunpack.c.h.b16 %v2552
    %v2648 = vunpack.c.l.b16 %v2553
    %v2649 = vunpack.c.h.b16 %v2553
    %v2650 = vunpack.c.l.b16 %v2554
    %v2651 = vunpack.c.h.b16 %v2554
    %v2652 = vunpack.c.l.b16 %v2555
    %v2653 = vunpack.c.h.b16 %v2555
    %v2654 = vunpack.c.l.b16 %v2556
    %v2655 = vunpack.c.h.b16 %v2556
    %v2656 = vunpack.c.l.b16 %v2557
    %v2657 = vunpack.c.h.b16 %v2557
    %v2658 = vunpack.c.l.b16 %v2558
    %v2659 = vunpack.c.h.b16 %v2558
    %v2660 = vunpack.c.l.b16 %v2559
    %v2661 = vunpack.c.h.b16 %v2559
    %v2662 = vunpack.c.l.b16 %v2560
    %v2663 = vunpack.c.h.b16 %v2560
    %v2664 = vpack.c.b16 %v2604, %v2600
    %v2665 = vpack.c.b16 %v2605, %v2601
    %v2666 = vpack.c.b16 %v2606, %v2602
    %v2667 = vpack.c.b16 %v2607, %v2603
    %v2668 = vpack.c.b16 %v2612, %v2608
    %v2669 = vpack.c.b16 %v2613, %v2609
    %v2670 = vpack.c.b16 %v2614, %v2610
    %v2671 = vpack.c.b16 %v2615, %v2611
    %v2672 = vpack.c.b16 %v2620, %v2616
    %v2673 = vpack.c.b16 %v2621, %v2617
    %v2674 = vpack.c.b16 %v2622, %v2618
    %v2675 = vpack.c.b16 %v2623, %v2619
    %v2676 = vpack.c.b16 %v2628, %v2624
    %v2677 = vpack.c.b16 %v2629, %v2625
    %v2678 = vpack.c.b16 %v2630, %v2626
    %v2679 = vpack.c.b16 %v2631, %v2627
    %v2680 = vpack.c.b16 %v2636, %v2632
    %v2681 = vpack.c.b16 %v2637, %v2633
    %v2682 = vpack.c.b16 %v2638, %v2634
    %v2683 = vpack.c.b16 %v2639, %v2635
    %v2684 = vpack.c.b16 %v2644, %v2640
    %v2685 = vpack.c.b16 %v2645, %v2641
    %v2686 = vpack.c.b16 %v2646, %v2642
    %v2687 = vpack.c.b16 %v2647, %v2643
    %v2688 = vpack.c.b16 %v2652, %v2648
    %v2689 = vpack.c.b16 %v2653, %v2649
    %v2690 = vpack.c.b16 %v2654, %v2650
    %v2691 = vpack.c.b16 %v2655, %v2651
    %v2692 = vpack.c.b16 %v2660, %v2656
    %v2693 = vpack.c.b16 %v2661, %v2657
    %v2694 = vpack.c.b16 %v2662, %v2658
    %v2695 = vpack.c.b16 %v2663, %v2659
    %2728 = vmatpush.bf16.msra.mxu0 %v2692
    %2729 = vmatpush.bf16.msra.mxu0 %v2688
    %2730 = vmatpush.bf16.msra.mxu0 %v2684
    %2731 = vmatpush.bf16.msra.mxu0 %v2680
    %2732 = vmatpush.bf16.msra.mxu0 %v2676
    %2733 = vmatpush.bf16.msra.mxu0 %v2672
    %2734 = vmatpush.bf16.msra.mxu0 %v2668
    %2735 = vmatpush.bf16.msra.mxu0 %v2664
    %2736 = vmatmul.bf16.gmra.mxu0 %v2528
    %v2737 = vpop.f32.mrf.mxu0
    %v2738 = vadd.f32 %v2564, %v2737
    %v2739 = vpop.f32.mrf.mxu0
    %2740 = vdwg.mxu0
    %2741 = vmatpush.bf16.msra.mxu0 %v2693
    %2742 = vmatpush.bf16.msra.mxu0 %v2689
    %2743 = vmatpush.bf16.msra.mxu0 %v2685
    %2744 = vmatpush.bf16.msra.mxu0 %v2681
    %2745 = vmatpush.bf16.msra.mxu0 %v2677
    %2746 = vmatpush.bf16.msra.mxu0 %v2673
    %2747 = vmatpush.bf16.msra.mxu0 %v2669
    %2748 = vmatpush.bf16.msra.mxu0 %v2665
    %2749 = vmatmul.bf16.gmra.mxu0 %v2528
    %v2750 = vpop.f32.mrf.mxu0
    %v2751 = vadd.f32 %v2565, %v2750
    %v2752 = vpop.f32.mrf.mxu0
    %2753 = vdwg.mxu0
    %2754 = vmatpush.bf16.msra.mxu0 %v2694
    %2755 = vmatpush.bf16.msra.mxu0 %v2690
    %2756 = vmatpush.bf16.msra.mxu0 %v2686
    %2757 = vmatpush.bf16.msra.mxu0 %v2682
    %2758 = vmatpush.bf16.msra.mxu0 %v2678
    %2759 = vmatpush.bf16.msra.mxu0 %v2674
    %2760 = vmatpush.bf16.msra.mxu0 %v2670
    %2761 = vmatpush.bf16.msra.mxu0 %v2666
    %2762 = vmatmul.bf16.gmra.mxu0 %v2528
    %v2763 = vpop.f32.mrf.mxu0
    %v2764 = vadd.f32 %v2566, %v2763
    %v2765 = vpop.f32.mrf.mxu0
    %2766 = vdwg.mxu0
    %2767 = vmatpush.bf16.msra.mxu0 %v2695
    %2768 = vmatpush.bf16.msra.mxu0 %v2691
    %2769 = vmatpush.bf16.msra.mxu0 %v2687
    %2770 = vmatpush.bf16.msra.mxu0 %v2683
    %2771 = vmatpush.bf16.msra.mxu0 %v2679
    %2772 = vmatpush.bf16.msra.mxu0 %v2675
    %2773 = vmatpush.bf16.msra.mxu0 %v2671
    %2774 = vmatpush.bf16.msra.mxu0 %v2667
    %2775 = vmatmul.bf16.gmra.mxu0 %v2528
    %v2776 = vpop.f32.mrf.mxu0
    %v2777 = vadd.f32 %v2567, %v2776
    %v2778 = vpop.f32.mrf.mxu0
    %2779 = vdwg.mxu0
    %v2780 = vxor.u32 %v2738, 2147483648
    %v2781 = vmul.f32 %v2780, 1.442695
    %v2782 = vpow.pop %v2781
    %v2783 = vadd.f32 %v2782, 1.0
    %v2784 = vrcp.pop %v2783
    %v2785 = vmul.f32 %v2783, %v2784
    %v2786 = vsub.f32 1.0, %v2785
    %v2787 = vmul.f32 %v2784, %v2786
    %v2788 = vadd.f32 %v2784, %v2787
    %vm2789 = vweird.f32 %v2783
    %vm2790 = vweird.f32 %v2784
    %vm2791 = vmor %vm2789, %vm2790
    %v2792 = vsel %vm2791, %v2784, %v2788
    %v2793 = vand.u32 2147483647, %v2783
    %vm2794 = vcmp.eq.f32.partialorder %v2793, 8.507059e+37
    %v2795 = vand.u32 %v2783, 2147483648
    %v2796 = vor.u32 1.1754944e-38, %v2795
    %v2797 = vsel %vm2794, %v2796, %v2792
    %v2798 = vmul.f32 1.0, %v2797
    %v2799 = vxor.u32 %v2751, 2147483648
    %v2800 = vmul.f32 %v2799, 1.442695
    %v2801 = vpow.pop %v2800
    %v2802 = vadd.f32 %v2801, 1.0
    %v2803 = vrcp.pop %v2802
    %v2804 = vmul.f32 %v2802, %v2803
    %v2805 = vsub.f32 1.0, %v2804
    %v2806 = vmul.f32 %v2803, %v2805
    %v2807 = vadd.f32 %v2803, %v2806
    %vm2808 = vweird.f32 %v2802
    %vm2809 = vweird.f32 %v2803
    %vm2810 = vmor %vm2808, %vm2809
    %v2811 = vsel %vm2810, %v2803, %v2807
    %v2812 = vand.u32 2147483647, %v2802
    %vm2813 = vcmp.eq.f32.partialorder %v2812, 8.507059e+37
    %v2814 = vand.u32 %v2802, 2147483648
    %v2815 = vor.u32 1.1754944e-38, %v2814
    %v2816 = vsel %vm2813, %v2815, %v2811
    %v2817 = vmul.f32 1.0, %v2816
    %v2818 = vtanh.pop %v2764
    %v2819 = vxor.u32 %v2777, 2147483648
    %v2820 = vmul.f32 %v2819, 1.442695
    %v2821 = vpow.pop %v2820
    %v2822 = vadd.f32 %v2821, 1.0
    %v2823 = vrcp.pop %v2822
    %v2824 = vmul.f32 %v2822, %v2823
    %v2825 = vsub.f32 1.0, %v2824
    %v2826 = vmul.f32 %v2823, %v2825
    %v2827 = vadd.f32 %v2823, %v2826
    %vm2828 = vweird.f32 %v2822
    %vm2829 = vweird.f32 %v2823
    %vm2830 = vmor %vm2828, %vm2829
    %v2831 = vsel %vm2830, %v2823, %v2827
    %v2832 = vand.u32 2147483647, %v2822
    %vm2833 = vcmp.eq.f32.partialorder %v2832, 8.507059e+37
    %v2834 = vand.u32 %v2822, 2147483648
    %v2835 = vor.u32 1.1754944e-38, %v2834
    %v2836 = vsel %vm2833, %v2835, %v2831
    %v2837 = vmul.f32 1.0, %v2836
    %v2838 = vld [vmem:[#allocation10] sm:$0xff]
    %v2839 = vmul.f32 %v2817, %v2838
    %v2840 = vmul.f32 %v2798, %v2818
    %v2841 = vadd.f32 %v2839, %v2840
    %v2842 = vtanh.pop %v2841
    %v2843 = vmul.f32 %v2837, %v2842
    %2844 = vst [vmem:[#allocation10] sm:$0xff] %v2841
    %v2845 = vpack.c.bf16 %v2843, %v2843
    %2846 = vst [vmem:[#allocation9] sm:$0xf] %v2845
  $region109: #{improved_hybrid_forward.3} parent=0 // loop_footer
    %s2527 = sadd.s32 1, %s2523
  $region110: #{improved_hybrid_forward.3} parent=0 // loop_footer_branch
    %2522 = sbr.rel target = $region106
  $region111: #{improved_hybrid_forward.3} parent=0 // loop_exit
    _
  %s2847 = scalar_lea.vmem [#allocation5], 112
  %v2848 = vld [vmem:[%s2847] sm:$0xff]
  %v2849 = vld [vmem:[%s2847 + $0x8] sm:$0xff]
  %v2850 = vpack.c.bf16 %v2848, %v2848
  %v2851 = vpack.c.bf16 %v2849, %v2849
  %v2852 = vld [vmem:[%s10] sm:$0xff]
  %v2853 = vld [vmem:[%s10 + $0x8] sm:$0xff]
  %v2854 = vld [vmem:[%s10 + $0x10] sm:$0xff]
  %v2855 = vld [vmem:[%s10 + $0x18] sm:$0xff]
  %v2856 = vld [vmem:[%s10 + $0x20] sm:$0xff]
  %v2857 = vld [vmem:[%s10 + $0x28] sm:$0xff]
  %v2858 = vld [vmem:[%s10 + $0x30] sm:$0xff]
  %v2859 = vld [vmem:[%s10 + $0x38] sm:$0xff]
  %v2860 = vld [vmem:[%s10 + $0x40] sm:$0xff]
  %v2861 = vld [vmem:[%s10 + $0x48] sm:$0xff]
  %v2862 = vld [vmem:[%s10 + $0x50] sm:$0xff]
  %v2863 = vld [vmem:[%s10 + $0x58] sm:$0xff]
  %v2864 = vld [vmem:[%s10 + $0x60] sm:$0xff]
  %v2865 = vld [vmem:[%s10 + $0x68] sm:$0xff]
  %v2866 = vld [vmem:[%s10 + $0x70] sm:$0xff]
  %v2867 = vld [vmem:[%s10 + $0x78] sm:$0xff]
  %v2868 = vld [vmem:[%s10 + $0x80] sm:$0xff]
  %v2869 = vld [vmem:[%s10 + $0x88] sm:$0xff]
  %v2870 = vld [vmem:[%s10 + $0x90] sm:$0xff]
  %v2871 = vld [vmem:[%s10 + $0x98] sm:$0xff]
  %v2872 = vld [vmem:[%s10 + $0xa0] sm:$0xff]
  %v2873 = vld [vmem:[%s10 + $0xa8] sm:$0xff]
  %v2874 = vld [vmem:[%s10 + $0xb0] sm:$0xff]
  %v2875 = vld [vmem:[%s10 + $0xb8] sm:$0xff]
  %v2876 = vld [vmem:[%s10 + $0xc0] sm:$0xff]
  %v2877 = vld [vmem:[%s10 + $0xc8] sm:$0xff]
  %v2878 = vld [vmem:[%s10 + $0xd0] sm:$0xff]
  %v2879 = vld [vmem:[%s10 + $0xd8] sm:$0xff]
  %v2880 = vld [vmem:[%s10 + $0xe0] sm:$0xff]
  %v2881 = vld [vmem:[%s10 + $0xe8] sm:$0xff]
  %v2882 = vld [vmem:[%s10 + $0xf0] sm:$0xff]
  %v2883 = vld [vmem:[%s10 + $0xf8] sm:$0xff]
  %v2884 = vld [vmem:[%s10 + $0x100] sm:$0xff]
  %v2885 = vld [vmem:[%s10 + $0x108] sm:$0xff]
  %v2886 = vld [vmem:[%s10 + $0x110] sm:$0xff]
  %v2887 = vld [vmem:[%s10 + $0x118] sm:$0xff]
  %v2888 = vld [vmem:[%s10 + $0x120] sm:$0xff]
  %v2889 = vld [vmem:[%s10 + $0x128] sm:$0xff]
  %v2890 = vld [vmem:[%s10 + $0x130] sm:$0xff]
  %v2891 = vld [vmem:[%s10 + $0x138] sm:$0xff]
  %v2892 = vld [vmem:[%s10 + $0x140] sm:$0xff]
  %v2893 = vld [vmem:[%s10 + $0x148] sm:$0xff]
  %v2894 = vld [vmem:[%s10 + $0x150] sm:$0xff]
  %v2895 = vld [vmem:[%s10 + $0x158] sm:$0xff]
  %v2896 = vld [vmem:[%s10 + $0x160] sm:$0xff]
  %v2897 = vld [vmem:[%s10 + $0x168] sm:$0xff]
  %v2898 = vld [vmem:[%s10 + $0x170] sm:$0xff]
  %v2899 = vld [vmem:[%s10 + $0x178] sm:$0xff]
  %v2900 = vld [vmem:[%s10 + $0x180] sm:$0xff]
  %v2901 = vld [vmem:[%s10 + $0x188] sm:$0xff]
  %v2902 = vld [vmem:[%s10 + $0x190] sm:$0xff]
  %v2903 = vld [vmem:[%s10 + $0x198] sm:$0xff]
  %v2904 = vld [vmem:[%s10 + $0x1a0] sm:$0xff]
  %v2905 = vld [vmem:[%s10 + $0x1a8] sm:$0xff]
  %v2906 = vld [vmem:[%s10 + $0x1b0] sm:$0xff]
  %v2907 = vld [vmem:[%s10 + $0x1b8] sm:$0xff]
  %v2908 = vld [vmem:[%s10 + $0x1c0] sm:$0xff]
  %v2909 = vld [vmem:[%s10 + $0x1c8] sm:$0xff]
  %v2910 = vld [vmem:[%s10 + $0x1d0] sm:$0xff]
  %v2911 = vld [vmem:[%s10 + $0x1d8] sm:$0xff]
  %v2912 = vld [vmem:[%s10 + $0x1e0] sm:$0xff]
  %v2913 = vld [vmem:[%s10 + $0x1e8] sm:$0xff]
  %v2914 = vld [vmem:[%s10 + $0x1f0] sm:$0xff]
  %v2915 = vld [vmem:[%s10 + $0x1f8] sm:$0xff]
  %v2916 = vld [vmem:[%s11] sm:$0xf]
  %v2918 = vperm.slane %v2916, 0
  %v2919 = vperm.slane %v2916, 2
  %v2920 = vperm.slane %v2916, 3
  %v2988 = vunpack.c.l.b16 %v2852
  %v2989 = vunpack.c.l.b16 %v2853
  %v2990 = vunpack.c.h.b16 %v2853
  %v2991 = vunpack.c.l.b16 %v2854
  %v2992 = vunpack.c.l.b16 %v2855
  %v2993 = vunpack.c.h.b16 %v2855
  %v2994 = vunpack.c.l.b16 %v2856
  %v2995 = vunpack.c.l.b16 %v2857
  %v2996 = vunpack.c.h.b16 %v2857
  %v2997 = vunpack.c.l.b16 %v2858
  %v2998 = vunpack.c.l.b16 %v2859
  %v2999 = vunpack.c.h.b16 %v2859
  %v3000 = vunpack.c.l.b16 %v2860
  %v3001 = vunpack.c.l.b16 %v2861
  %v3002 = vunpack.c.h.b16 %v2861
  %v3003 = vunpack.c.l.b16 %v2862
  %v3004 = vunpack.c.l.b16 %v2863
  %v3005 = vunpack.c.h.b16 %v2863
  %v3006 = vunpack.c.l.b16 %v2864
  %v3007 = vunpack.c.l.b16 %v2865
  %v3008 = vunpack.c.h.b16 %v2865
  %v3009 = vunpack.c.l.b16 %v2866
  %v3010 = vunpack.c.l.b16 %v2867
  %v3011 = vunpack.c.h.b16 %v2867
  %v3012 = vunpack.c.l.b16 %v2868
  %v3013 = vunpack.c.l.b16 %v2869
  %v3014 = vunpack.c.h.b16 %v2869
  %v3015 = vunpack.c.l.b16 %v2870
  %v3016 = vunpack.c.l.b16 %v2871
  %v3017 = vunpack.c.h.b16 %v2871
  %v3018 = vunpack.c.l.b16 %v2872
  %v3019 = vunpack.c.l.b16 %v2873
  %v3020 = vunpack.c.h.b16 %v2873
  %v3021 = vunpack.c.l.b16 %v2874
  %v3022 = vunpack.c.l.b16 %v2875
  %v3023 = vunpack.c.h.b16 %v2875
  %v3024 = vunpack.c.l.b16 %v2876
  %v3025 = vunpack.c.l.b16 %v2877
  %v3026 = vunpack.c.h.b16 %v2877
  %v3027 = vunpack.c.l.b16 %v2878
  %v3028 = vunpack.c.l.b16 %v2879
  %v3029 = vunpack.c.h.b16 %v2879
  %v3030 = vunpack.c.l.b16 %v2880
  %v3031 = vunpack.c.l.b16 %v2881
  %v3032 = vunpack.c.h.b16 %v2881
  %v3033 = vunpack.c.l.b16 %v2882
  %v3034 = vunpack.c.l.b16 %v2883
  %v3035 = vunpack.c.h.b16 %v2883
  %v3036 = vunpack.c.l.b16 %v2884
  %v3037 = vunpack.c.l.b16 %v2885
  %v3038 = vunpack.c.h.b16 %v2885
  %v3039 = vunpack.c.l.b16 %v2886
  %v3040 = vunpack.c.l.b16 %v2887
  %v3041 = vunpack.c.h.b16 %v2887
  %v3042 = vunpack.c.l.b16 %v2888
  %v3043 = vunpack.c.l.b16 %v2889
  %v3044 = vunpack.c.h.b16 %v2889
  %v3045 = vunpack.c.l.b16 %v2890
  %v3046 = vunpack.c.l.b16 %v2891
  %v3047 = vunpack.c.h.b16 %v2891
  %v3048 = vunpack.c.l.b16 %v2892
  %v3049 = vunpack.c.l.b16 %v2893
  %v3050 = vunpack.c.h.b16 %v2893
  %v3051 = vunpack.c.l.b16 %v2894
  %v3052 = vunpack.c.l.b16 %v2895
  %v3053 = vunpack.c.h.b16 %v2895
  %v3054 = vunpack.c.l.b16 %v2896
  %v3055 = vunpack.c.l.b16 %v2897
  %v3056 = vunpack.c.h.b16 %v2897
  %v3057 = vunpack.c.l.b16 %v2898
  %v3058 = vunpack.c.l.b16 %v2899
  %v3059 = vunpack.c.h.b16 %v2899
  %v3060 = vunpack.c.l.b16 %v2900
  %v3061 = vunpack.c.l.b16 %v2901
  %v3062 = vunpack.c.h.b16 %v2901
  %v3063 = vunpack.c.l.b16 %v2902
  %v3064 = vunpack.c.l.b16 %v2903
  %v3065 = vunpack.c.h.b16 %v2903
  %v3066 = vunpack.c.l.b16 %v2904
  %v3067 = vunpack.c.l.b16 %v2905
  %v3068 = vunpack.c.h.b16 %v2905
  %v3069 = vunpack.c.l.b16 %v2906
  %v3070 = vunpack.c.l.b16 %v2907
  %v3071 = vunpack.c.h.b16 %v2907
  %v3072 = vunpack.c.l.b16 %v2908
  %v3073 = vunpack.c.l.b16 %v2909
  %v3074 = vunpack.c.h.b16 %v2909
  %v3075 = vunpack.c.l.b16 %v2910
  %v3076 = vunpack.c.l.b16 %v2911
  %v3077 = vunpack.c.h.b16 %v2911
  %v3078 = vunpack.c.l.b16 %v2912
  %v3079 = vunpack.c.l.b16 %v2913
  %v3080 = vunpack.c.h.b16 %v2913
  %v3081 = vunpack.c.l.b16 %v2914
  %v3082 = vunpack.c.l.b16 %v2915
  %v3083 = vunpack.c.h.b16 %v2915
  %v3084 = vpack.c.b16 %v2991, %v2988
  %v3085 = vpack.c.b16 %v2992, %v2989
  %v3086 = vpack.c.b16 %v2993, %v2990
  %v3087 = vpack.c.b16 %v2997, %v2994
  %v3088 = vpack.c.b16 %v2998, %v2995
  %v3089 = vpack.c.b16 %v2999, %v2996
  %v3090 = vpack.c.b16 %v3003, %v3000
  %v3091 = vpack.c.b16 %v3004, %v3001
  %v3092 = vpack.c.b16 %v3005, %v3002
  %v3093 = vpack.c.b16 %v3009, %v3006
  %v3094 = vpack.c.b16 %v3010, %v3007
  %v3095 = vpack.c.b16 %v3011, %v3008
  %v3096 = vpack.c.b16 %v3015, %v3012
  %v3097 = vpack.c.b16 %v3016, %v3013
  %v3098 = vpack.c.b16 %v3017, %v3014
  %v3099 = vpack.c.b16 %v3021, %v3018
  %v3100 = vpack.c.b16 %v3022, %v3019
  %v3101 = vpack.c.b16 %v3023, %v3020
  %v3102 = vpack.c.b16 %v3027, %v3024
  %v3103 = vpack.c.b16 %v3028, %v3025
  %v3104 = vpack.c.b16 %v3029, %v3026
  %v3105 = vpack.c.b16 %v3033, %v3030
  %v3106 = vpack.c.b16 %v3034, %v3031
  %v3107 = vpack.c.b16 %v3035, %v3032
  %v3108 = vpack.c.b16 %v3039, %v3036
  %v3109 = vpack.c.b16 %v3040, %v3037
  %v3110 = vpack.c.b16 %v3041, %v3038
  %v3111 = vpack.c.b16 %v3045, %v3042
  %v3112 = vpack.c.b16 %v3046, %v3043
  %v3113 = vpack.c.b16 %v3047, %v3044
  %v3114 = vpack.c.b16 %v3051, %v3048
  %v3115 = vpack.c.b16 %v3052, %v3049
  %v3116 = vpack.c.b16 %v3053, %v3050
  %v3117 = vpack.c.b16 %v3057, %v3054
  %v3118 = vpack.c.b16 %v3058, %v3055
  %v3119 = vpack.c.b16 %v3059, %v3056
  %v3120 = vpack.c.b16 %v3063, %v3060
  %v3121 = vpack.c.b16 %v3064, %v3061
  %v3122 = vpack.c.b16 %v3065, %v3062
  %v3123 = vpack.c.b16 %v3069, %v3066
  %v3124 = vpack.c.b16 %v3070, %v3067
  %v3125 = vpack.c.b16 %v3071, %v3068
  %v3126 = vpack.c.b16 %v3075, %v3072
  %v3127 = vpack.c.b16 %v3076, %v3073
  %v3128 = vpack.c.b16 %v3077, %v3074
  %v3129 = vpack.c.b16 %v3081, %v3078
  %v3130 = vpack.c.b16 %v3082, %v3079
  %v3131 = vpack.c.b16 %v3083, %v3080
  %3180 = vmatpush.bf16.msra.mxu0 %v3105
  %3181 = vmatpush.bf16.msra.mxu0 %v3102
  %3182 = vmatpush.bf16.msra.mxu0 %v3099
  %3183 = vmatpush.bf16.msra.mxu0 %v3096
  %3184 = vmatpush.bf16.msra.mxu0 %v3093
  %3185 = vmatpush.bf16.msra.mxu0 %v3090
  %3186 = vmatpush.bf16.msra.mxu0 %v3087
  %3187 = vmatpush.bf16.msra.mxu0 %v3084
  %3188 = vmatmul.bf16.gmra.mxu0 %v2850
  %v3189 = vpop.f32.mrf.mxu0
  %v3190 = vadd.f32 %v2918, %v3189
  %v3191 = vpop.f32.mrf.mxu0
  %3192 = vdwg.mxu0
  %3193 = vmatpush.bf16.msra.mxu0 %v3129
  %3194 = vmatpush.bf16.msra.mxu0 %v3126
  %3195 = vmatpush.bf16.msra.mxu0 %v3123
  %3196 = vmatpush.bf16.msra.mxu0 %v3120
  %3197 = vmatpush.bf16.msra.mxu0 %v3117
  %3198 = vmatpush.bf16.msra.mxu0 %v3114
  %3199 = vmatpush.bf16.msra.mxu0 %v3111
  %3200 = vmatpush.bf16.msra.mxu0 %v3108
  %3201 = vmatmul.bf16.gmra.mxu0 %v2851
  %v3202 = vpop.f32.mrf.mxu0
  %v3203 = vadd.f32 %v3190, %v3202
  %v3204 = vpop.f32.mrf.mxu0
  %3205 = vdwg.mxu0
  %3206 = vmatpush.bf16.msra.mxu0 %v3106
  %3207 = vmatpush.bf16.msra.mxu0 %v3103
  %3208 = vmatpush.bf16.msra.mxu0 %v3100
  %3209 = vmatpush.bf16.msra.mxu0 %v3097
  %3210 = vmatpush.bf16.msra.mxu0 %v3094
  %3211 = vmatpush.bf16.msra.mxu0 %v3091
  %3212 = vmatpush.bf16.msra.mxu0 %v3088
  %3213 = vmatpush.bf16.msra.mxu0 %v3085
  %3214 = vmatmul.bf16.gmra.mxu0 %v2850
  %v3215 = vpop.f32.mrf.mxu0
  %v3216 = vadd.f32 %v2919, %v3215
  %v3217 = vpop.f32.mrf.mxu0
  %3218 = vdwg.mxu0
  %3219 = vmatpush.bf16.msra.mxu0 %v3130
  %3220 = vmatpush.bf16.msra.mxu0 %v3127
  %3221 = vmatpush.bf16.msra.mxu0 %v3124
  %3222 = vmatpush.bf16.msra.mxu0 %v3121
  %3223 = vmatpush.bf16.msra.mxu0 %v3118
  %3224 = vmatpush.bf16.msra.mxu0 %v3115
  %3225 = vmatpush.bf16.msra.mxu0 %v3112
  %3226 = vmatpush.bf16.msra.mxu0 %v3109
  %3227 = vmatmul.bf16.gmra.mxu0 %v2851
  %v3228 = vpop.f32.mrf.mxu0
  %v3229 = vadd.f32 %v3216, %v3228
  %v3230 = vpop.f32.mrf.mxu0
  %3231 = vdwg.mxu0
  %3232 = vmatpush.bf16.msra.mxu0 %v3107
  %3233 = vmatpush.bf16.msra.mxu0 %v3104
  %3234 = vmatpush.bf16.msra.mxu0 %v3101
  %3235 = vmatpush.bf16.msra.mxu0 %v3098
  %3236 = vmatpush.bf16.msra.mxu0 %v3095
  %3237 = vmatpush.bf16.msra.mxu0 %v3092
  %3238 = vmatpush.bf16.msra.mxu0 %v3089
  %3239 = vmatpush.bf16.msra.mxu0 %v3086
  %3240 = vmatmul.bf16.gmra.mxu0 %v2850
  %v3241 = vpop.f32.mrf.mxu0
  %v3242 = vadd.f32 %v2920, %v3241
  %v3243 = vpop.f32.mrf.mxu0
  %3244 = vdwg.mxu0
  %3245 = vmatpush.bf16.msra.mxu0 %v3131
  %3246 = vmatpush.bf16.msra.mxu0 %v3128
  %3247 = vmatpush.bf16.msra.mxu0 %v3125
  %3248 = vmatpush.bf16.msra.mxu0 %v3122
  %3249 = vmatpush.bf16.msra.mxu0 %v3119
  %3250 = vmatpush.bf16.msra.mxu0 %v3116
  %3251 = vmatpush.bf16.msra.mxu0 %v3113
  %3252 = vmatpush.bf16.msra.mxu0 %v3110
  %3253 = vmatmul.bf16.gmra.mxu0 %v2851
  %v3254 = vpop.f32.mrf.mxu0
  %v3255 = vadd.f32 %v3242, %v3254
  %v3256 = vpop.f32.mrf.mxu0
  %3257 = vdwg.mxu0
  %v3258 = vxor.u32 %v3203, 2147483648
  %v3259 = vmul.f32 %v3258, 1.442695
  %v3260 = vpow.pop %v3259
  %v3261 = vadd.f32 %v3260, 1.0
  %v3262 = vrcp.pop %v3261
  %v3263 = vmul.f32 %v3261, %v3262
  %v3264 = vsub.f32 1.0, %v3263
  %v3265 = vmul.f32 %v3262, %v3264
  %v3266 = vadd.f32 %v3262, %v3265
  %vm3267 = vweird.f32 %v3261
  %vm3268 = vweird.f32 %v3262
  %vm3269 = vmor %vm3267, %vm3268
  %v3270 = vsel %vm3269, %v3262, %v3266
  %v3271 = vand.u32 2147483647, %v3261
  %vm3272 = vcmp.eq.f32.partialorder %v3271, 8.507059e+37
  %v3273 = vand.u32 %v3261, 2147483648
  %v3274 = vor.u32 1.1754944e-38, %v3273
  %v3275 = vsel %vm3272, %v3274, %v3270
  %v3276 = vmul.f32 1.0, %v3275
  %v3277 = vtanh.pop %v3229
  %v3278 = vxor.u32 %v3255, 2147483648
  %v3279 = vmul.f32 %v3278, 1.442695
  %v3280 = vpow.pop %v3279
  %v3281 = vadd.f32 %v3280, 1.0
  %v3282 = vrcp.pop %v3281
  %v3283 = vmul.f32 %v3281, %v3282
  %v3284 = vsub.f32 1.0, %v3283
  %v3285 = vmul.f32 %v3282, %v3284
  %v3286 = vadd.f32 %v3282, %v3285
  %vm3287 = vweird.f32 %v3281
  %vm3288 = vweird.f32 %v3282
  %vm3289 = vmor %vm3287, %vm3288
  %v3290 = vsel %vm3289, %v3282, %v3286
  %v3291 = vand.u32 2147483647, %v3281
  %vm3292 = vcmp.eq.f32.partialorder %v3291, 8.507059e+37
  %v3293 = vand.u32 %v3281, 2147483648
  %v3294 = vor.u32 1.1754944e-38, %v3293
  %v3295 = vsel %vm3292, %v3294, %v3290
  %v3296 = vmul.f32 1.0, %v3295
  %v3297 = vmul.f32 %v3276, %v3277
  %v3298 = vtanh.pop %v3297
  %v3299 = vmul.f32 %v3296, %v3298
  %v3300 = vld [vmem:[#allocation9] sm:$0xf]
  %v3301 = vpack.c.bf16 %v3299, %v3299
  %v3302 = vld [vmem:[%s2] sm:$0xff]
  %v3303 = vpack.c.bf16 %v3302, %v3302
  %v3304 = vld [vmem:[%s12] sm:$0xf]
  %v3305 = vld [vmem:[%s12 + $0x4] sm:$0xf]
  %v3306 = vld [vmem:[%s12 + $0x8] sm:$0xf]
  %v3307 = vld [vmem:[%s12 + $0xc] sm:$0xf]
  %v3308 = vld [vmem:[%s12 + $0x10] sm:$0xf]
  %v3309 = vld [vmem:[%s12 + $0x14] sm:$0xf]
  %v3310 = vld [vmem:[%s12 + $0x18] sm:$0xf]
  %v3311 = vld [vmem:[%s12 + $0x1c] sm:$0xf]
  %v3312 = vld [vmem:[%s12 + $0x20] sm:$0xf]
  %v3313 = vld [vmem:[%s12 + $0x24] sm:$0xf]
  %v3314 = vld [vmem:[%s12 + $0x28] sm:$0xf]
  %v3315 = vld [vmem:[%s12 + $0x2c] sm:$0xf]
  %v3316 = vld [vmem:[%s12 + $0x30] sm:$0xf]
  %v3317 = vld [vmem:[%s12 + $0x34] sm:$0xf]
  %v3318 = vld [vmem:[%s12 + $0x38] sm:$0xf]
  %v3319 = vld [vmem:[%s12 + $0x3c] sm:$0xf]
  %v3320 = vld [vmem:[%s13] sm:$0x1]
  %v3322 = vperm.slane %v3320, 0
  %v3340 = vunpack.c.l.b16 %v3304
  %v3341 = vunpack.c.l.b16 %v3305
  %v3342 = vunpack.c.l.b16 %v3306
  %v3343 = vunpack.c.l.b16 %v3307
  %v3344 = vunpack.c.l.b16 %v3308
  %v3345 = vunpack.c.l.b16 %v3309
  %v3346 = vunpack.c.l.b16 %v3310
  %v3347 = vunpack.c.l.b16 %v3311
  %v3348 = vunpack.c.l.b16 %v3312
  %v3349 = vunpack.c.l.b16 %v3313
  %v3350 = vunpack.c.l.b16 %v3314
  %v3351 = vunpack.c.l.b16 %v3315
  %v3352 = vunpack.c.l.b16 %v3316
  %v3353 = vunpack.c.l.b16 %v3317
  %v3354 = vunpack.c.l.b16 %v3318
  %v3355 = vunpack.c.l.b16 %v3319
  %v3356 = vpack.c.b16 %v3341, %v3340
  %v3357 = vpack.c.b16 %v3343, %v3342
  %v3358 = vpack.c.b16 %v3345, %v3344
  %v3359 = vpack.c.b16 %v3347, %v3346
  %v3360 = vpack.c.b16 %v3349, %v3348
  %v3361 = vpack.c.b16 %v3351, %v3350
  %v3362 = vpack.c.b16 %v3353, %v3352
  %v3363 = vpack.c.b16 %v3355, %v3354
  %3372 = vmatpush.bf16.msra.mxu0 %v3363
  %3373 = vmatpush.bf16.msra.mxu0 %v3362
  %3374 = vmatpush.bf16.msra.mxu0 %v3361
  %3375 = vmatpush.bf16.msra.mxu0 %v3360
  %3376 = vmatpush.bf16.msra.mxu0 %v3359
  %3377 = vmatpush.bf16.msra.mxu0 %v3358
  %3378 = vmatpush.bf16.msra.mxu0 %v3357
  %3379 = vmatpush.bf16.msra.mxu0 %v3356
  %3380 = vmatmul.bf16.gmra.mxu0 %v3303
  %v3381 = vpop.f32.mrf.mxu0
  %v3382 = vadd.f32 %v3322, %v3381
  %v3383 = vpop.f32.mrf.mxu0
  %3384 = vdwg.mxu0
  %v3385 = vmax.f32 %v3382, 0.0
  %v3386 = vpack.c.bf16 %v3385, %v3385
  %v3387 = vld [vmem:[%s14] sm:$0xf]
  %v3388 = vld [vmem:[%s14 + $0x4] sm:$0xf]
  %v3389 = vld [vmem:[%s14 + $0x8] sm:$0xf]
  %v3390 = vld [vmem:[%s14 + $0xc] sm:$0xf]
  %v3391 = vld [vmem:[%s14 + $0x10] sm:$0xf]
  %v3392 = vld [vmem:[%s14 + $0x14] sm:$0xf]
  %v3393 = vld [vmem:[%s14 + $0x18] sm:$0xf]
  %v3394 = vld [vmem:[%s14 + $0x1c] sm:$0xf]
  %v3395 = vld [vmem:[%s14 + $0x20] sm:$0xf]
  %v3396 = vld [vmem:[%s14 + $0x24] sm:$0xf]
  %v3397 = vld [vmem:[%s14 + $0x28] sm:$0xf]
  %v3398 = vld [vmem:[%s14 + $0x2c] sm:$0xf]
  %v3399 = vld [vmem:[%s14 + $0x30] sm:$0xf]
  %v3400 = vld [vmem:[%s14 + $0x34] sm:$0xf]
  %v3401 = vld [vmem:[%s14 + $0x38] sm:$0xf]
  %v3402 = vld [vmem:[%s14 + $0x3c] sm:$0xf]
  %v3403 = vld [vmem:[%s15] sm:$0x1]
  %v3405 = vperm.slane %v3403, 0
  %v3423 = vunpack.c.l.b16 %v3387
  %v3424 = vunpack.c.l.b16 %v3388
  %v3425 = vunpack.c.l.b16 %v3389
  %v3426 = vunpack.c.l.b16 %v3390
  %v3427 = vunpack.c.l.b16 %v3391
  %v3428 = vunpack.c.l.b16 %v3392
  %v3429 = vunpack.c.l.b16 %v3393
  %v3430 = vunpack.c.l.b16 %v3394
  %v3431 = vunpack.c.l.b16 %v3395
  %v3432 = vunpack.c.l.b16 %v3396
  %v3433 = vunpack.c.l.b16 %v3397
  %v3434 = vunpack.c.l.b16 %v3398
  %v3435 = vunpack.c.l.b16 %v3399
  %v3436 = vunpack.c.l.b16 %v3400
  %v3437 = vunpack.c.l.b16 %v3401
  %v3438 = vunpack.c.l.b16 %v3402
  %v3439 = vpack.c.b16 %v3424, %v3423
  %v3440 = vpack.c.b16 %v3426, %v3425
  %v3441 = vpack.c.b16 %v3428, %v3427
  %v3442 = vpack.c.b16 %v3430, %v3429
  %v3443 = vpack.c.b16 %v3432, %v3431
  %v3444 = vpack.c.b16 %v3434, %v3433
  %v3445 = vpack.c.b16 %v3436, %v3435
  %v3446 = vpack.c.b16 %v3438, %v3437
  %3455 = vmatpush.bf16.msra.mxu0 %v3446
  %3456 = vmatpush.bf16.msra.mxu0 %v3445
  %3457 = vmatpush.bf16.msra.mxu0 %v3444
  %3458 = vmatpush.bf16.msra.mxu0 %v3443
  %3459 = vmatpush.bf16.msra.mxu0 %v3442
  %3460 = vmatpush.bf16.msra.mxu0 %v3441
  %3461 = vmatpush.bf16.msra.mxu0 %v3440
  %3462 = vmatpush.bf16.msra.mxu0 %v3439
  %3463 = vmatmul.bf16.gmra.mxu0 %v3386
  %v3464 = vpop.f32.mrf.mxu0
  %v3465 = vadd.f32 %v3405, %v3464
  %v3466 = vpop.f32.mrf.mxu0
  %3467 = vdwg.mxu0
  %v3468 = vmax.f32 %v3465, 0.0
  %v3469 = vld [vmem:[%s1] sm:$0xff]
  %v3470 = vld [vmem:[%s1 + $0x8] sm:$0xff]
  %v3471 = vld [vmem:[%s1 + $0x10] sm:$0xff]
  %v3472 = vld [vmem:[%s1 + $0x18] sm:$0xff]
  %v3473 = vld [vmem:[%s1 + $0x20] sm:$0xff]
  %v3474 = vld [vmem:[%s1 + $0x28] sm:$0xff]
  %v3475 = vld [vmem:[%s1 + $0x30] sm:$0xff]
  %v3476 = vld [vmem:[%s1 + $0x38] sm:$0xff]
  %v3477 = vld [vmem:[%s16] sm:$0xff]
  %v3478 = vld [vmem:[%s16 + $0x8] sm:$0xff]
  %v3479 = vld [vmem:[%s16 + $0x10] sm:$0xff]
  %v3480 = vld [vmem:[%s16 + $0x18] sm:$0xff]
  %v3481 = vld [vmem:[%s16 + $0x20] sm:$0xff]
  %v3482 = vld [vmem:[%s16 + $0x28] sm:$0xff]
  %v3483 = vld [vmem:[%s16 + $0x30] sm:$0xff]
  %v3484 = vld [vmem:[%s16 + $0x38] sm:$0xff]
  %v3485 = vld [vmem:[%s16 + $0x40] sm:$0xff]
  %v3486 = vld [vmem:[%s16 + $0x48] sm:$0xff]
  %v3487 = vld [vmem:[%s16 + $0x50] sm:$0xff]
  %v3488 = vld [vmem:[%s16 + $0x58] sm:$0xff]
  %v3489 = vld [vmem:[%s16 + $0x60] sm:$0xff]
  %v3490 = vld [vmem:[%s16 + $0x68] sm:$0xff]
  %v3491 = vld [vmem:[%s16 + $0x70] sm:$0xff]
  %v3492 = vld [vmem:[%s16 + $0x78] sm:$0xff]
  %v3493 = vld [vmem:[%s16 + $0x80] sm:$0xff]
  %v3494 = vld [vmem:[%s16 + $0x88] sm:$0xff]
  %v3495 = vld [vmem:[%s16 + $0x90] sm:$0xff]
  %v3496 = vld [vmem:[%s16 + $0x98] sm:$0xff]
  %v3497 = vld [vmem:[%s16 + $0xa0] sm:$0xff]
  %v3498 = vld [vmem:[%s16 + $0xa8] sm:$0xff]
  %v3499 = vld [vmem:[%s16 + $0xb0] sm:$0xff]
  %v3500 = vld [vmem:[%s16 + $0xb8] sm:$0xff]
  %v3501 = vld [vmem:[%s16 + $0xc0] sm:$0xff]
  %v3502 = vld [vmem:[%s16 + $0xc8] sm:$0xff]
  %v3503 = vld [vmem:[%s16 + $0xd0] sm:$0xff]
  %v3504 = vld [vmem:[%s16 + $0xd8] sm:$0xff]
  %v3505 = vld [vmem:[%s16 + $0xe0] sm:$0xff]
  %v3506 = vld [vmem:[%s16 + $0xe8] sm:$0xff]
  %v3507 = vld [vmem:[%s16 + $0xf0] sm:$0xff]
  %v3508 = vld [vmem:[%s16 + $0xf8] sm:$0xff]
  %v3509 = vld [vmem:[%s16 + $0x100] sm:$0xff]
  %v3510 = vld [vmem:[%s16 + $0x108] sm:$0xff]
  %v3511 = vld [vmem:[%s16 + $0x110] sm:$0xff]
  %v3512 = vld [vmem:[%s16 + $0x118] sm:$0xff]
  %v3513 = vld [vmem:[%s16 + $0x120] sm:$0xff]
  %v3514 = vld [vmem:[%s16 + $0x128] sm:$0xff]
  %v3515 = vld [vmem:[%s16 + $0x130] sm:$0xff]
  %v3516 = vld [vmem:[%s16 + $0x138] sm:$0xff]
  %v3517 = vld [vmem:[%s16 + $0x140] sm:$0xff]
  %v3518 = vld [vmem:[%s16 + $0x148] sm:$0xff]
  %v3519 = vld [vmem:[%s16 + $0x150] sm:$0xff]
  %v3520 = vld [vmem:[%s16 + $0x158] sm:$0xff]
  %v3521 = vld [vmem:[%s16 + $0x160] sm:$0xff]
  %v3522 = vld [vmem:[%s16 + $0x168] sm:$0xff]
  %v3523 = vld [vmem:[%s16 + $0x170] sm:$0xff]
  %v3524 = vld [vmem:[%s16 + $0x178] sm:$0xff]
  %v3525 = vld [vmem:[%s16 + $0x180] sm:$0xff]
  %v3526 = vld [vmem:[%s16 + $0x188] sm:$0xff]
  %v3527 = vld [vmem:[%s16 + $0x190] sm:$0xff]
  %v3528 = vld [vmem:[%s16 + $0x198] sm:$0xff]
  %v3529 = vld [vmem:[%s16 + $0x1a0] sm:$0xff]
  %v3530 = vld [vmem:[%s16 + $0x1a8] sm:$0xff]
  %v3531 = vld [vmem:[%s16 + $0x1b0] sm:$0xff]
  %v3532 = vld [vmem:[%s16 + $0x1b8] sm:$0xff]
  %v3533 = vld [vmem:[%s16 + $0x1c0] sm:$0xff]
  %v3534 = vld [vmem:[%s16 + $0x1c8] sm:$0xff]
  %v3535 = vld [vmem:[%s16 + $0x1d0] sm:$0xff]
  %v3536 = vld [vmem:[%s16 + $0x1d8] sm:$0xff]
  %v3537 = vld [vmem:[%s16 + $0x1e0] sm:$0xff]
  %v3538 = vld [vmem:[%s16 + $0x1e8] sm:$0xff]
  %v3539 = vld [vmem:[%s16 + $0x1f0] sm:$0xff]
  %v3540 = vld [vmem:[%s16 + $0x1f8] sm:$0xff]
  %v3541 = vld [vmem:[%s16 + $0x200] sm:$0xff]
  %v3542 = vld [vmem:[%s16 + $0x208] sm:$0xff]
  %v3543 = vld [vmem:[%s16 + $0x210] sm:$0xff]
  %v3544 = vld [vmem:[%s16 + $0x218] sm:$0xff]
  %v3545 = vld [vmem:[%s16 + $0x220] sm:$0xff]
  %v3546 = vld [vmem:[%s16 + $0x228] sm:$0xff]
  %v3547 = vld [vmem:[%s16 + $0x230] sm:$0xff]
  %v3548 = vld [vmem:[%s16 + $0x238] sm:$0xff]
  %v3549 = vld [vmem:[%s16 + $0x240] sm:$0xff]
  %v3550 = vld [vmem:[%s16 + $0x248] sm:$0xff]
  %v3551 = vld [vmem:[%s16 + $0x250] sm:$0xff]
  %v3552 = vld [vmem:[%s16 + $0x258] sm:$0xff]
  %v3553 = vld [vmem:[%s16 + $0x260] sm:$0xff]
  %v3554 = vld [vmem:[%s16 + $0x268] sm:$0xff]
  %v3555 = vld [vmem:[%s16 + $0x270] sm:$0xff]
  %v3556 = vld [vmem:[%s16 + $0x278] sm:$0xff]
  %v3557 = vld [vmem:[%s16 + $0x280] sm:$0xff]
  %v3558 = vld [vmem:[%s16 + $0x288] sm:$0xff]
  %v3559 = vld [vmem:[%s16 + $0x290] sm:$0xff]
  %v3560 = vld [vmem:[%s16 + $0x298] sm:$0xff]
  %v3561 = vld [vmem:[%s16 + $0x2a0] sm:$0xff]
  %v3562 = vld [vmem:[%s16 + $0x2a8] sm:$0xff]
  %v3563 = vld [vmem:[%s16 + $0x2b0] sm:$0xff]
  %v3564 = vld [vmem:[%s16 + $0x2b8] sm:$0xff]
  %v3565 = vld [vmem:[%s16 + $0x2c0] sm:$0xff]
  %v3566 = vld [vmem:[%s16 + $0x2c8] sm:$0xff]
  %v3567 = vld [vmem:[%s16 + $0x2d0] sm:$0xff]
  %v3568 = vld [vmem:[%s16 + $0x2d8] sm:$0xff]
  %v3569 = vld [vmem:[%s16 + $0x2e0] sm:$0xff]
  %v3570 = vld [vmem:[%s16 + $0x2e8] sm:$0xff]
  %v3571 = vld [vmem:[%s16 + $0x2f0] sm:$0xff]
  %v3572 = vld [vmem:[%s16 + $0x2f8] sm:$0xff]
  %v3573 = vld [vmem:[%s16 + $0x300] sm:$0xff]
  %v3574 = vld [vmem:[%s16 + $0x308] sm:$0xff]
  %v3575 = vld [vmem:[%s16 + $0x310] sm:$0xff]
  %v3576 = vld [vmem:[%s16 + $0x318] sm:$0xff]
  %v3577 = vld [vmem:[%s16 + $0x320] sm:$0xff]
  %v3578 = vld [vmem:[%s16 + $0x328] sm:$0xff]
  %v3579 = vld [vmem:[%s16 + $0x330] sm:$0xff]
  %v3580 = vld [vmem:[%s16 + $0x338] sm:$0xff]
  %v3581 = vld [vmem:[%s16 + $0x340] sm:$0xff]
  %v3582 = vld [vmem:[%s16 + $0x348] sm:$0xff]
  %v3583 = vld [vmem:[%s16 + $0x350] sm:$0xff]
  %v3584 = vld [vmem:[%s16 + $0x358] sm:$0xff]
  %v3585 = vld [vmem:[%s16 + $0x360] sm:$0xff]
  %v3586 = vld [vmem:[%s16 + $0x368] sm:$0xff]
  %v3587 = vld [vmem:[%s16 + $0x370] sm:$0xff]
  %v3588 = vld [vmem:[%s16 + $0x378] sm:$0xff]
  %v3589 = vld [vmem:[%s16 + $0x380] sm:$0xff]
  %v3590 = vld [vmem:[%s16 + $0x388] sm:$0xff]
  %v3591 = vld [vmem:[%s16 + $0x390] sm:$0xff]
  %v3592 = vld [vmem:[%s16 + $0x398] sm:$0xff]
  %v3593 = vld [vmem:[%s16 + $0x3a0] sm:$0xff]
  %v3594 = vld [vmem:[%s16 + $0x3a8] sm:$0xff]
  %v3595 = vld [vmem:[%s16 + $0x3b0] sm:$0xff]
  %v3596 = vld [vmem:[%s16 + $0x3b8] sm:$0xff]
  %v3597 = vld [vmem:[%s16 + $0x3c0] sm:$0xff]
  %v3598 = vld [vmem:[%s16 + $0x3c8] sm:$0xff]
  %v3599 = vld [vmem:[%s16 + $0x3d0] sm:$0xff]
  %v3600 = vld [vmem:[%s16 + $0x3d8] sm:$0xff]
  %v3601 = vld [vmem:[%s16 + $0x3e0] sm:$0xff]
  %v3602 = vld [vmem:[%s16 + $0x3e8] sm:$0xff]
  %v3603 = vld [vmem:[%s16 + $0x3f0] sm:$0xff]
  %v3604 = vld [vmem:[%s16 + $0x3f8] sm:$0xff]
  %v3605 = vld [vmem:[%s16 + $0x400] sm:$0xff]
  %v3606 = vld [vmem:[%s16 + $0x408] sm:$0xff]
  %v3607 = vld [vmem:[%s16 + $0x410] sm:$0xff]
  %v3608 = vld [vmem:[%s16 + $0x418] sm:$0xff]
  %v3609 = vld [vmem:[%s16 + $0x420] sm:$0xff]
  %v3610 = vld [vmem:[%s16 + $0x428] sm:$0xff]
  %v3611 = vld [vmem:[%s16 + $0x430] sm:$0xff]
  %v3612 = vld [vmem:[%s16 + $0x438] sm:$0xff]
  %v3613 = vld [vmem:[%s16 + $0x440] sm:$0xff]
  %v3614 = vld [vmem:[%s16 + $0x448] sm:$0xff]
  %v3615 = vld [vmem:[%s16 + $0x450] sm:$0xff]
  %v3616 = vld [vmem:[%s16 + $0x458] sm:$0xff]
  %v3617 = vld [vmem:[%s16 + $0x460] sm:$0xff]
  %v3618 = vld [vmem:[%s16 + $0x468] sm:$0xff]
  %v3619 = vld [vmem:[%s16 + $0x470] sm:$0xff]
  %v3620 = vld [vmem:[%s16 + $0x478] sm:$0xff]
  %v3621 = vld [vmem:[%s16 + $0x480] sm:$0xff]
  %v3622 = vld [vmem:[%s16 + $0x488] sm:$0xff]
  %v3623 = vld [vmem:[%s16 + $0x490] sm:$0xff]
  %v3624 = vld [vmem:[%s16 + $0x498] sm:$0xff]
  %v3625 = vld [vmem:[%s16 + $0x4a0] sm:$0xff]
  %v3626 = vld [vmem:[%s16 + $0x4a8] sm:$0xff]
  %v3627 = vld [vmem:[%s16 + $0x4b0] sm:$0xff]
  %v3628 = vld [vmem:[%s16 + $0x4b8] sm:$0xff]
  %v3629 = vld [vmem:[%s16 + $0x4c0] sm:$0xff]
  %v3630 = vld [vmem:[%s16 + $0x4c8] sm:$0xff]
  %v3631 = vld [vmem:[%s16 + $0x4d0] sm:$0xff]
  %v3632 = vld [vmem:[%s16 + $0x4d8] sm:$0xff]
  %v3633 = vld [vmem:[%s16 + $0x4e0] sm:$0xff]
  %v3634 = vld [vmem:[%s16 + $0x4e8] sm:$0xff]
  %v3635 = vld [vmem:[%s16 + $0x4f0] sm:$0xff]
  %v3636 = vld [vmem:[%s16 + $0x4f8] sm:$0xff]
  %v3637 = vld [vmem:[%s16 + $0x500] sm:$0xff]
  %v3638 = vld [vmem:[%s16 + $0x508] sm:$0xff]
  %v3639 = vld [vmem:[%s16 + $0x510] sm:$0xff]
  %v3640 = vld [vmem:[%s16 + $0x518] sm:$0xff]
  %v3641 = vld [vmem:[%s16 + $0x520] sm:$0xff]
  %v3642 = vld [vmem:[%s16 + $0x528] sm:$0xff]
  %v3643 = vld [vmem:[%s16 + $0x530] sm:$0xff]
  %v3644 = vld [vmem:[%s16 + $0x538] sm:$0xff]
  %v3645 = vld [vmem:[%s16 + $0x540] sm:$0xff]
  %v3646 = vld [vmem:[%s16 + $0x548] sm:$0xff]
  %v3647 = vld [vmem:[%s16 + $0x550] sm:$0xff]
  %v3648 = vld [vmem:[%s16 + $0x558] sm:$0xff]
  %v3649 = vld [vmem:[%s16 + $0x560] sm:$0xff]
  %v3650 = vld [vmem:[%s16 + $0x568] sm:$0xff]
  %v3651 = vld [vmem:[%s16 + $0x570] sm:$0xff]
  %v3652 = vld [vmem:[%s16 + $0x578] sm:$0xff]
  %v3653 = vld [vmem:[%s16 + $0x580] sm:$0xff]
  %v3654 = vld [vmem:[%s16 + $0x588] sm:$0xff]
  %v3655 = vld [vmem:[%s16 + $0x590] sm:$0xff]
  %v3656 = vld [vmem:[%s16 + $0x598] sm:$0xff]
  %v3657 = vld [vmem:[%s16 + $0x5a0] sm:$0xff]
  %v3658 = vld [vmem:[%s16 + $0x5a8] sm:$0xff]
  %v3659 = vld [vmem:[%s16 + $0x5b0] sm:$0xff]
  %v3660 = vld [vmem:[%s16 + $0x5b8] sm:$0xff]
  %v3661 = vld [vmem:[%s16 + $0x5c0] sm:$0xff]
  %v3662 = vld [vmem:[%s16 + $0x5c8] sm:$0xff]
  %v3663 = vld [vmem:[%s16 + $0x5d0] sm:$0xff]
  %v3664 = vld [vmem:[%s16 + $0x5d8] sm:$0xff]
  %v3665 = vld [vmem:[%s16 + $0x5e0] sm:$0xff]
  %v3666 = vld [vmem:[%s16 + $0x5e8] sm:$0xff]
  %v3667 = vld [vmem:[%s16 + $0x5f0] sm:$0xff]
  %v3668 = vld [vmem:[%s16 + $0x5f8] sm:$0xff]
  %v3669 = vld [vmem:[%s16 + $0x600] sm:$0xff]
  %v3670 = vld [vmem:[%s16 + $0x608] sm:$0xff]
  %v3671 = vld [vmem:[%s16 + $0x610] sm:$0xff]
  %v3672 = vld [vmem:[%s16 + $0x618] sm:$0xff]
  %v3673 = vld [vmem:[%s16 + $0x620] sm:$0xff]
  %v3674 = vld [vmem:[%s16 + $0x628] sm:$0xff]
  %v3675 = vld [vmem:[%s16 + $0x630] sm:$0xff]
  %v3676 = vld [vmem:[%s16 + $0x638] sm:$0xff]
  %v3677 = vld [vmem:[%s16 + $0x640] sm:$0xff]
  %v3678 = vld [vmem:[%s16 + $0x648] sm:$0xff]
  %v3679 = vld [vmem:[%s16 + $0x650] sm:$0xff]
  %v3680 = vld [vmem:[%s16 + $0x658] sm:$0xff]
  %v3681 = vld [vmem:[%s16 + $0x660] sm:$0xff]
  %v3682 = vld [vmem:[%s16 + $0x668] sm:$0xff]
  %v3683 = vld [vmem:[%s16 + $0x670] sm:$0xff]
  %v3684 = vld [vmem:[%s16 + $0x678] sm:$0xff]
  %v3685 = vld [vmem:[%s16 + $0x680] sm:$0xff]
  %v3686 = vld [vmem:[%s16 + $0x688] sm:$0xff]
  %v3687 = vld [vmem:[%s16 + $0x690] sm:$0xff]
  %v3688 = vld [vmem:[%s16 + $0x698] sm:$0xff]
  %v3689 = vld [vmem:[%s16 + $0x6a0] sm:$0xff]
  %v3690 = vld [vmem:[%s16 + $0x6a8] sm:$0xff]
  %v3691 = vld [vmem:[%s16 + $0x6b0] sm:$0xff]
  %v3692 = vld [vmem:[%s16 + $0x6b8] sm:$0xff]
  %v3693 = vld [vmem:[%s16 + $0x6c0] sm:$0xff]
  %v3694 = vld [vmem:[%s16 + $0x6c8] sm:$0xff]
  %v3695 = vld [vmem:[%s16 + $0x6d0] sm:$0xff]
  %v3696 = vld [vmem:[%s16 + $0x6d8] sm:$0xff]
  %v3697 = vld [vmem:[%s16 + $0x6e0] sm:$0xff]
  %v3698 = vld [vmem:[%s16 + $0x6e8] sm:$0xff]
  %v3699 = vld [vmem:[%s16 + $0x6f0] sm:$0xff]
  %v3700 = vld [vmem:[%s16 + $0x6f8] sm:$0xff]
  %v3701 = vld [vmem:[%s16 + $0x700] sm:$0xff]
  %v3702 = vld [vmem:[%s16 + $0x708] sm:$0xff]
  %v3703 = vld [vmem:[%s16 + $0x710] sm:$0xff]
  %v3704 = vld [vmem:[%s16 + $0x718] sm:$0xff]
  %v3705 = vld [vmem:[%s16 + $0x720] sm:$0xff]
  %v3706 = vld [vmem:[%s16 + $0x728] sm:$0xff]
  %v3707 = vld [vmem:[%s16 + $0x730] sm:$0xff]
  %v3708 = vld [vmem:[%s16 + $0x738] sm:$0xff]
  %v3709 = vld [vmem:[%s16 + $0x740] sm:$0xff]
  %v3710 = vld [vmem:[%s16 + $0x748] sm:$0xff]
  %v3711 = vld [vmem:[%s16 + $0x750] sm:$0xff]
  %v3712 = vld [vmem:[%s16 + $0x758] sm:$0xff]
  %v3713 = vld [vmem:[%s16 + $0x760] sm:$0xff]
  %v3714 = vld [vmem:[%s16 + $0x768] sm:$0xff]
  %v3715 = vld [vmem:[%s16 + $0x770] sm:$0xff]
  %v3716 = vld [vmem:[%s16 + $0x778] sm:$0xff]
  %v3717 = vld [vmem:[%s16 + $0x780] sm:$0xff]
  %v3718 = vld [vmem:[%s16 + $0x788] sm:$0xff]
  %v3719 = vld [vmem:[%s16 + $0x790] sm:$0xff]
  %v3720 = vld [vmem:[%s16 + $0x798] sm:$0xff]
  %v3721 = vld [vmem:[%s16 + $0x7a0] sm:$0xff]
  %v3722 = vld [vmem:[%s16 + $0x7a8] sm:$0xff]
  %v3723 = vld [vmem:[%s16 + $0x7b0] sm:$0xff]
  %v3724 = vld [vmem:[%s16 + $0x7b8] sm:$0xff]
  %v3725 = vld [vmem:[%s16 + $0x7c0] sm:$0xff]
  %v3726 = vld [vmem:[%s16 + $0x7c8] sm:$0xff]
  %v3727 = vld [vmem:[%s16 + $0x7d0] sm:$0xff]
  %v3728 = vld [vmem:[%s16 + $0x7d8] sm:$0xff]
  %v3729 = vld [vmem:[%s16 + $0x7e0] sm:$0xff]
  %v3730 = vld [vmem:[%s16 + $0x7e8] sm:$0xff]
  %v3731 = vld [vmem:[%s16 + $0x7f0] sm:$0xff]
  %v3732 = vld [vmem:[%s16 + $0x7f8] sm:$0xff]
  %v3733 = vld [vmem:[%s16 + $0x800] sm:$0xff]
  %v3734 = vld [vmem:[%s16 + $0x808] sm:$0xff]
  %v3735 = vld [vmem:[%s16 + $0x810] sm:$0xff]
  %v3736 = vld [vmem:[%s16 + $0x818] sm:$0xff]
  %v3737 = vld [vmem:[%s16 + $0x820] sm:$0xff]
  %v3738 = vld [vmem:[%s16 + $0x828] sm:$0xff]
  %v3739 = vld [vmem:[%s16 + $0x830] sm:$0xff]
  %v3740 = vld [vmem:[%s16 + $0x838] sm:$0xff]
  %v3741 = vld [vmem:[%s16 + $0x840] sm:$0xff]
  %v3742 = vld [vmem:[%s16 + $0x848] sm:$0xff]
  %v3743 = vld [vmem:[%s16 + $0x850] sm:$0xff]
  %v3744 = vld [vmem:[%s16 + $0x858] sm:$0xff]
  %v3745 = vld [vmem:[%s16 + $0x860] sm:$0xff]
  %v3746 = vld [vmem:[%s16 + $0x868] sm:$0xff]
  %v3747 = vld [vmem:[%s16 + $0x870] sm:$0xff]
  %v3748 = vld [vmem:[%s16 + $0x878] sm:$0xff]
  %v3749 = vld [vmem:[%s16 + $0x880] sm:$0xff]
  %v3750 = vld [vmem:[%s16 + $0x888] sm:$0xff]
  %v3751 = vld [vmem:[%s16 + $0x890] sm:$0xff]
  %v3752 = vld [vmem:[%s16 + $0x898] sm:$0xff]
  %v3753 = vld [vmem:[%s16 + $0x8a0] sm:$0xff]
  %v3754 = vld [vmem:[%s16 + $0x8a8] sm:$0xff]
  %v3755 = vld [vmem:[%s16 + $0x8b0] sm:$0xff]
  %v3756 = vld [vmem:[%s16 + $0x8b8] sm:$0xff]
  %v3757 = vld [vmem:[%s16 + $0x8c0] sm:$0xff]
  %v3758 = vld [vmem:[%s16 + $0x8c8] sm:$0xff]
  %v3759 = vld [vmem:[%s16 + $0x8d0] sm:$0xff]
  %v3760 = vld [vmem:[%s16 + $0x8d8] sm:$0xff]
  %v3761 = vld [vmem:[%s16 + $0x8e0] sm:$0xff]
  %v3762 = vld [vmem:[%s16 + $0x8e8] sm:$0xff]
  %v3763 = vld [vmem:[%s16 + $0x8f0] sm:$0xff]
  %v3764 = vld [vmem:[%s16 + $0x8f8] sm:$0xff]
  %v3765 = vld [vmem:[%s16 + $0x900] sm:$0xff]
  %v3766 = vld [vmem:[%s16 + $0x908] sm:$0xff]
  %v3767 = vld [vmem:[%s16 + $0x910] sm:$0xff]
  %v3768 = vld [vmem:[%s16 + $0x918] sm:$0xff]
  %v3769 = vld [vmem:[%s16 + $0x920] sm:$0xff]
  %v3770 = vld [vmem:[%s16 + $0x928] sm:$0xff]
  %v3771 = vld [vmem:[%s16 + $0x930] sm:$0xff]
  %v3772 = vld [vmem:[%s16 + $0x938] sm:$0xff]
  %v3773 = vld [vmem:[%s16 + $0x940] sm:$0xff]
  %v3774 = vld [vmem:[%s16 + $0x948] sm:$0xff]
  %v3775 = vld [vmem:[%s16 + $0x950] sm:$0xff]
  %v3776 = vld [vmem:[%s16 + $0x958] sm:$0xff]
  %v3777 = vld [vmem:[%s16 + $0x960] sm:$0xff]
  %v3778 = vld [vmem:[%s16 + $0x968] sm:$0xff]
  %v3779 = vld [vmem:[%s16 + $0x970] sm:$0xff]
  %v3780 = vld [vmem:[%s16 + $0x978] sm:$0xff]
  %v3781 = vld [vmem:[%s16 + $0x980] sm:$0xff]
  %v3782 = vld [vmem:[%s16 + $0x988] sm:$0xff]
  %v3783 = vld [vmem:[%s16 + $0x990] sm:$0xff]
  %v3784 = vld [vmem:[%s16 + $0x998] sm:$0xff]
  %v3785 = vld [vmem:[%s16 + $0x9a0] sm:$0xff]
  %v3786 = vld [vmem:[%s16 + $0x9a8] sm:$0xff]
  %v3787 = vld [vmem:[%s16 + $0x9b0] sm:$0xff]
  %v3788 = vld [vmem:[%s16 + $0x9b8] sm:$0xff]
  %v3789 = vld [vmem:[%s16 + $0x9c0] sm:$0xff]
  %v3790 = vld [vmem:[%s16 + $0x9c8] sm:$0xff]
  %v3791 = vld [vmem:[%s16 + $0x9d0] sm:$0xff]
  %v3792 = vld [vmem:[%s16 + $0x9d8] sm:$0xff]
  %v3793 = vld [vmem:[%s16 + $0x9e0] sm:$0xff]
  %v3794 = vld [vmem:[%s16 + $0x9e8] sm:$0xff]
  %v3795 = vld [vmem:[%s16 + $0x9f0] sm:$0xff]
  %v3796 = vld [vmem:[%s16 + $0x9f8] sm:$0xff]
  %v3797 = vld [vmem:[%s16 + $0xa00] sm:$0xff]
  %v3798 = vld [vmem:[%s16 + $0xa08] sm:$0xff]
  %v3799 = vld [vmem:[%s16 + $0xa10] sm:$0xff]
  %v3800 = vld [vmem:[%s16 + $0xa18] sm:$0xff]
  %v3801 = vld [vmem:[%s16 + $0xa20] sm:$0xff]
  %v3802 = vld [vmem:[%s16 + $0xa28] sm:$0xff]
  %v3803 = vld [vmem:[%s16 + $0xa30] sm:$0xff]
  %v3804 = vld [vmem:[%s16 + $0xa38] sm:$0xff]
  %v3805 = vld [vmem:[%s16 + $0xa40] sm:$0xff]
  %v3806 = vld [vmem:[%s16 + $0xa48] sm:$0xff]
  %v3807 = vld [vmem:[%s16 + $0xa50] sm:$0xff]
  %v3808 = vld [vmem:[%s16 + $0xa58] sm:$0xff]
  %v3809 = vld [vmem:[%s16 + $0xa60] sm:$0xff]
  %v3810 = vld [vmem:[%s16 + $0xa68] sm:$0xff]
  %v3811 = vld [vmem:[%s16 + $0xa70] sm:$0xff]
  %v3812 = vld [vmem:[%s16 + $0xa78] sm:$0xff]
  %v3813 = vld [vmem:[%s16 + $0xa80] sm:$0xff]
  %v3814 = vld [vmem:[%s16 + $0xa88] sm:$0xff]
  %v3815 = vld [vmem:[%s16 + $0xa90] sm:$0xff]
  %v3816 = vld [vmem:[%s16 + $0xa98] sm:$0xff]
  %v3817 = vld [vmem:[%s16 + $0xaa0] sm:$0xff]
  %v3818 = vld [vmem:[%s16 + $0xaa8] sm:$0xff]
  %v3819 = vld [vmem:[%s16 + $0xab0] sm:$0xff]
  %v3820 = vld [vmem:[%s16 + $0xab8] sm:$0xff]
  %v3821 = vld [vmem:[%s16 + $0xac0] sm:$0xff]
  %v3822 = vld [vmem:[%s16 + $0xac8] sm:$0xff]
  %v3823 = vld [vmem:[%s16 + $0xad0] sm:$0xff]
  %v3824 = vld [vmem:[%s16 + $0xad8] sm:$0xff]
  %v3825 = vld [vmem:[%s16 + $0xae0] sm:$0xff]
  %v3826 = vld [vmem:[%s16 + $0xae8] sm:$0xff]
  %v3827 = vld [vmem:[%s16 + $0xaf0] sm:$0xff]
  %v3828 = vld [vmem:[%s16 + $0xaf8] sm:$0xff]
  %v3829 = vld [vmem:[%s16 + $0xb00] sm:$0xff]
  %v3830 = vld [vmem:[%s16 + $0xb08] sm:$0xff]
  %v3831 = vld [vmem:[%s16 + $0xb10] sm:$0xff]
  %v3832 = vld [vmem:[%s16 + $0xb18] sm:$0xff]
  %v3833 = vld [vmem:[%s16 + $0xb20] sm:$0xff]
  %v3834 = vld [vmem:[%s16 + $0xb28] sm:$0xff]
  %v3835 = vld [vmem:[%s16 + $0xb30] sm:$0xff]
  %v3836 = vld [vmem:[%s16 + $0xb38] sm:$0xff]
  %v3837 = vld [vmem:[%s16 + $0xb40] sm:$0xff]
  %v3838 = vld [vmem:[%s16 + $0xb48] sm:$0xff]
  %v3839 = vld [vmem:[%s16 + $0xb50] sm:$0xff]
  %v3840 = vld [vmem:[%s16 + $0xb58] sm:$0xff]
  %v3841 = vld [vmem:[%s16 + $0xb60] sm:$0xff]
  %v3842 = vld [vmem:[%s16 + $0xb68] sm:$0xff]
  %v3843 = vld [vmem:[%s16 + $0xb70] sm:$0xff]
  %v3844 = vld [vmem:[%s16 + $0xb78] sm:$0xff]
  %v3845 = vld [vmem:[%s16 + $0xb80] sm:$0xff]
  %v3846 = vld [vmem:[%s16 + $0xb88] sm:$0xff]
  %v3847 = vld [vmem:[%s16 + $0xb90] sm:$0xff]
  %v3848 = vld [vmem:[%s16 + $0xb98] sm:$0xff]
  %v3849 = vld [vmem:[%s16 + $0xba0] sm:$0xff]
  %v3850 = vld [vmem:[%s16 + $0xba8] sm:$0xff]
  %v3851 = vld [vmem:[%s16 + $0xbb0] sm:$0xff]
  %v3852 = vld [vmem:[%s16 + $0xbb8] sm:$0xff]
  %v3853 = vld [vmem:[%s16 + $0xbc0] sm:$0xff]
  %v3854 = vld [vmem:[%s16 + $0xbc8] sm:$0xff]
  %v3855 = vld [vmem:[%s16 + $0xbd0] sm:$0xff]
  %v3856 = vld [vmem:[%s16 + $0xbd8] sm:$0xff]
  %v3857 = vld [vmem:[%s16 + $0xbe0] sm:$0xff]
  %v3858 = vld [vmem:[%s16 + $0xbe8] sm:$0xff]
  %v3859 = vld [vmem:[%s16 + $0xbf0] sm:$0xff]
  %v3860 = vld [vmem:[%s16 + $0xbf8] sm:$0xff]
  %v3861 = vld [vmem:[%s16 + $0xc00] sm:$0xff]
  %v3862 = vld [vmem:[%s16 + $0xc08] sm:$0xff]
  %v3863 = vld [vmem:[%s16 + $0xc10] sm:$0xff]
  %v3864 = vld [vmem:[%s16 + $0xc18] sm:$0xff]
  %v3865 = vld [vmem:[%s16 + $0xc20] sm:$0xff]
  %v3866 = vld [vmem:[%s16 + $0xc28] sm:$0xff]
  %v3867 = vld [vmem:[%s16 + $0xc30] sm:$0xff]
  %v3868 = vld [vmem:[%s16 + $0xc38] sm:$0xff]
  %v3869 = vld [vmem:[%s16 + $0xc40] sm:$0xff]
  %v3870 = vld [vmem:[%s16 + $0xc48] sm:$0xff]
  %v3871 = vld [vmem:[%s16 + $0xc50] sm:$0xff]
  %v3872 = vld [vmem:[%s16 + $0xc58] sm:$0xff]
  %v3873 = vld [vmem:[%s16 + $0xc60] sm:$0xff]
  %v3874 = vld [vmem:[%s16 + $0xc68] sm:$0xff]
  %v3875 = vld [vmem:[%s16 + $0xc70] sm:$0xff]
  %v3876 = vld [vmem:[%s16 + $0xc78] sm:$0xff]
  %v3877 = vld [vmem:[%s16 + $0xc80] sm:$0xff]
  %v3878 = vld [vmem:[%s16 + $0xc88] sm:$0xff]
  %v3879 = vld [vmem:[%s16 + $0xc90] sm:$0xff]
  %v3880 = vld [vmem:[%s16 + $0xc98] sm:$0xff]
  %v3881 = vld [vmem:[%s16 + $0xca0] sm:$0xff]
  %v3882 = vld [vmem:[%s16 + $0xca8] sm:$0xff]
  %v3883 = vld [vmem:[%s16 + $0xcb0] sm:$0xff]
  %v3884 = vld [vmem:[%s16 + $0xcb8] sm:$0xff]
  %v3885 = vld [vmem:[%s16 + $0xcc0] sm:$0xff]
  %v3886 = vld [vmem:[%s16 + $0xcc8] sm:$0xff]
  %v3887 = vld [vmem:[%s16 + $0xcd0] sm:$0xff]
  %v3888 = vld [vmem:[%s16 + $0xcd8] sm:$0xff]
  %v3889 = vld [vmem:[%s16 + $0xce0] sm:$0xff]
  %v3890 = vld [vmem:[%s16 + $0xce8] sm:$0xff]
  %v3891 = vld [vmem:[%s16 + $0xcf0] sm:$0xff]
  %v3892 = vld [vmem:[%s16 + $0xcf8] sm:$0xff]
  %v3893 = vld [vmem:[%s16 + $0xd00] sm:$0xff]
  %v3894 = vld [vmem:[%s16 + $0xd08] sm:$0xff]
  %v3895 = vld [vmem:[%s16 + $0xd10] sm:$0xff]
  %v3896 = vld [vmem:[%s16 + $0xd18] sm:$0xff]
  %v3897 = vld [vmem:[%s16 + $0xd20] sm:$0xff]
  %v3898 = vld [vmem:[%s16 + $0xd28] sm:$0xff]
  %v3899 = vld [vmem:[%s16 + $0xd30] sm:$0xff]
  %v3900 = vld [vmem:[%s16 + $0xd38] sm:$0xff]
  %v3901 = vld [vmem:[%s16 + $0xd40] sm:$0xff]
  %v3902 = vld [vmem:[%s16 + $0xd48] sm:$0xff]
  %v3903 = vld [vmem:[%s16 + $0xd50] sm:$0xff]
  %v3904 = vld [vmem:[%s16 + $0xd58] sm:$0xff]
  %v3905 = vld [vmem:[%s16 + $0xd60] sm:$0xff]
  %v3906 = vld [vmem:[%s16 + $0xd68] sm:$0xff]
  %v3907 = vld [vmem:[%s16 + $0xd70] sm:$0xff]
  %v3908 = vld [vmem:[%s16 + $0xd78] sm:$0xff]
  %v3909 = vld [vmem:[%s16 + $0xd80] sm:$0xff]
  %v3910 = vld [vmem:[%s16 + $0xd88] sm:$0xff]
  %v3911 = vld [vmem:[%s16 + $0xd90] sm:$0xff]
  %v3912 = vld [vmem:[%s16 + $0xd98] sm:$0xff]
  %v3913 = vld [vmem:[%s16 + $0xda0] sm:$0xff]
  %v3914 = vld [vmem:[%s16 + $0xda8] sm:$0xff]
  %v3915 = vld [vmem:[%s16 + $0xdb0] sm:$0xff]
  %v3916 = vld [vmem:[%s16 + $0xdb8] sm:$0xff]
  %v3917 = vld [vmem:[%s16 + $0xdc0] sm:$0xff]
  %v3918 = vld [vmem:[%s16 + $0xdc8] sm:$0xff]
  %v3919 = vld [vmem:[%s16 + $0xdd0] sm:$0xff]
  %v3920 = vld [vmem:[%s16 + $0xdd8] sm:$0xff]
  %v3921 = vld [vmem:[%s16 + $0xde0] sm:$0xff]
  %v3922 = vld [vmem:[%s16 + $0xde8] sm:$0xff]
  %v3923 = vld [vmem:[%s16 + $0xdf0] sm:$0xff]
  %v3924 = vld [vmem:[%s16 + $0xdf8] sm:$0xff]
  %v3925 = vld [vmem:[%s16 + $0xe00] sm:$0xff]
  %v3926 = vld [vmem:[%s16 + $0xe08] sm:$0xff]
  %v3927 = vld [vmem:[%s16 + $0xe10] sm:$0xff]
  %v3928 = vld [vmem:[%s16 + $0xe18] sm:$0xff]
  %v3929 = vld [vmem:[%s16 + $0xe20] sm:$0xff]
  %v3930 = vld [vmem:[%s16 + $0xe28] sm:$0xff]
  %v3931 = vld [vmem:[%s16 + $0xe30] sm:$0xff]
  %v3932 = vld [vmem:[%s16 + $0xe38] sm:$0xff]
  %v3933 = vld [vmem:[%s16 + $0xe40] sm:$0xff]
  %v3934 = vld [vmem:[%s16 + $0xe48] sm:$0xff]
  %v3935 = vld [vmem:[%s16 + $0xe50] sm:$0xff]
  %v3936 = vld [vmem:[%s16 + $0xe58] sm:$0xff]
  %v3937 = vld [vmem:[%s16 + $0xe60] sm:$0xff]
  %v3938 = vld [vmem:[%s16 + $0xe68] sm:$0xff]
  %v3939 = vld [vmem:[%s16 + $0xe70] sm:$0xff]
  %v3940 = vld [vmem:[%s16 + $0xe78] sm:$0xff]
  %v3941 = vld [vmem:[%s16 + $0xe80] sm:$0xff]
  %v3942 = vld [vmem:[%s16 + $0xe88] sm:$0xff]
  %v3943 = vld [vmem:[%s16 + $0xe90] sm:$0xff]
  %v3944 = vld [vmem:[%s16 + $0xe98] sm:$0xff]
  %v3945 = vld [vmem:[%s16 + $0xea0] sm:$0xff]
  %v3946 = vld [vmem:[%s16 + $0xea8] sm:$0xff]
  %v3947 = vld [vmem:[%s16 + $0xeb0] sm:$0xff]
  %v3948 = vld [vmem:[%s16 + $0xeb8] sm:$0xff]
  %v3949 = vld [vmem:[%s16 + $0xec0] sm:$0xff]
  %v3950 = vld [vmem:[%s16 + $0xec8] sm:$0xff]
  %v3951 = vld [vmem:[%s16 + $0xed0] sm:$0xff]
  %v3952 = vld [vmem:[%s16 + $0xed8] sm:$0xff]
  %v3953 = vld [vmem:[%s16 + $0xee0] sm:$0xff]
  %v3954 = vld [vmem:[%s16 + $0xee8] sm:$0xff]
  %v3955 = vld [vmem:[%s16 + $0xef0] sm:$0xff]
  %v3956 = vld [vmem:[%s16 + $0xef8] sm:$0xff]
  %v3957 = vld [vmem:[%s16 + $0xf00] sm:$0xff]
  %v3958 = vld [vmem:[%s16 + $0xf08] sm:$0xff]
  %v3959 = vld [vmem:[%s16 + $0xf10] sm:$0xff]
  %v3960 = vld [vmem:[%s16 + $0xf18] sm:$0xff]
  %v3961 = vld [vmem:[%s16 + $0xf20] sm:$0xff]
  %v3962 = vld [vmem:[%s16 + $0xf28] sm:$0xff]
  %v3963 = vld [vmem:[%s16 + $0xf30] sm:$0xff]
  %v3964 = vld [vmem:[%s16 + $0xf38] sm:$0xff]
  %v3965 = vld [vmem:[%s16 + $0xf40] sm:$0xff]
  %v3966 = vld [vmem:[%s16 + $0xf48] sm:$0xff]
  %v3967 = vld [vmem:[%s16 + $0xf50] sm:$0xff]
  %v3968 = vld [vmem:[%s16 + $0xf58] sm:$0xff]
  %v3969 = vld [vmem:[%s16 + $0xf60] sm:$0xff]
  %v3970 = vld [vmem:[%s16 + $0xf68] sm:$0xff]
  %v3971 = vld [vmem:[%s16 + $0xf70] sm:$0xff]
  %v3972 = vld [vmem:[%s16 + $0xf78] sm:$0xff]
  %v3973 = vld [vmem:[%s16 + $0xf80] sm:$0xff]
  %v3974 = vld [vmem:[%s16 + $0xf88] sm:$0xff]
  %v3975 = vld [vmem:[%s16 + $0xf90] sm:$0xff]
  %v3976 = vld [vmem:[%s16 + $0xf98] sm:$0xff]
  %v3977 = vld [vmem:[%s16 + $0xfa0] sm:$0xff]
  %v3978 = vld [vmem:[%s16 + $0xfa8] sm:$0xff]
  %v3979 = vld [vmem:[%s16 + $0xfb0] sm:$0xff]
  %v3980 = vld [vmem:[%s16 + $0xfb8] sm:$0xff]
  %v3981 = vld [vmem:[%s16 + $0xfc0] sm:$0xff]
  %v3982 = vld [vmem:[%s16 + $0xfc8] sm:$0xff]
  %v3983 = vld [vmem:[%s16 + $0xfd0] sm:$0xff]
  %v3984 = vld [vmem:[%s16 + $0xfd8] sm:$0xff]
  %v3985 = vld [vmem:[%s16 + $0xfe0] sm:$0xff]
  %v3986 = vld [vmem:[%s16 + $0xfe8] sm:$0xff]
  %v3987 = vld [vmem:[%s16 + $0xff0] sm:$0xff]
  %v3988 = vld [vmem:[%s16 + $0xff8] sm:$0xff]
  %v3989 = vld [vmem:[%s17] sm:$0xff]
  %v3990 = vld [vmem:[%s17 + $0x8] sm:$0xff]
  %v3991 = vld [vmem:[%s17 + $0x10] sm:$0xff]
  %v3992 = vld [vmem:[%s17 + $0x18] sm:$0xff]
  %v3993 = vld [vmem:[%s17 + $0x20] sm:$0xff]
  %v3994 = vld [vmem:[%s17 + $0x28] sm:$0xff]
  %v3995 = vld [vmem:[%s17 + $0x30] sm:$0xff]
  %v3996 = vld [vmem:[%s17 + $0x38] sm:$0xff]
  %v3997 = vld [vmem:[%s17 + $0x40] sm:$0xff]
  %v3998 = vld [vmem:[%s17 + $0x48] sm:$0xff]
  %v3999 = vld [vmem:[%s17 + $0x50] sm:$0xff]
  %v4000 = vld [vmem:[%s17 + $0x58] sm:$0xff]
  %v4001 = vld [vmem:[%s17 + $0x60] sm:$0xff]
  %v4002 = vld [vmem:[%s17 + $0x68] sm:$0xff]
  %v4003 = vld [vmem:[%s17 + $0x70] sm:$0xff]
  %v4004 = vld [vmem:[%s17 + $0x78] sm:$0xff]
  %v4005 = vld [vmem:[%s17 + $0x80] sm:$0xff]
  %v4006 = vld [vmem:[%s17 + $0x88] sm:$0xff]
  %v4007 = vld [vmem:[%s17 + $0x90] sm:$0xff]
  %v4008 = vld [vmem:[%s17 + $0x98] sm:$0xff]
  %v4009 = vld [vmem:[%s17 + $0xa0] sm:$0xff]
  %v4010 = vld [vmem:[%s17 + $0xa8] sm:$0xff]
  %v4011 = vld [vmem:[%s17 + $0xb0] sm:$0xff]
  %v4012 = vld [vmem:[%s17 + $0xb8] sm:$0xff]
  %v4013 = vld [vmem:[%s17 + $0xc0] sm:$0xff]
  %v4014 = vld [vmem:[%s17 + $0xc8] sm:$0xff]
  %v4015 = vld [vmem:[%s17 + $0xd0] sm:$0xff]
  %v4016 = vld [vmem:[%s17 + $0xd8] sm:$0xff]
  %v4017 = vld [vmem:[%s17 + $0xe0] sm:$0xff]
  %v4018 = vld [vmem:[%s17 + $0xe8] sm:$0xff]
  %v4019 = vld [vmem:[%s17 + $0xf0] sm:$0xff]
  %v4020 = vld [vmem:[%s17 + $0xf8] sm:$0xff]
  %v4021 = vld [vmem:[%s17 + $0x100] sm:$0xff]
  %v4022 = vld [vmem:[%s17 + $0x108] sm:$0xff]
  %v4023 = vld [vmem:[%s17 + $0x110] sm:$0xff]
  %v4024 = vld [vmem:[%s17 + $0x118] sm:$0xff]
  %v4025 = vld [vmem:[%s17 + $0x120] sm:$0xff]
  %v4026 = vld [vmem:[%s17 + $0x128] sm:$0xff]
  %v4027 = vld [vmem:[%s17 + $0x130] sm:$0xff]
  %v4028 = vld [vmem:[%s17 + $0x138] sm:$0xff]
  %v4029 = vld [vmem:[%s17 + $0x140] sm:$0xff]
  %v4030 = vld [vmem:[%s17 + $0x148] sm:$0xff]
  %v4031 = vld [vmem:[%s17 + $0x150] sm:$0xff]
  %v4032 = vld [vmem:[%s17 + $0x158] sm:$0xff]
  %v4033 = vld [vmem:[%s17 + $0x160] sm:$0xff]
  %v4034 = vld [vmem:[%s17 + $0x168] sm:$0xff]
  %v4035 = vld [vmem:[%s17 + $0x170] sm:$0xff]
  %v4036 = vld [vmem:[%s17 + $0x178] sm:$0xff]
  %v4037 = vld [vmem:[%s17 + $0x180] sm:$0xff]
  %v4038 = vld [vmem:[%s17 + $0x188] sm:$0xff]
  %v4039 = vld [vmem:[%s17 + $0x190] sm:$0xff]
  %v4040 = vld [vmem:[%s17 + $0x198] sm:$0xff]
  %v4041 = vld [vmem:[%s17 + $0x1a0] sm:$0xff]
  %v4042 = vld [vmem:[%s17 + $0x1a8] sm:$0xff]
  %v4043 = vld [vmem:[%s17 + $0x1b0] sm:$0xff]
  %v4044 = vld [vmem:[%s17 + $0x1b8] sm:$0xff]
  %v4045 = vld [vmem:[%s17 + $0x1c0] sm:$0xff]
  %v4046 = vld [vmem:[%s17 + $0x1c8] sm:$0xff]
  %v4047 = vld [vmem:[%s17 + $0x1d0] sm:$0xff]
  %v4048 = vld [vmem:[%s17 + $0x1d8] sm:$0xff]
  %v4049 = vld [vmem:[%s17 + $0x1e0] sm:$0xff]
  %v4050 = vld [vmem:[%s17 + $0x1e8] sm:$0xff]
  %v4051 = vld [vmem:[%s17 + $0x1f0] sm:$0xff]
  %v4052 = vld [vmem:[%s17 + $0x1f8] sm:$0xff]
  %v4117 = vunpack.c.l.b16 %v3989
  %v4118 = vunpack.c.h.b16 %v3989
  %v4119 = vunpack.c.l.b16 %v3990
  %v4120 = vunpack.c.h.b16 %v3990
  %v4121 = vunpack.c.l.b16 %v3991
  %v4122 = vunpack.c.h.b16 %v3991
  %v4123 = vunpack.c.l.b16 %v3992
  %v4124 = vunpack.c.h.b16 %v3992
  %v4125 = vunpack.c.l.b16 %v3993
  %v4126 = vunpack.c.h.b16 %v3993
  %v4127 = vunpack.c.l.b16 %v3994
  %v4128 = vunpack.c.h.b16 %v3994
  %v4129 = vunpack.c.l.b16 %v3995
  %v4130 = vunpack.c.h.b16 %v3995
  %v4131 = vunpack.c.l.b16 %v3996
  %v4132 = vunpack.c.h.b16 %v3996
  %v4133 = vunpack.c.l.b16 %v3997
  %v4134 = vunpack.c.h.b16 %v3997
  %v4135 = vunpack.c.l.b16 %v3998
  %v4136 = vunpack.c.h.b16 %v3998
  %v4137 = vunpack.c.l.b16 %v3999
  %v4138 = vunpack.c.h.b16 %v3999
  %v4139 = vunpack.c.l.b16 %v4000
  %v4140 = vunpack.c.h.b16 %v4000
  %v4141 = vunpack.c.l.b16 %v4001
  %v4142 = vunpack.c.h.b16 %v4001
  %v4143 = vunpack.c.l.b16 %v4002
  %v4144 = vunpack.c.h.b16 %v4002
  %v4145 = vunpack.c.l.b16 %v4003
  %v4146 = vunpack.c.h.b16 %v4003
  %v4147 = vunpack.c.l.b16 %v4004
  %v4148 = vunpack.c.h.b16 %v4004
  %v4149 = vunpack.c.l.b16 %v4005
  %v4150 = vunpack.c.h.b16 %v4005
  %v4151 = vunpack.c.l.b16 %v4006
  %v4152 = vunpack.c.h.b16 %v4006
  %v4153 = vunpack.c.l.b16 %v4007
  %v4154 = vunpack.c.h.b16 %v4007
  %v4155 = vunpack.c.l.b16 %v4008
  %v4156 = vunpack.c.h.b16 %v4008
  %v4157 = vunpack.c.l.b16 %v4009
  %v4158 = vunpack.c.h.b16 %v4009
  %v4159 = vunpack.c.l.b16 %v4010
  %v4160 = vunpack.c.h.b16 %v4010
  %v4161 = vunpack.c.l.b16 %v4011
  %v4162 = vunpack.c.h.b16 %v4011
  %v4163 = vunpack.c.l.b16 %v4012
  %v4164 = vunpack.c.h.b16 %v4012
  %v4165 = vunpack.c.l.b16 %v4013
  %v4166 = vunpack.c.h.b16 %v4013
  %v4167 = vunpack.c.l.b16 %v4014
  %v4168 = vunpack.c.h.b16 %v4014
  %v4169 = vunpack.c.l.b16 %v4015
  %v4170 = vunpack.c.h.b16 %v4015
  %v4171 = vunpack.c.l.b16 %v4016
  %v4172 = vunpack.c.h.b16 %v4016
  %v4173 = vunpack.c.l.b16 %v4017
  %v4174 = vunpack.c.h.b16 %v4017
  %v4175 = vunpack.c.l.b16 %v4018
  %v4176 = vunpack.c.h.b16 %v4018
  %v4177 = vunpack.c.l.b16 %v4019
  %v4178 = vunpack.c.h.b16 %v4019
  %v4179 = vunpack.c.l.b16 %v4020
  %v4180 = vunpack.c.h.b16 %v4020
  %v4181 = vunpack.c.l.b16 %v4021
  %v4182 = vunpack.c.h.b16 %v4021
  %v4183 = vunpack.c.l.b16 %v4022
  %v4184 = vunpack.c.h.b16 %v4022
  %v4185 = vunpack.c.l.b16 %v4023
  %v4186 = vunpack.c.h.b16 %v4023
  %v4187 = vunpack.c.l.b16 %v4024
  %v4188 = vunpack.c.h.b16 %v4024
  %v4189 = vunpack.c.l.b16 %v4025
  %v4190 = vunpack.c.h.b16 %v4025
  %v4191 = vunpack.c.l.b16 %v4026
  %v4192 = vunpack.c.h.b16 %v4026
  %v4193 = vunpack.c.l.b16 %v4027
  %v4194 = vunpack.c.h.b16 %v4027
  %v4195 = vunpack.c.l.b16 %v4028
  %v4196 = vunpack.c.h.b16 %v4028
  %v4197 = vunpack.c.l.b16 %v4029
  %v4198 = vunpack.c.h.b16 %v4029
  %v4199 = vunpack.c.l.b16 %v4030
  %v4200 = vunpack.c.h.b16 %v4030
  %v4201 = vunpack.c.l.b16 %v4031
  %v4202 = vunpack.c.h.b16 %v4031
  %v4203 = vunpack.c.l.b16 %v4032
  %v4204 = vunpack.c.h.b16 %v4032
  %v4205 = vunpack.c.l.b16 %v4033
  %v4206 = vunpack.c.h.b16 %v4033
  %v4207 = vunpack.c.l.b16 %v4034
  %v4208 = vunpack.c.h.b16 %v4034
  %v4209 = vunpack.c.l.b16 %v4035
  %v4210 = vunpack.c.h.b16 %v4035
  %v4211 = vunpack.c.l.b16 %v4036
  %v4212 = vunpack.c.h.b16 %v4036
  %v4213 = vunpack.c.l.b16 %v4037
  %v4214 = vunpack.c.h.b16 %v4037
  %v4215 = vunpack.c.l.b16 %v4038
  %v4216 = vunpack.c.h.b16 %v4038
  %v4217 = vunpack.c.l.b16 %v4039
  %v4218 = vunpack.c.h.b16 %v4039
  %v4219 = vunpack.c.l.b16 %v4040
  %v4220 = vunpack.c.h.b16 %v4040
  %v4221 = vunpack.c.l.b16 %v4041
  %v4222 = vunpack.c.h.b16 %v4041
  %v4223 = vunpack.c.l.b16 %v4042
  %v4224 = vunpack.c.h.b16 %v4042
  %v4225 = vunpack.c.l.b16 %v4043
  %v4226 = vunpack.c.h.b16 %v4043
  %v4227 = vunpack.c.l.b16 %v4044
  %v4228 = vunpack.c.h.b16 %v4044
  %v4229 = vunpack.c.l.b16 %v4045
  %v4230 = vunpack.c.h.b16 %v4045
  %v4231 = vunpack.c.l.b16 %v4046
  %v4232 = vunpack.c.h.b16 %v4046
  %v4233 = vunpack.c.l.b16 %v4047
  %v4234 = vunpack.c.h.b16 %v4047
  %v4235 = vunpack.c.l.b16 %v4048
  %v4236 = vunpack.c.h.b16 %v4048
  %v4237 = vunpack.c.l.b16 %v4049
  %v4238 = vunpack.c.h.b16 %v4049
  %v4239 = vunpack.c.l.b16 %v4050
  %v4240 = vunpack.c.h.b16 %v4050
  %v4241 = vunpack.c.l.b16 %v4051
  %v4242 = vunpack.c.h.b16 %v4051
  %v4243 = vunpack.c.l.b16 %v4052
  %v4244 = vunpack.c.h.b16 %v4052
  %v4245 = vpack.c.b16 %v4121, %v4117
  %v4246 = vpack.c.b16 %v4122, %v4118
  %v4247 = vpack.c.b16 %v4123, %v4119
  %v4248 = vpack.c.b16 %v4124, %v4120
  %v4249 = vpack.c.b16 %v4129, %v4125
  %v4250 = vpack.c.b16 %v4130, %v4126
  %v4251 = vpack.c.b16 %v4131, %v4127
  %v4252 = vpack.c.b16 %v4132, %v4128
  %v4253 = vpack.c.b16 %v4137, %v4133
  %v4254 = vpack.c.b16 %v4138, %v4134
  %v4255 = vpack.c.b16 %v4139, %v4135
  %v4256 = vpack.c.b16 %v4140, %v4136
  %v4257 = vpack.c.b16 %v4145, %v4141
  %v4258 = vpack.c.b16 %v4146, %v4142
  %v4259 = vpack.c.b16 %v4147, %v4143
  %v4260 = vpack.c.b16 %v4148, %v4144
  %v4261 = vpack.c.b16 %v4153, %v4149
  %v4262 = vpack.c.b16 %v4154, %v4150
  %v4263 = vpack.c.b16 %v4155, %v4151
  %v4264 = vpack.c.b16 %v4156, %v4152
  %v4265 = vpack.c.b16 %v4161, %v4157
  %v4266 = vpack.c.b16 %v4162, %v4158
  %v4267 = vpack.c.b16 %v4163, %v4159
  %v4268 = vpack.c.b16 %v4164, %v4160
  %v4269 = vpack.c.b16 %v4169, %v4165
  %v4270 = vpack.c.b16 %v4170, %v4166
  %v4271 = vpack.c.b16 %v4171, %v4167
  %v4272 = vpack.c.b16 %v4172, %v4168
  %v4273 = vpack.c.b16 %v4177, %v4173
  %v4274 = vpack.c.b16 %v4178, %v4174
  %v4275 = vpack.c.b16 %v4179, %v4175
  %v4276 = vpack.c.b16 %v4180, %v4176
  %v4277 = vpack.c.b16 %v4185, %v4181
  %v4278 = vpack.c.b16 %v4186, %v4182
  %v4279 = vpack.c.b16 %v4187, %v4183
  %v4280 = vpack.c.b16 %v4188, %v4184
  %v4281 = vpack.c.b16 %v4193, %v4189
  %v4282 = vpack.c.b16 %v4194, %v4190
  %v4283 = vpack.c.b16 %v4195, %v4191
  %v4284 = vpack.c.b16 %v4196, %v4192
  %v4285 = vpack.c.b16 %v4201, %v4197
  %v4286 = vpack.c.b16 %v4202, %v4198
  %v4287 = vpack.c.b16 %v4203, %v4199
  %v4288 = vpack.c.b16 %v4204, %v4200
  %v4289 = vpack.c.b16 %v4209, %v4205
  %v4290 = vpack.c.b16 %v4210, %v4206
  %v4291 = vpack.c.b16 %v4211, %v4207
  %v4292 = vpack.c.b16 %v4212, %v4208
  %v4293 = vpack.c.b16 %v4217, %v4213
  %v4294 = vpack.c.b16 %v4218, %v4214
  %v4295 = vpack.c.b16 %v4219, %v4215
  %v4296 = vpack.c.b16 %v4220, %v4216
  %v4297 = vpack.c.b16 %v4225, %v4221
  %v4298 = vpack.c.b16 %v4226, %v4222
  %v4299 = vpack.c.b16 %v4227, %v4223
  %v4300 = vpack.c.b16 %v4228, %v4224
  %v4301 = vpack.c.b16 %v4233, %v4229
  %v4302 = vpack.c.b16 %v4234, %v4230
  %v4303 = vpack.c.b16 %v4235, %v4231
  %v4304 = vpack.c.b16 %v4236, %v4232
  %v4305 = vpack.c.b16 %v4241, %v4237
  %v4306 = vpack.c.b16 %v4242, %v4238
  %v4307 = vpack.c.b16 %v4243, %v4239
  %v4308 = vpack.c.b16 %v4244, %v4240
  %4373 = vmatpush.bf16.msra.mxu0 %v4273
  %4374 = vmatpush.bf16.msra.mxu0 %v4269
  %4375 = vmatpush.bf16.msra.mxu0 %v4265
  %4376 = vmatpush.bf16.msra.mxu0 %v4261
  %4377 = vmatpush.bf16.msra.mxu0 %v4257
  %4378 = vmatpush.bf16.msra.mxu0 %v4253
  %4379 = vmatpush.bf16.msra.mxu0 %v4249
  %4380 = vmatpush.bf16.msra.mxu0 %v4245
  %4381 = vmatmul.bf16.gmra.mxu0 %v3300
  %v4382 = vpop.f32.mrf.mxu0
  %v4383 = vadd.f32 0.0, %v4382
  %v4384 = vpop.f32.mrf.mxu0
  %4385 = vdwg.mxu0
  %4386 = vmatpush.bf16.msra.mxu0 %v4305
  %4387 = vmatpush.bf16.msra.mxu0 %v4301
  %4388 = vmatpush.bf16.msra.mxu0 %v4297
  %4389 = vmatpush.bf16.msra.mxu0 %v4293
  %4390 = vmatpush.bf16.msra.mxu0 %v4289
  %4391 = vmatpush.bf16.msra.mxu0 %v4285
  %4392 = vmatpush.bf16.msra.mxu0 %v4281
  %4393 = vmatpush.bf16.msra.mxu0 %v4277
  %4394 = vmatmul.bf16.gmra.mxu0 %v3301
  %v4395 = vpop.f32.mrf.mxu0
  %v4396 = vadd.f32 %v4383, %v4395
  %v4397 = vpop.f32.mrf.mxu0
  %4398 = vdwg.mxu0
  %4399 = vmatpush.bf16.msra.mxu0 %v4274
  %4400 = vmatpush.bf16.msra.mxu0 %v4270
  %4401 = vmatpush.bf16.msra.mxu0 %v4266
  %4402 = vmatpush.bf16.msra.mxu0 %v4262
  %4403 = vmatpush.bf16.msra.mxu0 %v4258
  %4404 = vmatpush.bf16.msra.mxu0 %v4254
  %4405 = vmatpush.bf16.msra.mxu0 %v4250
  %4406 = vmatpush.bf16.msra.mxu0 %v4246
  %4407 = vmatmul.bf16.gmra.mxu0 %v3300
  %v4408 = vpop.f32.mrf.mxu0
  %v4409 = vadd.f32 0.0, %v4408
  %v4410 = vpop.f32.mrf.mxu0
  %4411 = vdwg.mxu0
  %4412 = vmatpush.bf16.msra.mxu0 %v4306
  %4413 = vmatpush.bf16.msra.mxu0 %v4302
  %4414 = vmatpush.bf16.msra.mxu0 %v4298
  %4415 = vmatpush.bf16.msra.mxu0 %v4294
  %4416 = vmatpush.bf16.msra.mxu0 %v4290
  %4417 = vmatpush.bf16.msra.mxu0 %v4286
  %4418 = vmatpush.bf16.msra.mxu0 %v4282
  %4419 = vmatpush.bf16.msra.mxu0 %v4278
  %4420 = vmatmul.bf16.gmra.mxu0 %v3301
  %v4421 = vpop.f32.mrf.mxu0
  %v4422 = vadd.f32 %v4409, %v4421
  %v4423 = vpop.f32.mrf.mxu0
  %4424 = vdwg.mxu0
  %4425 = vmatpush.bf16.msra.mxu0 %v4275
  %4426 = vmatpush.bf16.msra.mxu0 %v4271
  %4427 = vmatpush.bf16.msra.mxu0 %v4267
  %4428 = vmatpush.bf16.msra.mxu0 %v4263
  %4429 = vmatpush.bf16.msra.mxu0 %v4259
  %4430 = vmatpush.bf16.msra.mxu0 %v4255
  %4431 = vmatpush.bf16.msra.mxu0 %v4251
  %4432 = vmatpush.bf16.msra.mxu0 %v4247
  %4433 = vmatmul.bf16.gmra.mxu0 %v3300
  %v4434 = vpop.f32.mrf.mxu0
  %v4435 = vadd.f32 0.0, %v4434
  %v4436 = vpop.f32.mrf.mxu0
  %4437 = vdwg.mxu0
  %4438 = vmatpush.bf16.msra.mxu0 %v4307
  %4439 = vmatpush.bf16.msra.mxu0 %v4303
  %4440 = vmatpush.bf16.msra.mxu0 %v4299
  %4441 = vmatpush.bf16.msra.mxu0 %v4295
  %4442 = vmatpush.bf16.msra.mxu0 %v4291
  %4443 = vmatpush.bf16.msra.mxu0 %v4287
  %4444 = vmatpush.bf16.msra.mxu0 %v4283
  %4445 = vmatpush.bf16.msra.mxu0 %v4279
  %4446 = vmatmul.bf16.gmra.mxu0 %v3301
  %v4447 = vpop.f32.mrf.mxu0
  %v4448 = vadd.f32 %v4435, %v4447
  %v4449 = vpop.f32.mrf.mxu0
  %4450 = vdwg.mxu0
  %4451 = vmatpush.bf16.msra.mxu0 %v4276
  %4452 = vmatpush.bf16.msra.mxu0 %v4272
  %4453 = vmatpush.bf16.msra.mxu0 %v4268
  %4454 = vmatpush.bf16.msra.mxu0 %v4264
  %4455 = vmatpush.bf16.msra.mxu0 %v4260
  %4456 = vmatpush.bf16.msra.mxu0 %v4256
  %4457 = vmatpush.bf16.msra.mxu0 %v4252
  %4458 = vmatpush.bf16.msra.mxu0 %v4248
  %4459 = vmatmul.bf16.gmra.mxu0 %v3300
  %v4460 = vpop.f32.mrf.mxu0
  %v4461 = vadd.f32 0.0, %v4460
  %v4462 = vpop.f32.mrf.mxu0
  %4463 = vdwg.mxu0
  %4464 = vmatpush.bf16.msra.mxu0 %v4308
  %4465 = vmatpush.bf16.msra.mxu0 %v4304
  %4466 = vmatpush.bf16.msra.mxu0 %v4300
  %4467 = vmatpush.bf16.msra.mxu0 %v4296
  %4468 = vmatpush.bf16.msra.mxu0 %v4292
  %4469 = vmatpush.bf16.msra.mxu0 %v4288
  %4470 = vmatpush.bf16.msra.mxu0 %v4284
  %4471 = vmatpush.bf16.msra.mxu0 %v4280
  %4472 = vmatmul.bf16.gmra.mxu0 %v3301
  %v4473 = vpop.f32.mrf.mxu0
  %v4474 = vadd.f32 %v4461, %v4473
  %v4475 = vpop.f32.mrf.mxu0
  %4476 = vdwg.mxu0
  %v4485 = vunpack.c.l.b16 %v3469
  %v4486 = vunpack.c.h.b16 %v3469
  %v4487 = vunpack.c.l.b16 %v3470
  %v4488 = vunpack.c.h.b16 %v3470
  %v4489 = vunpack.c.l.b16 %v3471
  %v4490 = vunpack.c.h.b16 %v3471
  %v4491 = vunpack.c.l.b16 %v3472
  %v4492 = vunpack.c.h.b16 %v3472
  %v4493 = vunpack.c.l.b16 %v3473
  %v4494 = vunpack.c.h.b16 %v3473
  %v4495 = vunpack.c.l.b16 %v3474
  %v4496 = vunpack.c.h.b16 %v3474
  %v4497 = vunpack.c.l.b16 %v3475
  %v4498 = vunpack.c.h.b16 %v3475
  %v4499 = vunpack.c.l.b16 %v3476
  %v4500 = vunpack.c.h.b16 %v3476
  %v4501 = vpack.c.b16 %v4485, %v4485
  %v4502 = vpack.c.b16 %v4486, %v4486
  %v4503 = vpack.c.b16 %v4487, %v4487
  %v4504 = vpack.c.b16 %v4488, %v4488
  %v4505 = vpack.c.b16 %v4489, %v4489
  %v4506 = vpack.c.b16 %v4490, %v4490
  %v4507 = vpack.c.b16 %v4491, %v4491
  %v4508 = vpack.c.b16 %v4492, %v4492
  %v4509 = vpack.c.b16 %v4493, %v4493
  %v4510 = vpack.c.b16 %v4494, %v4494
  %v4511 = vpack.c.b16 %v4495, %v4495
  %v4512 = vpack.c.b16 %v4496, %v4496
  %v4513 = vpack.c.b16 %v4497, %v4497
  %v4514 = vpack.c.b16 %v4498, %v4498
  %v4515 = vpack.c.b16 %v4499, %v4499
  %v4516 = vpack.c.b16 %v4500, %v4500
  %v5045 = vunpack.c.l.b16 %v3477
  %v5046 = vunpack.c.h.b16 %v3477
  %v5047 = vunpack.c.l.b16 %v3478
  %v5048 = vunpack.c.h.b16 %v3478
  %v5049 = vunpack.c.l.b16 %v3479
  %v5050 = vunpack.c.h.b16 %v3479
  %v5051 = vunpack.c.l.b16 %v3480
  %v5052 = vunpack.c.h.b16 %v3480
  %v5053 = vunpack.c.l.b16 %v3481
  %v5054 = vunpack.c.h.b16 %v3481
  %v5055 = vunpack.c.l.b16 %v3482
  %v5056 = vunpack.c.h.b16 %v3482
  %v5057 = vunpack.c.l.b16 %v3483
  %v5058 = vunpack.c.h.b16 %v3483
  %v5059 = vunpack.c.l.b16 %v3484
  %v5060 = vunpack.c.h.b16 %v3484
  %v5061 = vunpack.c.l.b16 %v3485
  %v5062 = vunpack.c.h.b16 %v3485
  %v5063 = vunpack.c.l.b16 %v3486
  %v5064 = vunpack.c.h.b16 %v3486
  %v5065 = vunpack.c.l.b16 %v3487
  %v5066 = vunpack.c.h.b16 %v3487
  %v5067 = vunpack.c.l.b16 %v3488
  %v5068 = vunpack.c.h.b16 %v3488
  %v5069 = vunpack.c.l.b16 %v3489
  %v5070 = vunpack.c.h.b16 %v3489
  %v5071 = vunpack.c.l.b16 %v3490
  %v5072 = vunpack.c.h.b16 %v3490
  %v5073 = vunpack.c.l.b16 %v3491
  %v5074 = vunpack.c.h.b16 %v3491
  %v5075 = vunpack.c.l.b16 %v3492
  %v5076 = vunpack.c.h.b16 %v3492
  %v5077 = vunpack.c.l.b16 %v3493
  %v5078 = vunpack.c.h.b16 %v3493
  %v5079 = vunpack.c.l.b16 %v3494
  %v5080 = vunpack.c.h.b16 %v3494
  %v5081 = vunpack.c.l.b16 %v3495
  %v5082 = vunpack.c.h.b16 %v3495
  %v5083 = vunpack.c.l.b16 %v3496
  %v5084 = vunpack.c.h.b16 %v3496
  %v5085 = vunpack.c.l.b16 %v3497
  %v5086 = vunpack.c.h.b16 %v3497
  %v5087 = vunpack.c.l.b16 %v3498
  %v5088 = vunpack.c.h.b16 %v3498
  %v5089 = vunpack.c.l.b16 %v3499
  %v5090 = vunpack.c.h.b16 %v3499
  %v5091 = vunpack.c.l.b16 %v3500
  %v5092 = vunpack.c.h.b16 %v3500
  %v5093 = vunpack.c.l.b16 %v3501
  %v5094 = vunpack.c.h.b16 %v3501
  %v5095 = vunpack.c.l.b16 %v3502
  %v5096 = vunpack.c.h.b16 %v3502
  %v5097 = vunpack.c.l.b16 %v3503
  %v5098 = vunpack.c.h.b16 %v3503
  %v5099 = vunpack.c.l.b16 %v3504
  %v5100 = vunpack.c.h.b16 %v3504
  %v5101 = vunpack.c.l.b16 %v3505
  %v5102 = vunpack.c.h.b16 %v3505
  %v5103 = vunpack.c.l.b16 %v3506
  %v5104 = vunpack.c.h.b16 %v3506
  %v5105 = vunpack.c.l.b16 %v3507
  %v5106 = vunpack.c.h.b16 %v3507
  %v5107 = vunpack.c.l.b16 %v3508
  %v5108 = vunpack.c.h.b16 %v3508
  %v5109 = vunpack.c.l.b16 %v3509
  %v5110 = vunpack.c.h.b16 %v3509
  %v5111 = vunpack.c.l.b16 %v3510
  %v5112 = vunpack.c.h.b16 %v3510
  %v5113 = vunpack.c.l.b16 %v3511
  %v5114 = vunpack.c.h.b16 %v3511
  %v5115 = vunpack.c.l.b16 %v3512
  %v5116 = vunpack.c.h.b16 %v3512
  %v5117 = vunpack.c.l.b16 %v3513
  %v5118 = vunpack.c.h.b16 %v3513
  %v5119 = vunpack.c.l.b16 %v3514
  %v5120 = vunpack.c.h.b16 %v3514
  %v5121 = vunpack.c.l.b16 %v3515
  %v5122 = vunpack.c.h.b16 %v3515
  %v5123 = vunpack.c.l.b16 %v3516
  %v5124 = vunpack.c.h.b16 %v3516
  %v5125 = vunpack.c.l.b16 %v3517
  %v5126 = vunpack.c.h.b16 %v3517
  %v5127 = vunpack.c.l.b16 %v3518
  %v5128 = vunpack.c.h.b16 %v3518
  %v5129 = vunpack.c.l.b16 %v3519
  %v5130 = vunpack.c.h.b16 %v3519
  %v5131 = vunpack.c.l.b16 %v3520
  %v5132 = vunpack.c.h.b16 %v3520
  %v5133 = vunpack.c.l.b16 %v3521
  %v5134 = vunpack.c.h.b16 %v3521
  %v5135 = vunpack.c.l.b16 %v3522
  %v5136 = vunpack.c.h.b16 %v3522
  %v5137 = vunpack.c.l.b16 %v3523
  %v5138 = vunpack.c.h.b16 %v3523
  %v5139 = vunpack.c.l.b16 %v3524
  %v5140 = vunpack.c.h.b16 %v3524
  %v5141 = vunpack.c.l.b16 %v3525
  %v5142 = vunpack.c.h.b16 %v3525
  %v5143 = vunpack.c.l.b16 %v3526
  %v5144 = vunpack.c.h.b16 %v3526
  %v5145 = vunpack.c.l.b16 %v3527
  %v5146 = vunpack.c.h.b16 %v3527
  %v5147 = vunpack.c.l.b16 %v3528
  %v5148 = vunpack.c.h.b16 %v3528
  %v5149 = vunpack.c.l.b16 %v3529
  %v5150 = vunpack.c.h.b16 %v3529
  %v5151 = vunpack.c.l.b16 %v3530
  %v5152 = vunpack.c.h.b16 %v3530
  %v5153 = vunpack.c.l.b16 %v3531
  %v5154 = vunpack.c.h.b16 %v3531
  %v5155 = vunpack.c.l.b16 %v3532
  %v5156 = vunpack.c.h.b16 %v3532
  %v5157 = vunpack.c.l.b16 %v3533
  %v5158 = vunpack.c.h.b16 %v3533
  %v5159 = vunpack.c.l.b16 %v3534
  %v5160 = vunpack.c.h.b16 %v3534
  %v5161 = vunpack.c.l.b16 %v3535
  %v5162 = vunpack.c.h.b16 %v3535
  %v5163 = vunpack.c.l.b16 %v3536
  %v5164 = vunpack.c.h.b16 %v3536
  %v5165 = vunpack.c.l.b16 %v3537
  %v5166 = vunpack.c.h.b16 %v3537
  %v5167 = vunpack.c.l.b16 %v3538
  %v5168 = vunpack.c.h.b16 %v3538
  %v5169 = vunpack.c.l.b16 %v3539
  %v5170 = vunpack.c.h.b16 %v3539
  %v5171 = vunpack.c.l.b16 %v3540
  %v5172 = vunpack.c.h.b16 %v3540
  %v5173 = vunpack.c.l.b16 %v3541
  %v5174 = vunpack.c.h.b16 %v3541
  %v5175 = vunpack.c.l.b16 %v3542
  %v5176 = vunpack.c.h.b16 %v3542
  %v5177 = vunpack.c.l.b16 %v3543
  %v5178 = vunpack.c.h.b16 %v3543
  %v5179 = vunpack.c.l.b16 %v3544
  %v5180 = vunpack.c.h.b16 %v3544
  %v5181 = vunpack.c.l.b16 %v3545
  %v5182 = vunpack.c.h.b16 %v3545
  %v5183 = vunpack.c.l.b16 %v3546
  %v5184 = vunpack.c.h.b16 %v3546
  %v5185 = vunpack.c.l.b16 %v3547
  %v5186 = vunpack.c.h.b16 %v3547
  %v5187 = vunpack.c.l.b16 %v3548
  %v5188 = vunpack.c.h.b16 %v3548
  %v5189 = vunpack.c.l.b16 %v3549
  %v5190 = vunpack.c.h.b16 %v3549
  %v5191 = vunpack.c.l.b16 %v3550
  %v5192 = vunpack.c.h.b16 %v3550
  %v5193 = vunpack.c.l.b16 %v3551
  %v5194 = vunpack.c.h.b16 %v3551
  %v5195 = vunpack.c.l.b16 %v3552
  %v5196 = vunpack.c.h.b16 %v3552
  %v5197 = vunpack.c.l.b16 %v3553
  %v5198 = vunpack.c.h.b16 %v3553
  %v5199 = vunpack.c.l.b16 %v3554
  %v5200 = vunpack.c.h.b16 %v3554
  %v5201 = vunpack.c.l.b16 %v3555
  %v5202 = vunpack.c.h.b16 %v3555
  %v5203 = vunpack.c.l.b16 %v3556
  %v5204 = vunpack.c.h.b16 %v3556
  %v5205 = vunpack.c.l.b16 %v3557
  %v5206 = vunpack.c.h.b16 %v3557
  %v5207 = vunpack.c.l.b16 %v3558
  %v5208 = vunpack.c.h.b16 %v3558
  %v5209 = vunpack.c.l.b16 %v3559
  %v5210 = vunpack.c.h.b16 %v3559
  %v5211 = vunpack.c.l.b16 %v3560
  %v5212 = vunpack.c.h.b16 %v3560
  %v5213 = vunpack.c.l.b16 %v3561
  %v5214 = vunpack.c.h.b16 %v3561
  %v5215 = vunpack.c.l.b16 %v3562
  %v5216 = vunpack.c.h.b16 %v3562
  %v5217 = vunpack.c.l.b16 %v3563
  %v5218 = vunpack.c.h.b16 %v3563
  %v5219 = vunpack.c.l.b16 %v3564
  %v5220 = vunpack.c.h.b16 %v3564
  %v5221 = vunpack.c.l.b16 %v3565
  %v5222 = vunpack.c.h.b16 %v3565
  %v5223 = vunpack.c.l.b16 %v3566
  %v5224 = vunpack.c.h.b16 %v3566
  %v5225 = vunpack.c.l.b16 %v3567
  %v5226 = vunpack.c.h.b16 %v3567
  %v5227 = vunpack.c.l.b16 %v3568
  %v5228 = vunpack.c.h.b16 %v3568
  %v5229 = vunpack.c.l.b16 %v3569
  %v5230 = vunpack.c.h.b16 %v3569
  %v5231 = vunpack.c.l.b16 %v3570
  %v5232 = vunpack.c.h.b16 %v3570
  %v5233 = vunpack.c.l.b16 %v3571
  %v5234 = vunpack.c.h.b16 %v3571
  %v5235 = vunpack.c.l.b16 %v3572
  %v5236 = vunpack.c.h.b16 %v3572
  %v5237 = vunpack.c.l.b16 %v3573
  %v5238 = vunpack.c.h.b16 %v3573
  %v5239 = vunpack.c.l.b16 %v3574
  %v5240 = vunpack.c.h.b16 %v3574
  %v5241 = vunpack.c.l.b16 %v3575
  %v5242 = vunpack.c.h.b16 %v3575
  %v5243 = vunpack.c.l.b16 %v3576
  %v5244 = vunpack.c.h.b16 %v3576
  %v5245 = vunpack.c.l.b16 %v3577
  %v5246 = vunpack.c.h.b16 %v3577
  %v5247 = vunpack.c.l.b16 %v3578
  %v5248 = vunpack.c.h.b16 %v3578
  %v5249 = vunpack.c.l.b16 %v3579
  %v5250 = vunpack.c.h.b16 %v3579
  %v5251 = vunpack.c.l.b16 %v3580
  %v5252 = vunpack.c.h.b16 %v3580
  %v5253 = vunpack.c.l.b16 %v3581
  %v5254 = vunpack.c.h.b16 %v3581
  %v5255 = vunpack.c.l.b16 %v3582
  %v5256 = vunpack.c.h.b16 %v3582
  %v5257 = vunpack.c.l.b16 %v3583
  %v5258 = vunpack.c.h.b16 %v3583
  %v5259 = vunpack.c.l.b16 %v3584
  %v5260 = vunpack.c.h.b16 %v3584
  %v5261 = vunpack.c.l.b16 %v3585
  %v5262 = vunpack.c.h.b16 %v3585
  %v5263 = vunpack.c.l.b16 %v3586
  %v5264 = vunpack.c.h.b16 %v3586
  %v5265 = vunpack.c.l.b16 %v3587
  %v5266 = vunpack.c.h.b16 %v3587
  %v5267 = vunpack.c.l.b16 %v3588
  %v5268 = vunpack.c.h.b16 %v3588
  %v5269 = vunpack.c.l.b16 %v3589
  %v5270 = vunpack.c.h.b16 %v3589
  %v5271 = vunpack.c.l.b16 %v3590
  %v5272 = vunpack.c.h.b16 %v3590
  %v5273 = vunpack.c.l.b16 %v3591
  %v5274 = vunpack.c.h.b16 %v3591
  %v5275 = vunpack.c.l.b16 %v3592
  %v5276 = vunpack.c.h.b16 %v3592
  %v5277 = vunpack.c.l.b16 %v3593
  %v5278 = vunpack.c.h.b16 %v3593
  %v5279 = vunpack.c.l.b16 %v3594
  %v5280 = vunpack.c.h.b16 %v3594
  %v5281 = vunpack.c.l.b16 %v3595
  %v5282 = vunpack.c.h.b16 %v3595
  %v5283 = vunpack.c.l.b16 %v3596
  %v5284 = vunpack.c.h.b16 %v3596
  %v5285 = vunpack.c.l.b16 %v3597
  %v5286 = vunpack.c.h.b16 %v3597
  %v5287 = vunpack.c.l.b16 %v3598
  %v5288 = vunpack.c.h.b16 %v3598
  %v5289 = vunpack.c.l.b16 %v3599
  %v5290 = vunpack.c.h.b16 %v3599
  %v5291 = vunpack.c.l.b16 %v3600
  %v5292 = vunpack.c.h.b16 %v3600
  %v5293 = vunpack.c.l.b16 %v3601
  %v5294 = vunpack.c.h.b16 %v3601
  %v5295 = vunpack.c.l.b16 %v3602
  %v5296 = vunpack.c.h.b16 %v3602
  %v5297 = vunpack.c.l.b16 %v3603
  %v5298 = vunpack.c.h.b16 %v3603
  %v5299 = vunpack.c.l.b16 %v3604
  %v5300 = vunpack.c.h.b16 %v3604
  %v5301 = vunpack.c.l.b16 %v3605
  %v5302 = vunpack.c.h.b16 %v3605
  %v5303 = vunpack.c.l.b16 %v3606
  %v5304 = vunpack.c.h.b16 %v3606
  %v5305 = vunpack.c.l.b16 %v3607
  %v5306 = vunpack.c.h.b16 %v3607
  %v5307 = vunpack.c.l.b16 %v3608
  %v5308 = vunpack.c.h.b16 %v3608
  %v5309 = vunpack.c.l.b16 %v3609
  %v5310 = vunpack.c.h.b16 %v3609
  %v5311 = vunpack.c.l.b16 %v3610
  %v5312 = vunpack.c.h.b16 %v3610
  %v5313 = vunpack.c.l.b16 %v3611
  %v5314 = vunpack.c.h.b16 %v3611
  %v5315 = vunpack.c.l.b16 %v3612
  %v5316 = vunpack.c.h.b16 %v3612
  %v5317 = vunpack.c.l.b16 %v3613
  %v5318 = vunpack.c.h.b16 %v3613
  %v5319 = vunpack.c.l.b16 %v3614
  %v5320 = vunpack.c.h.b16 %v3614
  %v5321 = vunpack.c.l.b16 %v3615
  %v5322 = vunpack.c.h.b16 %v3615
  %v5323 = vunpack.c.l.b16 %v3616
  %v5324 = vunpack.c.h.b16 %v3616
  %v5325 = vunpack.c.l.b16 %v3617
  %v5326 = vunpack.c.h.b16 %v3617
  %v5327 = vunpack.c.l.b16 %v3618
  %v5328 = vunpack.c.h.b16 %v3618
  %v5329 = vunpack.c.l.b16 %v3619
  %v5330 = vunpack.c.h.b16 %v3619
  %v5331 = vunpack.c.l.b16 %v3620
  %v5332 = vunpack.c.h.b16 %v3620
  %v5333 = vunpack.c.l.b16 %v3621
  %v5334 = vunpack.c.h.b16 %v3621
  %v5335 = vunpack.c.l.b16 %v3622
  %v5336 = vunpack.c.h.b16 %v3622
  %v5337 = vunpack.c.l.b16 %v3623
  %v5338 = vunpack.c.h.b16 %v3623
  %v5339 = vunpack.c.l.b16 %v3624
  %v5340 = vunpack.c.h.b16 %v3624
  %v5341 = vunpack.c.l.b16 %v3625
  %v5342 = vunpack.c.h.b16 %v3625
  %v5343 = vunpack.c.l.b16 %v3626
  %v5344 = vunpack.c.h.b16 %v3626
  %v5345 = vunpack.c.l.b16 %v3627
  %v5346 = vunpack.c.h.b16 %v3627
  %v5347 = vunpack.c.l.b16 %v3628
  %v5348 = vunpack.c.h.b16 %v3628
  %v5349 = vunpack.c.l.b16 %v3629
  %v5350 = vunpack.c.h.b16 %v3629
  %v5351 = vunpack.c.l.b16 %v3630
  %v5352 = vunpack.c.h.b16 %v3630
  %v5353 = vunpack.c.l.b16 %v3631
  %v5354 = vunpack.c.h.b16 %v3631
  %v5355 = vunpack.c.l.b16 %v3632
  %v5356 = vunpack.c.h.b16 %v3632
  %v5357 = vunpack.c.l.b16 %v3633
  %v5358 = vunpack.c.h.b16 %v3633
  %v5359 = vunpack.c.l.b16 %v3634
  %v5360 = vunpack.c.h.b16 %v3634
  %v5361 = vunpack.c.l.b16 %v3635
  %v5362 = vunpack.c.h.b16 %v3635
  %v5363 = vunpack.c.l.b16 %v3636
  %v5364 = vunpack.c.h.b16 %v3636
  %v5365 = vunpack.c.l.b16 %v3637
  %v5366 = vunpack.c.h.b16 %v3637
  %v5367 = vunpack.c.l.b16 %v3638
  %v5368 = vunpack.c.h.b16 %v3638
  %v5369 = vunpack.c.l.b16 %v3639
  %v5370 = vunpack.c.h.b16 %v3639
  %v5371 = vunpack.c.l.b16 %v3640
  %v5372 = vunpack.c.h.b16 %v3640
  %v5373 = vunpack.c.l.b16 %v3641
  %v5374 = vunpack.c.h.b16 %v3641
  %v5375 = vunpack.c.l.b16 %v3642
  %v5376 = vunpack.c.h.b16 %v3642
  %v5377 = vunpack.c.l.b16 %v3643
  %v5378 = vunpack.c.h.b16 %v3643
  %v5379 = vunpack.c.l.b16 %v3644
  %v5380 = vunpack.c.h.b16 %v3644
  %v5381 = vunpack.c.l.b16 %v3645
  %v5382 = vunpack.c.h.b16 %v3645
  %v5383 = vunpack.c.l.b16 %v3646
  %v5384 = vunpack.c.h.b16 %v3646
  %v5385 = vunpack.c.l.b16 %v3647
  %v5386 = vunpack.c.h.b16 %v3647
  %v5387 = vunpack.c.l.b16 %v3648
  %v5388 = vunpack.c.h.b16 %v3648
  %v5389 = vunpack.c.l.b16 %v3649
  %v5390 = vunpack.c.h.b16 %v3649
  %v5391 = vunpack.c.l.b16 %v3650
  %v5392 = vunpack.c.h.b16 %v3650
  %v5393 = vunpack.c.l.b16 %v3651
  %v5394 = vunpack.c.h.b16 %v3651
  %v5395 = vunpack.c.l.b16 %v3652
  %v5396 = vunpack.c.h.b16 %v3652
  %v5397 = vunpack.c.l.b16 %v3653
  %v5398 = vunpack.c.h.b16 %v3653
  %v5399 = vunpack.c.l.b16 %v3654
  %v5400 = vunpack.c.h.b16 %v3654
  %v5401 = vunpack.c.l.b16 %v3655
  %v5402 = vunpack.c.h.b16 %v3655
  %v5403 = vunpack.c.l.b16 %v3656
  %v5404 = vunpack.c.h.b16 %v3656
  %v5405 = vunpack.c.l.b16 %v3657
  %v5406 = vunpack.c.h.b16 %v3657
  %v5407 = vunpack.c.l.b16 %v3658
  %v5408 = vunpack.c.h.b16 %v3658
  %v5409 = vunpack.c.l.b16 %v3659
  %v5410 = vunpack.c.h.b16 %v3659
  %v5411 = vunpack.c.l.b16 %v3660
  %v5412 = vunpack.c.h.b16 %v3660
  %v5413 = vunpack.c.l.b16 %v3661
  %v5414 = vunpack.c.h.b16 %v3661
  %v5415 = vunpack.c.l.b16 %v3662
  %v5416 = vunpack.c.h.b16 %v3662
  %v5417 = vunpack.c.l.b16 %v3663
  %v5418 = vunpack.c.h.b16 %v3663
  %v5419 = vunpack.c.l.b16 %v3664
  %v5420 = vunpack.c.h.b16 %v3664
  %v5421 = vunpack.c.l.b16 %v3665
  %v5422 = vunpack.c.h.b16 %v3665
  %v5423 = vunpack.c.l.b16 %v3666
  %v5424 = vunpack.c.h.b16 %v3666
  %v5425 = vunpack.c.l.b16 %v3667
  %v5426 = vunpack.c.h.b16 %v3667
  %v5427 = vunpack.c.l.b16 %v3668
  %v5428 = vunpack.c.h.b16 %v3668
  %v5429 = vunpack.c.l.b16 %v3669
  %v5430 = vunpack.c.h.b16 %v3669
  %v5431 = vunpack.c.l.b16 %v3670
  %v5432 = vunpack.c.h.b16 %v3670
  %v5433 = vunpack.c.l.b16 %v3671
  %v5434 = vunpack.c.h.b16 %v3671
  %v5435 = vunpack.c.l.b16 %v3672
  %v5436 = vunpack.c.h.b16 %v3672
  %v5437 = vunpack.c.l.b16 %v3673
  %v5438 = vunpack.c.h.b16 %v3673
  %v5439 = vunpack.c.l.b16 %v3674
  %v5440 = vunpack.c.h.b16 %v3674
  %v5441 = vunpack.c.l.b16 %v3675
  %v5442 = vunpack.c.h.b16 %v3675
  %v5443 = vunpack.c.l.b16 %v3676
  %v5444 = vunpack.c.h.b16 %v3676
  %v5445 = vunpack.c.l.b16 %v3677
  %v5446 = vunpack.c.h.b16 %v3677
  %v5447 = vunpack.c.l.b16 %v3678
  %v5448 = vunpack.c.h.b16 %v3678
  %v5449 = vunpack.c.l.b16 %v3679
  %v5450 = vunpack.c.h.b16 %v3679
  %v5451 = vunpack.c.l.b16 %v3680
  %v5452 = vunpack.c.h.b16 %v3680
  %v5453 = vunpack.c.l.b16 %v3681
  %v5454 = vunpack.c.h.b16 %v3681
  %v5455 = vunpack.c.l.b16 %v3682
  %v5456 = vunpack.c.h.b16 %v3682
  %v5457 = vunpack.c.l.b16 %v3683
  %v5458 = vunpack.c.h.b16 %v3683
  %v5459 = vunpack.c.l.b16 %v3684
  %v5460 = vunpack.c.h.b16 %v3684
  %v5461 = vunpack.c.l.b16 %v3685
  %v5462 = vunpack.c.h.b16 %v3685
  %v5463 = vunpack.c.l.b16 %v3686
  %v5464 = vunpack.c.h.b16 %v3686
  %v5465 = vunpack.c.l.b16 %v3687
  %v5466 = vunpack.c.h.b16 %v3687
  %v5467 = vunpack.c.l.b16 %v3688
  %v5468 = vunpack.c.h.b16 %v3688
  %v5469 = vunpack.c.l.b16 %v3689
  %v5470 = vunpack.c.h.b16 %v3689
  %v5471 = vunpack.c.l.b16 %v3690
  %v5472 = vunpack.c.h.b16 %v3690
  %v5473 = vunpack.c.l.b16 %v3691
  %v5474 = vunpack.c.h.b16 %v3691
  %v5475 = vunpack.c.l.b16 %v3692
  %v5476 = vunpack.c.h.b16 %v3692
  %v5477 = vunpack.c.l.b16 %v3693
  %v5478 = vunpack.c.h.b16 %v3693
  %v5479 = vunpack.c.l.b16 %v3694
  %v5480 = vunpack.c.h.b16 %v3694
  %v5481 = vunpack.c.l.b16 %v3695
  %v5482 = vunpack.c.h.b16 %v3695
  %v5483 = vunpack.c.l.b16 %v3696
  %v5484 = vunpack.c.h.b16 %v3696
  %v5485 = vunpack.c.l.b16 %v3697
  %v5486 = vunpack.c.h.b16 %v3697
  %v5487 = vunpack.c.l.b16 %v3698
  %v5488 = vunpack.c.h.b16 %v3698
  %v5489 = vunpack.c.l.b16 %v3699
  %v5490 = vunpack.c.h.b16 %v3699
  %v5491 = vunpack.c.l.b16 %v3700
  %v5492 = vunpack.c.h.b16 %v3700
  %v5493 = vunpack.c.l.b16 %v3701
  %v5494 = vunpack.c.h.b16 %v3701
  %v5495 = vunpack.c.l.b16 %v3702
  %v5496 = vunpack.c.h.b16 %v3702
  %v5497 = vunpack.c.l.b16 %v3703
  %v5498 = vunpack.c.h.b16 %v3703
  %v5499 = vunpack.c.l.b16 %v3704
  %v5500 = vunpack.c.h.b16 %v3704
  %v5501 = vunpack.c.l.b16 %v3705
  %v5502 = vunpack.c.h.b16 %v3705
  %v5503 = vunpack.c.l.b16 %v3706
  %v5504 = vunpack.c.h.b16 %v3706
  %v5505 = vunpack.c.l.b16 %v3707
  %v5506 = vunpack.c.h.b16 %v3707
  %v5507 = vunpack.c.l.b16 %v3708
  %v5508 = vunpack.c.h.b16 %v3708
  %v5509 = vunpack.c.l.b16 %v3709
  %v5510 = vunpack.c.h.b16 %v3709
  %v5511 = vunpack.c.l.b16 %v3710
  %v5512 = vunpack.c.h.b16 %v3710
  %v5513 = vunpack.c.l.b16 %v3711
  %v5514 = vunpack.c.h.b16 %v3711
  %v5515 = vunpack.c.l.b16 %v3712
  %v5516 = vunpack.c.h.b16 %v3712
  %v5517 = vunpack.c.l.b16 %v3713
  %v5518 = vunpack.c.h.b16 %v3713
  %v5519 = vunpack.c.l.b16 %v3714
  %v5520 = vunpack.c.h.b16 %v3714
  %v5521 = vunpack.c.l.b16 %v3715
  %v5522 = vunpack.c.h.b16 %v3715
  %v5523 = vunpack.c.l.b16 %v3716
  %v5524 = vunpack.c.h.b16 %v3716
  %v5525 = vunpack.c.l.b16 %v3717
  %v5526 = vunpack.c.h.b16 %v3717
  %v5527 = vunpack.c.l.b16 %v3718
  %v5528 = vunpack.c.h.b16 %v3718
  %v5529 = vunpack.c.l.b16 %v3719
  %v5530 = vunpack.c.h.b16 %v3719
  %v5531 = vunpack.c.l.b16 %v3720
  %v5532 = vunpack.c.h.b16 %v3720
  %v5533 = vunpack.c.l.b16 %v3721
  %v5534 = vunpack.c.h.b16 %v3721
  %v5535 = vunpack.c.l.b16 %v3722
  %v5536 = vunpack.c.h.b16 %v3722
  %v5537 = vunpack.c.l.b16 %v3723
  %v5538 = vunpack.c.h.b16 %v3723
  %v5539 = vunpack.c.l.b16 %v3724
  %v5540 = vunpack.c.h.b16 %v3724
  %v5541 = vunpack.c.l.b16 %v3725
  %v5542 = vunpack.c.h.b16 %v3725
  %v5543 = vunpack.c.l.b16 %v3726
  %v5544 = vunpack.c.h.b16 %v3726
  %v5545 = vunpack.c.l.b16 %v3727
  %v5546 = vunpack.c.h.b16 %v3727
  %v5547 = vunpack.c.l.b16 %v3728
  %v5548 = vunpack.c.h.b16 %v3728
  %v5549 = vunpack.c.l.b16 %v3729
  %v5550 = vunpack.c.h.b16 %v3729
  %v5551 = vunpack.c.l.b16 %v3730
  %v5552 = vunpack.c.h.b16 %v3730
  %v5553 = vunpack.c.l.b16 %v3731
  %v5554 = vunpack.c.h.b16 %v3731
  %v5555 = vunpack.c.l.b16 %v3732
  %v5556 = vunpack.c.h.b16 %v3732
  %v5557 = vunpack.c.l.b16 %v3733
  %v5558 = vunpack.c.h.b16 %v3733
  %v5559 = vunpack.c.l.b16 %v3734
  %v5560 = vunpack.c.h.b16 %v3734
  %v5561 = vunpack.c.l.b16 %v3735
  %v5562 = vunpack.c.h.b16 %v3735
  %v5563 = vunpack.c.l.b16 %v3736
  %v5564 = vunpack.c.h.b16 %v3736
  %v5565 = vunpack.c.l.b16 %v3737
  %v5566 = vunpack.c.h.b16 %v3737
  %v5567 = vunpack.c.l.b16 %v3738
  %v5568 = vunpack.c.h.b16 %v3738
  %v5569 = vunpack.c.l.b16 %v3739
  %v5570 = vunpack.c.h.b16 %v3739
  %v5571 = vunpack.c.l.b16 %v3740
  %v5572 = vunpack.c.h.b16 %v3740
  %v5573 = vunpack.c.l.b16 %v3741
  %v5574 = vunpack.c.h.b16 %v3741
  %v5575 = vunpack.c.l.b16 %v3742
  %v5576 = vunpack.c.h.b16 %v3742
  %v5577 = vunpack.c.l.b16 %v3743
  %v5578 = vunpack.c.h.b16 %v3743
  %v5579 = vunpack.c.l.b16 %v3744
  %v5580 = vunpack.c.h.b16 %v3744
  %v5581 = vunpack.c.l.b16 %v3745
  %v5582 = vunpack.c.h.b16 %v3745
  %v5583 = vunpack.c.l.b16 %v3746
  %v5584 = vunpack.c.h.b16 %v3746
  %v5585 = vunpack.c.l.b16 %v3747
  %v5586 = vunpack.c.h.b16 %v3747
  %v5587 = vunpack.c.l.b16 %v3748
  %v5588 = vunpack.c.h.b16 %v3748
  %v5589 = vunpack.c.l.b16 %v3749
  %v5590 = vunpack.c.h.b16 %v3749
  %v5591 = vunpack.c.l.b16 %v3750
  %v5592 = vunpack.c.h.b16 %v3750
  %v5593 = vunpack.c.l.b16 %v3751
  %v5594 = vunpack.c.h.b16 %v3751
  %v5595 = vunpack.c.l.b16 %v3752
  %v5596 = vunpack.c.h.b16 %v3752
  %v5597 = vunpack.c.l.b16 %v3753
  %v5598 = vunpack.c.h.b16 %v3753
  %v5599 = vunpack.c.l.b16 %v3754
  %v5600 = vunpack.c.h.b16 %v3754
  %v5601 = vunpack.c.l.b16 %v3755
  %v5602 = vunpack.c.h.b16 %v3755
  %v5603 = vunpack.c.l.b16 %v3756
  %v5604 = vunpack.c.h.b16 %v3756
  %v5605 = vunpack.c.l.b16 %v3757
  %v5606 = vunpack.c.h.b16 %v3757
  %v5607 = vunpack.c.l.b16 %v3758
  %v5608 = vunpack.c.h.b16 %v3758
  %v5609 = vunpack.c.l.b16 %v3759
  %v5610 = vunpack.c.h.b16 %v3759
  %v5611 = vunpack.c.l.b16 %v3760
  %v5612 = vunpack.c.h.b16 %v3760
  %v5613 = vunpack.c.l.b16 %v3761
  %v5614 = vunpack.c.h.b16 %v3761
  %v5615 = vunpack.c.l.b16 %v3762
  %v5616 = vunpack.c.h.b16 %v3762
  %v5617 = vunpack.c.l.b16 %v3763
  %v5618 = vunpack.c.h.b16 %v3763
  %v5619 = vunpack.c.l.b16 %v3764
  %v5620 = vunpack.c.h.b16 %v3764
  %v5621 = vunpack.c.l.b16 %v3765
  %v5622 = vunpack.c.h.b16 %v3765
  %v5623 = vunpack.c.l.b16 %v3766
  %v5624 = vunpack.c.h.b16 %v3766
  %v5625 = vunpack.c.l.b16 %v3767
  %v5626 = vunpack.c.h.b16 %v3767
  %v5627 = vunpack.c.l.b16 %v3768
  %v5628 = vunpack.c.h.b16 %v3768
  %v5629 = vunpack.c.l.b16 %v3769
  %v5630 = vunpack.c.h.b16 %v3769
  %v5631 = vunpack.c.l.b16 %v3770
  %v5632 = vunpack.c.h.b16 %v3770
  %v5633 = vunpack.c.l.b16 %v3771
  %v5634 = vunpack.c.h.b16 %v3771
  %v5635 = vunpack.c.l.b16 %v3772
  %v5636 = vunpack.c.h.b16 %v3772
  %v5637 = vunpack.c.l.b16 %v3773
  %v5638 = vunpack.c.h.b16 %v3773
  %v5639 = vunpack.c.l.b16 %v3774
  %v5640 = vunpack.c.h.b16 %v3774
  %v5641 = vunpack.c.l.b16 %v3775
  %v5642 = vunpack.c.h.b16 %v3775
  %v5643 = vunpack.c.l.b16 %v3776
  %v5644 = vunpack.c.h.b16 %v3776
  %v5645 = vunpack.c.l.b16 %v3777
  %v5646 = vunpack.c.h.b16 %v3777
  %v5647 = vunpack.c.l.b16 %v3778
  %v5648 = vunpack.c.h.b16 %v3778
  %v5649 = vunpack.c.l.b16 %v3779
  %v5650 = vunpack.c.h.b16 %v3779
  %v5651 = vunpack.c.l.b16 %v3780
  %v5652 = vunpack.c.h.b16 %v3780
  %v5653 = vunpack.c.l.b16 %v3781
  %v5654 = vunpack.c.h.b16 %v3781
  %v5655 = vunpack.c.l.b16 %v3782
  %v5656 = vunpack.c.h.b16 %v3782
  %v5657 = vunpack.c.l.b16 %v3783
  %v5658 = vunpack.c.h.b16 %v3783
  %v5659 = vunpack.c.l.b16 %v3784
  %v5660 = vunpack.c.h.b16 %v3784
  %v5661 = vunpack.c.l.b16 %v3785
  %v5662 = vunpack.c.h.b16 %v3785
  %v5663 = vunpack.c.l.b16 %v3786
  %v5664 = vunpack.c.h.b16 %v3786
  %v5665 = vunpack.c.l.b16 %v3787
  %v5666 = vunpack.c.h.b16 %v3787
  %v5667 = vunpack.c.l.b16 %v3788
  %v5668 = vunpack.c.h.b16 %v3788
  %v5669 = vunpack.c.l.b16 %v3789
  %v5670 = vunpack.c.h.b16 %v3789
  %v5671 = vunpack.c.l.b16 %v3790
  %v5672 = vunpack.c.h.b16 %v3790
  %v5673 = vunpack.c.l.b16 %v3791
  %v5674 = vunpack.c.h.b16 %v3791
  %v5675 = vunpack.c.l.b16 %v3792
  %v5676 = vunpack.c.h.b16 %v3792
  %v5677 = vunpack.c.l.b16 %v3793
  %v5678 = vunpack.c.h.b16 %v3793
  %v5679 = vunpack.c.l.b16 %v3794
  %v5680 = vunpack.c.h.b16 %v3794
  %v5681 = vunpack.c.l.b16 %v3795
  %v5682 = vunpack.c.h.b16 %v3795
  %v5683 = vunpack.c.l.b16 %v3796
  %v5684 = vunpack.c.h.b16 %v3796
  %v5685 = vunpack.c.l.b16 %v3797
  %v5686 = vunpack.c.h.b16 %v3797
  %v5687 = vunpack.c.l.b16 %v3798
  %v5688 = vunpack.c.h.b16 %v3798
  %v5689 = vunpack.c.l.b16 %v3799
  %v5690 = vunpack.c.h.b16 %v3799
  %v5691 = vunpack.c.l.b16 %v3800
  %v5692 = vunpack.c.h.b16 %v3800
  %v5693 = vunpack.c.l.b16 %v3801
  %v5694 = vunpack.c.h.b16 %v3801
  %v5695 = vunpack.c.l.b16 %v3802
  %v5696 = vunpack.c.h.b16 %v3802
  %v5697 = vunpack.c.l.b16 %v3803
  %v5698 = vunpack.c.h.b16 %v3803
  %v5699 = vunpack.c.l.b16 %v3804
  %v5700 = vunpack.c.h.b16 %v3804
  %v5701 = vunpack.c.l.b16 %v3805
  %v5702 = vunpack.c.h.b16 %v3805
  %v5703 = vunpack.c.l.b16 %v3806
  %v5704 = vunpack.c.h.b16 %v3806
  %v5705 = vunpack.c.l.b16 %v3807
  %v5706 = vunpack.c.h.b16 %v3807
  %v5707 = vunpack.c.l.b16 %v3808
  %v5708 = vunpack.c.h.b16 %v3808
  %v5709 = vunpack.c.l.b16 %v3809
  %v5710 = vunpack.c.h.b16 %v3809
  %v5711 = vunpack.c.l.b16 %v3810
  %v5712 = vunpack.c.h.b16 %v3810
  %v5713 = vunpack.c.l.b16 %v3811
  %v5714 = vunpack.c.h.b16 %v3811
  %v5715 = vunpack.c.l.b16 %v3812
  %v5716 = vunpack.c.h.b16 %v3812
  %v5717 = vunpack.c.l.b16 %v3813
  %v5718 = vunpack.c.h.b16 %v3813
  %v5719 = vunpack.c.l.b16 %v3814
  %v5720 = vunpack.c.h.b16 %v3814
  %v5721 = vunpack.c.l.b16 %v3815
  %v5722 = vunpack.c.h.b16 %v3815
  %v5723 = vunpack.c.l.b16 %v3816
  %v5724 = vunpack.c.h.b16 %v3816
  %v5725 = vunpack.c.l.b16 %v3817
  %v5726 = vunpack.c.h.b16 %v3817
  %v5727 = vunpack.c.l.b16 %v3818
  %v5728 = vunpack.c.h.b16 %v3818
  %v5729 = vunpack.c.l.b16 %v3819
  %v5730 = vunpack.c.h.b16 %v3819
  %v5731 = vunpack.c.l.b16 %v3820
  %v5732 = vunpack.c.h.b16 %v3820
  %v5733 = vunpack.c.l.b16 %v3821
  %v5734 = vunpack.c.h.b16 %v3821
  %v5735 = vunpack.c.l.b16 %v3822
  %v5736 = vunpack.c.h.b16 %v3822
  %v5737 = vunpack.c.l.b16 %v3823
  %v5738 = vunpack.c.h.b16 %v3823
  %v5739 = vunpack.c.l.b16 %v3824
  %v5740 = vunpack.c.h.b16 %v3824
  %v5741 = vunpack.c.l.b16 %v3825
  %v5742 = vunpack.c.h.b16 %v3825
  %v5743 = vunpack.c.l.b16 %v3826
  %v5744 = vunpack.c.h.b16 %v3826
  %v5745 = vunpack.c.l.b16 %v3827
  %v5746 = vunpack.c.h.b16 %v3827
  %v5747 = vunpack.c.l.b16 %v3828
  %v5748 = vunpack.c.h.b16 %v3828
  %v5749 = vunpack.c.l.b16 %v3829
  %v5750 = vunpack.c.h.b16 %v3829
  %v5751 = vunpack.c.l.b16 %v3830
  %v5752 = vunpack.c.h.b16 %v3830
  %v5753 = vunpack.c.l.b16 %v3831
  %v5754 = vunpack.c.h.b16 %v3831
  %v5755 = vunpack.c.l.b16 %v3832
  %v5756 = vunpack.c.h.b16 %v3832
  %v5757 = vunpack.c.l.b16 %v3833
  %v5758 = vunpack.c.h.b16 %v3833
  %v5759 = vunpack.c.l.b16 %v3834
  %v5760 = vunpack.c.h.b16 %v3834
  %v5761 = vunpack.c.l.b16 %v3835
  %v5762 = vunpack.c.h.b16 %v3835
  %v5763 = vunpack.c.l.b16 %v3836
  %v5764 = vunpack.c.h.b16 %v3836
  %v5765 = vunpack.c.l.b16 %v3837
  %v5766 = vunpack.c.h.b16 %v3837
  %v5767 = vunpack.c.l.b16 %v3838
  %v5768 = vunpack.c.h.b16 %v3838
  %v5769 = vunpack.c.l.b16 %v3839
  %v5770 = vunpack.c.h.b16 %v3839
  %v5771 = vunpack.c.l.b16 %v3840
  %v5772 = vunpack.c.h.b16 %v3840
  %v5773 = vunpack.c.l.b16 %v3841
  %v5774 = vunpack.c.h.b16 %v3841
  %v5775 = vunpack.c.l.b16 %v3842
  %v5776 = vunpack.c.h.b16 %v3842
  %v5777 = vunpack.c.l.b16 %v3843
  %v5778 = vunpack.c.h.b16 %v3843
  %v5779 = vunpack.c.l.b16 %v3844
  %v5780 = vunpack.c.h.b16 %v3844
  %v5781 = vunpack.c.l.b16 %v3845
  %v5782 = vunpack.c.h.b16 %v3845
  %v5783 = vunpack.c.l.b16 %v3846
  %v5784 = vunpack.c.h.b16 %v3846
  %v5785 = vunpack.c.l.b16 %v3847
  %v5786 = vunpack.c.h.b16 %v3847
  %v5787 = vunpack.c.l.b16 %v3848
  %v5788 = vunpack.c.h.b16 %v3848
  %v5789 = vunpack.c.l.b16 %v3849
  %v5790 = vunpack.c.h.b16 %v3849
  %v5791 = vunpack.c.l.b16 %v3850
  %v5792 = vunpack.c.h.b16 %v3850
  %v5793 = vunpack.c.l.b16 %v3851
  %v5794 = vunpack.c.h.b16 %v3851
  %v5795 = vunpack.c.l.b16 %v3852
  %v5796 = vunpack.c.h.b16 %v3852
  %v5797 = vunpack.c.l.b16 %v3853
  %v5798 = vunpack.c.h.b16 %v3853
  %v5799 = vunpack.c.l.b16 %v3854
  %v5800 = vunpack.c.h.b16 %v3854
  %v5801 = vunpack.c.l.b16 %v3855
  %v5802 = vunpack.c.h.b16 %v3855
  %v5803 = vunpack.c.l.b16 %v3856
  %v5804 = vunpack.c.h.b16 %v3856
  %v5805 = vunpack.c.l.b16 %v3857
  %v5806 = vunpack.c.h.b16 %v3857
  %v5807 = vunpack.c.l.b16 %v3858
  %v5808 = vunpack.c.h.b16 %v3858
  %v5809 = vunpack.c.l.b16 %v3859
  %v5810 = vunpack.c.h.b16 %v3859
  %v5811 = vunpack.c.l.b16 %v3860
  %v5812 = vunpack.c.h.b16 %v3860
  %v5813 = vunpack.c.l.b16 %v3861
  %v5814 = vunpack.c.h.b16 %v3861
  %v5815 = vunpack.c.l.b16 %v3862
  %v5816 = vunpack.c.h.b16 %v3862
  %v5817 = vunpack.c.l.b16 %v3863
  %v5818 = vunpack.c.h.b16 %v3863
  %v5819 = vunpack.c.l.b16 %v3864
  %v5820 = vunpack.c.h.b16 %v3864
  %v5821 = vunpack.c.l.b16 %v3865
  %v5822 = vunpack.c.h.b16 %v3865
  %v5823 = vunpack.c.l.b16 %v3866
  %v5824 = vunpack.c.h.b16 %v3866
  %v5825 = vunpack.c.l.b16 %v3867
  %v5826 = vunpack.c.h.b16 %v3867
  %v5827 = vunpack.c.l.b16 %v3868
  %v5828 = vunpack.c.h.b16 %v3868
  %v5829 = vunpack.c.l.b16 %v3869
  %v5830 = vunpack.c.h.b16 %v3869
  %v5831 = vunpack.c.l.b16 %v3870
  %v5832 = vunpack.c.h.b16 %v3870
  %v5833 = vunpack.c.l.b16 %v3871
  %v5834 = vunpack.c.h.b16 %v3871
  %v5835 = vunpack.c.l.b16 %v3872
  %v5836 = vunpack.c.h.b16 %v3872
  %v5837 = vunpack.c.l.b16 %v3873
  %v5838 = vunpack.c.h.b16 %v3873
  %v5839 = vunpack.c.l.b16 %v3874
  %v5840 = vunpack.c.h.b16 %v3874
  %v5841 = vunpack.c.l.b16 %v3875
  %v5842 = vunpack.c.h.b16 %v3875
  %v5843 = vunpack.c.l.b16 %v3876
  %v5844 = vunpack.c.h.b16 %v3876
  %v5845 = vunpack.c.l.b16 %v3877
  %v5846 = vunpack.c.h.b16 %v3877
  %v5847 = vunpack.c.l.b16 %v3878
  %v5848 = vunpack.c.h.b16 %v3878
  %v5849 = vunpack.c.l.b16 %v3879
  %v5850 = vunpack.c.h.b16 %v3879
  %v5851 = vunpack.c.l.b16 %v3880
  %v5852 = vunpack.c.h.b16 %v3880
  %v5853 = vunpack.c.l.b16 %v3881
  %v5854 = vunpack.c.h.b16 %v3881
  %v5855 = vunpack.c.l.b16 %v3882
  %v5856 = vunpack.c.h.b16 %v3882
  %v5857 = vunpack.c.l.b16 %v3883
  %v5858 = vunpack.c.h.b16 %v3883
  %v5859 = vunpack.c.l.b16 %v3884
  %v5860 = vunpack.c.h.b16 %v3884
  %v5861 = vunpack.c.l.b16 %v3885
  %v5862 = vunpack.c.h.b16 %v3885
  %v5863 = vunpack.c.l.b16 %v3886
  %v5864 = vunpack.c.h.b16 %v3886
  %v5865 = vunpack.c.l.b16 %v3887
  %v5866 = vunpack.c.h.b16 %v3887
  %v5867 = vunpack.c.l.b16 %v3888
  %v5868 = vunpack.c.h.b16 %v3888
  %v5869 = vunpack.c.l.b16 %v3889
  %v5870 = vunpack.c.h.b16 %v3889
  %v5871 = vunpack.c.l.b16 %v3890
  %v5872 = vunpack.c.h.b16 %v3890
  %v5873 = vunpack.c.l.b16 %v3891
  %v5874 = vunpack.c.h.b16 %v3891
  %v5875 = vunpack.c.l.b16 %v3892
  %v5876 = vunpack.c.h.b16 %v3892
  %v5877 = vunpack.c.l.b16 %v3893
  %v5878 = vunpack.c.h.b16 %v3893
  %v5879 = vunpack.c.l.b16 %v3894
  %v5880 = vunpack.c.h.b16 %v3894
  %v5881 = vunpack.c.l.b16 %v3895
  %v5882 = vunpack.c.h.b16 %v3895
  %v5883 = vunpack.c.l.b16 %v3896
  %v5884 = vunpack.c.h.b16 %v3896
  %v5885 = vunpack.c.l.b16 %v3897
  %v5886 = vunpack.c.h.b16 %v3897
  %v5887 = vunpack.c.l.b16 %v3898
  %v5888 = vunpack.c.h.b16 %v3898
  %v5889 = vunpack.c.l.b16 %v3899
  %v5890 = vunpack.c.h.b16 %v3899
  %v5891 = vunpack.c.l.b16 %v3900
  %v5892 = vunpack.c.h.b16 %v3900
  %v5893 = vunpack.c.l.b16 %v3901
  %v5894 = vunpack.c.h.b16 %v3901
  %v5895 = vunpack.c.l.b16 %v3902
  %v5896 = vunpack.c.h.b16 %v3902
  %v5897 = vunpack.c.l.b16 %v3903
  %v5898 = vunpack.c.h.b16 %v3903
  %v5899 = vunpack.c.l.b16 %v3904
  %v5900 = vunpack.c.h.b16 %v3904
  %v5901 = vunpack.c.l.b16 %v3905
  %v5902 = vunpack.c.h.b16 %v3905
  %v5903 = vunpack.c.l.b16 %v3906
  %v5904 = vunpack.c.h.b16 %v3906
  %v5905 = vunpack.c.l.b16 %v3907
  %v5906 = vunpack.c.h.b16 %v3907
  %v5907 = vunpack.c.l.b16 %v3908
  %v5908 = vunpack.c.h.b16 %v3908
  %v5909 = vunpack.c.l.b16 %v3909
  %v5910 = vunpack.c.h.b16 %v3909
  %v5911 = vunpack.c.l.b16 %v3910
  %v5912 = vunpack.c.h.b16 %v3910
  %v5913 = vunpack.c.l.b16 %v3911
  %v5914 = vunpack.c.h.b16 %v3911
  %v5915 = vunpack.c.l.b16 %v3912
  %v5916 = vunpack.c.h.b16 %v3912
  %v5917 = vunpack.c.l.b16 %v3913
  %v5918 = vunpack.c.h.b16 %v3913
  %v5919 = vunpack.c.l.b16 %v3914
  %v5920 = vunpack.c.h.b16 %v3914
  %v5921 = vunpack.c.l.b16 %v3915
  %v5922 = vunpack.c.h.b16 %v3915
  %v5923 = vunpack.c.l.b16 %v3916
  %v5924 = vunpack.c.h.b16 %v3916
  %v5925 = vunpack.c.l.b16 %v3917
  %v5926 = vunpack.c.h.b16 %v3917
  %v5927 = vunpack.c.l.b16 %v3918
  %v5928 = vunpack.c.h.b16 %v3918
  %v5929 = vunpack.c.l.b16 %v3919
  %v5930 = vunpack.c.h.b16 %v3919
  %v5931 = vunpack.c.l.b16 %v3920
  %v5932 = vunpack.c.h.b16 %v3920
  %v5933 = vunpack.c.l.b16 %v3921
  %v5934 = vunpack.c.h.b16 %v3921
  %v5935 = vunpack.c.l.b16 %v3922
  %v5936 = vunpack.c.h.b16 %v3922
  %v5937 = vunpack.c.l.b16 %v3923
  %v5938 = vunpack.c.h.b16 %v3923
  %v5939 = vunpack.c.l.b16 %v3924
  %v5940 = vunpack.c.h.b16 %v3924
  %v5941 = vunpack.c.l.b16 %v3925
  %v5942 = vunpack.c.h.b16 %v3925
  %v5943 = vunpack.c.l.b16 %v3926
  %v5944 = vunpack.c.h.b16 %v3926
  %v5945 = vunpack.c.l.b16 %v3927
  %v5946 = vunpack.c.h.b16 %v3927
  %v5947 = vunpack.c.l.b16 %v3928
  %v5948 = vunpack.c.h.b16 %v3928
  %v5949 = vunpack.c.l.b16 %v3929
  %v5950 = vunpack.c.h.b16 %v3929
  %v5951 = vunpack.c.l.b16 %v3930
  %v5952 = vunpack.c.h.b16 %v3930
  %v5953 = vunpack.c.l.b16 %v3931
  %v5954 = vunpack.c.h.b16 %v3931
  %v5955 = vunpack.c.l.b16 %v3932
  %v5956 = vunpack.c.h.b16 %v3932
  %v5957 = vunpack.c.l.b16 %v3933
  %v5958 = vunpack.c.h.b16 %v3933
  %v5959 = vunpack.c.l.b16 %v3934
  %v5960 = vunpack.c.h.b16 %v3934
  %v5961 = vunpack.c.l.b16 %v3935
  %v5962 = vunpack.c.h.b16 %v3935
  %v5963 = vunpack.c.l.b16 %v3936
  %v5964 = vunpack.c.h.b16 %v3936
  %v5965 = vunpack.c.l.b16 %v3937
  %v5966 = vunpack.c.h.b16 %v3937
  %v5967 = vunpack.c.l.b16 %v3938
  %v5968 = vunpack.c.h.b16 %v3938
  %v5969 = vunpack.c.l.b16 %v3939
  %v5970 = vunpack.c.h.b16 %v3939
  %v5971 = vunpack.c.l.b16 %v3940
  %v5972 = vunpack.c.h.b16 %v3940
  %v5973 = vunpack.c.l.b16 %v3941
  %v5974 = vunpack.c.h.b16 %v3941
  %v5975 = vunpack.c.l.b16 %v3942
  %v5976 = vunpack.c.h.b16 %v3942
  %v5977 = vunpack.c.l.b16 %v3943
  %v5978 = vunpack.c.h.b16 %v3943
  %v5979 = vunpack.c.l.b16 %v3944
  %v5980 = vunpack.c.h.b16 %v3944
  %v5981 = vunpack.c.l.b16 %v3945
  %v5982 = vunpack.c.h.b16 %v3945
  %v5983 = vunpack.c.l.b16 %v3946
  %v5984 = vunpack.c.h.b16 %v3946
  %v5985 = vunpack.c.l.b16 %v3947
  %v5986 = vunpack.c.h.b16 %v3947
  %v5987 = vunpack.c.l.b16 %v3948
  %v5988 = vunpack.c.h.b16 %v3948
  %v5989 = vunpack.c.l.b16 %v3949
  %v5990 = vunpack.c.h.b16 %v3949
  %v5991 = vunpack.c.l.b16 %v3950
  %v5992 = vunpack.c.h.b16 %v3950
  %v5993 = vunpack.c.l.b16 %v3951
  %v5994 = vunpack.c.h.b16 %v3951
  %v5995 = vunpack.c.l.b16 %v3952
  %v5996 = vunpack.c.h.b16 %v3952
  %v5997 = vunpack.c.l.b16 %v3953
  %v5998 = vunpack.c.h.b16 %v3953
  %v5999 = vunpack.c.l.b16 %v3954
  %v6000 = vunpack.c.h.b16 %v3954
  %v6001 = vunpack.c.l.b16 %v3955
  %v6002 = vunpack.c.h.b16 %v3955
  %v6003 = vunpack.c.l.b16 %v3956
  %v6004 = vunpack.c.h.b16 %v3956
  %v6005 = vunpack.c.l.b16 %v3957
  %v6006 = vunpack.c.h.b16 %v3957
  %v6007 = vunpack.c.l.b16 %v3958
  %v6008 = vunpack.c.h.b16 %v3958
  %v6009 = vunpack.c.l.b16 %v3959
  %v6010 = vunpack.c.h.b16 %v3959
  %v6011 = vunpack.c.l.b16 %v3960
  %v6012 = vunpack.c.h.b16 %v3960
  %v6013 = vunpack.c.l.b16 %v3961
  %v6014 = vunpack.c.h.b16 %v3961
  %v6015 = vunpack.c.l.b16 %v3962
  %v6016 = vunpack.c.h.b16 %v3962
  %v6017 = vunpack.c.l.b16 %v3963
  %v6018 = vunpack.c.h.b16 %v3963
  %v6019 = vunpack.c.l.b16 %v3964
  %v6020 = vunpack.c.h.b16 %v3964
  %v6021 = vunpack.c.l.b16 %v3965
  %v6022 = vunpack.c.h.b16 %v3965
  %v6023 = vunpack.c.l.b16 %v3966
  %v6024 = vunpack.c.h.b16 %v3966
  %v6025 = vunpack.c.l.b16 %v3967
  %v6026 = vunpack.c.h.b16 %v3967
  %v6027 = vunpack.c.l.b16 %v3968
  %v6028 = vunpack.c.h.b16 %v3968
  %v6029 = vunpack.c.l.b16 %v3969
  %v6030 = vunpack.c.h.b16 %v3969
  %v6031 = vunpack.c.l.b16 %v3970
  %v6032 = vunpack.c.h.b16 %v3970
  %v6033 = vunpack.c.l.b16 %v3971
  %v6034 = vunpack.c.h.b16 %v3971
  %v6035 = vunpack.c.l.b16 %v3972
  %v6036 = vunpack.c.h.b16 %v3972
  %v6037 = vunpack.c.l.b16 %v3973
  %v6038 = vunpack.c.h.b16 %v3973
  %v6039 = vunpack.c.l.b16 %v3974
  %v6040 = vunpack.c.h.b16 %v3974
  %v6041 = vunpack.c.l.b16 %v3975
  %v6042 = vunpack.c.h.b16 %v3975
  %v6043 = vunpack.c.l.b16 %v3976
  %v6044 = vunpack.c.h.b16 %v3976
  %v6045 = vunpack.c.l.b16 %v3977
  %v6046 = vunpack.c.h.b16 %v3977
  %v6047 = vunpack.c.l.b16 %v3978
  %v6048 = vunpack.c.h.b16 %v3978
  %v6049 = vunpack.c.l.b16 %v3979
  %v6050 = vunpack.c.h.b16 %v3979
  %v6051 = vunpack.c.l.b16 %v3980
  %v6052 = vunpack.c.h.b16 %v3980
  %v6053 = vunpack.c.l.b16 %v3981
  %v6054 = vunpack.c.h.b16 %v3981
  %v6055 = vunpack.c.l.b16 %v3982
  %v6056 = vunpack.c.h.b16 %v3982
  %v6057 = vunpack.c.l.b16 %v3983
  %v6058 = vunpack.c.h.b16 %v3983
  %v6059 = vunpack.c.l.b16 %v3984
  %v6060 = vunpack.c.h.b16 %v3984
  %v6061 = vunpack.c.l.b16 %v3985
  %v6062 = vunpack.c.h.b16 %v3985
  %v6063 = vunpack.c.l.b16 %v3986
  %v6064 = vunpack.c.h.b16 %v3986
  %v6065 = vunpack.c.l.b16 %v3987
  %v6066 = vunpack.c.h.b16 %v3987
  %v6067 = vunpack.c.l.b16 %v3988
  %v6068 = vunpack.c.h.b16 %v3988
  %v6069 = vpack.c.b16 %v5049, %v5045
  %v6070 = vpack.c.b16 %v5050, %v5046
  %v6071 = vpack.c.b16 %v5051, %v5047
  %v6072 = vpack.c.b16 %v5052, %v5048
  %v6073 = vpack.c.b16 %v5057, %v5053
  %v6074 = vpack.c.b16 %v5058, %v5054
  %v6075 = vpack.c.b16 %v5059, %v5055
  %v6076 = vpack.c.b16 %v5060, %v5056
  %v6077 = vpack.c.b16 %v5065, %v5061
  %v6078 = vpack.c.b16 %v5066, %v5062
  %v6079 = vpack.c.b16 %v5067, %v5063
  %v6080 = vpack.c.b16 %v5068, %v5064
  %v6081 = vpack.c.b16 %v5073, %v5069
  %v6082 = vpack.c.b16 %v5074, %v5070
  %v6083 = vpack.c.b16 %v5075, %v5071
  %v6084 = vpack.c.b16 %v5076, %v5072
  %v6085 = vpack.c.b16 %v5081, %v5077
  %v6086 = vpack.c.b16 %v5082, %v5078
  %v6087 = vpack.c.b16 %v5083, %v5079
  %v6088 = vpack.c.b16 %v5084, %v5080
  %v6089 = vpack.c.b16 %v5089, %v5085
  %v6090 = vpack.c.b16 %v5090, %v5086
  %v6091 = vpack.c.b16 %v5091, %v5087
  %v6092 = vpack.c.b16 %v5092, %v5088
  %v6093 = vpack.c.b16 %v5097, %v5093
  %v6094 = vpack.c.b16 %v5098, %v5094
  %v6095 = vpack.c.b16 %v5099, %v5095
  %v6096 = vpack.c.b16 %v5100, %v5096
  %v6097 = vpack.c.b16 %v5105, %v5101
  %v6098 = vpack.c.b16 %v5106, %v5102
  %v6099 = vpack.c.b16 %v5107, %v5103
  %v6100 = vpack.c.b16 %v5108, %v5104
  %v6101 = vpack.c.b16 %v5113, %v5109
  %v6102 = vpack.c.b16 %v5114, %v5110
  %v6103 = vpack.c.b16 %v5115, %v5111
  %v6104 = vpack.c.b16 %v5116, %v5112
  %v6105 = vpack.c.b16 %v5121, %v5117
  %v6106 = vpack.c.b16 %v5122, %v5118
  %v6107 = vpack.c.b16 %v5123, %v5119
  %v6108 = vpack.c.b16 %v5124, %v5120
  %v6109 = vpack.c.b16 %v5129, %v5125
  %v6110 = vpack.c.b16 %v5130, %v5126
  %v6111 = vpack.c.b16 %v5131, %v5127
  %v6112 = vpack.c.b16 %v5132, %v5128
  %v6113 = vpack.c.b16 %v5137, %v5133
  %v6114 = vpack.c.b16 %v5138, %v5134
  %v6115 = vpack.c.b16 %v5139, %v5135
  %v6116 = vpack.c.b16 %v5140, %v5136
  %v6117 = vpack.c.b16 %v5145, %v5141
  %v6118 = vpack.c.b16 %v5146, %v5142
  %v6119 = vpack.c.b16 %v5147, %v5143
  %v6120 = vpack.c.b16 %v5148, %v5144
  %v6121 = vpack.c.b16 %v5153, %v5149
  %v6122 = vpack.c.b16 %v5154, %v5150
  %v6123 = vpack.c.b16 %v5155, %v5151
  %v6124 = vpack.c.b16 %v5156, %v5152
  %v6125 = vpack.c.b16 %v5161, %v5157
  %v6126 = vpack.c.b16 %v5162, %v5158
  %v6127 = vpack.c.b16 %v5163, %v5159
  %v6128 = vpack.c.b16 %v5164, %v5160
  %v6129 = vpack.c.b16 %v5169, %v5165
  %v6130 = vpack.c.b16 %v5170, %v5166
  %v6131 = vpack.c.b16 %v5171, %v5167
  %v6132 = vpack.c.b16 %v5172, %v5168
  %v6133 = vpack.c.b16 %v5177, %v5173
  %v6134 = vpack.c.b16 %v5178, %v5174
  %v6135 = vpack.c.b16 %v5179, %v5175
  %v6136 = vpack.c.b16 %v5180, %v5176
  %v6137 = vpack.c.b16 %v5185, %v5181
  %v6138 = vpack.c.b16 %v5186, %v5182
  %v6139 = vpack.c.b16 %v5187, %v5183
  %v6140 = vpack.c.b16 %v5188, %v5184
  %v6141 = vpack.c.b16 %v5193, %v5189
  %v6142 = vpack.c.b16 %v5194, %v5190
  %v6143 = vpack.c.b16 %v5195, %v5191
  %v6144 = vpack.c.b16 %v5196, %v5192
  %v6145 = vpack.c.b16 %v5201, %v5197
  %v6146 = vpack.c.b16 %v5202, %v5198
  %v6147 = vpack.c.b16 %v5203, %v5199
  %v6148 = vpack.c.b16 %v5204, %v5200
  %v6149 = vpack.c.b16 %v5209, %v5205
  %v6150 = vpack.c.b16 %v5210, %v5206
  %v6151 = vpack.c.b16 %v5211, %v5207
  %v6152 = vpack.c.b16 %v5212, %v5208
  %v6153 = vpack.c.b16 %v5217, %v5213
  %v6154 = vpack.c.b16 %v5218, %v5214
  %v6155 = vpack.c.b16 %v5219, %v5215
  %v6156 = vpack.c.b16 %v5220, %v5216
  %v6157 = vpack.c.b16 %v5225, %v5221
  %v6158 = vpack.c.b16 %v5226, %v5222
  %v6159 = vpack.c.b16 %v5227, %v5223
  %v6160 = vpack.c.b16 %v5228, %v5224
  %v6161 = vpack.c.b16 %v5233, %v5229
  %v6162 = vpack.c.b16 %v5234, %v5230
  %v6163 = vpack.c.b16 %v5235, %v5231
  %v6164 = vpack.c.b16 %v5236, %v5232
  %v6165 = vpack.c.b16 %v5241, %v5237
  %v6166 = vpack.c.b16 %v5242, %v5238
  %v6167 = vpack.c.b16 %v5243, %v5239
  %v6168 = vpack.c.b16 %v5244, %v5240
  %v6169 = vpack.c.b16 %v5249, %v5245
  %v6170 = vpack.c.b16 %v5250, %v5246
  %v6171 = vpack.c.b16 %v5251, %v5247
  %v6172 = vpack.c.b16 %v5252, %v5248
  %v6173 = vpack.c.b16 %v5257, %v5253
  %v6174 = vpack.c.b16 %v5258, %v5254
  %v6175 = vpack.c.b16 %v5259, %v5255
  %v6176 = vpack.c.b16 %v5260, %v5256
  %v6177 = vpack.c.b16 %v5265, %v5261
  %v6178 = vpack.c.b16 %v5266, %v5262
  %v6179 = vpack.c.b16 %v5267, %v5263
  %v6180 = vpack.c.b16 %v5268, %v5264
  %v6181 = vpack.c.b16 %v5273, %v5269
  %v6182 = vpack.c.b16 %v5274, %v5270
  %v6183 = vpack.c.b16 %v5275, %v5271
  %v6184 = vpack.c.b16 %v5276, %v5272
  %v6185 = vpack.c.b16 %v5281, %v5277
  %v6186 = vpack.c.b16 %v5282, %v5278
  %v6187 = vpack.c.b16 %v5283, %v5279
  %v6188 = vpack.c.b16 %v5284, %v5280
  %v6189 = vpack.c.b16 %v5289, %v5285
  %v6190 = vpack.c.b16 %v5290, %v5286
  %v6191 = vpack.c.b16 %v5291, %v5287
  %v6192 = vpack.c.b16 %v5292, %v5288
  %v6193 = vpack.c.b16 %v5297, %v5293
  %v6194 = vpack.c.b16 %v5298, %v5294
  %v6195 = vpack.c.b16 %v5299, %v5295
  %v6196 = vpack.c.b16 %v5300, %v5296
  %v6197 = vpack.c.b16 %v5305, %v5301
  %v6198 = vpack.c.b16 %v5306, %v5302
  %v6199 = vpack.c.b16 %v5307, %v5303
  %v6200 = vpack.c.b16 %v5308, %v5304
  %v6201 = vpack.c.b16 %v5313, %v5309
  %v6202 = vpack.c.b16 %v5314, %v5310
  %v6203 = vpack.c.b16 %v5315, %v5311
  %v6204 = vpack.c.b16 %v5316, %v5312
  %v6205 = vpack.c.b16 %v5321, %v5317
  %v6206 = vpack.c.b16 %v5322, %v5318
  %v6207 = vpack.c.b16 %v5323, %v5319
  %v6208 = vpack.c.b16 %v5324, %v5320
  %v6209 = vpack.c.b16 %v5329, %v5325
  %v6210 = vpack.c.b16 %v5330, %v5326
  %v6211 = vpack.c.b16 %v5331, %v5327
  %v6212 = vpack.c.b16 %v5332, %v5328
  %v6213 = vpack.c.b16 %v5337, %v5333
  %v6214 = vpack.c.b16 %v5338, %v5334
  %v6215 = vpack.c.b16 %v5339, %v5335
  %v6216 = vpack.c.b16 %v5340, %v5336
  %v6217 = vpack.c.b16 %v5345, %v5341
  %v6218 = vpack.c.b16 %v5346, %v5342
  %v6219 = vpack.c.b16 %v5347, %v5343
  %v6220 = vpack.c.b16 %v5348, %v5344
  %v6221 = vpack.c.b16 %v5353, %v5349
  %v6222 = vpack.c.b16 %v5354, %v5350
  %v6223 = vpack.c.b16 %v5355, %v5351
  %v6224 = vpack.c.b16 %v5356, %v5352
  %v6225 = vpack.c.b16 %v5361, %v5357
  %v6226 = vpack.c.b16 %v5362, %v5358
  %v6227 = vpack.c.b16 %v5363, %v5359
  %v6228 = vpack.c.b16 %v5364, %v5360
  %v6229 = vpack.c.b16 %v5369, %v5365
  %v6230 = vpack.c.b16 %v5370, %v5366
  %v6231 = vpack.c.b16 %v5371, %v5367
  %v6232 = vpack.c.b16 %v5372, %v5368
  %v6233 = vpack.c.b16 %v5377, %v5373
  %v6234 = vpack.c.b16 %v5378, %v5374
  %v6235 = vpack.c.b16 %v5379, %v5375
  %v6236 = vpack.c.b16 %v5380, %v5376
  %v6237 = vpack.c.b16 %v5385, %v5381
  %v6238 = vpack.c.b16 %v5386, %v5382
  %v6239 = vpack.c.b16 %v5387, %v5383
  %v6240 = vpack.c.b16 %v5388, %v5384
  %v6241 = vpack.c.b16 %v5393, %v5389
  %v6242 = vpack.c.b16 %v5394, %v5390
  %v6243 = vpack.c.b16 %v5395, %v5391
  %v6244 = vpack.c.b16 %v5396, %v5392
  %v6245 = vpack.c.b16 %v5401, %v5397
  %v6246 = vpack.c.b16 %v5402, %v5398
  %v6247 = vpack.c.b16 %v5403, %v5399
  %v6248 = vpack.c.b16 %v5404, %v5400
  %v6249 = vpack.c.b16 %v5409, %v5405
  %v6250 = vpack.c.b16 %v5410, %v5406
  %v6251 = vpack.c.b16 %v5411, %v5407
  %v6252 = vpack.c.b16 %v5412, %v5408
  %v6253 = vpack.c.b16 %v5417, %v5413
  %v6254 = vpack.c.b16 %v5418, %v5414
  %v6255 = vpack.c.b16 %v5419, %v5415
  %v6256 = vpack.c.b16 %v5420, %v5416
  %v6257 = vpack.c.b16 %v5425, %v5421
  %v6258 = vpack.c.b16 %v5426, %v5422
  %v6259 = vpack.c.b16 %v5427, %v5423
  %v6260 = vpack.c.b16 %v5428, %v5424
  %v6261 = vpack.c.b16 %v5433, %v5429
  %v6262 = vpack.c.b16 %v5434, %v5430
  %v6263 = vpack.c.b16 %v5435, %v5431
  %v6264 = vpack.c.b16 %v5436, %v5432
  %v6265 = vpack.c.b16 %v5441, %v5437
  %v6266 = vpack.c.b16 %v5442, %v5438
  %v6267 = vpack.c.b16 %v5443, %v5439
  %v6268 = vpack.c.b16 %v5444, %v5440
  %v6269 = vpack.c.b16 %v5449, %v5445
  %v6270 = vpack.c.b16 %v5450, %v5446
  %v6271 = vpack.c.b16 %v5451, %v5447
  %v6272 = vpack.c.b16 %v5452, %v5448
  %v6273 = vpack.c.b16 %v5457, %v5453
  %v6274 = vpack.c.b16 %v5458, %v5454
  %v6275 = vpack.c.b16 %v5459, %v5455
  %v6276 = vpack.c.b16 %v5460, %v5456
  %v6277 = vpack.c.b16 %v5465, %v5461
  %v6278 = vpack.c.b16 %v5466, %v5462
  %v6279 = vpack.c.b16 %v5467, %v5463
  %v6280 = vpack.c.b16 %v5468, %v5464
  %v6281 = vpack.c.b16 %v5473, %v5469
  %v6282 = vpack.c.b16 %v5474, %v5470
  %v6283 = vpack.c.b16 %v5475, %v5471
  %v6284 = vpack.c.b16 %v5476, %v5472
  %v6285 = vpack.c.b16 %v5481, %v5477
  %v6286 = vpack.c.b16 %v5482, %v5478
  %v6287 = vpack.c.b16 %v5483, %v5479
  %v6288 = vpack.c.b16 %v5484, %v5480
  %v6289 = vpack.c.b16 %v5489, %v5485
  %v6290 = vpack.c.b16 %v5490, %v5486
  %v6291 = vpack.c.b16 %v5491, %v5487
  %v6292 = vpack.c.b16 %v5492, %v5488
  %v6293 = vpack.c.b16 %v5497, %v5493
  %v6294 = vpack.c.b16 %v5498, %v5494
  %v6295 = vpack.c.b16 %v5499, %v5495
  %v6296 = vpack.c.b16 %v5500, %v5496
  %v6297 = vpack.c.b16 %v5505, %v5501
  %v6298 = vpack.c.b16 %v5506, %v5502
  %v6299 = vpack.c.b16 %v5507, %v5503
  %v6300 = vpack.c.b16 %v5508, %v5504
  %v6301 = vpack.c.b16 %v5513, %v5509
  %v6302 = vpack.c.b16 %v5514, %v5510
  %v6303 = vpack.c.b16 %v5515, %v5511
  %v6304 = vpack.c.b16 %v5516, %v5512
  %v6305 = vpack.c.b16 %v5521, %v5517
  %v6306 = vpack.c.b16 %v5522, %v5518
  %v6307 = vpack.c.b16 %v5523, %v5519
  %v6308 = vpack.c.b16 %v5524, %v5520
  %v6309 = vpack.c.b16 %v5529, %v5525
  %v6310 = vpack.c.b16 %v5530, %v5526
  %v6311 = vpack.c.b16 %v5531, %v5527
  %v6312 = vpack.c.b16 %v5532, %v5528
  %v6313 = vpack.c.b16 %v5537, %v5533
  %v6314 = vpack.c.b16 %v5538, %v5534
  %v6315 = vpack.c.b16 %v5539, %v5535
  %v6316 = vpack.c.b16 %v5540, %v5536
  %v6317 = vpack.c.b16 %v5545, %v5541
  %v6318 = vpack.c.b16 %v5546, %v5542
  %v6319 = vpack.c.b16 %v5547, %v5543
  %v6320 = vpack.c.b16 %v5548, %v5544
  %v6321 = vpack.c.b16 %v5553, %v5549
  %v6322 = vpack.c.b16 %v5554, %v5550
  %v6323 = vpack.c.b16 %v5555, %v5551
  %v6324 = vpack.c.b16 %v5556, %v5552
  %v6325 = vpack.c.b16 %v5561, %v5557
  %v6326 = vpack.c.b16 %v5562, %v5558
  %v6327 = vpack.c.b16 %v5563, %v5559
  %v6328 = vpack.c.b16 %v5564, %v5560
  %v6329 = vpack.c.b16 %v5569, %v5565
  %v6330 = vpack.c.b16 %v5570, %v5566
  %v6331 = vpack.c.b16 %v5571, %v5567
  %v6332 = vpack.c.b16 %v5572, %v5568
  %v6333 = vpack.c.b16 %v5577, %v5573
  %v6334 = vpack.c.b16 %v5578, %v5574
  %v6335 = vpack.c.b16 %v5579, %v5575
  %v6336 = vpack.c.b16 %v5580, %v5576
  %v6337 = vpack.c.b16 %v5585, %v5581
  %v6338 = vpack.c.b16 %v5586, %v5582
  %v6339 = vpack.c.b16 %v5587, %v5583
  %v6340 = vpack.c.b16 %v5588, %v5584
  %v6341 = vpack.c.b16 %v5593, %v5589
  %v6342 = vpack.c.b16 %v5594, %v5590
  %v6343 = vpack.c.b16 %v5595, %v5591
  %v6344 = vpack.c.b16 %v5596, %v5592
  %v6345 = vpack.c.b16 %v5601, %v5597
  %v6346 = vpack.c.b16 %v5602, %v5598
  %v6347 = vpack.c.b16 %v5603, %v5599
  %v6348 = vpack.c.b16 %v5604, %v5600
  %v6349 = vpack.c.b16 %v5609, %v5605
  %v6350 = vpack.c.b16 %v5610, %v5606
  %v6351 = vpack.c.b16 %v5611, %v5607
  %v6352 = vpack.c.b16 %v5612, %v5608
  %v6353 = vpack.c.b16 %v5617, %v5613
  %v6354 = vpack.c.b16 %v5618, %v5614
  %v6355 = vpack.c.b16 %v5619, %v5615
  %v6356 = vpack.c.b16 %v5620, %v5616
  %v6357 = vpack.c.b16 %v5625, %v5621
  %v6358 = vpack.c.b16 %v5626, %v5622
  %v6359 = vpack.c.b16 %v5627, %v5623
  %v6360 = vpack.c.b16 %v5628, %v5624
  %v6361 = vpack.c.b16 %v5633, %v5629
  %v6362 = vpack.c.b16 %v5634, %v5630
  %v6363 = vpack.c.b16 %v5635, %v5631
  %v6364 = vpack.c.b16 %v5636, %v5632
  %v6365 = vpack.c.b16 %v5641, %v5637
  %v6366 = vpack.c.b16 %v5642, %v5638
  %v6367 = vpack.c.b16 %v5643, %v5639
  %v6368 = vpack.c.b16 %v5644, %v5640
  %v6369 = vpack.c.b16 %v5649, %v5645
  %v6370 = vpack.c.b16 %v5650, %v5646
  %v6371 = vpack.c.b16 %v5651, %v5647
  %v6372 = vpack.c.b16 %v5652, %v5648
  %v6373 = vpack.c.b16 %v5657, %v5653
  %v6374 = vpack.c.b16 %v5658, %v5654
  %v6375 = vpack.c.b16 %v5659, %v5655
  %v6376 = vpack.c.b16 %v5660, %v5656
  %v6377 = vpack.c.b16 %v5665, %v5661
  %v6378 = vpack.c.b16 %v5666, %v5662
  %v6379 = vpack.c.b16 %v5667, %v5663
  %v6380 = vpack.c.b16 %v5668, %v5664
  %v6381 = vpack.c.b16 %v5673, %v5669
  %v6382 = vpack.c.b16 %v5674, %v5670
  %v6383 = vpack.c.b16 %v5675, %v5671
  %v6384 = vpack.c.b16 %v5676, %v5672
  %v6385 = vpack.c.b16 %v5681, %v5677
  %v6386 = vpack.c.b16 %v5682, %v5678
  %v6387 = vpack.c.b16 %v5683, %v5679
  %v6388 = vpack.c.b16 %v5684, %v5680
  %v6389 = vpack.c.b16 %v5689, %v5685
  %v6390 = vpack.c.b16 %v5690, %v5686
  %v6391 = vpack.c.b16 %v5691, %v5687
  %v6392 = vpack.c.b16 %v5692, %v5688
  %v6393 = vpack.c.b16 %v5697, %v5693
  %v6394 = vpack.c.b16 %v5698, %v5694
  %v6395 = vpack.c.b16 %v5699, %v5695
  %v6396 = vpack.c.b16 %v5700, %v5696
  %v6397 = vpack.c.b16 %v5705, %v5701
  %v6398 = vpack.c.b16 %v5706, %v5702
  %v6399 = vpack.c.b16 %v5707, %v5703
  %v6400 = vpack.c.b16 %v5708, %v5704
  %v6401 = vpack.c.b16 %v5713, %v5709
  %v6402 = vpack.c.b16 %v5714, %v5710
  %v6403 = vpack.c.b16 %v5715, %v5711
  %v6404 = vpack.c.b16 %v5716, %v5712
  %v6405 = vpack.c.b16 %v5721, %v5717
  %v6406 = vpack.c.b16 %v5722, %v5718
  %v6407 = vpack.c.b16 %v5723, %v5719
  %v6408 = vpack.c.b16 %v5724, %v5720
  %v6409 = vpack.c.b16 %v5729, %v5725
  %v6410 = vpack.c.b16 %v5730, %v5726
  %v6411 = vpack.c.b16 %v5731, %v5727
  %v6412 = vpack.c.b16 %v5732, %v5728
  %v6413 = vpack.c.b16 %v5737, %v5733
  %v6414 = vpack.c.b16 %v5738, %v5734
  %v6415 = vpack.c.b16 %v5739, %v5735
  %v6416 = vpack.c.b16 %v5740, %v5736
  %v6417 = vpack.c.b16 %v5745, %v5741
  %v6418 = vpack.c.b16 %v5746, %v5742
  %v6419 = vpack.c.b16 %v5747, %v5743
  %v6420 = vpack.c.b16 %v5748, %v5744
  %v6421 = vpack.c.b16 %v5753, %v5749
  %v6422 = vpack.c.b16 %v5754, %v5750
  %v6423 = vpack.c.b16 %v5755, %v5751
  %v6424 = vpack.c.b16 %v5756, %v5752
  %v6425 = vpack.c.b16 %v5761, %v5757
  %v6426 = vpack.c.b16 %v5762, %v5758
  %v6427 = vpack.c.b16 %v5763, %v5759
  %v6428 = vpack.c.b16 %v5764, %v5760
  %v6429 = vpack.c.b16 %v5769, %v5765
  %v6430 = vpack.c.b16 %v5770, %v5766
  %v6431 = vpack.c.b16 %v5771, %v5767
  %v6432 = vpack.c.b16 %v5772, %v5768
  %v6433 = vpack.c.b16 %v5777, %v5773
  %v6434 = vpack.c.b16 %v5778, %v5774
  %v6435 = vpack.c.b16 %v5779, %v5775
  %v6436 = vpack.c.b16 %v5780, %v5776
  %v6437 = vpack.c.b16 %v5785, %v5781
  %v6438 = vpack.c.b16 %v5786, %v5782
  %v6439 = vpack.c.b16 %v5787, %v5783
  %v6440 = vpack.c.b16 %v5788, %v5784
  %v6441 = vpack.c.b16 %v5793, %v5789
  %v6442 = vpack.c.b16 %v5794, %v5790
  %v6443 = vpack.c.b16 %v5795, %v5791
  %v6444 = vpack.c.b16 %v5796, %v5792
  %v6445 = vpack.c.b16 %v5801, %v5797
  %v6446 = vpack.c.b16 %v5802, %v5798
  %v6447 = vpack.c.b16 %v5803, %v5799
  %v6448 = vpack.c.b16 %v5804, %v5800
  %v6449 = vpack.c.b16 %v5809, %v5805
  %v6450 = vpack.c.b16 %v5810, %v5806
  %v6451 = vpack.c.b16 %v5811, %v5807
  %v6452 = vpack.c.b16 %v5812, %v5808
  %v6453 = vpack.c.b16 %v5817, %v5813
  %v6454 = vpack.c.b16 %v5818, %v5814
  %v6455 = vpack.c.b16 %v5819, %v5815
  %v6456 = vpack.c.b16 %v5820, %v5816
  %v6457 = vpack.c.b16 %v5825, %v5821
  %v6458 = vpack.c.b16 %v5826, %v5822
  %v6459 = vpack.c.b16 %v5827, %v5823
  %v6460 = vpack.c.b16 %v5828, %v5824
  %v6461 = vpack.c.b16 %v5833, %v5829
  %v6462 = vpack.c.b16 %v5834, %v5830
  %v6463 = vpack.c.b16 %v5835, %v5831
  %v6464 = vpack.c.b16 %v5836, %v5832
  %v6465 = vpack.c.b16 %v5841, %v5837
  %v6466 = vpack.c.b16 %v5842, %v5838
  %v6467 = vpack.c.b16 %v5843, %v5839
  %v6468 = vpack.c.b16 %v5844, %v5840
  %v6469 = vpack.c.b16 %v5849, %v5845
  %v6470 = vpack.c.b16 %v5850, %v5846
  %v6471 = vpack.c.b16 %v5851, %v5847
  %v6472 = vpack.c.b16 %v5852, %v5848
  %v6473 = vpack.c.b16 %v5857, %v5853
  %v6474 = vpack.c.b16 %v5858, %v5854
  %v6475 = vpack.c.b16 %v5859, %v5855
  %v6476 = vpack.c.b16 %v5860, %v5856
  %v6477 = vpack.c.b16 %v5865, %v5861
  %v6478 = vpack.c.b16 %v5866, %v5862
  %v6479 = vpack.c.b16 %v5867, %v5863
  %v6480 = vpack.c.b16 %v5868, %v5864
  %v6481 = vpack.c.b16 %v5873, %v5869
  %v6482 = vpack.c.b16 %v5874, %v5870
  %v6483 = vpack.c.b16 %v5875, %v5871
  %v6484 = vpack.c.b16 %v5876, %v5872
  %v6485 = vpack.c.b16 %v5881, %v5877
  %v6486 = vpack.c.b16 %v5882, %v5878
  %v6487 = vpack.c.b16 %v5883, %v5879
  %v6488 = vpack.c.b16 %v5884, %v5880
  %v6489 = vpack.c.b16 %v5889, %v5885
  %v6490 = vpack.c.b16 %v5890, %v5886
  %v6491 = vpack.c.b16 %v5891, %v5887
  %v6492 = vpack.c.b16 %v5892, %v5888
  %v6493 = vpack.c.b16 %v5897, %v5893
  %v6494 = vpack.c.b16 %v5898, %v5894
  %v6495 = vpack.c.b16 %v5899, %v5895
  %v6496 = vpack.c.b16 %v5900, %v5896
  %v6497 = vpack.c.b16 %v5905, %v5901
  %v6498 = vpack.c.b16 %v5906, %v5902
  %v6499 = vpack.c.b16 %v5907, %v5903
  %v6500 = vpack.c.b16 %v5908, %v5904
  %v6501 = vpack.c.b16 %v5913, %v5909
  %v6502 = vpack.c.b16 %v5914, %v5910
  %v6503 = vpack.c.b16 %v5915, %v5911
  %v6504 = vpack.c.b16 %v5916, %v5912
  %v6505 = vpack.c.b16 %v5921, %v5917
  %v6506 = vpack.c.b16 %v5922, %v5918
  %v6507 = vpack.c.b16 %v5923, %v5919
  %v6508 = vpack.c.b16 %v5924, %v5920
  %v6509 = vpack.c.b16 %v5929, %v5925
  %v6510 = vpack.c.b16 %v5930, %v5926
  %v6511 = vpack.c.b16 %v5931, %v5927
  %v6512 = vpack.c.b16 %v5932, %v5928
  %v6513 = vpack.c.b16 %v5937, %v5933
  %v6514 = vpack.c.b16 %v5938, %v5934
  %v6515 = vpack.c.b16 %v5939, %v5935
  %v6516 = vpack.c.b16 %v5940, %v5936
  %v6517 = vpack.c.b16 %v5945, %v5941
  %v6518 = vpack.c.b16 %v5946, %v5942
  %v6519 = vpack.c.b16 %v5947, %v5943
  %v6520 = vpack.c.b16 %v5948, %v5944
  %v6521 = vpack.c.b16 %v5953, %v5949
  %v6522 = vpack.c.b16 %v5954, %v5950
  %v6523 = vpack.c.b16 %v5955, %v5951
  %v6524 = vpack.c.b16 %v5956, %v5952
  %v6525 = vpack.c.b16 %v5961, %v5957
  %v6526 = vpack.c.b16 %v5962, %v5958
  %v6527 = vpack.c.b16 %v5963, %v5959
  %v6528 = vpack.c.b16 %v5964, %v5960
  %v6529 = vpack.c.b16 %v5969, %v5965
  %v6530 = vpack.c.b16 %v5970, %v5966
  %v6531 = vpack.c.b16 %v5971, %v5967
  %v6532 = vpack.c.b16 %v5972, %v5968
  %v6533 = vpack.c.b16 %v5977, %v5973
  %v6534 = vpack.c.b16 %v5978, %v5974
  %v6535 = vpack.c.b16 %v5979, %v5975
  %v6536 = vpack.c.b16 %v5980, %v5976
  %v6537 = vpack.c.b16 %v5985, %v5981
  %v6538 = vpack.c.b16 %v5986, %v5982
  %v6539 = vpack.c.b16 %v5987, %v5983
  %v6540 = vpack.c.b16 %v5988, %v5984
  %v6541 = vpack.c.b16 %v5993, %v5989
  %v6542 = vpack.c.b16 %v5994, %v5990
  %v6543 = vpack.c.b16 %v5995, %v5991
  %v6544 = vpack.c.b16 %v5996, %v5992
  %v6545 = vpack.c.b16 %v6001, %v5997
  %v6546 = vpack.c.b16 %v6002, %v5998
  %v6547 = vpack.c.b16 %v6003, %v5999
  %v6548 = vpack.c.b16 %v6004, %v6000
  %v6549 = vpack.c.b16 %v6009, %v6005
  %v6550 = vpack.c.b16 %v6010, %v6006
  %v6551 = vpack.c.b16 %v6011, %v6007
  %v6552 = vpack.c.b16 %v6012, %v6008
  %v6553 = vpack.c.b16 %v6017, %v6013
  %v6554 = vpack.c.b16 %v6018, %v6014
  %v6555 = vpack.c.b16 %v6019, %v6015
  %v6556 = vpack.c.b16 %v6020, %v6016
  %v6557 = vpack.c.b16 %v6025, %v6021
  %v6558 = vpack.c.b16 %v6026, %v6022
  %v6559 = vpack.c.b16 %v6027, %v6023
  %v6560 = vpack.c.b16 %v6028, %v6024
  %v6561 = vpack.c.b16 %v6033, %v6029
  %v6562 = vpack.c.b16 %v6034, %v6030
  %v6563 = vpack.c.b16 %v6035, %v6031
  %v6564 = vpack.c.b16 %v6036, %v6032
  %v6565 = vpack.c.b16 %v6041, %v6037
  %v6566 = vpack.c.b16 %v6042, %v6038
  %v6567 = vpack.c.b16 %v6043, %v6039
  %v6568 = vpack.c.b16 %v6044, %v6040
  %v6569 = vpack.c.b16 %v6049, %v6045
  %v6570 = vpack.c.b16 %v6050, %v6046
  %v6571 = vpack.c.b16 %v6051, %v6047
  %v6572 = vpack.c.b16 %v6052, %v6048
  %v6573 = vpack.c.b16 %v6057, %v6053
  %v6574 = vpack.c.b16 %v6058, %v6054
  %v6575 = vpack.c.b16 %v6059, %v6055
  %v6576 = vpack.c.b16 %v6060, %v6056
  %v6577 = vpack.c.b16 %v6065, %v6061
  %v6578 = vpack.c.b16 %v6066, %v6062
  %v6579 = vpack.c.b16 %v6067, %v6063
  %v6580 = vpack.c.b16 %v6068, %v6064
  %7093 = vmatpush.bf16.msra.mxu0 %v6097
  %7094 = vmatpush.bf16.msra.mxu0 %v6093
  %7095 = vmatpush.bf16.msra.mxu0 %v6089
  %7096 = vmatpush.bf16.msra.mxu0 %v6085
  %7097 = vmatpush.bf16.msra.mxu0 %v6081
  %7098 = vmatpush.bf16.msra.mxu0 %v6077
  %7099 = vmatpush.bf16.msra.mxu0 %v6073
  %7100 = vmatpush.bf16.msra.mxu0 %v6069
  %7101 = vmatmul.bf16.gmra.mxu0 %v4501
  %v7102 = vpop.f32.mrf.mxu0
  %v7103 = vadd.f32 %v4396, %v7102
  %v7104 = vpop.f32.mrf.mxu0
  %7105 = vdwg.mxu0
  %7106 = vmatpush.bf16.msra.mxu0 %v6129
  %7107 = vmatpush.bf16.msra.mxu0 %v6125
  %7108 = vmatpush.bf16.msra.mxu0 %v6121
  %7109 = vmatpush.bf16.msra.mxu0 %v6117
  %7110 = vmatpush.bf16.msra.mxu0 %v6113
  %7111 = vmatpush.bf16.msra.mxu0 %v6109
  %7112 = vmatpush.bf16.msra.mxu0 %v6105
  %7113 = vmatpush.bf16.msra.mxu0 %v6101
  %7114 = vmatmul.bf16.gmra.mxu0 %v4502
  %v7115 = vpop.f32.mrf.mxu0
  %v7116 = vadd.f32 %v7103, %v7115
  %v7117 = vpop.f32.mrf.mxu0
  %7118 = vdwg.mxu0
  %7119 = vmatpush.bf16.msra.mxu0 %v6161
  %7120 = vmatpush.bf16.msra.mxu0 %v6157
  %7121 = vmatpush.bf16.msra.mxu0 %v6153
  %7122 = vmatpush.bf16.msra.mxu0 %v6149
  %7123 = vmatpush.bf16.msra.mxu0 %v6145
  %7124 = vmatpush.bf16.msra.mxu0 %v6141
  %7125 = vmatpush.bf16.msra.mxu0 %v6137
  %7126 = vmatpush.bf16.msra.mxu0 %v6133
  %7127 = vmatmul.bf16.gmra.mxu0 %v4503
  %v7128 = vpop.f32.mrf.mxu0
  %v7129 = vadd.f32 %v7116, %v7128
  %v7130 = vpop.f32.mrf.mxu0
  %7131 = vdwg.mxu0
  %7132 = vmatpush.bf16.msra.mxu0 %v6193
  %7133 = vmatpush.bf16.msra.mxu0 %v6189
  %7134 = vmatpush.bf16.msra.mxu0 %v6185
  %7135 = vmatpush.bf16.msra.mxu0 %v6181
  %7136 = vmatpush.bf16.msra.mxu0 %v6177
  %7137 = vmatpush.bf16.msra.mxu0 %v6173
  %7138 = vmatpush.bf16.msra.mxu0 %v6169
  %7139 = vmatpush.bf16.msra.mxu0 %v6165
  %7140 = vmatmul.bf16.gmra.mxu0 %v4504
  %v7141 = vpop.f32.mrf.mxu0
  %v7142 = vadd.f32 %v7129, %v7141
  %v7143 = vpop.f32.mrf.mxu0
  %7144 = vdwg.mxu0
  %7145 = vmatpush.bf16.msra.mxu0 %v6225
  %7146 = vmatpush.bf16.msra.mxu0 %v6221
  %7147 = vmatpush.bf16.msra.mxu0 %v6217
  %7148 = vmatpush.bf16.msra.mxu0 %v6213
  %7149 = vmatpush.bf16.msra.mxu0 %v6209
  %7150 = vmatpush.bf16.msra.mxu0 %v6205
  %7151 = vmatpush.bf16.msra.mxu0 %v6201
  %7152 = vmatpush.bf16.msra.mxu0 %v6197
  %7153 = vmatmul.bf16.gmra.mxu0 %v4505
  %v7154 = vpop.f32.mrf.mxu0
  %v7155 = vadd.f32 %v7142, %v7154
  %v7156 = vpop.f32.mrf.mxu0
  %7157 = vdwg.mxu0
  %7158 = vmatpush.bf16.msra.mxu0 %v6257
  %7159 = vmatpush.bf16.msra.mxu0 %v6253
  %7160 = vmatpush.bf16.msra.mxu0 %v6249
  %7161 = vmatpush.bf16.msra.mxu0 %v6245
  %7162 = vmatpush.bf16.msra.mxu0 %v6241
  %7163 = vmatpush.bf16.msra.mxu0 %v6237
  %7164 = vmatpush.bf16.msra.mxu0 %v6233
  %7165 = vmatpush.bf16.msra.mxu0 %v6229
  %7166 = vmatmul.bf16.gmra.mxu0 %v4506
  %v7167 = vpop.f32.mrf.mxu0
  %v7168 = vadd.f32 %v7155, %v7167
  %v7169 = vpop.f32.mrf.mxu0
  %7170 = vdwg.mxu0
  %7171 = vmatpush.bf16.msra.mxu0 %v6289
  %7172 = vmatpush.bf16.msra.mxu0 %v6285
  %7173 = vmatpush.bf16.msra.mxu0 %v6281
  %7174 = vmatpush.bf16.msra.mxu0 %v6277
  %7175 = vmatpush.bf16.msra.mxu0 %v6273
  %7176 = vmatpush.bf16.msra.mxu0 %v6269
  %7177 = vmatpush.bf16.msra.mxu0 %v6265
  %7178 = vmatpush.bf16.msra.mxu0 %v6261
  %7179 = vmatmul.bf16.gmra.mxu0 %v4507
  %v7180 = vpop.f32.mrf.mxu0
  %v7181 = vadd.f32 %v7168, %v7180
  %v7182 = vpop.f32.mrf.mxu0
  %7183 = vdwg.mxu0
  %7184 = vmatpush.bf16.msra.mxu0 %v6321
  %7185 = vmatpush.bf16.msra.mxu0 %v6317
  %7186 = vmatpush.bf16.msra.mxu0 %v6313
  %7187 = vmatpush.bf16.msra.mxu0 %v6309
  %7188 = vmatpush.bf16.msra.mxu0 %v6305
  %7189 = vmatpush.bf16.msra.mxu0 %v6301
  %7190 = vmatpush.bf16.msra.mxu0 %v6297
  %7191 = vmatpush.bf16.msra.mxu0 %v6293
  %7192 = vmatmul.bf16.gmra.mxu0 %v4508
  %v7193 = vpop.f32.mrf.mxu0
  %v7194 = vadd.f32 %v7181, %v7193
  %v7195 = vpop.f32.mrf.mxu0
  %7196 = vdwg.mxu0
  %7197 = vmatpush.bf16.msra.mxu0 %v6353
  %7198 = vmatpush.bf16.msra.mxu0 %v6349
  %7199 = vmatpush.bf16.msra.mxu0 %v6345
  %7200 = vmatpush.bf16.msra.mxu0 %v6341
  %7201 = vmatpush.bf16.msra.mxu0 %v6337
  %7202 = vmatpush.bf16.msra.mxu0 %v6333
  %7203 = vmatpush.bf16.msra.mxu0 %v6329
  %7204 = vmatpush.bf16.msra.mxu0 %v6325
  %7205 = vmatmul.bf16.gmra.mxu0 %v4509
  %v7206 = vpop.f32.mrf.mxu0
  %v7207 = vadd.f32 %v7194, %v7206
  %v7208 = vpop.f32.mrf.mxu0
  %7209 = vdwg.mxu0
  %7210 = vmatpush.bf16.msra.mxu0 %v6385
  %7211 = vmatpush.bf16.msra.mxu0 %v6381
  %7212 = vmatpush.bf16.msra.mxu0 %v6377
  %7213 = vmatpush.bf16.msra.mxu0 %v6373
  %7214 = vmatpush.bf16.msra.mxu0 %v6369
  %7215 = vmatpush.bf16.msra.mxu0 %v6365
  %7216 = vmatpush.bf16.msra.mxu0 %v6361
  %7217 = vmatpush.bf16.msra.mxu0 %v6357
  %7218 = vmatmul.bf16.gmra.mxu0 %v4510
  %v7219 = vpop.f32.mrf.mxu0
  %v7220 = vadd.f32 %v7207, %v7219
  %v7221 = vpop.f32.mrf.mxu0
  %7222 = vdwg.mxu0
  %7223 = vmatpush.bf16.msra.mxu0 %v6417
  %7224 = vmatpush.bf16.msra.mxu0 %v6413
  %7225 = vmatpush.bf16.msra.mxu0 %v6409
  %7226 = vmatpush.bf16.msra.mxu0 %v6405
  %7227 = vmatpush.bf16.msra.mxu0 %v6401
  %7228 = vmatpush.bf16.msra.mxu0 %v6397
  %7229 = vmatpush.bf16.msra.mxu0 %v6393
  %7230 = vmatpush.bf16.msra.mxu0 %v6389
  %7231 = vmatmul.bf16.gmra.mxu0 %v4511
  %v7232 = vpop.f32.mrf.mxu0
  %v7233 = vadd.f32 %v7220, %v7232
  %v7234 = vpop.f32.mrf.mxu0
  %7235 = vdwg.mxu0
  %7236 = vmatpush.bf16.msra.mxu0 %v6449
  %7237 = vmatpush.bf16.msra.mxu0 %v6445
  %7238 = vmatpush.bf16.msra.mxu0 %v6441
  %7239 = vmatpush.bf16.msra.mxu0 %v6437
  %7240 = vmatpush.bf16.msra.mxu0 %v6433
  %7241 = vmatpush.bf16.msra.mxu0 %v6429
  %7242 = vmatpush.bf16.msra.mxu0 %v6425
  %7243 = vmatpush.bf16.msra.mxu0 %v6421
  %7244 = vmatmul.bf16.gmra.mxu0 %v4512
  %v7245 = vpop.f32.mrf.mxu0
  %v7246 = vadd.f32 %v7233, %v7245
  %v7247 = vpop.f32.mrf.mxu0
  %7248 = vdwg.mxu0
  %7249 = vmatpush.bf16.msra.mxu0 %v6481
  %7250 = vmatpush.bf16.msra.mxu0 %v6477
  %7251 = vmatpush.bf16.msra.mxu0 %v6473
  %7252 = vmatpush.bf16.msra.mxu0 %v6469
  %7253 = vmatpush.bf16.msra.mxu0 %v6465
  %7254 = vmatpush.bf16.msra.mxu0 %v6461
  %7255 = vmatpush.bf16.msra.mxu0 %v6457
  %7256 = vmatpush.bf16.msra.mxu0 %v6453
  %7257 = vmatmul.bf16.gmra.mxu0 %v4513
  %v7258 = vpop.f32.mrf.mxu0
  %v7259 = vadd.f32 %v7246, %v7258
  %v7260 = vpop.f32.mrf.mxu0
  %7261 = vdwg.mxu0
  %7262 = vmatpush.bf16.msra.mxu0 %v6513
  %7263 = vmatpush.bf16.msra.mxu0 %v6509
  %7264 = vmatpush.bf16.msra.mxu0 %v6505
  %7265 = vmatpush.bf16.msra.mxu0 %v6501
  %7266 = vmatpush.bf16.msra.mxu0 %v6497
  %7267 = vmatpush.bf16.msra.mxu0 %v6493
  %7268 = vmatpush.bf16.msra.mxu0 %v6489
  %7269 = vmatpush.bf16.msra.mxu0 %v6485
  %7270 = vmatmul.bf16.gmra.mxu0 %v4514
  %v7271 = vpop.f32.mrf.mxu0
  %v7272 = vadd.f32 %v7259, %v7271
  %v7273 = vpop.f32.mrf.mxu0
  %7274 = vdwg.mxu0
  %7275 = vmatpush.bf16.msra.mxu0 %v6545
  %7276 = vmatpush.bf16.msra.mxu0 %v6541
  %7277 = vmatpush.bf16.msra.mxu0 %v6537
  %7278 = vmatpush.bf16.msra.mxu0 %v6533
  %7279 = vmatpush.bf16.msra.mxu0 %v6529
  %7280 = vmatpush.bf16.msra.mxu0 %v6525
  %7281 = vmatpush.bf16.msra.mxu0 %v6521
  %7282 = vmatpush.bf16.msra.mxu0 %v6517
  %7283 = vmatmul.bf16.gmra.mxu0 %v4515
  %v7284 = vpop.f32.mrf.mxu0
  %v7285 = vadd.f32 %v7272, %v7284
  %v7286 = vpop.f32.mrf.mxu0
  %7287 = vdwg.mxu0
  %7288 = vmatpush.bf16.msra.mxu0 %v6577
  %7289 = vmatpush.bf16.msra.mxu0 %v6573
  %7290 = vmatpush.bf16.msra.mxu0 %v6569
  %7291 = vmatpush.bf16.msra.mxu0 %v6565
  %7292 = vmatpush.bf16.msra.mxu0 %v6561
  %7293 = vmatpush.bf16.msra.mxu0 %v6557
  %7294 = vmatpush.bf16.msra.mxu0 %v6553
  %7295 = vmatpush.bf16.msra.mxu0 %v6549
  %7296 = vmatmul.bf16.gmra.mxu0 %v4516
  %v7297 = vpop.f32.mrf.mxu0
  %v7298 = vadd.f32 %v7285, %v7297
  %v7299 = vpop.f32.mrf.mxu0
  %7300 = vdwg.mxu0
  %7301 = vmatpush.bf16.msra.mxu0 %v6098
  %7302 = vmatpush.bf16.msra.mxu0 %v6094
  %7303 = vmatpush.bf16.msra.mxu0 %v6090
  %7304 = vmatpush.bf16.msra.mxu0 %v6086
  %7305 = vmatpush.bf16.msra.mxu0 %v6082
  %7306 = vmatpush.bf16.msra.mxu0 %v6078
  %7307 = vmatpush.bf16.msra.mxu0 %v6074
  %7308 = vmatpush.bf16.msra.mxu0 %v6070
  %7309 = vmatmul.bf16.gmra.mxu0 %v4501
  %v7310 = vpop.f32.mrf.mxu0
  %v7311 = vadd.f32 %v4422, %v7310
  %v7312 = vpop.f32.mrf.mxu0
  %7313 = vdwg.mxu0
  %7314 = vmatpush.bf16.msra.mxu0 %v6130
  %7315 = vmatpush.bf16.msra.mxu0 %v6126
  %7316 = vmatpush.bf16.msra.mxu0 %v6122
  %7317 = vmatpush.bf16.msra.mxu0 %v6118
  %7318 = vmatpush.bf16.msra.mxu0 %v6114
  %7319 = vmatpush.bf16.msra.mxu0 %v6110
  %7320 = vmatpush.bf16.msra.mxu0 %v6106
  %7321 = vmatpush.bf16.msra.mxu0 %v6102
  %7322 = vmatmul.bf16.gmra.mxu0 %v4502
  %v7323 = vpop.f32.mrf.mxu0
  %v7324 = vadd.f32 %v7311, %v7323
  %v7325 = vpop.f32.mrf.mxu0
  %7326 = vdwg.mxu0
  %7327 = vmatpush.bf16.msra.mxu0 %v6162
  %7328 = vmatpush.bf16.msra.mxu0 %v6158
  %7329 = vmatpush.bf16.msra.mxu0 %v6154
  %7330 = vmatpush.bf16.msra.mxu0 %v6150
  %7331 = vmatpush.bf16.msra.mxu0 %v6146
  %7332 = vmatpush.bf16.msra.mxu0 %v6142
  %7333 = vmatpush.bf16.msra.mxu0 %v6138
  %7334 = vmatpush.bf16.msra.mxu0 %v6134
  %7335 = vmatmul.bf16.gmra.mxu0 %v4503
  %v7336 = vpop.f32.mrf.mxu0
  %v7337 = vadd.f32 %v7324, %v7336
  %v7338 = vpop.f32.mrf.mxu0
  %7339 = vdwg.mxu0
  %7340 = vmatpush.bf16.msra.mxu0 %v6194
  %7341 = vmatpush.bf16.msra.mxu0 %v6190
  %7342 = vmatpush.bf16.msra.mxu0 %v6186
  %7343 = vmatpush.bf16.msra.mxu0 %v6182
  %7344 = vmatpush.bf16.msra.mxu0 %v6178
  %7345 = vmatpush.bf16.msra.mxu0 %v6174
  %7346 = vmatpush.bf16.msra.mxu0 %v6170
  %7347 = vmatpush.bf16.msra.mxu0 %v6166
  %7348 = vmatmul.bf16.gmra.mxu0 %v4504
  %v7349 = vpop.f32.mrf.mxu0
  %v7350 = vadd.f32 %v7337, %v7349
  %v7351 = vpop.f32.mrf.mxu0
  %7352 = vdwg.mxu0
  %7353 = vmatpush.bf16.msra.mxu0 %v6226
  %7354 = vmatpush.bf16.msra.mxu0 %v6222
  %7355 = vmatpush.bf16.msra.mxu0 %v6218
  %7356 = vmatpush.bf16.msra.mxu0 %v6214
  %7357 = vmatpush.bf16.msra.mxu0 %v6210
  %7358 = vmatpush.bf16.msra.mxu0 %v6206
  %7359 = vmatpush.bf16.msra.mxu0 %v6202
  %7360 = vmatpush.bf16.msra.mxu0 %v6198
  %7361 = vmatmul.bf16.gmra.mxu0 %v4505
  %v7362 = vpop.f32.mrf.mxu0
  %v7363 = vadd.f32 %v7350, %v7362
  %v7364 = vpop.f32.mrf.mxu0
  %7365 = vdwg.mxu0
  %7366 = vmatpush.bf16.msra.mxu0 %v6258
  %7367 = vmatpush.bf16.msra.mxu0 %v6254
  %7368 = vmatpush.bf16.msra.mxu0 %v6250
  %7369 = vmatpush.bf16.msra.mxu0 %v6246
  %7370 = vmatpush.bf16.msra.mxu0 %v6242
  %7371 = vmatpush.bf16.msra.mxu0 %v6238
  %7372 = vmatpush.bf16.msra.mxu0 %v6234
  %7373 = vmatpush.bf16.msra.mxu0 %v6230
  %7374 = vmatmul.bf16.gmra.mxu0 %v4506
  %v7375 = vpop.f32.mrf.mxu0
  %v7376 = vadd.f32 %v7363, %v7375
  %v7377 = vpop.f32.mrf.mxu0
  %7378 = vdwg.mxu0
  %7379 = vmatpush.bf16.msra.mxu0 %v6290
  %7380 = vmatpush.bf16.msra.mxu0 %v6286
  %7381 = vmatpush.bf16.msra.mxu0 %v6282
  %7382 = vmatpush.bf16.msra.mxu0 %v6278
  %7383 = vmatpush.bf16.msra.mxu0 %v6274
  %7384 = vmatpush.bf16.msra.mxu0 %v6270
  %7385 = vmatpush.bf16.msra.mxu0 %v6266
  %7386 = vmatpush.bf16.msra.mxu0 %v6262
  %7387 = vmatmul.bf16.gmra.mxu0 %v4507
  %v7388 = vpop.f32.mrf.mxu0
  %v7389 = vadd.f32 %v7376, %v7388
  %v7390 = vpop.f32.mrf.mxu0
  %7391 = vdwg.mxu0
  %7392 = vmatpush.bf16.msra.mxu0 %v6322
  %7393 = vmatpush.bf16.msra.mxu0 %v6318
  %7394 = vmatpush.bf16.msra.mxu0 %v6314
  %7395 = vmatpush.bf16.msra.mxu0 %v6310
  %7396 = vmatpush.bf16.msra.mxu0 %v6306
  %7397 = vmatpush.bf16.msra.mxu0 %v6302
  %7398 = vmatpush.bf16.msra.mxu0 %v6298
  %7399 = vmatpush.bf16.msra.mxu0 %v6294
  %7400 = vmatmul.bf16.gmra.mxu0 %v4508
  %v7401 = vpop.f32.mrf.mxu0
  %v7402 = vadd.f32 %v7389, %v7401
  %v7403 = vpop.f32.mrf.mxu0
  %7404 = vdwg.mxu0
  %7405 = vmatpush.bf16.msra.mxu0 %v6354
  %7406 = vmatpush.bf16.msra.mxu0 %v6350
  %7407 = vmatpush.bf16.msra.mxu0 %v6346
  %7408 = vmatpush.bf16.msra.mxu0 %v6342
  %7409 = vmatpush.bf16.msra.mxu0 %v6338
  %7410 = vmatpush.bf16.msra.mxu0 %v6334
  %7411 = vmatpush.bf16.msra.mxu0 %v6330
  %7412 = vmatpush.bf16.msra.mxu0 %v6326
  %7413 = vmatmul.bf16.gmra.mxu0 %v4509
  %v7414 = vpop.f32.mrf.mxu0
  %v7415 = vadd.f32 %v7402, %v7414
  %v7416 = vpop.f32.mrf.mxu0
  %7417 = vdwg.mxu0
  %7418 = vmatpush.bf16.msra.mxu0 %v6386
  %7419 = vmatpush.bf16.msra.mxu0 %v6382
  %7420 = vmatpush.bf16.msra.mxu0 %v6378
  %7421 = vmatpush.bf16.msra.mxu0 %v6374
  %7422 = vmatpush.bf16.msra.mxu0 %v6370
  %7423 = vmatpush.bf16.msra.mxu0 %v6366
  %7424 = vmatpush.bf16.msra.mxu0 %v6362
  %7425 = vmatpush.bf16.msra.mxu0 %v6358
  %7426 = vmatmul.bf16.gmra.mxu0 %v4510
  %v7427 = vpop.f32.mrf.mxu0
  %v7428 = vadd.f32 %v7415, %v7427
  %v7429 = vpop.f32.mrf.mxu0
  %7430 = vdwg.mxu0
  %7431 = vmatpush.bf16.msra.mxu0 %v6418
  %7432 = vmatpush.bf16.msra.mxu0 %v6414
  %7433 = vmatpush.bf16.msra.mxu0 %v6410
  %7434 = vmatpush.bf16.msra.mxu0 %v6406
  %7435 = vmatpush.bf16.msra.mxu0 %v6402
  %7436 = vmatpush.bf16.msra.mxu0 %v6398
  %7437 = vmatpush.bf16.msra.mxu0 %v6394
  %7438 = vmatpush.bf16.msra.mxu0 %v6390
  %7439 = vmatmul.bf16.gmra.mxu0 %v4511
  %v7440 = vpop.f32.mrf.mxu0
  %v7441 = vadd.f32 %v7428, %v7440
  %v7442 = vpop.f32.mrf.mxu0
  %7443 = vdwg.mxu0
  %7444 = vmatpush.bf16.msra.mxu0 %v6450
  %7445 = vmatpush.bf16.msra.mxu0 %v6446
  %7446 = vmatpush.bf16.msra.mxu0 %v6442
  %7447 = vmatpush.bf16.msra.mxu0 %v6438
  %7448 = vmatpush.bf16.msra.mxu0 %v6434
  %7449 = vmatpush.bf16.msra.mxu0 %v6430
  %7450 = vmatpush.bf16.msra.mxu0 %v6426
  %7451 = vmatpush.bf16.msra.mxu0 %v6422
  %7452 = vmatmul.bf16.gmra.mxu0 %v4512
  %v7453 = vpop.f32.mrf.mxu0
  %v7454 = vadd.f32 %v7441, %v7453
  %v7455 = vpop.f32.mrf.mxu0
  %7456 = vdwg.mxu0
  %7457 = vmatpush.bf16.msra.mxu0 %v6482
  %7458 = vmatpush.bf16.msra.mxu0 %v6478
  %7459 = vmatpush.bf16.msra.mxu0 %v6474
  %7460 = vmatpush.bf16.msra.mxu0 %v6470
  %7461 = vmatpush.bf16.msra.mxu0 %v6466
  %7462 = vmatpush.bf16.msra.mxu0 %v6462
  %7463 = vmatpush.bf16.msra.mxu0 %v6458
  %7464 = vmatpush.bf16.msra.mxu0 %v6454
  %7465 = vmatmul.bf16.gmra.mxu0 %v4513
  %v7466 = vpop.f32.mrf.mxu0
  %v7467 = vadd.f32 %v7454, %v7466
  %v7468 = vpop.f32.mrf.mxu0
  %7469 = vdwg.mxu0
  %7470 = vmatpush.bf16.msra.mxu0 %v6514
  %7471 = vmatpush.bf16.msra.mxu0 %v6510
  %7472 = vmatpush.bf16.msra.mxu0 %v6506
  %7473 = vmatpush.bf16.msra.mxu0 %v6502
  %7474 = vmatpush.bf16.msra.mxu0 %v6498
  %7475 = vmatpush.bf16.msra.mxu0 %v6494
  %7476 = vmatpush.bf16.msra.mxu0 %v6490
  %7477 = vmatpush.bf16.msra.mxu0 %v6486
  %7478 = vmatmul.bf16.gmra.mxu0 %v4514
  %v7479 = vpop.f32.mrf.mxu0
  %v7480 = vadd.f32 %v7467, %v7479
  %v7481 = vpop.f32.mrf.mxu0
  %7482 = vdwg.mxu0
  %7483 = vmatpush.bf16.msra.mxu0 %v6546
  %7484 = vmatpush.bf16.msra.mxu0 %v6542
  %7485 = vmatpush.bf16.msra.mxu0 %v6538
  %7486 = vmatpush.bf16.msra.mxu0 %v6534
  %7487 = vmatpush.bf16.msra.mxu0 %v6530
  %7488 = vmatpush.bf16.msra.mxu0 %v6526
  %7489 = vmatpush.bf16.msra.mxu0 %v6522
  %7490 = vmatpush.bf16.msra.mxu0 %v6518
  %7491 = vmatmul.bf16.gmra.mxu0 %v4515
  %v7492 = vpop.f32.mrf.mxu0
  %v7493 = vadd.f32 %v7480, %v7492
  %v7494 = vpop.f32.mrf.mxu0
  %7495 = vdwg.mxu0
  %7496 = vmatpush.bf16.msra.mxu0 %v6578
  %7497 = vmatpush.bf16.msra.mxu0 %v6574
  %7498 = vmatpush.bf16.msra.mxu0 %v6570
  %7499 = vmatpush.bf16.msra.mxu0 %v6566
  %7500 = vmatpush.bf16.msra.mxu0 %v6562
  %7501 = vmatpush.bf16.msra.mxu0 %v6558
  %7502 = vmatpush.bf16.msra.mxu0 %v6554
  %7503 = vmatpush.bf16.msra.mxu0 %v6550
  %7504 = vmatmul.bf16.gmra.mxu0 %v4516
  %v7505 = vpop.f32.mrf.mxu0
  %v7506 = vadd.f32 %v7493, %v7505
  %v7507 = vpop.f32.mrf.mxu0
  %7508 = vdwg.mxu0
  %7509 = vmatpush.bf16.msra.mxu0 %v6099
  %7510 = vmatpush.bf16.msra.mxu0 %v6095
  %7511 = vmatpush.bf16.msra.mxu0 %v6091
  %7512 = vmatpush.bf16.msra.mxu0 %v6087
  %7513 = vmatpush.bf16.msra.mxu0 %v6083
  %7514 = vmatpush.bf16.msra.mxu0 %v6079
  %7515 = vmatpush.bf16.msra.mxu0 %v6075
  %7516 = vmatpush.bf16.msra.mxu0 %v6071
  %7517 = vmatmul.bf16.gmra.mxu0 %v4501
  %v7518 = vpop.f32.mrf.mxu0
  %v7519 = vadd.f32 %v4448, %v7518
  %v7520 = vpop.f32.mrf.mxu0
  %7521 = vdwg.mxu0
  %7522 = vmatpush.bf16.msra.mxu0 %v6131
  %7523 = vmatpush.bf16.msra.mxu0 %v6127
  %7524 = vmatpush.bf16.msra.mxu0 %v6123
  %7525 = vmatpush.bf16.msra.mxu0 %v6119
  %7526 = vmatpush.bf16.msra.mxu0 %v6115
  %7527 = vmatpush.bf16.msra.mxu0 %v6111
  %7528 = vmatpush.bf16.msra.mxu0 %v6107
  %7529 = vmatpush.bf16.msra.mxu0 %v6103
  %7530 = vmatmul.bf16.gmra.mxu0 %v4502
  %v7531 = vpop.f32.mrf.mxu0
  %v7532 = vadd.f32 %v7519, %v7531
  %v7533 = vpop.f32.mrf.mxu0
  %7534 = vdwg.mxu0
  %7535 = vmatpush.bf16.msra.mxu0 %v6163
  %7536 = vmatpush.bf16.msra.mxu0 %v6159
  %7537 = vmatpush.bf16.msra.mxu0 %v6155
  %7538 = vmatpush.bf16.msra.mxu0 %v6151
  %7539 = vmatpush.bf16.msra.mxu0 %v6147
  %7540 = vmatpush.bf16.msra.mxu0 %v6143
  %7541 = vmatpush.bf16.msra.mxu0 %v6139
  %7542 = vmatpush.bf16.msra.mxu0 %v6135
  %7543 = vmatmul.bf16.gmra.mxu0 %v4503
  %v7544 = vpop.f32.mrf.mxu0
  %v7545 = vadd.f32 %v7532, %v7544
  %v7546 = vpop.f32.mrf.mxu0
  %7547 = vdwg.mxu0
  %7548 = vmatpush.bf16.msra.mxu0 %v6195
  %7549 = vmatpush.bf16.msra.mxu0 %v6191
  %7550 = vmatpush.bf16.msra.mxu0 %v6187
  %7551 = vmatpush.bf16.msra.mxu0 %v6183
  %7552 = vmatpush.bf16.msra.mxu0 %v6179
  %7553 = vmatpush.bf16.msra.mxu0 %v6175
  %7554 = vmatpush.bf16.msra.mxu0 %v6171
  %7555 = vmatpush.bf16.msra.mxu0 %v6167
  %7556 = vmatmul.bf16.gmra.mxu0 %v4504
  %v7557 = vpop.f32.mrf.mxu0
  %v7558 = vadd.f32 %v7545, %v7557
  %v7559 = vpop.f32.mrf.mxu0
  %7560 = vdwg.mxu0
  %7561 = vmatpush.bf16.msra.mxu0 %v6227
  %7562 = vmatpush.bf16.msra.mxu0 %v6223
  %7563 = vmatpush.bf16.msra.mxu0 %v6219
  %7564 = vmatpush.bf16.msra.mxu0 %v6215
  %7565 = vmatpush.bf16.msra.mxu0 %v6211
  %7566 = vmatpush.bf16.msra.mxu0 %v6207
  %7567 = vmatpush.bf16.msra.mxu0 %v6203
  %7568 = vmatpush.bf16.msra.mxu0 %v6199
  %7569 = vmatmul.bf16.gmra.mxu0 %v4505
  %v7570 = vpop.f32.mrf.mxu0
  %v7571 = vadd.f32 %v7558, %v7570
  %v7572 = vpop.f32.mrf.mxu0
  %7573 = vdwg.mxu0
  %7574 = vmatpush.bf16.msra.mxu0 %v6259
  %7575 = vmatpush.bf16.msra.mxu0 %v6255
  %7576 = vmatpush.bf16.msra.mxu0 %v6251
  %7577 = vmatpush.bf16.msra.mxu0 %v6247
  %7578 = vmatpush.bf16.msra.mxu0 %v6243
  %7579 = vmatpush.bf16.msra.mxu0 %v6239
  %7580 = vmatpush.bf16.msra.mxu0 %v6235
  %7581 = vmatpush.bf16.msra.mxu0 %v6231
  %7582 = vmatmul.bf16.gmra.mxu0 %v4506
  %v7583 = vpop.f32.mrf.mxu0
  %v7584 = vadd.f32 %v7571, %v7583
  %v7585 = vpop.f32.mrf.mxu0
  %7586 = vdwg.mxu0
  %7587 = vmatpush.bf16.msra.mxu0 %v6291
  %7588 = vmatpush.bf16.msra.mxu0 %v6287
  %7589 = vmatpush.bf16.msra.mxu0 %v6283
  %7590 = vmatpush.bf16.msra.mxu0 %v6279
  %7591 = vmatpush.bf16.msra.mxu0 %v6275
  %7592 = vmatpush.bf16.msra.mxu0 %v6271
  %7593 = vmatpush.bf16.msra.mxu0 %v6267
  %7594 = vmatpush.bf16.msra.mxu0 %v6263
  %7595 = vmatmul.bf16.gmra.mxu0 %v4507
  %v7596 = vpop.f32.mrf.mxu0
  %v7597 = vadd.f32 %v7584, %v7596
  %v7598 = vpop.f32.mrf.mxu0
  %7599 = vdwg.mxu0
  %7600 = vmatpush.bf16.msra.mxu0 %v6323
  %7601 = vmatpush.bf16.msra.mxu0 %v6319
  %7602 = vmatpush.bf16.msra.mxu0 %v6315
  %7603 = vmatpush.bf16.msra.mxu0 %v6311
  %7604 = vmatpush.bf16.msra.mxu0 %v6307
  %7605 = vmatpush.bf16.msra.mxu0 %v6303
  %7606 = vmatpush.bf16.msra.mxu0 %v6299
  %7607 = vmatpush.bf16.msra.mxu0 %v6295
  %7608 = vmatmul.bf16.gmra.mxu0 %v4508
  %v7609 = vpop.f32.mrf.mxu0
  %v7610 = vadd.f32 %v7597, %v7609
  %v7611 = vpop.f32.mrf.mxu0
  %7612 = vdwg.mxu0
  %7613 = vmatpush.bf16.msra.mxu0 %v6355
  %7614 = vmatpush.bf16.msra.mxu0 %v6351
  %7615 = vmatpush.bf16.msra.mxu0 %v6347
  %7616 = vmatpush.bf16.msra.mxu0 %v6343
  %7617 = vmatpush.bf16.msra.mxu0 %v6339
  %7618 = vmatpush.bf16.msra.mxu0 %v6335
  %7619 = vmatpush.bf16.msra.mxu0 %v6331
  %7620 = vmatpush.bf16.msra.mxu0 %v6327
  %7621 = vmatmul.bf16.gmra.mxu0 %v4509
  %v7622 = vpop.f32.mrf.mxu0
  %v7623 = vadd.f32 %v7610, %v7622
  %v7624 = vpop.f32.mrf.mxu0
  %7625 = vdwg.mxu0
  %7626 = vmatpush.bf16.msra.mxu0 %v6387
  %7627 = vmatpush.bf16.msra.mxu0 %v6383
  %7628 = vmatpush.bf16.msra.mxu0 %v6379
  %7629 = vmatpush.bf16.msra.mxu0 %v6375
  %7630 = vmatpush.bf16.msra.mxu0 %v6371
  %7631 = vmatpush.bf16.msra.mxu0 %v6367
  %7632 = vmatpush.bf16.msra.mxu0 %v6363
  %7633 = vmatpush.bf16.msra.mxu0 %v6359
  %7634 = vmatmul.bf16.gmra.mxu0 %v4510
  %v7635 = vpop.f32.mrf.mxu0
  %v7636 = vadd.f32 %v7623, %v7635
  %v7637 = vpop.f32.mrf.mxu0
  %7638 = vdwg.mxu0
  %7639 = vmatpush.bf16.msra.mxu0 %v6419
  %7640 = vmatpush.bf16.msra.mxu0 %v6415
  %7641 = vmatpush.bf16.msra.mxu0 %v6411
  %7642 = vmatpush.bf16.msra.mxu0 %v6407
  %7643 = vmatpush.bf16.msra.mxu0 %v6403
  %7644 = vmatpush.bf16.msra.mxu0 %v6399
  %7645 = vmatpush.bf16.msra.mxu0 %v6395
  %7646 = vmatpush.bf16.msra.mxu0 %v6391
  %7647 = vmatmul.bf16.gmra.mxu0 %v4511
  %v7648 = vpop.f32.mrf.mxu0
  %v7649 = vadd.f32 %v7636, %v7648
  %v7650 = vpop.f32.mrf.mxu0
  %7651 = vdwg.mxu0
  %7652 = vmatpush.bf16.msra.mxu0 %v6451
  %7653 = vmatpush.bf16.msra.mxu0 %v6447
  %7654 = vmatpush.bf16.msra.mxu0 %v6443
  %7655 = vmatpush.bf16.msra.mxu0 %v6439
  %7656 = vmatpush.bf16.msra.mxu0 %v6435
  %7657 = vmatpush.bf16.msra.mxu0 %v6431
  %7658 = vmatpush.bf16.msra.mxu0 %v6427
  %7659 = vmatpush.bf16.msra.mxu0 %v6423
  %7660 = vmatmul.bf16.gmra.mxu0 %v4512
  %v7661 = vpop.f32.mrf.mxu0
  %v7662 = vadd.f32 %v7649, %v7661
  %v7663 = vpop.f32.mrf.mxu0
  %7664 = vdwg.mxu0
  %7665 = vmatpush.bf16.msra.mxu0 %v6483
  %7666 = vmatpush.bf16.msra.mxu0 %v6479
  %7667 = vmatpush.bf16.msra.mxu0 %v6475
  %7668 = vmatpush.bf16.msra.mxu0 %v6471
  %7669 = vmatpush.bf16.msra.mxu0 %v6467
  %7670 = vmatpush.bf16.msra.mxu0 %v6463
  %7671 = vmatpush.bf16.msra.mxu0 %v6459
  %7672 = vmatpush.bf16.msra.mxu0 %v6455
  %7673 = vmatmul.bf16.gmra.mxu0 %v4513
  %v7674 = vpop.f32.mrf.mxu0
  %v7675 = vadd.f32 %v7662, %v7674
  %v7676 = vpop.f32.mrf.mxu0
  %7677 = vdwg.mxu0
  %7678 = vmatpush.bf16.msra.mxu0 %v6515
  %7679 = vmatpush.bf16.msra.mxu0 %v6511
  %7680 = vmatpush.bf16.msra.mxu0 %v6507
  %7681 = vmatpush.bf16.msra.mxu0 %v6503
  %7682 = vmatpush.bf16.msra.mxu0 %v6499
  %7683 = vmatpush.bf16.msra.mxu0 %v6495
  %7684 = vmatpush.bf16.msra.mxu0 %v6491
  %7685 = vmatpush.bf16.msra.mxu0 %v6487
  %7686 = vmatmul.bf16.gmra.mxu0 %v4514
  %v7687 = vpop.f32.mrf.mxu0
  %v7688 = vadd.f32 %v7675, %v7687
  %v7689 = vpop.f32.mrf.mxu0
  %7690 = vdwg.mxu0
  %7691 = vmatpush.bf16.msra.mxu0 %v6547
  %7692 = vmatpush.bf16.msra.mxu0 %v6543
  %7693 = vmatpush.bf16.msra.mxu0 %v6539
  %7694 = vmatpush.bf16.msra.mxu0 %v6535
  %7695 = vmatpush.bf16.msra.mxu0 %v6531
  %7696 = vmatpush.bf16.msra.mxu0 %v6527
  %7697 = vmatpush.bf16.msra.mxu0 %v6523
  %7698 = vmatpush.bf16.msra.mxu0 %v6519
  %7699 = vmatmul.bf16.gmra.mxu0 %v4515
  %v7700 = vpop.f32.mrf.mxu0
  %v7701 = vadd.f32 %v7688, %v7700
  %v7702 = vpop.f32.mrf.mxu0
  %7703 = vdwg.mxu0
  %7704 = vmatpush.bf16.msra.mxu0 %v6579
  %7705 = vmatpush.bf16.msra.mxu0 %v6575
  %7706 = vmatpush.bf16.msra.mxu0 %v6571
  %7707 = vmatpush.bf16.msra.mxu0 %v6567
  %7708 = vmatpush.bf16.msra.mxu0 %v6563
  %7709 = vmatpush.bf16.msra.mxu0 %v6559
  %7710 = vmatpush.bf16.msra.mxu0 %v6555
  %7711 = vmatpush.bf16.msra.mxu0 %v6551
  %7712 = vmatmul.bf16.gmra.mxu0 %v4516
  %v7713 = vpop.f32.mrf.mxu0
  %v7714 = vadd.f32 %v7701, %v7713
  %v7715 = vpop.f32.mrf.mxu0
  %7716 = vdwg.mxu0
  %7717 = vmatpush.bf16.msra.mxu0 %v6100
  %7718 = vmatpush.bf16.msra.mxu0 %v6096
  %7719 = vmatpush.bf16.msra.mxu0 %v6092
  %7720 = vmatpush.bf16.msra.mxu0 %v6088
  %7721 = vmatpush.bf16.msra.mxu0 %v6084
  %7722 = vmatpush.bf16.msra.mxu0 %v6080
  %7723 = vmatpush.bf16.msra.mxu0 %v6076
  %7724 = vmatpush.bf16.msra.mxu0 %v6072
  %7725 = vmatmul.bf16.gmra.mxu0 %v4501
  %v7726 = vpop.f32.mrf.mxu0
  %v7727 = vadd.f32 %v4474, %v7726
  %v7728 = vpop.f32.mrf.mxu0
  %7729 = vdwg.mxu0
  %7730 = vmatpush.bf16.msra.mxu0 %v6132
  %7731 = vmatpush.bf16.msra.mxu0 %v6128
  %7732 = vmatpush.bf16.msra.mxu0 %v6124
  %7733 = vmatpush.bf16.msra.mxu0 %v6120
  %7734 = vmatpush.bf16.msra.mxu0 %v6116
  %7735 = vmatpush.bf16.msra.mxu0 %v6112
  %7736 = vmatpush.bf16.msra.mxu0 %v6108
  %7737 = vmatpush.bf16.msra.mxu0 %v6104
  %7738 = vmatmul.bf16.gmra.mxu0 %v4502
  %v7739 = vpop.f32.mrf.mxu0
  %v7740 = vadd.f32 %v7727, %v7739
  %v7741 = vpop.f32.mrf.mxu0
  %7742 = vdwg.mxu0
  %7743 = vmatpush.bf16.msra.mxu0 %v6164
  %7744 = vmatpush.bf16.msra.mxu0 %v6160
  %7745 = vmatpush.bf16.msra.mxu0 %v6156
  %7746 = vmatpush.bf16.msra.mxu0 %v6152
  %7747 = vmatpush.bf16.msra.mxu0 %v6148
  %7748 = vmatpush.bf16.msra.mxu0 %v6144
  %7749 = vmatpush.bf16.msra.mxu0 %v6140
  %7750 = vmatpush.bf16.msra.mxu0 %v6136
  %7751 = vmatmul.bf16.gmra.mxu0 %v4503
  %v7752 = vpop.f32.mrf.mxu0
  %v7753 = vadd.f32 %v7740, %v7752
  %v7754 = vpop.f32.mrf.mxu0
  %7755 = vdwg.mxu0
  %7756 = vmatpush.bf16.msra.mxu0 %v6196
  %7757 = vmatpush.bf16.msra.mxu0 %v6192
  %7758 = vmatpush.bf16.msra.mxu0 %v6188
  %7759 = vmatpush.bf16.msra.mxu0 %v6184
  %7760 = vmatpush.bf16.msra.mxu0 %v6180
  %7761 = vmatpush.bf16.msra.mxu0 %v6176
  %7762 = vmatpush.bf16.msra.mxu0 %v6172
  %7763 = vmatpush.bf16.msra.mxu0 %v6168
  %7764 = vmatmul.bf16.gmra.mxu0 %v4504
  %v7765 = vpop.f32.mrf.mxu0
  %v7766 = vadd.f32 %v7753, %v7765
  %v7767 = vpop.f32.mrf.mxu0
  %7768 = vdwg.mxu0
  %7769 = vmatpush.bf16.msra.mxu0 %v6228
  %7770 = vmatpush.bf16.msra.mxu0 %v6224
  %7771 = vmatpush.bf16.msra.mxu0 %v6220
  %7772 = vmatpush.bf16.msra.mxu0 %v6216
  %7773 = vmatpush.bf16.msra.mxu0 %v6212
  %7774 = vmatpush.bf16.msra.mxu0 %v6208
  %7775 = vmatpush.bf16.msra.mxu0 %v6204
  %7776 = vmatpush.bf16.msra.mxu0 %v6200
  %7777 = vmatmul.bf16.gmra.mxu0 %v4505
  %v7778 = vpop.f32.mrf.mxu0
  %v7779 = vadd.f32 %v7766, %v7778
  %v7780 = vpop.f32.mrf.mxu0
  %7781 = vdwg.mxu0
  %7782 = vmatpush.bf16.msra.mxu0 %v6260
  %7783 = vmatpush.bf16.msra.mxu0 %v6256
  %7784 = vmatpush.bf16.msra.mxu0 %v6252
  %7785 = vmatpush.bf16.msra.mxu0 %v6248
  %7786 = vmatpush.bf16.msra.mxu0 %v6244
  %7787 = vmatpush.bf16.msra.mxu0 %v6240
  %7788 = vmatpush.bf16.msra.mxu0 %v6236
  %7789 = vmatpush.bf16.msra.mxu0 %v6232
  %7790 = vmatmul.bf16.gmra.mxu0 %v4506
  %v7791 = vpop.f32.mrf.mxu0
  %v7792 = vadd.f32 %v7779, %v7791
  %v7793 = vpop.f32.mrf.mxu0
  %7794 = vdwg.mxu0
  %7795 = vmatpush.bf16.msra.mxu0 %v6292
  %7796 = vmatpush.bf16.msra.mxu0 %v6288
  %7797 = vmatpush.bf16.msra.mxu0 %v6284
  %7798 = vmatpush.bf16.msra.mxu0 %v6280
  %7799 = vmatpush.bf16.msra.mxu0 %v6276
  %7800 = vmatpush.bf16.msra.mxu0 %v6272
  %7801 = vmatpush.bf16.msra.mxu0 %v6268
  %7802 = vmatpush.bf16.msra.mxu0 %v6264
  %7803 = vmatmul.bf16.gmra.mxu0 %v4507
  %v7804 = vpop.f32.mrf.mxu0
  %v7805 = vadd.f32 %v7792, %v7804
  %v7806 = vpop.f32.mrf.mxu0
  %7807 = vdwg.mxu0
  %7808 = vmatpush.bf16.msra.mxu0 %v6324
  %7809 = vmatpush.bf16.msra.mxu0 %v6320
  %7810 = vmatpush.bf16.msra.mxu0 %v6316
  %7811 = vmatpush.bf16.msra.mxu0 %v6312
  %7812 = vmatpush.bf16.msra.mxu0 %v6308
  %7813 = vmatpush.bf16.msra.mxu0 %v6304
  %7814 = vmatpush.bf16.msra.mxu0 %v6300
  %7815 = vmatpush.bf16.msra.mxu0 %v6296
  %7816 = vmatmul.bf16.gmra.mxu0 %v4508
  %v7817 = vpop.f32.mrf.mxu0
  %v7818 = vadd.f32 %v7805, %v7817
  %v7819 = vpop.f32.mrf.mxu0
  %7820 = vdwg.mxu0
  %7821 = vmatpush.bf16.msra.mxu0 %v6356
  %7822 = vmatpush.bf16.msra.mxu0 %v6352
  %7823 = vmatpush.bf16.msra.mxu0 %v6348
  %7824 = vmatpush.bf16.msra.mxu0 %v6344
  %7825 = vmatpush.bf16.msra.mxu0 %v6340
  %7826 = vmatpush.bf16.msra.mxu0 %v6336
  %7827 = vmatpush.bf16.msra.mxu0 %v6332
  %7828 = vmatpush.bf16.msra.mxu0 %v6328
  %7829 = vmatmul.bf16.gmra.mxu0 %v4509
  %v7830 = vpop.f32.mrf.mxu0
  %v7831 = vadd.f32 %v7818, %v7830
  %v7832 = vpop.f32.mrf.mxu0
  %7833 = vdwg.mxu0
  %7834 = vmatpush.bf16.msra.mxu0 %v6388
  %7835 = vmatpush.bf16.msra.mxu0 %v6384
  %7836 = vmatpush.bf16.msra.mxu0 %v6380
  %7837 = vmatpush.bf16.msra.mxu0 %v6376
  %7838 = vmatpush.bf16.msra.mxu0 %v6372
  %7839 = vmatpush.bf16.msra.mxu0 %v6368
  %7840 = vmatpush.bf16.msra.mxu0 %v6364
  %7841 = vmatpush.bf16.msra.mxu0 %v6360
  %7842 = vmatmul.bf16.gmra.mxu0 %v4510
  %v7843 = vpop.f32.mrf.mxu0
  %v7844 = vadd.f32 %v7831, %v7843
  %v7845 = vpop.f32.mrf.mxu0
  %7846 = vdwg.mxu0
  %7847 = vmatpush.bf16.msra.mxu0 %v6420
  %7848 = vmatpush.bf16.msra.mxu0 %v6416
  %7849 = vmatpush.bf16.msra.mxu0 %v6412
  %7850 = vmatpush.bf16.msra.mxu0 %v6408
  %7851 = vmatpush.bf16.msra.mxu0 %v6404
  %7852 = vmatpush.bf16.msra.mxu0 %v6400
  %7853 = vmatpush.bf16.msra.mxu0 %v6396
  %7854 = vmatpush.bf16.msra.mxu0 %v6392
  %7855 = vmatmul.bf16.gmra.mxu0 %v4511
  %v7856 = vpop.f32.mrf.mxu0
  %v7857 = vadd.f32 %v7844, %v7856
  %v7858 = vpop.f32.mrf.mxu0
  %7859 = vdwg.mxu0
  %7860 = vmatpush.bf16.msra.mxu0 %v6452
  %7861 = vmatpush.bf16.msra.mxu0 %v6448
  %7862 = vmatpush.bf16.msra.mxu0 %v6444
  %7863 = vmatpush.bf16.msra.mxu0 %v6440
  %7864 = vmatpush.bf16.msra.mxu0 %v6436
  %7865 = vmatpush.bf16.msra.mxu0 %v6432
  %7866 = vmatpush.bf16.msra.mxu0 %v6428
  %7867 = vmatpush.bf16.msra.mxu0 %v6424
  %7868 = vmatmul.bf16.gmra.mxu0 %v4512
  %v7869 = vpop.f32.mrf.mxu0
  %v7870 = vadd.f32 %v7857, %v7869
  %v7871 = vpop.f32.mrf.mxu0
  %7872 = vdwg.mxu0
  %7873 = vmatpush.bf16.msra.mxu0 %v6484
  %7874 = vmatpush.bf16.msra.mxu0 %v6480
  %7875 = vmatpush.bf16.msra.mxu0 %v6476
  %7876 = vmatpush.bf16.msra.mxu0 %v6472
  %7877 = vmatpush.bf16.msra.mxu0 %v6468
  %7878 = vmatpush.bf16.msra.mxu0 %v6464
  %7879 = vmatpush.bf16.msra.mxu0 %v6460
  %7880 = vmatpush.bf16.msra.mxu0 %v6456
  %7881 = vmatmul.bf16.gmra.mxu0 %v4513
  %v7882 = vpop.f32.mrf.mxu0
  %v7883 = vadd.f32 %v7870, %v7882
  %v7884 = vpop.f32.mrf.mxu0
  %7885 = vdwg.mxu0
  %7886 = vmatpush.bf16.msra.mxu0 %v6516
  %7887 = vmatpush.bf16.msra.mxu0 %v6512
  %7888 = vmatpush.bf16.msra.mxu0 %v6508
  %7889 = vmatpush.bf16.msra.mxu0 %v6504
  %7890 = vmatpush.bf16.msra.mxu0 %v6500
  %7891 = vmatpush.bf16.msra.mxu0 %v6496
  %7892 = vmatpush.bf16.msra.mxu0 %v6492
  %7893 = vmatpush.bf16.msra.mxu0 %v6488
  %7894 = vmatmul.bf16.gmra.mxu0 %v4514
  %v7895 = vpop.f32.mrf.mxu0
  %v7896 = vadd.f32 %v7883, %v7895
  %v7897 = vpop.f32.mrf.mxu0
  %7898 = vdwg.mxu0
  %7899 = vmatpush.bf16.msra.mxu0 %v6548
  %7900 = vmatpush.bf16.msra.mxu0 %v6544
  %7901 = vmatpush.bf16.msra.mxu0 %v6540
  %7902 = vmatpush.bf16.msra.mxu0 %v6536
  %7903 = vmatpush.bf16.msra.mxu0 %v6532
  %7904 = vmatpush.bf16.msra.mxu0 %v6528
  %7905 = vmatpush.bf16.msra.mxu0 %v6524
  %7906 = vmatpush.bf16.msra.mxu0 %v6520
  %7907 = vmatmul.bf16.gmra.mxu0 %v4515
  %v7908 = vpop.f32.mrf.mxu0
  %v7909 = vadd.f32 %v7896, %v7908
  %v7910 = vpop.f32.mrf.mxu0
  %7911 = vdwg.mxu0
  %7912 = vmatpush.bf16.msra.mxu0 %v6580
  %7913 = vmatpush.bf16.msra.mxu0 %v6576
  %7914 = vmatpush.bf16.msra.mxu0 %v6572
  %7915 = vmatpush.bf16.msra.mxu0 %v6568
  %7916 = vmatpush.bf16.msra.mxu0 %v6564
  %7917 = vmatpush.bf16.msra.mxu0 %v6560
  %7918 = vmatpush.bf16.msra.mxu0 %v6556
  %7919 = vmatpush.bf16.msra.mxu0 %v6552
  %7920 = vmatmul.bf16.gmra.mxu0 %v4516
  %v7921 = vpop.f32.mrf.mxu0
  %v7922 = vadd.f32 %v7909, %v7921
  %v7923 = vpop.f32.mrf.mxu0
  %7924 = vdwg.mxu0
  %v7925 = vpack.c.bf16 %v3468, %v3468
  %v7926 = vld [vmem:[%s18] sm:$0xff]
  %v7927 = vld [vmem:[%s18 + $0x8] sm:$0xff]
  %v7928 = vld [vmem:[%s18 + $0x10] sm:$0xff]
  %v7929 = vld [vmem:[%s18 + $0x18] sm:$0xff]
  %v7930 = vld [vmem:[%s18 + $0x20] sm:$0xff]
  %v7931 = vld [vmem:[%s18 + $0x28] sm:$0xff]
  %v7932 = vld [vmem:[%s18 + $0x30] sm:$0xff]
  %v7933 = vld [vmem:[%s18 + $0x38] sm:$0xff]
  %v7934 = vld [vmem:[%s18 + $0x40] sm:$0xff]
  %v7935 = vld [vmem:[%s18 + $0x48] sm:$0xff]
  %v7936 = vld [vmem:[%s18 + $0x50] sm:$0xff]
  %v7937 = vld [vmem:[%s18 + $0x58] sm:$0xff]
  %v7938 = vld [vmem:[%s18 + $0x60] sm:$0xff]
  %v7939 = vld [vmem:[%s18 + $0x68] sm:$0xff]
  %v7940 = vld [vmem:[%s18 + $0x70] sm:$0xff]
  %v7941 = vld [vmem:[%s18 + $0x78] sm:$0xff]
  %v7942 = vld [vmem:[%s18 + $0x80] sm:$0xff]
  %v7943 = vld [vmem:[%s18 + $0x88] sm:$0xff]
  %v7944 = vld [vmem:[%s18 + $0x90] sm:$0xff]
  %v7945 = vld [vmem:[%s18 + $0x98] sm:$0xff]
  %v7946 = vld [vmem:[%s18 + $0xa0] sm:$0xff]
  %v7947 = vld [vmem:[%s18 + $0xa8] sm:$0xff]
  %v7948 = vld [vmem:[%s18 + $0xb0] sm:$0xff]
  %v7949 = vld [vmem:[%s18 + $0xb8] sm:$0xff]
  %v7950 = vld [vmem:[%s18 + $0xc0] sm:$0xff]
  %v7951 = vld [vmem:[%s18 + $0xc8] sm:$0xff]
  %v7952 = vld [vmem:[%s18 + $0xd0] sm:$0xff]
  %v7953 = vld [vmem:[%s18 + $0xd8] sm:$0xff]
  %v7954 = vld [vmem:[%s18 + $0xe0] sm:$0xff]
  %v7955 = vld [vmem:[%s18 + $0xe8] sm:$0xff]
  %v7956 = vld [vmem:[%s18 + $0xf0] sm:$0xff]
  %v7957 = vld [vmem:[%s18 + $0xf8] sm:$0xff]
  %v7990 = vunpack.c.l.b16 %v7926
  %v7991 = vunpack.c.h.b16 %v7926
  %v7992 = vunpack.c.l.b16 %v7927
  %v7993 = vunpack.c.h.b16 %v7927
  %v7994 = vunpack.c.l.b16 %v7928
  %v7995 = vunpack.c.h.b16 %v7928
  %v7996 = vunpack.c.l.b16 %v7929
  %v7997 = vunpack.c.h.b16 %v7929
  %v7998 = vunpack.c.l.b16 %v7930
  %v7999 = vunpack.c.h.b16 %v7930
  %v8000 = vunpack.c.l.b16 %v7931
  %v8001 = vunpack.c.h.b16 %v7931
  %v8002 = vunpack.c.l.b16 %v7932
  %v8003 = vunpack.c.h.b16 %v7932
  %v8004 = vunpack.c.l.b16 %v7933
  %v8005 = vunpack.c.h.b16 %v7933
  %v8006 = vunpack.c.l.b16 %v7934
  %v8007 = vunpack.c.h.b16 %v7934
  %v8008 = vunpack.c.l.b16 %v7935
  %v8009 = vunpack.c.h.b16 %v7935
  %v8010 = vunpack.c.l.b16 %v7936
  %v8011 = vunpack.c.h.b16 %v7936
  %v8012 = vunpack.c.l.b16 %v7937
  %v8013 = vunpack.c.h.b16 %v7937
  %v8014 = vunpack.c.l.b16 %v7938
  %v8015 = vunpack.c.h.b16 %v7938
  %v8016 = vunpack.c.l.b16 %v7939
  %v8017 = vunpack.c.h.b16 %v7939
  %v8018 = vunpack.c.l.b16 %v7940
  %v8019 = vunpack.c.h.b16 %v7940
  %v8020 = vunpack.c.l.b16 %v7941
  %v8021 = vunpack.c.h.b16 %v7941
  %v8022 = vunpack.c.l.b16 %v7942
  %v8023 = vunpack.c.h.b16 %v7942
  %v8024 = vunpack.c.l.b16 %v7943
  %v8025 = vunpack.c.h.b16 %v7943
  %v8026 = vunpack.c.l.b16 %v7944
  %v8027 = vunpack.c.h.b16 %v7944
  %v8028 = vunpack.c.l.b16 %v7945
  %v8029 = vunpack.c.h.b16 %v7945
  %v8030 = vunpack.c.l.b16 %v7946
  %v8031 = vunpack.c.h.b16 %v7946
  %v8032 = vunpack.c.l.b16 %v7947
  %v8033 = vunpack.c.h.b16 %v7947
  %v8034 = vunpack.c.l.b16 %v7948
  %v8035 = vunpack.c.h.b16 %v7948
  %v8036 = vunpack.c.l.b16 %v7949
  %v8037 = vunpack.c.h.b16 %v7949
  %v8038 = vunpack.c.l.b16 %v7950
  %v8039 = vunpack.c.h.b16 %v7950
  %v8040 = vunpack.c.l.b16 %v7951
  %v8041 = vunpack.c.h.b16 %v7951
  %v8042 = vunpack.c.l.b16 %v7952
  %v8043 = vunpack.c.h.b16 %v7952
  %v8044 = vunpack.c.l.b16 %v7953
  %v8045 = vunpack.c.h.b16 %v7953
  %v8046 = vunpack.c.l.b16 %v7954
  %v8047 = vunpack.c.h.b16 %v7954
  %v8048 = vunpack.c.l.b16 %v7955
  %v8049 = vunpack.c.h.b16 %v7955
  %v8050 = vunpack.c.l.b16 %v7956
  %v8051 = vunpack.c.h.b16 %v7956
  %v8052 = vunpack.c.l.b16 %v7957
  %v8053 = vunpack.c.h.b16 %v7957
  %v8054 = vpack.c.b16 %v7994, %v7990
  %v8055 = vpack.c.b16 %v7995, %v7991
  %v8056 = vpack.c.b16 %v7996, %v7992
  %v8057 = vpack.c.b16 %v7997, %v7993
  %v8058 = vpack.c.b16 %v8002, %v7998
  %v8059 = vpack.c.b16 %v8003, %v7999
  %v8060 = vpack.c.b16 %v8004, %v8000
  %v8061 = vpack.c.b16 %v8005, %v8001
  %v8062 = vpack.c.b16 %v8010, %v8006
  %v8063 = vpack.c.b16 %v8011, %v8007
  %v8064 = vpack.c.b16 %v8012, %v8008
  %v8065 = vpack.c.b16 %v8013, %v8009
  %v8066 = vpack.c.b16 %v8018, %v8014
  %v8067 = vpack.c.b16 %v8019, %v8015
  %v8068 = vpack.c.b16 %v8020, %v8016
  %v8069 = vpack.c.b16 %v8021, %v8017
  %v8070 = vpack.c.b16 %v8026, %v8022
  %v8071 = vpack.c.b16 %v8027, %v8023
  %v8072 = vpack.c.b16 %v8028, %v8024
  %v8073 = vpack.c.b16 %v8029, %v8025
  %v8074 = vpack.c.b16 %v8034, %v8030
  %v8075 = vpack.c.b16 %v8035, %v8031
  %v8076 = vpack.c.b16 %v8036, %v8032
  %v8077 = vpack.c.b16 %v8037, %v8033
  %v8078 = vpack.c.b16 %v8042, %v8038
  %v8079 = vpack.c.b16 %v8043, %v8039
  %v8080 = vpack.c.b16 %v8044, %v8040
  %v8081 = vpack.c.b16 %v8045, %v8041
  %v8082 = vpack.c.b16 %v8050, %v8046
  %v8083 = vpack.c.b16 %v8051, %v8047
  %v8084 = vpack.c.b16 %v8052, %v8048
  %v8085 = vpack.c.b16 %v8053, %v8049
  %8118 = vmatpush.bf16.msra.mxu0 %v8082
  %8119 = vmatpush.bf16.msra.mxu0 %v8078
  %8120 = vmatpush.bf16.msra.mxu0 %v8074
  %8121 = vmatpush.bf16.msra.mxu0 %v8070
  %8122 = vmatpush.bf16.msra.mxu0 %v8066
  %8123 = vmatpush.bf16.msra.mxu0 %v8062
  %8124 = vmatpush.bf16.msra.mxu0 %v8058
  %8125 = vmatpush.bf16.msra.mxu0 %v8054
  %8126 = vmatmul.bf16.gmra.mxu0 %v7925
  %v8127 = vpop.f32.mrf.mxu0
  %v8128 = vadd.f32 0.0, %v8127
  %v8129 = vpop.f32.mrf.mxu0
  %8130 = vdwg.mxu0
  %8131 = vmatpush.bf16.msra.mxu0 %v8083
  %8132 = vmatpush.bf16.msra.mxu0 %v8079
  %8133 = vmatpush.bf16.msra.mxu0 %v8075
  %8134 = vmatpush.bf16.msra.mxu0 %v8071
  %8135 = vmatpush.bf16.msra.mxu0 %v8067
  %8136 = vmatpush.bf16.msra.mxu0 %v8063
  %8137 = vmatpush.bf16.msra.mxu0 %v8059
  %8138 = vmatpush.bf16.msra.mxu0 %v8055
  %8139 = vmatmul.bf16.gmra.mxu0 %v7925
  %v8140 = vpop.f32.mrf.mxu0
  %v8141 = vadd.f32 0.0, %v8140
  %v8142 = vpop.f32.mrf.mxu0
  %8143 = vdwg.mxu0
  %8144 = vmatpush.bf16.msra.mxu0 %v8084
  %8145 = vmatpush.bf16.msra.mxu0 %v8080
  %8146 = vmatpush.bf16.msra.mxu0 %v8076
  %8147 = vmatpush.bf16.msra.mxu0 %v8072
  %8148 = vmatpush.bf16.msra.mxu0 %v8068
  %8149 = vmatpush.bf16.msra.mxu0 %v8064
  %8150 = vmatpush.bf16.msra.mxu0 %v8060
  %8151 = vmatpush.bf16.msra.mxu0 %v8056
  %8152 = vmatmul.bf16.gmra.mxu0 %v7925
  %v8153 = vpop.f32.mrf.mxu0
  %v8154 = vadd.f32 0.0, %v8153
  %v8155 = vpop.f32.mrf.mxu0
  %8156 = vdwg.mxu0
  %8157 = vmatpush.bf16.msra.mxu0 %v8085
  %8158 = vmatpush.bf16.msra.mxu0 %v8081
  %8159 = vmatpush.bf16.msra.mxu0 %v8077
  %8160 = vmatpush.bf16.msra.mxu0 %v8073
  %8161 = vmatpush.bf16.msra.mxu0 %v8069
  %8162 = vmatpush.bf16.msra.mxu0 %v8065
  %8163 = vmatpush.bf16.msra.mxu0 %v8061
  %8164 = vmatpush.bf16.msra.mxu0 %v8057
  %8165 = vmatmul.bf16.gmra.mxu0 %v7925
  %v8166 = vpop.f32.mrf.mxu0
  %v8167 = vadd.f32 0.0, %v8166
  %v8168 = vpop.f32.mrf.mxu0
  %8169 = vdwg.mxu0
  %v8170 = vadd.f32 %v7298, %v8128
  %v8171 = vadd.f32 %v7506, %v8141
  %v8172 = vadd.f32 %v7714, %v8154
  %v8173 = vadd.f32 %v7922, %v8167
  %v8174 = vld [vmem:[%s19] sm:$0xf]
  %v8176 = vperm.slane %v8174, 0
  %v8177 = vperm.slane %v8174, 1
  %v8178 = vperm.slane %v8174, 2
  %v8179 = vperm.slane %v8174, 3
  %v8184 = vadd.f32 %v8170, %v8176
  %v8185 = vadd.f32 %v8171, %v8177
  %v8186 = vadd.f32 %v8172, %v8178
  %v8187 = vadd.f32 %v8173, %v8179
  %v8188 = vmax.f32 %v8184, 0.0
  %v8189 = vmax.f32 %v8185, 0.0
  %v8190 = vmax.f32 %v8186, 0.0
  %v8191 = vmax.f32 %v8187, 0.0
  %v8192 = vpack.c.bf16 %v8188, %v8188
  %v8193 = vpack.c.bf16 %v8189, %v8189
  %v8194 = vpack.c.bf16 %v8190, %v8190
  %v8195 = vpack.c.bf16 %v8191, %v8191
  %v8196 = vld [vmem:[%s20] sm:$0xf]
  %v8197 = vld [vmem:[%s20 + $0x4] sm:$0xf]
  %v8198 = vld [vmem:[%s20 + $0x8] sm:$0xf]
  %v8199 = vld [vmem:[%s20 + $0xc] sm:$0xf]
  %v8200 = vld [vmem:[%s20 + $0x10] sm:$0xf]
  %v8201 = vld [vmem:[%s20 + $0x14] sm:$0xf]
  %v8202 = vld [vmem:[%s20 + $0x18] sm:$0xf]
  %v8203 = vld [vmem:[%s20 + $0x1c] sm:$0xf]
  %v8204 = vld [vmem:[%s20 + $0x20] sm:$0xf]
  %v8205 = vld [vmem:[%s20 + $0x24] sm:$0xf]
  %v8206 = vld [vmem:[%s20 + $0x28] sm:$0xf]
  %v8207 = vld [vmem:[%s20 + $0x2c] sm:$0xf]
  %v8208 = vld [vmem:[%s20 + $0x30] sm:$0xf]
  %v8209 = vld [vmem:[%s20 + $0x34] sm:$0xf]
  %v8210 = vld [vmem:[%s20 + $0x38] sm:$0xf]
  %v8211 = vld [vmem:[%s20 + $0x3c] sm:$0xf]
  %v8212 = vld [vmem:[%s20 + $0x40] sm:$0xf]
  %v8213 = vld [vmem:[%s20 + $0x44] sm:$0xf]
  %v8214 = vld [vmem:[%s20 + $0x48] sm:$0xf]
  %v8215 = vld [vmem:[%s20 + $0x4c] sm:$0xf]
  %v8216 = vld [vmem:[%s20 + $0x50] sm:$0xf]
  %v8217 = vld [vmem:[%s20 + $0x54] sm:$0xf]
  %v8218 = vld [vmem:[%s20 + $0x58] sm:$0xf]
  %v8219 = vld [vmem:[%s20 + $0x5c] sm:$0xf]
  %v8220 = vld [vmem:[%s20 + $0x60] sm:$0xf]
  %v8221 = vld [vmem:[%s20 + $0x64] sm:$0xf]
  %v8222 = vld [vmem:[%s20 + $0x68] sm:$0xf]
  %v8223 = vld [vmem:[%s20 + $0x6c] sm:$0xf]
  %v8224 = vld [vmem:[%s20 + $0x70] sm:$0xf]
  %v8225 = vld [vmem:[%s20 + $0x74] sm:$0xf]
  %v8226 = vld [vmem:[%s20 + $0x78] sm:$0xf]
  %v8227 = vld [vmem:[%s20 + $0x7c] sm:$0xf]
  %v8228 = vld [vmem:[%s20 + $0x80] sm:$0xf]
  %v8229 = vld [vmem:[%s20 + $0x84] sm:$0xf]
  %v8230 = vld [vmem:[%s20 + $0x88] sm:$0xf]
  %v8231 = vld [vmem:[%s20 + $0x8c] sm:$0xf]
  %v8232 = vld [vmem:[%s20 + $0x90] sm:$0xf]
  %v8233 = vld [vmem:[%s20 + $0x94] sm:$0xf]
  %v8234 = vld [vmem:[%s20 + $0x98] sm:$0xf]
  %v8235 = vld [vmem:[%s20 + $0x9c] sm:$0xf]
  %v8236 = vld [vmem:[%s20 + $0xa0] sm:$0xf]
  %v8237 = vld [vmem:[%s20 + $0xa4] sm:$0xf]
  %v8238 = vld [vmem:[%s20 + $0xa8] sm:$0xf]
  %v8239 = vld [vmem:[%s20 + $0xac] sm:$0xf]
  %v8240 = vld [vmem:[%s20 + $0xb0] sm:$0xf]
  %v8241 = vld [vmem:[%s20 + $0xb4] sm:$0xf]
  %v8242 = vld [vmem:[%s20 + $0xb8] sm:$0xf]
  %v8243 = vld [vmem:[%s20 + $0xbc] sm:$0xf]
  %v8244 = vld [vmem:[%s20 + $0xc0] sm:$0xf]
  %v8245 = vld [vmem:[%s20 + $0xc4] sm:$0xf]
  %v8246 = vld [vmem:[%s20 + $0xc8] sm:$0xf]
  %v8247 = vld [vmem:[%s20 + $0xcc] sm:$0xf]
  %v8248 = vld [vmem:[%s20 + $0xd0] sm:$0xf]
  %v8249 = vld [vmem:[%s20 + $0xd4] sm:$0xf]
  %v8250 = vld [vmem:[%s20 + $0xd8] sm:$0xf]
  %v8251 = vld [vmem:[%s20 + $0xdc] sm:$0xf]
  %v8252 = vld [vmem:[%s20 + $0xe0] sm:$0xf]
  %v8253 = vld [vmem:[%s20 + $0xe4] sm:$0xf]
  %v8254 = vld [vmem:[%s20 + $0xe8] sm:$0xf]
  %v8255 = vld [vmem:[%s20 + $0xec] sm:$0xf]
  %v8256 = vld [vmem:[%s20 + $0xf0] sm:$0xf]
  %v8257 = vld [vmem:[%s20 + $0xf4] sm:$0xf]
  %v8258 = vld [vmem:[%s20 + $0xf8] sm:$0xf]
  %v8259 = vld [vmem:[%s20 + $0xfc] sm:$0xf]
  %v8260 = vld [vmem:[%s21] sm:$0x1]
  %v8262 = vperm.slane %v8260, 0
  %v8328 = vunpack.c.l.b16 %v8196
  %v8329 = vunpack.c.l.b16 %v8197
  %v8330 = vunpack.c.l.b16 %v8198
  %v8331 = vunpack.c.l.b16 %v8199
  %v8332 = vunpack.c.l.b16 %v8200
  %v8333 = vunpack.c.l.b16 %v8201
  %v8334 = vunpack.c.l.b16 %v8202
  %v8335 = vunpack.c.l.b16 %v8203
  %v8336 = vunpack.c.l.b16 %v8204
  %v8337 = vunpack.c.l.b16 %v8205
  %v8338 = vunpack.c.l.b16 %v8206
  %v8339 = vunpack.c.l.b16 %v8207
  %v8340 = vunpack.c.l.b16 %v8208
  %v8341 = vunpack.c.l.b16 %v8209
  %v8342 = vunpack.c.l.b16 %v8210
  %v8343 = vunpack.c.l.b16 %v8211
  %v8344 = vunpack.c.l.b16 %v8212
  %v8345 = vunpack.c.l.b16 %v8213
  %v8346 = vunpack.c.l.b16 %v8214
  %v8347 = vunpack.c.l.b16 %v8215
  %v8348 = vunpack.c.l.b16 %v8216
  %v8349 = vunpack.c.l.b16 %v8217
  %v8350 = vunpack.c.l.b16 %v8218
  %v8351 = vunpack.c.l.b16 %v8219
  %v8352 = vunpack.c.l.b16 %v8220
  %v8353 = vunpack.c.l.b16 %v8221
  %v8354 = vunpack.c.l.b16 %v8222
  %v8355 = vunpack.c.l.b16 %v8223
  %v8356 = vunpack.c.l.b16 %v8224
  %v8357 = vunpack.c.l.b16 %v8225
  %v8358 = vunpack.c.l.b16 %v8226
  %v8359 = vunpack.c.l.b16 %v8227
  %v8360 = vunpack.c.l.b16 %v8228
  %v8361 = vunpack.c.l.b16 %v8229
  %v8362 = vunpack.c.l.b16 %v8230
  %v8363 = vunpack.c.l.b16 %v8231
  %v8364 = vunpack.c.l.b16 %v8232
  %v8365 = vunpack.c.l.b16 %v8233
  %v8366 = vunpack.c.l.b16 %v8234
  %v8367 = vunpack.c.l.b16 %v8235
  %v8368 = vunpack.c.l.b16 %v8236
  %v8369 = vunpack.c.l.b16 %v8237
  %v8370 = vunpack.c.l.b16 %v8238
  %v8371 = vunpack.c.l.b16 %v8239
  %v8372 = vunpack.c.l.b16 %v8240
  %v8373 = vunpack.c.l.b16 %v8241
  %v8374 = vunpack.c.l.b16 %v8242
  %v8375 = vunpack.c.l.b16 %v8243
  %v8376 = vunpack.c.l.b16 %v8244
  %v8377 = vunpack.c.l.b16 %v8245
  %v8378 = vunpack.c.l.b16 %v8246
  %v8379 = vunpack.c.l.b16 %v8247
  %v8380 = vunpack.c.l.b16 %v8248
  %v8381 = vunpack.c.l.b16 %v8249
  %v8382 = vunpack.c.l.b16 %v8250
  %v8383 = vunpack.c.l.b16 %v8251
  %v8384 = vunpack.c.l.b16 %v8252
  %v8385 = vunpack.c.l.b16 %v8253
  %v8386 = vunpack.c.l.b16 %v8254
  %v8387 = vunpack.c.l.b16 %v8255
  %v8388 = vunpack.c.l.b16 %v8256
  %v8389 = vunpack.c.l.b16 %v8257
  %v8390 = vunpack.c.l.b16 %v8258
  %v8391 = vunpack.c.l.b16 %v8259
  %v8392 = vpack.c.b16 %v8329, %v8328
  %v8393 = vpack.c.b16 %v8331, %v8330
  %v8394 = vpack.c.b16 %v8333, %v8332
  %v8395 = vpack.c.b16 %v8335, %v8334
  %v8396 = vpack.c.b16 %v8337, %v8336
  %v8397 = vpack.c.b16 %v8339, %v8338
  %v8398 = vpack.c.b16 %v8341, %v8340
  %v8399 = vpack.c.b16 %v8343, %v8342
  %v8400 = vpack.c.b16 %v8345, %v8344
  %v8401 = vpack.c.b16 %v8347, %v8346
  %v8402 = vpack.c.b16 %v8349, %v8348
  %v8403 = vpack.c.b16 %v8351, %v8350
  %v8404 = vpack.c.b16 %v8353, %v8352
  %v8405 = vpack.c.b16 %v8355, %v8354
  %v8406 = vpack.c.b16 %v8357, %v8356
  %v8407 = vpack.c.b16 %v8359, %v8358
  %v8408 = vpack.c.b16 %v8361, %v8360
  %v8409 = vpack.c.b16 %v8363, %v8362
  %v8410 = vpack.c.b16 %v8365, %v8364
  %v8411 = vpack.c.b16 %v8367, %v8366
  %v8412 = vpack.c.b16 %v8369, %v8368
  %v8413 = vpack.c.b16 %v8371, %v8370
  %v8414 = vpack.c.b16 %v8373, %v8372
  %v8415 = vpack.c.b16 %v8375, %v8374
  %v8416 = vpack.c.b16 %v8377, %v8376
  %v8417 = vpack.c.b16 %v8379, %v8378
  %v8418 = vpack.c.b16 %v8381, %v8380
  %v8419 = vpack.c.b16 %v8383, %v8382
  %v8420 = vpack.c.b16 %v8385, %v8384
  %v8421 = vpack.c.b16 %v8387, %v8386
  %v8422 = vpack.c.b16 %v8389, %v8388
  %v8423 = vpack.c.b16 %v8391, %v8390
  %8456 = vmatpush.bf16.msra.mxu0 %v8399
  %8457 = vmatpush.bf16.msra.mxu0 %v8398
  %8458 = vmatpush.bf16.msra.mxu0 %v8397
  %8459 = vmatpush.bf16.msra.mxu0 %v8396
  %8460 = vmatpush.bf16.msra.mxu0 %v8395
  %8461 = vmatpush.bf16.msra.mxu0 %v8394
  %8462 = vmatpush.bf16.msra.mxu0 %v8393
  %8463 = vmatpush.bf16.msra.mxu0 %v8392
  %8464 = vmatmul.bf16.gmra.mxu0 %v8192
  %v8465 = vpop.f32.mrf.mxu0
  %v8466 = vadd.f32 %v8262, %v8465
  %v8467 = vpop.f32.mrf.mxu0
  %8468 = vdwg.mxu0
  %8469 = vmatpush.bf16.msra.mxu0 %v8407
  %8470 = vmatpush.bf16.msra.mxu0 %v8406
  %8471 = vmatpush.bf16.msra.mxu0 %v8405
  %8472 = vmatpush.bf16.msra.mxu0 %v8404
  %8473 = vmatpush.bf16.msra.mxu0 %v8403
  %8474 = vmatpush.bf16.msra.mxu0 %v8402
  %8475 = vmatpush.bf16.msra.mxu0 %v8401
  %8476 = vmatpush.bf16.msra.mxu0 %v8400
  %8477 = vmatmul.bf16.gmra.mxu0 %v8193
  %v8478 = vpop.f32.mrf.mxu0
  %v8479 = vadd.f32 %v8466, %v8478
  %v8480 = vpop.f32.mrf.mxu0
  %8481 = vdwg.mxu0
  %8482 = vmatpush.bf16.msra.mxu0 %v8415
  %8483 = vmatpush.bf16.msra.mxu0 %v8414
  %8484 = vmatpush.bf16.msra.mxu0 %v8413
  %8485 = vmatpush.bf16.msra.mxu0 %v8412
  %8486 = vmatpush.bf16.msra.mxu0 %v8411
  %8487 = vmatpush.bf16.msra.mxu0 %v8410
  %8488 = vmatpush.bf16.msra.mxu0 %v8409
  %8489 = vmatpush.bf16.msra.mxu0 %v8408
  %8490 = vmatmul.bf16.gmra.mxu0 %v8194
  %v8491 = vpop.f32.mrf.mxu0
  %v8492 = vadd.f32 %v8479, %v8491
  %v8493 = vpop.f32.mrf.mxu0
  %8494 = vdwg.mxu0
  %8495 = vmatpush.bf16.msra.mxu0 %v8423
  %8496 = vmatpush.bf16.msra.mxu0 %v8422
  %8497 = vmatpush.bf16.msra.mxu0 %v8421
  %8498 = vmatpush.bf16.msra.mxu0 %v8420
  %8499 = vmatpush.bf16.msra.mxu0 %v8419
  %8500 = vmatpush.bf16.msra.mxu0 %v8418
  %8501 = vmatpush.bf16.msra.mxu0 %v8417
  %8502 = vmatpush.bf16.msra.mxu0 %v8416
  %8503 = vmatmul.bf16.gmra.mxu0 %v8195
  %v8504 = vpop.f32.mrf.mxu0
  %v8505 = vadd.f32 %v8492, %v8504
  %v8506 = vpop.f32.mrf.mxu0
  %8507 = vdwg.mxu0
  %v8508 = vmax.f32 %v8505, 0.0
  %v8509 = vpack.c.bf16 %v8508, %v8508
  %v8510 = vld [vmem:[%s22] sm:$0xf]
  %v8511 = vld [vmem:[%s22 + $0x4] sm:$0xf]
  %v8512 = vld [vmem:[%s22 + $0x8] sm:$0xf]
  %v8513 = vld [vmem:[%s22 + $0xc] sm:$0xf]
  %v8514 = vld [vmem:[%s22 + $0x10] sm:$0xf]
  %v8515 = vld [vmem:[%s22 + $0x14] sm:$0xf]
  %v8516 = vld [vmem:[%s22 + $0x18] sm:$0xf]
  %v8517 = vld [vmem:[%s22 + $0x1c] sm:$0xf]
  %v8518 = vld [vmem:[%s22 + $0x20] sm:$0xf]
  %v8519 = vld [vmem:[%s22 + $0x24] sm:$0xf]
  %v8520 = vld [vmem:[%s22 + $0x28] sm:$0xf]
  %v8521 = vld [vmem:[%s22 + $0x2c] sm:$0xf]
  %v8522 = vld [vmem:[%s22 + $0x30] sm:$0xf]
  %v8523 = vld [vmem:[%s22 + $0x34] sm:$0xf]
  %v8524 = vld [vmem:[%s22 + $0x38] sm:$0xf]
  %v8525 = vld [vmem:[%s22 + $0x3c] sm:$0xf]
  %v8526 = vld [vmem:[%s23] sm:$0x1]
  %v8528 = vperm.slane %v8526, 0
  %v8546 = vunpack.c.l.b16 %v8510
  %v8547 = vunpack.c.l.b16 %v8511
  %v8548 = vunpack.c.l.b16 %v8512
  %v8549 = vunpack.c.l.b16 %v8513
  %v8550 = vunpack.c.l.b16 %v8514
  %v8551 = vunpack.c.l.b16 %v8515
  %v8552 = vunpack.c.l.b16 %v8516
  %v8553 = vunpack.c.l.b16 %v8517
  %v8554 = vunpack.c.l.b16 %v8518
  %v8555 = vunpack.c.l.b16 %v8519
  %v8556 = vunpack.c.l.b16 %v8520
  %v8557 = vunpack.c.l.b16 %v8521
  %v8558 = vunpack.c.l.b16 %v8522
  %v8559 = vunpack.c.l.b16 %v8523
  %v8560 = vunpack.c.l.b16 %v8524
  %v8561 = vunpack.c.l.b16 %v8525
  %v8562 = vpack.c.b16 %v8547, %v8546
  %v8563 = vpack.c.b16 %v8549, %v8548
  %v8564 = vpack.c.b16 %v8551, %v8550
  %v8565 = vpack.c.b16 %v8553, %v8552
  %v8566 = vpack.c.b16 %v8555, %v8554
  %v8567 = vpack.c.b16 %v8557, %v8556
  %v8568 = vpack.c.b16 %v8559, %v8558
  %v8569 = vpack.c.b16 %v8561, %v8560
  %8578 = vmatpush.bf16.msra.mxu0 %v8569
  %8579 = vmatpush.bf16.msra.mxu0 %v8568
  %8580 = vmatpush.bf16.msra.mxu0 %v8567
  %8581 = vmatpush.bf16.msra.mxu0 %v8566
  %8582 = vmatpush.bf16.msra.mxu0 %v8565
  %8583 = vmatpush.bf16.msra.mxu0 %v8564
  %8584 = vmatpush.bf16.msra.mxu0 %v8563
  %8585 = vmatpush.bf16.msra.mxu0 %v8562
  %8586 = vmatmul.bf16.gmra.mxu0 %v8509
  %v8587 = vpop.f32.mrf.mxu0
  %v8588 = vadd.f32 %v8528, %v8587
  %v8589 = vpop.f32.mrf.mxu0
  %8590 = vdwg.mxu0
  %8591 = vst [vmem:[%s24] sm:$0xff] %v8588
  // Predicated region
  $region112: #{improved_hybrid_forward.3} parent=0 // pred_check
    _
  $region113: #{improved_hybrid_forward.3} parent=0 // pred_check_branch
    %8593 = sbr.rel (0) target = $region115
  $region114: #{improved_hybrid_forward.3} parent=0 // pred_region
    _
  $region115: #{improved_hybrid_forward.3} parent=0 // pred_fallthru
    _
  // Predicated region
  $region116: #{improved_hybrid_forward.3} parent=0 // pred_check
    _
  $region117: #{improved_hybrid_forward.3} parent=0 // pred_check_branch
    %8595 = sbr.rel (0) target = $region119
  $region118: #{improved_hybrid_forward.3} parent=0 // pred_region
    _
  $region119: #{improved_hybrid_forward.3} parent=0 // pred_fallthru
    _

</llo_original>
